<compile_context>
chip_gen: v5e
topology: v5e:2x2
jax: 0.10.0
libtpu: 0.0.40
codegen_flags: <defaults>
</compile_context>

<pallas_src>
import math
import numpy as np
import jax
import jax.numpy as jnp
from jax import lax
from jax.experimental import pallas as pl
from jax.experimental.pallas import tpu as pltpu

# ----------------------------- model dimensions -----------------------------
B = 2              # batch
D = 32             # embedding_size
H = 8              # nhead
DH = D // H        # head dim
FF = 2048          # PyTorch TransformerEncoder/DecoderLayer default dim_feedforward
L1 = 8             # max_len1 (= max_sentences, PE length)
L2 = 8             # max_len2
S = L1             # sentences per example (L1 == L2 in this config)
T = 16             # tokens per sentence (synthetic sbert sequence length)
NUM_LABELS = 3
D2 = D // 2
NEG = -1e9
N = B * S          # folded sequence length (batch folded into rows)
R = 2 * B * S      # pooled sentence rows (encoder stack + decoder stack)
OUT_LANES = 128    # lane-dense output slab width

assert L1 == L2 and D % H == 0


# ------------------------- in-kernel helpers -------------------------
def _block_diag_mask(n_rows, row_blk, n_cols, col_blk):
    """Boolean (n_rows, n_cols): True where row-block index == col-block index."""
    assert n_rows // row_blk == n_cols // col_blk
    ri = lax.broadcasted_iota(jnp.int32, (n_rows, n_cols), 0)
    ci = lax.broadcasted_iota(jnp.int32, (n_rows, n_cols), 1)
    out = None
    for b in range(n_rows // row_blk):
        t = ((ri >= b * row_blk) & (ri < (b + 1) * row_blk)
             & (ci >= b * col_blk) & (ci < (b + 1) * col_blk))
        out = t if out is None else out | t
    return out


def layernorm(x, w_ref, b_ref):
    mu = jnp.mean(x, axis=-1, keepdims=True)
    xc = x - mu
    var = jnp.mean(xc * xc, axis=-1, keepdims=True)
    return xc * lax.rsqrt(var + 1e-5) * w_ref[...] + b_ref[...]


def ffn(x, w1_ref, b1_ref, w2_ref, b2_ref):
    # weights are pre-transposed (in, out) and bf16; accumulate in f32.
    h = jnp.dot(x.astype(jnp.bfloat16), w1_ref[...],
                preferred_element_type=jnp.float32) + b1_ref[...]
    h = jnp.maximum(h, 0.0)
    return jnp.dot(h.astype(jnp.bfloat16), w2_ref[...],
                   preferred_element_type=jnp.float32) + b2_ref[...]


def mha(xq, xkv, qkv_w_ref, qkv_b_ref, out_w_ref, out_b_ref,
        add_mask, head_mask_k, head_mask_v, seg):
    """Multi-head attention, all heads + all (folded) batch in 3 MXU matmuls.

    xq: (Nq, D) f32 queries, xkv: (Nk, D) f32 keys/values, batch folded into rows.
    add_mask: (Nq, Nk) additive f32 mask (already includes the batch block-diagonal).
    """
    qkv_w = qkv_w_ref[...]                                   # (D, 3D) bf16, pre-transposed
    qkv_b = qkv_b_ref[...]                                   # (1, 3D) f32
    q = jnp.dot(xq.astype(jnp.bfloat16), qkv_w[:, 0:D],
                preferred_element_type=jnp.float32) + qkv_b[:, 0:D]
    kv = jnp.dot(xkv.astype(jnp.bfloat16), qkv_w[:, D:3 * D],
                 preferred_element_type=jnp.float32) + qkv_b[:, D:3 * D]
    k = kv[:, 0:D]
    v = kv[:, D:2 * D]
    q = q * (1.0 / math.sqrt(DH))

    # Per-head block-diagonal expansions: head h owns lanes [h*Nk, (h+1)*Nk) of the
    # score tile, so scores / values for all heads are single matmuls.
    kbd = jnp.where(head_mask_k, jnp.concatenate([k.T] * H, axis=1), 0.0)   # (D, H*Nk)
    vbd = jnp.where(head_mask_v, jnp.concatenate([v] * H, axis=0), 0.0)     # (H*Nk, D)

    s = jnp.dot(q.astype(jnp.bfloat16), kbd.astype(jnp.bfloat16),
                preferred_element_type=jnp.float32)                          # (Nq, H*Nk)
    s = s + jnp.concatenate([add_mask] * H, axis=1)
    # Softmax per 16-lane head segment; subtracting the per-row global max is valid
    # because it is constant across every segment of that row.
    s = s - jnp.max(s, axis=-1, keepdims=True)
    p = jnp.exp(s)
    denom = jnp.dot(p, seg, preferred_element_type=jnp.float32)              # segment sums
    p = p * pl.reciprocal(denom, approx=True)

    o = jnp.dot(p.astype(jnp.bfloat16), vbd.astype(jnp.bfloat16),
                preferred_element_type=jnp.float32)                          # (Nq, D)
    return jnp.dot(o.astype(jnp.bfloat16), out_w_ref[...],
                   preferred_element_type=jnp.float32) + out_b_ref[...]


# ------------------------- the fused kernel -------------------------
def splitbert_kernel(cnt1_ref, cnt2_ref,                       # scalar prefetch (SMEM)
                     tok_ref, tlen_ref, pe_ref,
                     wfc, bfc,
                     e_qkv_w, e_qkv_b, e_out_w, e_out_b,
                     e_ff1_w, e_ff1_b, e_ff2_w, e_ff2_b,
                     e_ln1_w, e_ln1_b, e_ln2_w, e_ln2_b,
                     d_qkv_w, d_qkv_b, d_out_w, d_out_b,
                     c_qkv_w, c_qkv_b, c_out_w, c_out_b,
                     d_ff1_w, d_ff1_b, d_ff2_w, d_ff2_b,
                     d_ln1_w, d_ln1_b, d_ln2_w, d_ln2_b, d_ln3_w, d_ln3_b,
                     cls1_w, cls1_b, cls2_w, cls2_b,
                     out_ref):
    # ---- mean_pooling over tokens, both stacks at once, as one masked matmul ----
    gi = lax.broadcasted_iota(jnp.int32, (R, R * T), 0)
    ri = lax.broadcasted_iota(jnp.int32, (R, R * T), 1)
    tlen = tlen_ref[...]                                       # (R, 1) int32 token lengths
    start = gi * T
    w_pool = jnp.where((ri >= start) & (ri < start + jnp.minimum(tlen, T)), 1.0, 0.0)
    sum_emb = jnp.dot(w_pool, tok_ref[...], preferred_element_type=jnp.float32)   # (R, D)
    pooled = sum_emb / jnp.maximum(tlen.astype(jnp.float32), 1e-9)   # clamp as in mean_pooling

    # zero out sentences past sentence_count (reference zero-pads BEFORE fc_layer)
    row = lax.broadcasted_iota(jnp.int32, (R, 1), 0)
    counts = [cnt1_ref[b] for b in range(B)] + [cnt2_ref[b] for b in range(B)]
    valid = None
    for blk, c in enumerate(counts):
        t = (row >= blk * S) & (row < blk * S + c)
        valid = t if valid is None else valid | t
    pooled = pooled * jnp.where(valid, 1.0, 0.0)

    # fc_layer (padded rows -> bias, as in the reference)
    emb = jnp.dot(pooled.astype(jnp.bfloat16), wfc[...],
                  preferred_element_type=jnp.float32) + bfc[...]
    enc_x = emb[0:N, :]                                        # (N, D) encoder sentence embs
    dec_x = emb[N:2 * N, :]                                    # (N, D) decoder sentence embs

    # ---- additive attention masks (batch block-diagonal + causal + key padding) ----
    qi = lax.broadcasted_iota(jnp.int32, (N, N), 0)
    ki = lax.broadcasted_iota(jnp.int32, (N, N), 1)

    def folded_self_mask(cnt_ref):
        allowed = None
        for b in range(B):
            t = ((qi >= b * S) & (qi < (b + 1) * S) & (ki >= b * S)
                 & (ki <= qi) & (ki < b * S + cnt_ref[b]))
            allowed = t if allowed is None else allowed | t
        return jnp.where(allowed, 0.0, NEG)

    enc_mask = folded_self_mask(cnt1_ref)
    dec_mask = folded_self_mask(cnt2_ref)
    # decoder cross-attn: no memory mask in the reference -> only block cross-example
    cross_mask = jnp.where(_block_diag_mask(N, S, N, S), 0.0, NEG)

    head_mask_k = _block_diag_mask(D, DH, H * N, N)            # (D, 128)
    head_mask_v = _block_diag_mask(H * N, N, D, DH)            # (128, D)
    seg = jnp.where(_block_diag_mask(H * N, N, H * N, N), 1.0, 0.0)   # (128, 128)

    # ---- PositionalEncoding + 1-layer TransformerEncoder (post-norm) ----
    x = enc_x + jnp.concatenate([pe_ref[...]] * B, axis=0)     # dropout = eval identity
    x = layernorm(x + mha(x, x, e_qkv_w, e_qkv_b, e_out_w, e_out_b,
                          enc_mask, head_mask_k, head_mask_v, seg), e_ln1_w, e_ln1_b)
    x = layernorm(x + ffn(x, e_ff1_w, e_ff1_b, e_ff2_w, e_ff2_b), e_ln2_w, e_ln2_b)
    memory = x

    # ---- 1-layer TransformerDecoder (post-norm) ----
    y = dec_x
    y = layernorm(y + mha(y, y, d_qkv_w, d_qkv_b, d_out_w, d_out_b,
                          dec_mask, head_mask_k, head_mask_v, seg), d_ln1_w, d_ln1_b)
    y = layernorm(y + mha(y, memory, c_qkv_w, c_qkv_b, c_out_w, c_out_b,
                          cross_mask, head_mask_k, head_mask_v, seg), d_ln2_w, d_ln2_b)
    y = layernorm(y + ffn(y, d_ff1_w, d_ff1_b, d_ff2_w, d_ff2_b), d_ln3_w, d_ln3_b)

    # ---- mean over the first count2 decoder positions (via a tiny selection matmul) ----
    bi = lax.broadcasted_iota(jnp.int32, (B, N), 0)
    ii = lax.broadcasted_iota(jnp.int32, (B, N), 1)
    wsel = jnp.zeros((B, N), jnp.float32)
    for b in range(B):
        c = cnt2_ref[b]
        m = (bi == b) & (ii >= b * S) & (ii < b * S + c)
        # clamp divisor to >= 1 so count2 == 0 cannot produce inf/NaN
        wsel = wsel + jnp.where(m, 1.0, 0.0) / jnp.maximum(c, 1).astype(jnp.float32)
    pooled_dec = jnp.dot(wsel, y, preferred_element_type=jnp.float32)       # (B, D)

    # ---- classifier1 / classifier2, written as one lane-dense (B, 128) slab ----
    # classifier weights are zero-padded on the host: cls1 -> lanes [0, D2),
    # cls2 -> lanes [D2, D2+NUM_LABELS).
    o1_pad = jnp.dot(pooled_dec, cls1_w[...],
                     preferred_element_type=jnp.float32) + cls1_b[...]      # (B, 128)
    o1 = o1_pad[:, 0:D2]
    lg_pad = jnp.dot(o1, cls2_w[...],
                     preferred_element_type=jnp.float32) + cls2_b[...]      # (B, 128)
    out_ref[...] = o1_pad + lg_pad


# ------------------------- host-side wrapper -------------------------
def _full_spec(shape):
    nd = len(shape)
    return pl.BlockSpec(shape, lambda i, *_: (0,) * nd)


def splitbert_forward(labels, tok1, tlen1, tok2, tlen2, count1, count2, pe, params):
    # Host-side layout plumbing (free): fold (batch, sentence, token) into rows so the
    # kernel only sees 2-D lane-dense slabs, and stack encoder/decoder inputs.
    tok_all = jnp.concatenate(
        [tok1.reshape(B * L1 * T, D), tok2.reshape(B * L2 * T, D)], axis=0)    # (512, 32)
    tlen_all = jnp.concatenate(
        [tlen1.reshape(B * L1), tlen2.reshape(B * L2)], axis=0
    ).astype(jnp.int32).reshape(R, 1)                                          # (32, 1)

    tensor_inputs = [tok_all, tlen_all, pe] + list(params)
    grid_spec = pltpu.PrefetchScalarGridSpec(
        num_scalar_prefetch=2,
        grid=(1,),
        in_specs=[_full_spec(a.shape) for a in tensor_inputs],
        out_specs=pl.BlockSpec((B, OUT_LANES), lambda i, *_: (0, 0)),
    )
    slab = pl.pallas_call(
        splitbert_kernel,
        out_shape=jax.ShapeDtypeStruct((B, OUT_LANES), jnp.float32),
        grid_spec=grid_spec,
        compiler_params=pltpu.CompilerParams(dimension_semantics=("arbitrary",)),
    )(count1.astype(jnp.int32), count2.astype(jnp.int32), *tensor_inputs)

    outputs = slab[:, :D2]
    logits = slab[:, D2:D2 + NUM_LABELS]
    # CrossEntropyLoss (mean reduction) - tiny glue in plain JAX
    logp = logits - jax.nn.logsumexp(logits, axis=-1, keepdims=True)
    loss = -jnp.mean(logp[jnp.arange(B), labels])
    return loss, logits, outputs


def prepare_params(tp):
    """Pre-transpose (contraction dim last), cast matmul weights to bf16 and
    zero-pad the classifier weights into the 128-lane output slab layout."""
    def wT(x):  # nn.Linear weight (out, in) -> (in, out), bf16 for the MXU
        return jnp.asarray(np.asarray(x).T, jnp.bfloat16)

    def row(x):  # bias / layernorm params as (1, n) f32
        return jnp.asarray(np.asarray(x, np.float32).reshape(1, -1))

    c1w = np.zeros((D, OUT_LANES), np.float32)
    c1w[:, :D2] = np.asarray(tp['cls1_w']).T
    c1b = np.zeros((1, OUT_LANES), np.float32)
    c1b[0, :D2] = np.asarray(tp['cls1_b'])
    c2w = np.zeros((D2, OUT_LANES), np.float32)
    c2w[:, D2:D2 + NUM_LABELS] = np.asarray(tp['cls2_w']).T
    c2b = np.zeros((1, OUT_LANES), np.float32)
    c2b[0, D2:D2 + NUM_LABELS] = np.asarray(tp['cls2_b'])

    return [
        wT(tp['fc_w']), row(tp['fc_b']),
        wT(tp['e_qkv_w']), row(tp['e_qkv_b']), wT(tp['e_out_w']), row(tp['e_out_b']),
        wT(tp['e_ff1_w']), row(tp['e_ff1_b']), wT(tp['e_ff2_w']), row(tp['e_ff2_b']),
        row(tp['e_ln1_w']), row(tp['e_ln1_b']), row(tp['e_ln2_w']), row(tp['e_ln2_b']),
        wT(tp['d_qkv_w']), row(tp['d_qkv_b']), wT(tp['d_out_w']), row(tp['d_out_b']),
        wT(tp['c_qkv_w']), row(tp['c_qkv_b']), wT(tp['c_out_w']), row(tp['c_out_b']),
        wT(tp['d_ff1_w']), row(tp['d_ff1_b']), wT(tp['d_ff2_w']), row(tp['d_ff2_b']),
        row(tp['d_ln1_w']), row(tp['d_ln1_b']), row(tp['d_ln2_w']), row(tp['d_ln2_b']),
        row(tp['d_ln3_w']), row(tp['d_ln3_b']),
        jnp.asarray(c1w), jnp.asarray(c1b), jnp.asarray(c2w), jnp.asarray(c2b),
    ]


def build_pe():
    pos = np.arange(L1, dtype=np.float32)[:, None]
    div = np.exp(np.arange(0, D, 2, dtype=np.float32) * (-np.log(10000.0) / D))
    pe = np.zeros((L1, D), np.float32)
    pe[:, 0::2] = np.sin(pos * div)
    pe[:, 1::2] = np.cos(pos * div)
    return jnp.asarray(pe)


if __name__ == "__main__":
    key = jax.random.PRNGKey(0)
    keys = iter(jax.random.split(key, 64))

    def p(shape, scale=0.05):
        return (jax.random.normal(next(keys), shape) * scale).astype(jnp.float32)

    ones = lambda n: jnp.ones((n,), jnp.float32)
    zeros = lambda n: jnp.zeros((n,), jnp.float32)

    # parameters in PyTorch nn.Linear convention (out, in); host prep transposes/casts
    torch_params = dict(
        fc_w=p((D, D)), fc_b=p((D,)),
        e_qkv_w=p((3 * D, D)), e_qkv_b=p((3 * D,)),
        e_out_w=p((D, D)), e_out_b=p((D,)),
        e_ff1_w=p((FF, D)), e_ff1_b=p((FF,)),
        e_ff2_w=p((D, FF)), e_ff2_b=p((D,)),
        e_ln1_w=ones(D), e_ln1_b=zeros(D), e_ln2_w=ones(D), e_ln2_b=zeros(D),
        d_qkv_w=p((3 * D, D)), d_qkv_b=p((3 * D,)),
        d_out_w=p((D, D)), d_out_b=p((D,)),
        c_qkv_w=p((3 * D, D)), c_qkv_b=p((3 * D,)),
        c_out_w=p((D, D)), c_out_b=p((D,)),
        d_ff1_w=p((FF, D)), d_ff1_b=p((FF,)),
        d_ff2_w=p((D, FF)), d_ff2_b=p((D,)),
        d_ln1_w=ones(D), d_ln1_b=zeros(D), d_ln2_w=ones(D), d_ln2_b=zeros(D),
        d_ln3_w=ones(D), d_ln3_b=zeros(D),
        cls1_w=p((D2, D)), cls1_b=p((D2,)),
        cls2_w=p((NUM_LABELS, D2)), cls2_b=p((NUM_LABELS,)),
    )
    params = prepare_params(torch_params)

    # synthetic sbert token-level outputs + per-sentence token lengths
    tok1 = jax.random.normal(next(keys), (B, L1, T, D), jnp.float32)
    tok2 = jax.random.normal(next(keys), (B, L2, T, D), jnp.float32)
    tlen1 = jnp.asarray([[4 + (b + s) % (T - 4) for s in range(L1)] for b in range(B)],
                        jnp.int32)
    tlen2 = jnp.asarray([[5 + (2 * b + s) % (T - 5) for s in range(L2)] for b in range(B)],
                        jnp.int32)

    sentence_count1 = jnp.array([3, 5], jnp.int32)
    sentence_count2 = jnp.array([2, 4], jnp.int32)
    labels = jnp.array([1, 0], jnp.int32)
    pe = build_pe()

    fwd = jax.jit(splitbert_forward)
    loss, logits, outputs = fwd(labels, tok1, tlen1, tok2, tlen2,
                                sentence_count1, sentence_count2, pe, params)
    jax.block_until_ready((loss, logits, outputs))

    assert logits.shape == (B, NUM_LABELS)
    assert outputs.shape == (B, D2)
    assert bool(jnp.isfinite(loss)) and bool(jnp.all(jnp.isfinite(logits)))
    print("KERNEL_OK")
</pallas_src>

<mosaic_0001>
module attributes {stable_mosaic.version = 11 : i64} {
  func.func @splitbert_kernel(%arg0: i32, %arg1: memref<2xi32, #tpu.memory_space<smem>>, %arg2: memref<2xi32, #tpu.memory_space<smem>>, %arg3: memref<512x32xf32, #tpu.memory_space<vmem>>, %arg4: memref<32x1xi32, #tpu.memory_space<vmem>>, %arg5: memref<8x32xf32, #tpu.memory_space<vmem>>, %arg6: memref<32x32xbf16, #tpu.memory_space<vmem>>, %arg7: memref<1x32xf32, #tpu.memory_space<vmem>>, %arg8: memref<32x96xbf16, #tpu.memory_space<vmem>>, %arg9: memref<1x96xf32, #tpu.memory_space<vmem>>, %arg10: memref<32x32xbf16, #tpu.memory_space<vmem>>, %arg11: memref<1x32xf32, #tpu.memory_space<vmem>>, %arg12: memref<32x2048xbf16, #tpu.memory_space<vmem>>, %arg13: memref<1x2048xf32, #tpu.memory_space<vmem>>, %arg14: memref<2048x32xbf16, #tpu.memory_space<vmem>>, %arg15: memref<1x32xf32, #tpu.memory_space<vmem>>, %arg16: memref<1x32xf32, #tpu.memory_space<vmem>>, %arg17: memref<1x32xf32, #tpu.memory_space<vmem>>, %arg18: memref<1x32xf32, #tpu.memory_space<vmem>>, %arg19: memref<1x32xf32, #tpu.memory_space<vmem>>, %arg20: memref<32x96xbf16, #tpu.memory_space<vmem>>, %arg21: memref<1x96xf32, #tpu.memory_space<vmem>>, %arg22: memref<32x32xbf16, #tpu.memory_space<vmem>>, %arg23: memref<1x32xf32, #tpu.memory_space<vmem>>, %arg24: memref<32x96xbf16, #tpu.memory_space<vmem>>, %arg25: memref<1x96xf32, #tpu.memory_space<vmem>>, %arg26: memref<32x32xbf16, #tpu.memory_space<vmem>>, %arg27: memref<1x32xf32, #tpu.memory_space<vmem>>, %arg28: memref<32x2048xbf16, #tpu.memory_space<vmem>>, %arg29: memref<1x2048xf32, #tpu.memory_space<vmem>>, %arg30: memref<2048x32xbf16, #tpu.memory_space<vmem>>, %arg31: memref<1x32xf32, #tpu.memory_space<vmem>>, %arg32: memref<1x32xf32, #tpu.memory_space<vmem>>, %arg33: memref<1x32xf32, #tpu.memory_space<vmem>>, %arg34: memref<1x32xf32, #tpu.memory_space<vmem>>, %arg35: memref<1x32xf32, #tpu.memory_space<vmem>>, %arg36: memref<1x32xf32, #tpu.memory_space<vmem>>, %arg37: memref<1x32xf32, #tpu.memory_space<vmem>>, %arg38: memref<32x128xf32, #tpu.memory_space<vmem>>, %arg39: memref<1x128xf32, #tpu.memory_space<vmem>>, %arg40: memref<16x128xf32, #tpu.memory_space<vmem>>, %arg41: memref<1x128xf32, #tpu.memory_space<vmem>>, %arg42: memref<2x128xf32, #tpu.memory_space<vmem>>) attributes {dimension_semantics = [#tpu.dimension_semantics<arbitrary>], iteration_bounds = array<i64: 1>, scalar_prefetch = 2 : i64, scratch_operands = 0 : i64, tpu.core_type = #tpu.core_type<tc>, window_params = [{pipeline_mode = #tpu.pipeline_mode<synchronous>, transform_indices = @transform_0, window_bounds = array<i64: 512, 32>}, {pipeline_mode = #tpu.pipeline_mode<synchronous>, transform_indices = @transform_1, window_bounds = array<i64: 32, 1>}, {pipeline_mode = #tpu.pipeline_mode<synchronous>, transform_indices = @transform_2, window_bounds = array<i64: 8, 32>}, {pipeline_mode = #tpu.pipeline_mode<synchronous>, transform_indices = @transform_3, window_bounds = array<i64: 32, 32>}, {pipeline_mode = #tpu.pipeline_mode<synchronous>, transform_indices = @transform_4, window_bounds = array<i64: 1, 32>}, {pipeline_mode = #tpu.pipeline_mode<synchronous>, transform_indices = @transform_5, window_bounds = array<i64: 32, 96>}, {pipeline_mode = #tpu.pipeline_mode<synchronous>, transform_indices = @transform_6, window_bounds = array<i64: 1, 96>}, {pipeline_mode = #tpu.pipeline_mode<synchronous>, transform_indices = @transform_7, window_bounds = array<i64: 32, 32>}, {pipeline_mode = #tpu.pipeline_mode<synchronous>, transform_indices = @transform_8, window_bounds = array<i64: 1, 32>}, {pipeline_mode = #tpu.pipeline_mode<synchronous>, transform_indices = @transform_9, window_bounds = array<i64: 32, 2048>}, {pipeline_mode = #tpu.pipeline_mode<synchronous>, transform_indices = @transform_10, window_bounds = array<i64: 1, 2048>}, {pipeline_mode = #tpu.pipeline_mode<synchronous>, transform_indices = @transform_11, window_bounds = array<i64: 2048, 32>}, {pipeline_mode = #tpu.pipeline_mode<synchronous>, transform_indices = @transform_12, window_bounds = array<i64: 1, 32>}, {pipeline_mode = #tpu.pipeline_mode<synchronous>, transform_indices = @transform_13, window_bounds = array<i64: 1, 32>}, {pipeline_mode = #tpu.pipeline_mode<synchronous>, transform_indices = @transform_14, window_bounds = array<i64: 1, 32>}, {pipeline_mode = #tpu.pipeline_mode<synchronous>, transform_indices = @transform_15, window_bounds = array<i64: 1, 32>}, {pipeline_mode = #tpu.pipeline_mode<synchronous>, transform_indices = @transform_16, window_bounds = array<i64: 1, 32>}, {pipeline_mode = #tpu.pipeline_mode<synchronous>, transform_indices = @transform_17, window_bounds = array<i64: 32, 96>}, {pipeline_mode = #tpu.pipeline_mode<synchronous>, transform_indices = @transform_18, window_bounds = array<i64: 1, 96>}, {pipeline_mode = #tpu.pipeline_mode<synchronous>, transform_indices = @transform_19, window_bounds = array<i64: 32, 32>}, {pipeline_mode = #tpu.pipeline_mode<synchronous>, transform_indices = @transform_20, window_bounds = array<i64: 1, 32>}, {pipeline_mode = #tpu.pipeline_mode<synchronous>, transform_indices = @transform_21, window_bounds = array<i64: 32, 96>}, {pipeline_mode = #tpu.pipeline_mode<synchronous>, transform_indices = @transform_22, window_bounds = array<i64: 1, 96>}, {pipeline_mode = #tpu.pipeline_mode<synchronous>, transform_indices = @transform_23, window_bounds = array<i64: 32, 32>}, {pipeline_mode = #tpu.pipeline_mode<synchronous>, transform_indices = @transform_24, window_bounds = array<i64: 1, 32>}, {pipeline_mode = #tpu.pipeline_mode<synchronous>, transform_indices = @transform_25, window_bounds = array<i64: 32, 2048>}, {pipeline_mode = #tpu.pipeline_mode<synchronous>, transform_indices = @transform_26, window_bounds = array<i64: 1, 2048>}, {pipeline_mode = #tpu.pipeline_mode<synchronous>, transform_indices = @transform_27, window_bounds = array<i64: 2048, 32>}, {pipeline_mode = #tpu.pipeline_mode<synchronous>, transform_indices = @transform_28, window_bounds = array<i64: 1, 32>}, {pipeline_mode = #tpu.pipeline_mode<synchronous>, transform_indices = @transform_29, window_bounds = array<i64: 1, 32>}, {pipeline_mode = #tpu.pipeline_mode<synchronous>, transform_indices = @transform_30, window_bounds = array<i64: 1, 32>}, {pipeline_mode = #tpu.pipeline_mode<synchronous>, transform_indices = @transform_31, window_bounds = array<i64: 1, 32>}, {pipeline_mode = #tpu.pipeline_mode<synchronous>, transform_indices = @transform_32, window_bounds = array<i64: 1, 32>}, {pipeline_mode = #tpu.pipeline_mode<synchronous>, transform_indices = @transform_33, window_bounds = array<i64: 1, 32>}, {pipeline_mode = #tpu.pipeline_mode<synchronous>, transform_indices = @transform_34, window_bounds = array<i64: 1, 32>}, {pipeline_mode = #tpu.pipeline_mode<synchronous>, transform_indices = @transform_35, window_bounds = array<i64: 32, 128>}, {pipeline_mode = #tpu.pipeline_mode<synchronous>, transform_indices = @transform_36, window_bounds = array<i64: 1, 128>}, {pipeline_mode = #tpu.pipeline_mode<synchronous>, transform_indices = @transform_37, window_bounds = array<i64: 16, 128>}, {pipeline_mode = #tpu.pipeline_mode<synchronous>, transform_indices = @transform_38, window_bounds = array<i64: 1, 128>}, {pipeline_mode = #tpu.pipeline_mode<synchronous>, transform_indices = @transform_39, window_bounds = array<i64: 2, 128>}]} {
    %0 = tpu.iota {dimensions = array<i32: 0>} : vector<32x512xi32>
    %1 = tpu.iota {dimensions = array<i32: 1>} : vector<32x512xi32>
    %c0 = arith.constant 0 : index
    %c0_0 = arith.constant 0 : index
    %2 = vector.load %arg4[%c0, %c0_0] : memref<32x1xi32, #tpu.memory_space<vmem>>, vector<32x1xi32>
    %c16_i32 = arith.constant 16 : i32
    %3 = vector.broadcast %c16_i32 : i32 to vector<32x512xi32>
    %4 = arith.muli %0, %3 : vector<32x512xi32>
    %5 = arith.cmpi sge, %1, %4 : vector<32x512xi32>
    %c16_i32_1 = arith.constant 16 : i32
    %6 = vector.broadcast %c16_i32_1 : i32 to vector<32x1xi32>
    %7 = arith.minsi %2, %6 : vector<32x1xi32>
    %8 = vector.broadcast %7 : vector<32x1xi32> to vector<32x512xi32>
    %9 = arith.addi %4, %8 : vector<32x512xi32>
    %10 = arith.cmpi slt, %1, %9 : vector<32x512xi32>
    %11 = arith.andi %5, %10 : vector<32x512xi1>
    %cst = arith.constant 1.000000e+00 : f32
    %cst_2 = arith.constant 0.000000e+00 : f32
    %12 = vector.broadcast %cst : f32 to vector<32x512xf32>
    %13 = vector.broadcast %cst_2 : f32 to vector<32x512xf32>
    %14 = arith.select %11, %12, %13 : vector<32x512xi1>, vector<32x512xf32>
    %c0_3 = arith.constant 0 : index
    %c0_4 = arith.constant 0 : index
    %15 = vector.load %arg3[%c0_3, %c0_4] : memref<512x32xf32, #tpu.memory_space<vmem>>, vector<512x32xf32>
    %cst_5 = arith.constant dense<0.000000e+00> : vector<32x32xf32>
    %16 = tpu.matmul %14, %15, %cst_5 {dimension_numbers = #tpu.dot_dimension_numbers<[1], [0], [0], [1], [0, 0, 1, 1], [], []>} : vector<32x512xf32>, vector<512x32xf32>, vector<32x32xf32> -> vector<32x32xf32>
    %17 = arith.sitofp %2 : vector<32x1xi32> to vector<32x1xf32>
    %cst_6 = arith.constant 9.99999971E-10 : f32
    %18 = vector.broadcast %cst_6 : f32 to vector<32x1xf32>
    %19 = arith.maximumf %17, %18 : vector<32x1xf32>
    %20 = vector.broadcast %19 : vector<32x1xf32> to vector<32x32xf32>
    %21 = arith.divf %16, %20 : vector<32x32xf32>
    %22 = tpu.iota {dimensions = array<i32: 0>} : vector<32x1xi32>
    %c0_7 = arith.constant 0 : index
    %23 = memref.load %arg1[%c0_7] : memref<2xi32, #tpu.memory_space<smem>>
    %c1 = arith.constant 1 : index
    %24 = memref.load %arg1[%c1] : memref<2xi32, #tpu.memory_space<smem>>
    %c0_8 = arith.constant 0 : index
    %25 = memref.load %arg2[%c0_8] : memref<2xi32, #tpu.memory_space<smem>>
    %c1_9 = arith.constant 1 : index
    %26 = memref.load %arg2[%c1_9] : memref<2xi32, #tpu.memory_space<smem>>
    %c0_i32 = arith.constant 0 : i32
    %27 = vector.broadcast %c0_i32 : i32 to vector<32x1xi32>
    %28 = arith.cmpi sge, %22, %27 : vector<32x1xi32>
    %c0_i32_10 = arith.constant 0 : i32
    %29 = arith.addi %c0_i32_10, %23 : i32
    %30 = vector.broadcast %29 : i32 to vector<32x1xi32>
    %31 = arith.cmpi slt, %22, %30 : vector<32x1xi32>
    %32 = arith.andi %28, %31 : vector<32x1xi1>
    %c8_i32 = arith.constant 8 : i32
    %33 = vector.broadcast %c8_i32 : i32 to vector<32x1xi32>
    %34 = arith.cmpi sge, %22, %33 : vector<32x1xi32>
    %c8_i32_11 = arith.constant 8 : i32
    %35 = arith.addi %c8_i32_11, %24 : i32
    %36 = vector.broadcast %35 : i32 to vector<32x1xi32>
    %37 = arith.cmpi slt, %22, %36 : vector<32x1xi32>
    %38 = arith.andi %34, %37 : vector<32x1xi1>
    %39 = arith.ori %32, %38 : vector<32x1xi1>
    %c16_i32_12 = arith.constant 16 : i32
    %40 = vector.broadcast %c16_i32_12 : i32 to vector<32x1xi32>
    %41 = arith.cmpi sge, %22, %40 : vector<32x1xi32>
    %c16_i32_13 = arith.constant 16 : i32
    %42 = arith.addi %c16_i32_13, %25 : i32
    %43 = vector.broadcast %42 : i32 to vector<32x1xi32>
    %44 = arith.cmpi slt, %22, %43 : vector<32x1xi32>
    %45 = arith.andi %41, %44 : vector<32x1xi1>
    %46 = arith.ori %39, %45 : vector<32x1xi1>
    %c24_i32 = arith.constant 24 : i32
    %47 = vector.broadcast %c24_i32 : i32 to vector<32x1xi32>
    %48 = arith.cmpi sge, %22, %47 : vector<32x1xi32>
    %c24_i32_14 = arith.constant 24 : i32
    %49 = arith.addi %c24_i32_14, %26 : i32
    %50 = vector.broadcast %49 : i32 to vector<32x1xi32>
    %51 = arith.cmpi slt, %22, %50 : vector<32x1xi32>
    %52 = arith.andi %48, %51 : vector<32x1xi1>
    %53 = arith.ori %46, %52 : vector<32x1xi1>
    %cst_15 = arith.constant 1.000000e+00 : f32
    %cst_16 = arith.constant 0.000000e+00 : f32
    %54 = vector.broadcast %cst_15 : f32 to vector<32x1xf32>
    %55 = vector.broadcast %cst_16 : f32 to vector<32x1xf32>
    %56 = arith.select %53, %54, %55 : vector<32x1xi1>, vector<32x1xf32>
    %57 = vector.broadcast %56 : vector<32x1xf32> to vector<32x32xf32>
    %58 = arith.mulf %21, %57 : vector<32x32xf32>
    %59 = arith.truncf %58 : vector<32x32xf32> to vector<32x32xbf16>
    %c0_17 = arith.constant 0 : index
    %c0_18 = arith.constant 0 : index
    %60 = vector.load %arg6[%c0_17, %c0_18] : memref<32x32xbf16, #tpu.memory_space<vmem>>, vector<32x32xbf16>
    %cst_19 = arith.constant dense<0.000000e+00> : vector<32x32xf32>
    %61 = tpu.matmul %59, %60, %cst_19 {dimension_numbers = #tpu.dot_dimension_numbers<[1], [0], [0], [1], [0, 0, 1, 1], [], []>} : vector<32x32xbf16>, vector<32x32xbf16>, vector<32x32xf32> -> vector<32x32xf32>
    %c0_20 = arith.constant 0 : index
    %c0_21 = arith.constant 0 : index
    %62 = vector.load %arg7[%c0_20, %c0_21] : memref<1x32xf32, #tpu.memory_space<vmem>>, vector<1x32xf32>
    %63 = vector.broadcast %62 : vector<1x32xf32> to vector<32x32xf32>
    %64 = arith.addf %61, %63 : vector<32x32xf32>
    %65 = vector.extract_strided_slice %64 {offsets = [0, 0], sizes = [16, 32], strides = [1, 1]} : vector<32x32xf32> to vector<16x32xf32>
    %66 = vector.extract_strided_slice %64 {offsets = [16, 0], sizes = [16, 32], strides = [1, 1]} : vector<32x32xf32> to vector<16x32xf32>
    %67 = tpu.iota {dimensions = array<i32: 0>} : vector<16x16xi32>
    %68 = tpu.iota {dimensions = array<i32: 1>} : vector<16x16xi32>
    %c0_i32_22 = arith.constant 0 : i32
    %69 = vector.broadcast %c0_i32_22 : i32 to vector<16x16xi32>
    %70 = arith.cmpi sge, %67, %69 : vector<16x16xi32>
    %c8_i32_23 = arith.constant 8 : i32
    %71 = vector.broadcast %c8_i32_23 : i32 to vector<16x16xi32>
    %72 = arith.cmpi slt, %67, %71 : vector<16x16xi32>
    %73 = arith.andi %70, %72 : vector<16x16xi1>
    %c0_i32_24 = arith.constant 0 : i32
    %74 = vector.broadcast %c0_i32_24 : i32 to vector<16x16xi32>
    %75 = arith.cmpi sge, %68, %74 : vector<16x16xi32>
    %76 = arith.andi %73, %75 : vector<16x16xi1>
    %77 = arith.cmpi sle, %68, %67 : vector<16x16xi32>
    %78 = arith.andi %76, %77 : vector<16x16xi1>
    %c0_25 = arith.constant 0 : index
    %79 = memref.load %arg1[%c0_25] : memref<2xi32, #tpu.memory_space<smem>>
    %c0_i32_26 = arith.constant 0 : i32
    %80 = arith.addi %c0_i32_26, %79 : i32
    %81 = vector.broadcast %80 : i32 to vector<16x16xi32>
    %82 = arith.cmpi slt, %68, %81 : vector<16x16xi32>
    %83 = arith.andi %78, %82 : vector<16x16xi1>
    %c8_i32_27 = arith.constant 8 : i32
    %84 = vector.broadcast %c8_i32_27 : i32 to vector<16x16xi32>
    %85 = arith.cmpi sge, %67, %84 : vector<16x16xi32>
    %c16_i32_28 = arith.constant 16 : i32
    %86 = vector.broadcast %c16_i32_28 : i32 to vector<16x16xi32>
    %87 = arith.cmpi slt, %67, %86 : vector<16x16xi32>
    %88 = arith.andi %85, %87 : vector<16x16xi1>
    %c8_i32_29 = arith.constant 8 : i32
    %89 = vector.broadcast %c8_i32_29 : i32 to vector<16x16xi32>
    %90 = arith.cmpi sge, %68, %89 : vector<16x16xi32>
    %91 = arith.andi %88, %90 : vector<16x16xi1>
    %92 = arith.cmpi sle, %68, %67 : vector<16x16xi32>
    %93 = arith.andi %91, %92 : vector<16x16xi1>
    %c1_30 = arith.constant 1 : index
    %94 = memref.load %arg1[%c1_30] : memref<2xi32, #tpu.memory_space<smem>>
    %c8_i32_31 = arith.constant 8 : i32
    %95 = arith.addi %c8_i32_31, %94 : i32
    %96 = vector.broadcast %95 : i32 to vector<16x16xi32>
    %97 = arith.cmpi slt, %68, %96 : vector<16x16xi32>
    %98 = arith.andi %93, %97 : vector<16x16xi1>
    %99 = arith.ori %83, %98 : vector<16x16xi1>
    %cst_32 = arith.constant 0.000000e+00 : f32
    %cst_33 = arith.constant -1.000000e+09 : f32
    %100 = vector.broadcast %cst_32 : f32 to vector<16x16xf32>
    %101 = vector.broadcast %cst_33 : f32 to vector<16x16xf32>
    %102 = arith.select %99, %100, %101 : vector<16x16xi1>, vector<16x16xf32>
    %c0_i32_34 = arith.constant 0 : i32
    %103 = vector.broadcast %c0_i32_34 : i32 to vector<16x16xi32>
    %104 = arith.cmpi sge, %67, %103 : vector<16x16xi32>
    %c8_i32_35 = arith.constant 8 : i32
    %105 = vector.broadcast %c8_i32_35 : i32 to vector<16x16xi32>
    %106 = arith.cmpi slt, %67, %105 : vector<16x16xi32>
    %107 = arith.andi %104, %106 : vector<16x16xi1>
    %c0_i32_36 = arith.constant 0 : i32
    %108 = vector.broadcast %c0_i32_36 : i32 to vector<16x16xi32>
    %109 = arith.cmpi sge, %68, %108 : vector<16x16xi32>
    %110 = arith.andi %107, %109 : vector<16x16xi1>
    %111 = arith.cmpi sle, %68, %67 : vector<16x16xi32>
    %112 = arith.andi %110, %111 : vector<16x16xi1>
    %c0_37 = arith.constant 0 : index
    %113 = memref.load %arg2[%c0_37] : memref<2xi32, #tpu.memory_space<smem>>
    %c0_i32_38 = arith.constant 0 : i32
    %114 = arith.addi %c0_i32_38, %113 : i32
    %115 = vector.broadcast %114 : i32 to vector<16x16xi32>
    %116 = arith.cmpi slt, %68, %115 : vector<16x16xi32>
    %117 = arith.andi %112, %116 : vector<16x16xi1>
    %c8_i32_39 = arith.constant 8 : i32
    %118 = vector.broadcast %c8_i32_39 : i32 to vector<16x16xi32>
    %119 = arith.cmpi sge, %67, %118 : vector<16x16xi32>
    %c16_i32_40 = arith.constant 16 : i32
    %120 = vector.broadcast %c16_i32_40 : i32 to vector<16x16xi32>
    %121 = arith.cmpi slt, %67, %120 : vector<16x16xi32>
    %122 = arith.andi %119, %121 : vector<16x16xi1>
    %c8_i32_41 = arith.constant 8 : i32
    %123 = vector.broadcast %c8_i32_41 : i32 to vector<16x16xi32>
    %124 = arith.cmpi sge, %68, %123 : vector<16x16xi32>
    %125 = arith.andi %122, %124 : vector<16x16xi1>
    %126 = arith.cmpi sle, %68, %67 : vector<16x16xi32>
    %127 = arith.andi %125, %126 : vector<16x16xi1>
    %c1_42 = arith.constant 1 : index
    %128 = memref.load %arg2[%c1_42] : memref<2xi32, #tpu.memory_space<smem>>
    %c8_i32_43 = arith.constant 8 : i32
    %129 = arith.addi %c8_i32_43, %128 : i32
    %130 = vector.broadcast %129 : i32 to vector<16x16xi32>
    %131 = arith.cmpi slt, %68, %130 : vector<16x16xi32>
    %132 = arith.andi %127, %131 : vector<16x16xi1>
    %133 = arith.ori %117, %132 : vector<16x16xi1>
    %cst_44 = arith.constant 0.000000e+00 : f32
    %cst_45 = arith.constant -1.000000e+09 : f32
    %134 = vector.broadcast %cst_44 : f32 to vector<16x16xf32>
    %135 = vector.broadcast %cst_45 : f32 to vector<16x16xf32>
    %136 = arith.select %133, %134, %135 : vector<16x16xi1>, vector<16x16xf32>
    %137 = tpu.iota {dimensions = array<i32: 0>} : vector<16x16xi32>
    %138 = tpu.iota {dimensions = array<i32: 1>} : vector<16x16xi32>
    %c0_i32_46 = arith.constant 0 : i32
    %139 = vector.broadcast %c0_i32_46 : i32 to vector<16x16xi32>
    %140 = arith.cmpi sge, %137, %139 : vector<16x16xi32>
    %c8_i32_47 = arith.constant 8 : i32
    %141 = vector.broadcast %c8_i32_47 : i32 to vector<16x16xi32>
    %142 = arith.cmpi slt, %137, %141 : vector<16x16xi32>
    %143 = arith.andi %140, %142 : vector<16x16xi1>
    %c0_i32_48 = arith.constant 0 : i32
    %144 = vector.broadcast %c0_i32_48 : i32 to vector<16x16xi32>
    %145 = arith.cmpi sge, %138, %144 : vector<16x16xi32>
    %146 = arith.andi %143, %145 : vector<16x16xi1>
    %c8_i32_49 = arith.constant 8 : i32
    %147 = vector.broadcast %c8_i32_49 : i32 to vector<16x16xi32>
    %148 = arith.cmpi slt, %138, %147 : vector<16x16xi32>
    %149 = arith.andi %146, %148 : vector<16x16xi1>
    %c8_i32_50 = arith.constant 8 : i32
    %150 = vector.broadcast %c8_i32_50 : i32 to vector<16x16xi32>
    %151 = arith.cmpi sge, %137, %150 : vector<16x16xi32>
    %c16_i32_51 = arith.constant 16 : i32
    %152 = vector.broadcast %c16_i32_51 : i32 to vector<16x16xi32>
    %153 = arith.cmpi slt, %137, %152 : vector<16x16xi32>
    %154 = arith.andi %151, %153 : vector<16x16xi1>
    %c8_i32_52 = arith.constant 8 : i32
    %155 = vector.broadcast %c8_i32_52 : i32 to vector<16x16xi32>
    %156 = arith.cmpi sge, %138, %155 : vector<16x16xi32>
    %157 = arith.andi %154, %156 : vector<16x16xi1>
    %c16_i32_53 = arith.constant 16 : i32
    %158 = vector.broadcast %c16_i32_53 : i32 to vector<16x16xi32>
    %159 = arith.cmpi slt, %138, %158 : vector<16x16xi32>
    %160 = arith.andi %157, %159 : vector<16x16xi1>
    %161 = arith.ori %149, %160 : vector<16x16xi1>
    %cst_54 = arith.constant 0.000000e+00 : f32
    %cst_55 = arith.constant -1.000000e+09 : f32
    %162 = vector.broadcast %cst_54 : f32 to vector<16x16xf32>
    %163 = vector.broadcast %cst_55 : f32 to vector<16x16xf32>
    %164 = arith.select %161, %162, %163 : vector<16x16xi1>, vector<16x16xf32>
    %165 = tpu.iota {dimensions = array<i32: 0>} : vector<32x128xi32>
    %166 = tpu.iota {dimensions = array<i32: 1>} : vector<32x128xi32>
    %c0_i32_56 = arith.constant 0 : i32
    %167 = vector.broadcast %c0_i32_56 : i32 to vector<32x128xi32>
    %168 = arith.cmpi sge, %165, %167 : vector<32x128xi32>
    %c4_i32 = arith.constant 4 : i32
    %169 = vector.broadcast %c4_i32 : i32 to vector<32x128xi32>
    %170 = arith.cmpi slt, %165, %169 : vector<32x128xi32>
    %171 = arith.andi %168, %170 : vector<32x128xi1>
    %c0_i32_57 = arith.constant 0 : i32
    %172 = vector.broadcast %c0_i32_57 : i32 to vector<32x128xi32>
    %173 = arith.cmpi sge, %166, %172 : vector<32x128xi32>
    %174 = arith.andi %171, %173 : vector<32x128xi1>
    %c16_i32_58 = arith.constant 16 : i32
    %175 = vector.broadcast %c16_i32_58 : i32 to vector<32x128xi32>
    %176 = arith.cmpi slt, %166, %175 : vector<32x128xi32>
    %177 = arith.andi %174, %176 : vector<32x128xi1>
    %c4_i32_59 = arith.constant 4 : i32
    %178 = vector.broadcast %c4_i32_59 : i32 to vector<32x128xi32>
    %179 = arith.cmpi sge, %165, %178 : vector<32x128xi32>
    %c8_i32_60 = arith.constant 8 : i32
    %180 = vector.broadcast %c8_i32_60 : i32 to vector<32x128xi32>
    %181 = arith.cmpi slt, %165, %180 : vector<32x128xi32>
    %182 = arith.andi %179, %181 : vector<32x128xi1>
    %c16_i32_61 = arith.constant 16 : i32
    %183 = vector.broadcast %c16_i32_61 : i32 to vector<32x128xi32>
    %184 = arith.cmpi sge, %166, %183 : vector<32x128xi32>
    %185 = arith.andi %182, %184 : vector<32x128xi1>
    %c32_i32 = arith.constant 32 : i32
    %186 = vector.broadcast %c32_i32 : i32 to vector<32x128xi32>
    %187 = arith.cmpi slt, %166, %186 : vector<32x128xi32>
    %188 = arith.andi %185, %187 : vector<32x128xi1>
    %189 = arith.ori %177, %188 : vector<32x128xi1>
    %c8_i32_62 = arith.constant 8 : i32
    %190 = vector.broadcast %c8_i32_62 : i32 to vector<32x128xi32>
    %191 = arith.cmpi sge, %165, %190 : vector<32x128xi32>
    %c12_i32 = arith.constant 12 : i32
    %192 = vector.broadcast %c12_i32 : i32 to vector<32x128xi32>
    %193 = arith.cmpi slt, %165, %192 : vector<32x128xi32>
    %194 = arith.andi %191, %193 : vector<32x128xi1>
    %c32_i32_63 = arith.constant 32 : i32
    %195 = vector.broadcast %c32_i32_63 : i32 to vector<32x128xi32>
    %196 = arith.cmpi sge, %166, %195 : vector<32x128xi32>
    %197 = arith.andi %194, %196 : vector<32x128xi1>
    %c48_i32 = arith.constant 48 : i32
    %198 = vector.broadcast %c48_i32 : i32 to vector<32x128xi32>
    %199 = arith.cmpi slt, %166, %198 : vector<32x128xi32>
    %200 = arith.andi %197, %199 : vector<32x128xi1>
    %201 = arith.ori %189, %200 : vector<32x128xi1>
    %c12_i32_64 = arith.constant 12 : i32
    %202 = vector.broadcast %c12_i32_64 : i32 to vector<32x128xi32>
    %203 = arith.cmpi sge, %165, %202 : vector<32x128xi32>
    %c16_i32_65 = arith.constant 16 : i32
    %204 = vector.broadcast %c16_i32_65 : i32 to vector<32x128xi32>
    %205 = arith.cmpi slt, %165, %204 : vector<32x128xi32>
    %206 = arith.andi %203, %205 : vector<32x128xi1>
    %c48_i32_66 = arith.constant 48 : i32
    %207 = vector.broadcast %c48_i32_66 : i32 to vector<32x128xi32>
    %208 = arith.cmpi sge, %166, %207 : vector<32x128xi32>
    %209 = arith.andi %206, %208 : vector<32x128xi1>
    %c64_i32 = arith.constant 64 : i32
    %210 = vector.broadcast %c64_i32 : i32 to vector<32x128xi32>
    %211 = arith.cmpi slt, %166, %210 : vector<32x128xi32>
    %212 = arith.andi %209, %211 : vector<32x128xi1>
    %213 = arith.ori %201, %212 : vector<32x128xi1>
    %c16_i32_67 = arith.constant 16 : i32
    %214 = vector.broadcast %c16_i32_67 : i32 to vector<32x128xi32>
    %215 = arith.cmpi sge, %165, %214 : vector<32x128xi32>
    %c20_i32 = arith.constant 20 : i32
    %216 = vector.broadcast %c20_i32 : i32 to vector<32x128xi32>
    %217 = arith.cmpi slt, %165, %216 : vector<32x128xi32>
    %218 = arith.andi %215, %217 : vector<32x128xi1>
    %c64_i32_68 = arith.constant 64 : i32
    %219 = vector.broadcast %c64_i32_68 : i32 to vector<32x128xi32>
    %220 = arith.cmpi sge, %166, %219 : vector<32x128xi32>
    %221 = arith.andi %218, %220 : vector<32x128xi1>
    %c80_i32 = arith.constant 80 : i32
    %222 = vector.broadcast %c80_i32 : i32 to vector<32x128xi32>
    %223 = arith.cmpi slt, %166, %222 : vector<32x128xi32>
    %224 = arith.andi %221, %223 : vector<32x128xi1>
    %225 = arith.ori %213, %224 : vector<32x128xi1>
    %c20_i32_69 = arith.constant 20 : i32
    %226 = vector.broadcast %c20_i32_69 : i32 to vector<32x128xi32>
    %227 = arith.cmpi sge, %165, %226 : vector<32x128xi32>
    %c24_i32_70 = arith.constant 24 : i32
    %228 = vector.broadcast %c24_i32_70 : i32 to vector<32x128xi32>
    %229 = arith.cmpi slt, %165, %228 : vector<32x128xi32>
    %230 = arith.andi %227, %229 : vector<32x128xi1>
    %c80_i32_71 = arith.constant 80 : i32
    %231 = vector.broadcast %c80_i32_71 : i32 to vector<32x128xi32>
    %232 = arith.cmpi sge, %166, %231 : vector<32x128xi32>
    %233 = arith.andi %230, %232 : vector<32x128xi1>
    %c96_i32 = arith.constant 96 : i32
    %234 = vector.broadcast %c96_i32 : i32 to vector<32x128xi32>
    %235 = arith.cmpi slt, %166, %234 : vector<32x128xi32>
    %236 = arith.andi %233, %235 : vector<32x128xi1>
    %237 = arith.ori %225, %236 : vector<32x128xi1>
    %c24_i32_72 = arith.constant 24 : i32
    %238 = vector.broadcast %c24_i32_72 : i32 to vector<32x128xi32>
    %239 = arith.cmpi sge, %165, %238 : vector<32x128xi32>
    %c28_i32 = arith.constant 28 : i32
    %240 = vector.broadcast %c28_i32 : i32 to vector<32x128xi32>
    %241 = arith.cmpi slt, %165, %240 : vector<32x128xi32>
    %242 = arith.andi %239, %241 : vector<32x128xi1>
    %c96_i32_73 = arith.constant 96 : i32
    %243 = vector.broadcast %c96_i32_73 : i32 to vector<32x128xi32>
    %244 = arith.cmpi sge, %166, %243 : vector<32x128xi32>
    %245 = arith.andi %242, %244 : vector<32x128xi1>
    %c112_i32 = arith.constant 112 : i32
    %246 = vector.broadcast %c112_i32 : i32 to vector<32x128xi32>
    %247 = arith.cmpi slt, %166, %246 : vector<32x128xi32>
    %248 = arith.andi %245, %247 : vector<32x128xi1>
    %249 = arith.ori %237, %248 : vector<32x128xi1>
    %c28_i32_74 = arith.constant 28 : i32
    %250 = vector.broadcast %c28_i32_74 : i32 to vector<32x128xi32>
    %251 = arith.cmpi sge, %165, %250 : vector<32x128xi32>
    %c32_i32_75 = arith.constant 32 : i32
    %252 = vector.broadcast %c32_i32_75 : i32 to vector<32x128xi32>
    %253 = arith.cmpi slt, %165, %252 : vector<32x128xi32>
    %254 = arith.andi %251, %253 : vector<32x128xi1>
    %c112_i32_76 = arith.constant 112 : i32
    %255 = vector.broadcast %c112_i32_76 : i32 to vector<32x128xi32>
    %256 = arith.cmpi sge, %166, %255 : vector<32x128xi32>
    %257 = arith.andi %254, %256 : vector<32x128xi1>
    %c128_i32 = arith.constant 128 : i32
    %258 = vector.broadcast %c128_i32 : i32 to vector<32x128xi32>
    %259 = arith.cmpi slt, %166, %258 : vector<32x128xi32>
    %260 = arith.andi %257, %259 : vector<32x128xi1>
    %261 = arith.ori %249, %260 : vector<32x128xi1>
    %262 = tpu.iota {dimensions = array<i32: 0>} : vector<128x32xi32>
    %263 = tpu.iota {dimensions = array<i32: 1>} : vector<128x32xi32>
    %c0_i32_77 = arith.constant 0 : i32
    %264 = vector.broadcast %c0_i32_77 : i32 to vector<128x32xi32>
    %265 = arith.cmpi sge, %262, %264 : vector<128x32xi32>
    %c16_i32_78 = arith.constant 16 : i32
    %266 = vector.broadcast %c16_i32_78 : i32 to vector<128x32xi32>
    %267 = arith.cmpi slt, %262, %266 : vector<128x32xi32>
    %268 = arith.andi %265, %267 : vector<128x32xi1>
    %c0_i32_79 = arith.constant 0 : i32
    %269 = vector.broadcast %c0_i32_79 : i32 to vector<128x32xi32>
    %270 = arith.cmpi sge, %263, %269 : vector<128x32xi32>
    %271 = arith.andi %268, %270 : vector<128x32xi1>
    %c4_i32_80 = arith.constant 4 : i32
    %272 = vector.broadcast %c4_i32_80 : i32 to vector<128x32xi32>
    %273 = arith.cmpi slt, %263, %272 : vector<128x32xi32>
    %274 = arith.andi %271, %273 : vector<128x32xi1>
    %c16_i32_81 = arith.constant 16 : i32
    %275 = vector.broadcast %c16_i32_81 : i32 to vector<128x32xi32>
    %276 = arith.cmpi sge, %262, %275 : vector<128x32xi32>
    %c32_i32_82 = arith.constant 32 : i32
    %277 = vector.broadcast %c32_i32_82 : i32 to vector<128x32xi32>
    %278 = arith.cmpi slt, %262, %277 : vector<128x32xi32>
    %279 = arith.andi %276, %278 : vector<128x32xi1>
    %c4_i32_83 = arith.constant 4 : i32
    %280 = vector.broadcast %c4_i32_83 : i32 to vector<128x32xi32>
    %281 = arith.cmpi sge, %263, %280 : vector<128x32xi32>
    %282 = arith.andi %279, %281 : vector<128x32xi1>
    %c8_i32_84 = arith.constant 8 : i32
    %283 = vector.broadcast %c8_i32_84 : i32 to vector<128x32xi32>
    %284 = arith.cmpi slt, %263, %283 : vector<128x32xi32>
    %285 = arith.andi %282, %284 : vector<128x32xi1>
    %286 = arith.ori %274, %285 : vector<128x32xi1>
    %c32_i32_85 = arith.constant 32 : i32
    %287 = vector.broadcast %c32_i32_85 : i32 to vector<128x32xi32>
    %288 = arith.cmpi sge, %262, %287 : vector<128x32xi32>
    %c48_i32_86 = arith.constant 48 : i32
    %289 = vector.broadcast %c48_i32_86 : i32 to vector<128x32xi32>
    %290 = arith.cmpi slt, %262, %289 : vector<128x32xi32>
    %291 = arith.andi %288, %290 : vector<128x32xi1>
    %c8_i32_87 = arith.constant 8 : i32
    %292 = vector.broadcast %c8_i32_87 : i32 to vector<128x32xi32>
    %293 = arith.cmpi sge, %263, %292 : vector<128x32xi32>
    %294 = arith.andi %291, %293 : vector<128x32xi1>
    %c12_i32_88 = arith.constant 12 : i32
    %295 = vector.broadcast %c12_i32_88 : i32 to vector<128x32xi32>
    %296 = arith.cmpi slt, %263, %295 : vector<128x32xi32>
    %297 = arith.andi %294, %296 : vector<128x32xi1>
    %298 = arith.ori %286, %297 : vector<128x32xi1>
    %c48_i32_89 = arith.constant 48 : i32
    %299 = vector.broadcast %c48_i32_89 : i32 to vector<128x32xi32>
    %300 = arith.cmpi sge, %262, %299 : vector<128x32xi32>
    %c64_i32_90 = arith.constant 64 : i32
    %301 = vector.broadcast %c64_i32_90 : i32 to vector<128x32xi32>
    %302 = arith.cmpi slt, %262, %301 : vector<128x32xi32>
    %303 = arith.andi %300, %302 : vector<128x32xi1>
    %c12_i32_91 = arith.constant 12 : i32
    %304 = vector.broadcast %c12_i32_91 : i32 to vector<128x32xi32>
    %305 = arith.cmpi sge, %263, %304 : vector<128x32xi32>
    %306 = arith.andi %303, %305 : vector<128x32xi1>
    %c16_i32_92 = arith.constant 16 : i32
    %307 = vector.broadcast %c16_i32_92 : i32 to vector<128x32xi32>
    %308 = arith.cmpi slt, %263, %307 : vector<128x32xi32>
    %309 = arith.andi %306, %308 : vector<128x32xi1>
    %310 = arith.ori %298, %309 : vector<128x32xi1>
    %c64_i32_93 = arith.constant 64 : i32
    %311 = vector.broadcast %c64_i32_93 : i32 to vector<128x32xi32>
    %312 = arith.cmpi sge, %262, %311 : vector<128x32xi32>
    %c80_i32_94 = arith.constant 80 : i32
    %313 = vector.broadcast %c80_i32_94 : i32 to vector<128x32xi32>
    %314 = arith.cmpi slt, %262, %313 : vector<128x32xi32>
    %315 = arith.andi %312, %314 : vector<128x32xi1>
    %c16_i32_95 = arith.constant 16 : i32
    %316 = vector.broadcast %c16_i32_95 : i32 to vector<128x32xi32>
    %317 = arith.cmpi sge, %263, %316 : vector<128x32xi32>
    %318 = arith.andi %315, %317 : vector<128x32xi1>
    %c20_i32_96 = arith.constant 20 : i32
    %319 = vector.broadcast %c20_i32_96 : i32 to vector<128x32xi32>
    %320 = arith.cmpi slt, %263, %319 : vector<128x32xi32>
    %321 = arith.andi %318, %320 : vector<128x32xi1>
    %322 = arith.ori %310, %321 : vector<128x32xi1>
    %c80_i32_97 = arith.constant 80 : i32
    %323 = vector.broadcast %c80_i32_97 : i32 to vector<128x32xi32>
    %324 = arith.cmpi sge, %262, %323 : vector<128x32xi32>
    %c96_i32_98 = arith.constant 96 : i32
    %325 = vector.broadcast %c96_i32_98 : i32 to vector<128x32xi32>
    %326 = arith.cmpi slt, %262, %325 : vector<128x32xi32>
    %327 = arith.andi %324, %326 : vector<128x32xi1>
    %c20_i32_99 = arith.constant 20 : i32
    %328 = vector.broadcast %c20_i32_99 : i32 to vector<128x32xi32>
    %329 = arith.cmpi sge, %263, %328 : vector<128x32xi32>
    %330 = arith.andi %327, %329 : vector<128x32xi1>
    %c24_i32_100 = arith.constant 24 : i32
    %331 = vector.broadcast %c24_i32_100 : i32 to vector<128x32xi32>
    %332 = arith.cmpi slt, %263, %331 : vector<128x32xi32>
    %333 = arith.andi %330, %332 : vector<128x32xi1>
    %334 = arith.ori %322, %333 : vector<128x32xi1>
    %c96_i32_101 = arith.constant 96 : i32
    %335 = vector.broadcast %c96_i32_101 : i32 to vector<128x32xi32>
    %336 = arith.cmpi sge, %262, %335 : vector<128x32xi32>
    %c112_i32_102 = arith.constant 112 : i32
    %337 = vector.broadcast %c112_i32_102 : i32 to vector<128x32xi32>
    %338 = arith.cmpi slt, %262, %337 : vector<128x32xi32>
    %339 = arith.andi %336, %338 : vector<128x32xi1>
    %c24_i32_103 = arith.constant 24 : i32
    %340 = vector.broadcast %c24_i32_103 : i32 to vector<128x32xi32>
    %341 = arith.cmpi sge, %263, %340 : vector<128x32xi32>
    %342 = arith.andi %339, %341 : vector<128x32xi1>
    %c28_i32_104 = arith.constant 28 : i32
    %343 = vector.broadcast %c28_i32_104 : i32 to vector<128x32xi32>
    %344 = arith.cmpi slt, %263, %343 : vector<128x32xi32>
    %345 = arith.andi %342, %344 : vector<128x32xi1>
    %346 = arith.ori %334, %345 : vector<128x32xi1>
    %c112_i32_105 = arith.constant 112 : i32
    %347 = vector.broadcast %c112_i32_105 : i32 to vector<128x32xi32>
    %348 = arith.cmpi sge, %262, %347 : vector<128x32xi32>
    %c128_i32_106 = arith.constant 128 : i32
    %349 = vector.broadcast %c128_i32_106 : i32 to vector<128x32xi32>
    %350 = arith.cmpi slt, %262, %349 : vector<128x32xi32>
    %351 = arith.andi %348, %350 : vector<128x32xi1>
    %c28_i32_107 = arith.constant 28 : i32
    %352 = vector.broadcast %c28_i32_107 : i32 to vector<128x32xi32>
    %353 = arith.cmpi sge, %263, %352 : vector<128x32xi32>
    %354 = arith.andi %351, %353 : vector<128x32xi1>
    %c32_i32_108 = arith.constant 32 : i32
    %355 = vector.broadcast %c32_i32_108 : i32 to vector<128x32xi32>
    %356 = arith.cmpi slt, %263, %355 : vector<128x32xi32>
    %357 = arith.andi %354, %356 : vector<128x32xi1>
    %358 = arith.ori %346, %357 : vector<128x32xi1>
    %359 = tpu.iota {dimensions = array<i32: 0>} : vector<128x128xi32>
    %360 = tpu.iota {dimensions = array<i32: 1>} : vector<128x128xi32>
    %c0_i32_109 = arith.constant 0 : i32
    %361 = vector.broadcast %c0_i32_109 : i32 to vector<128x128xi32>
    %362 = arith.cmpi sge, %359, %361 : vector<128x128xi32>
    %c16_i32_110 = arith.constant 16 : i32
    %363 = vector.broadcast %c16_i32_110 : i32 to vector<128x128xi32>
    %364 = arith.cmpi slt, %359, %363 : vector<128x128xi32>
    %365 = arith.andi %362, %364 : vector<128x128xi1>
    %c0_i32_111 = arith.constant 0 : i32
    %366 = vector.broadcast %c0_i32_111 : i32 to vector<128x128xi32>
    %367 = arith.cmpi sge, %360, %366 : vector<128x128xi32>
    %368 = arith.andi %365, %367 : vector<128x128xi1>
    %c16_i32_112 = arith.constant 16 : i32
    %369 = vector.broadcast %c16_i32_112 : i32 to vector<128x128xi32>
    %370 = arith.cmpi slt, %360, %369 : vector<128x128xi32>
    %371 = arith.andi %368, %370 : vector<128x128xi1>
    %c16_i32_113 = arith.constant 16 : i32
    %372 = vector.broadcast %c16_i32_113 : i32 to vector<128x128xi32>
    %373 = arith.cmpi sge, %359, %372 : vector<128x128xi32>
    %c32_i32_114 = arith.constant 32 : i32
    %374 = vector.broadcast %c32_i32_114 : i32 to vector<128x128xi32>
    %375 = arith.cmpi slt, %359, %374 : vector<128x128xi32>
    %376 = arith.andi %373, %375 : vector<128x128xi1>
    %c16_i32_115 = arith.constant 16 : i32
    %377 = vector.broadcast %c16_i32_115 : i32 to vector<128x128xi32>
    %378 = arith.cmpi sge, %360, %377 : vector<128x128xi32>
    %379 = arith.andi %376, %378 : vector<128x128xi1>
    %c32_i32_116 = arith.constant 32 : i32
    %380 = vector.broadcast %c32_i32_116 : i32 to vector<128x128xi32>
    %381 = arith.cmpi slt, %360, %380 : vector<128x128xi32>
    %382 = arith.andi %379, %381 : vector<128x128xi1>
    %383 = arith.ori %371, %382 : vector<128x128xi1>
    %c32_i32_117 = arith.constant 32 : i32
    %384 = vector.broadcast %c32_i32_117 : i32 to vector<128x128xi32>
    %385 = arith.cmpi sge, %359, %384 : vector<128x128xi32>
    %c48_i32_118 = arith.constant 48 : i32
    %386 = vector.broadcast %c48_i32_118 : i32 to vector<128x128xi32>
    %387 = arith.cmpi slt, %359, %386 : vector<128x128xi32>
    %388 = arith.andi %385, %387 : vector<128x128xi1>
    %c32_i32_119 = arith.constant 32 : i32
    %389 = vector.broadcast %c32_i32_119 : i32 to vector<128x128xi32>
    %390 = arith.cmpi sge, %360, %389 : vector<128x128xi32>
    %391 = arith.andi %388, %390 : vector<128x128xi1>
    %c48_i32_120 = arith.constant 48 : i32
    %392 = vector.broadcast %c48_i32_120 : i32 to vector<128x128xi32>
    %393 = arith.cmpi slt, %360, %392 : vector<128x128xi32>
    %394 = arith.andi %391, %393 : vector<128x128xi1>
    %395 = arith.ori %383, %394 : vector<128x128xi1>
    %c48_i32_121 = arith.constant 48 : i32
    %396 = vector.broadcast %c48_i32_121 : i32 to vector<128x128xi32>
    %397 = arith.cmpi sge, %359, %396 : vector<128x128xi32>
    %c64_i32_122 = arith.constant 64 : i32
    %398 = vector.broadcast %c64_i32_122 : i32 to vector<128x128xi32>
    %399 = arith.cmpi slt, %359, %398 : vector<128x128xi32>
    %400 = arith.andi %397, %399 : vector<128x128xi1>
    %c48_i32_123 = arith.constant 48 : i32
    %401 = vector.broadcast %c48_i32_123 : i32 to vector<128x128xi32>
    %402 = arith.cmpi sge, %360, %401 : vector<128x128xi32>
    %403 = arith.andi %400, %402 : vector<128x128xi1>
    %c64_i32_124 = arith.constant 64 : i32
    %404 = vector.broadcast %c64_i32_124 : i32 to vector<128x128xi32>
    %405 = arith.cmpi slt, %360, %404 : vector<128x128xi32>
    %406 = arith.andi %403, %405 : vector<128x128xi1>
    %407 = arith.ori %395, %406 : vector<128x128xi1>
    %c64_i32_125 = arith.constant 64 : i32
    %408 = vector.broadcast %c64_i32_125 : i32 to vector<128x128xi32>
    %409 = arith.cmpi sge, %359, %408 : vector<128x128xi32>
    %c80_i32_126 = arith.constant 80 : i32
    %410 = vector.broadcast %c80_i32_126 : i32 to vector<128x128xi32>
    %411 = arith.cmpi slt, %359, %410 : vector<128x128xi32>
    %412 = arith.andi %409, %411 : vector<128x128xi1>
    %c64_i32_127 = arith.constant 64 : i32
    %413 = vector.broadcast %c64_i32_127 : i32 to vector<128x128xi32>
    %414 = arith.cmpi sge, %360, %413 : vector<128x128xi32>
    %415 = arith.andi %412, %414 : vector<128x128xi1>
    %c80_i32_128 = arith.constant 80 : i32
    %416 = vector.broadcast %c80_i32_128 : i32 to vector<128x128xi32>
    %417 = arith.cmpi slt, %360, %416 : vector<128x128xi32>
    %418 = arith.andi %415, %417 : vector<128x128xi1>
    %419 = arith.ori %407, %418 : vector<128x128xi1>
    %c80_i32_129 = arith.constant 80 : i32
    %420 = vector.broadcast %c80_i32_129 : i32 to vector<128x128xi32>
    %421 = arith.cmpi sge, %359, %420 : vector<128x128xi32>
    %c96_i32_130 = arith.constant 96 : i32
    %422 = vector.broadcast %c96_i32_130 : i32 to vector<128x128xi32>
    %423 = arith.cmpi slt, %359, %422 : vector<128x128xi32>
    %424 = arith.andi %421, %423 : vector<128x128xi1>
    %c80_i32_131 = arith.constant 80 : i32
    %425 = vector.broadcast %c80_i32_131 : i32 to vector<128x128xi32>
    %426 = arith.cmpi sge, %360, %425 : vector<128x128xi32>
    %427 = arith.andi %424, %426 : vector<128x128xi1>
    %c96_i32_132 = arith.constant 96 : i32
    %428 = vector.broadcast %c96_i32_132 : i32 to vector<128x128xi32>
    %429 = arith.cmpi slt, %360, %428 : vector<128x128xi32>
    %430 = arith.andi %427, %429 : vector<128x128xi1>
    %431 = arith.ori %419, %430 : vector<128x128xi1>
    %c96_i32_133 = arith.constant 96 : i32
    %432 = vector.broadcast %c96_i32_133 : i32 to vector<128x128xi32>
    %433 = arith.cmpi sge, %359, %432 : vector<128x128xi32>
    %c112_i32_134 = arith.constant 112 : i32
    %434 = vector.broadcast %c112_i32_134 : i32 to vector<128x128xi32>
    %435 = arith.cmpi slt, %359, %434 : vector<128x128xi32>
    %436 = arith.andi %433, %435 : vector<128x128xi1>
    %c96_i32_135 = arith.constant 96 : i32
    %437 = vector.broadcast %c96_i32_135 : i32 to vector<128x128xi32>
    %438 = arith.cmpi sge, %360, %437 : vector<128x128xi32>
    %439 = arith.andi %436, %438 : vector<128x128xi1>
    %c112_i32_136 = arith.constant 112 : i32
    %440 = vector.broadcast %c112_i32_136 : i32 to vector<128x128xi32>
    %441 = arith.cmpi slt, %360, %440 : vector<128x128xi32>
    %442 = arith.andi %439, %441 : vector<128x128xi1>
    %443 = arith.ori %431, %442 : vector<128x128xi1>
    %c112_i32_137 = arith.constant 112 : i32
    %444 = vector.broadcast %c112_i32_137 : i32 to vector<128x128xi32>
    %445 = arith.cmpi sge, %359, %444 : vector<128x128xi32>
    %c128_i32_138 = arith.constant 128 : i32
    %446 = vector.broadcast %c128_i32_138 : i32 to vector<128x128xi32>
    %447 = arith.cmpi slt, %359, %446 : vector<128x128xi32>
    %448 = arith.andi %445, %447 : vector<128x128xi1>
    %c112_i32_139 = arith.constant 112 : i32
    %449 = vector.broadcast %c112_i32_139 : i32 to vector<128x128xi32>
    %450 = arith.cmpi sge, %360, %449 : vector<128x128xi32>
    %451 = arith.andi %448, %450 : vector<128x128xi1>
    %c128_i32_140 = arith.constant 128 : i32
    %452 = vector.broadcast %c128_i32_140 : i32 to vector<128x128xi32>
    %453 = arith.cmpi slt, %360, %452 : vector<128x128xi32>
    %454 = arith.andi %451, %453 : vector<128x128xi1>
    %455 = arith.ori %443, %454 : vector<128x128xi1>
    %cst_141 = arith.constant 1.000000e+00 : f32
    %cst_142 = arith.constant 0.000000e+00 : f32
    %456 = vector.broadcast %cst_141 : f32 to vector<128x128xf32>
    %457 = vector.broadcast %cst_142 : f32 to vector<128x128xf32>
    %458 = arith.select %455, %456, %457 : vector<128x128xi1>, vector<128x128xf32>
    %c0_143 = arith.constant 0 : index
    %c0_144 = arith.constant 0 : index
    %459 = vector.load %arg5[%c0_143, %c0_144] : memref<8x32xf32, #tpu.memory_space<vmem>>, vector<8x32xf32>
    %460 = tpu.concatenate %459, %459 in 0 : vector<8x32xf32>, vector<8x32xf32> -> vector<16x32xf32>
    %461 = arith.addf %65, %460 : vector<16x32xf32>
    %c0_145 = arith.constant 0 : index
    %c0_146 = arith.constant 0 : index
    %462 = vector.load %arg8[%c0_145, %c0_146] : memref<32x96xbf16, #tpu.memory_space<vmem>>, vector<32x96xbf16>
    %c0_147 = arith.constant 0 : index
    %c0_148 = arith.constant 0 : index
    %463 = vector.load %arg9[%c0_147, %c0_148] : memref<1x96xf32, #tpu.memory_space<vmem>>, vector<1x96xf32>
    %464 = arith.truncf %461 : vector<16x32xf32> to vector<16x32xbf16>
    %465 = vector.extract_strided_slice %462 {offsets = [0, 0], sizes = [32, 32], strides = [1, 1]} : vector<32x96xbf16> to vector<32x32xbf16>
    %cst_149 = arith.constant dense<0.000000e+00> : vector<16x32xf32>
    %466 = tpu.matmul %464, %465, %cst_149 {dimension_numbers = #tpu.dot_dimension_numbers<[1], [0], [0], [1], [0, 0, 1, 1], [], []>} : vector<16x32xbf16>, vector<32x32xbf16>, vector<16x32xf32> -> vector<16x32xf32>
    %467 = vector.extract_strided_slice %463 {offsets = [0, 0], sizes = [1, 32], strides = [1, 1]} : vector<1x96xf32> to vector<1x32xf32>
    %468 = vector.broadcast %467 : vector<1x32xf32> to vector<16x32xf32>
    %469 = arith.addf %466, %468 : vector<16x32xf32>
    %470 = arith.truncf %461 : vector<16x32xf32> to vector<16x32xbf16>
    %471 = vector.extract_strided_slice %462 {offsets = [0, 32], sizes = [32, 64], strides = [1, 1]} : vector<32x96xbf16> to vector<32x64xbf16>
    %cst_150 = arith.constant dense<0.000000e+00> : vector<16x64xf32>
    %472 = tpu.matmul %470, %471, %cst_150 {dimension_numbers = #tpu.dot_dimension_numbers<[1], [0], [0], [1], [0, 0, 1, 1], [], []>} : vector<16x32xbf16>, vector<32x64xbf16>, vector<16x64xf32> -> vector<16x64xf32>
    %473 = vector.extract_strided_slice %463 {offsets = [0, 32], sizes = [1, 64], strides = [1, 1]} : vector<1x96xf32> to vector<1x64xf32>
    %474 = vector.broadcast %473 : vector<1x64xf32> to vector<16x64xf32>
    %475 = arith.addf %472, %474 : vector<16x64xf32>
    %476 = vector.extract_strided_slice %475 {offsets = [0, 0], sizes = [16, 32], strides = [1, 1]} : vector<16x64xf32> to vector<16x32xf32>
    %477 = vector.extract_strided_slice %475 {offsets = [0, 32], sizes = [16, 32], strides = [1, 1]} : vector<16x64xf32> to vector<16x32xf32>
    %cst_151 = arith.constant 5.000000e-01 : f32
    %478 = vector.broadcast %cst_151 : f32 to vector<16x32xf32>
    %479 = arith.mulf %469, %478 : vector<16x32xf32>
    %480 = tpu.transpose %476, [1, 0] : vector<16x32xf32> -> vector<32x16xf32>
    %481 = tpu.concatenate %480, %480, %480, %480, %480, %480, %480, %480 in 1 : vector<32x16xf32>, vector<32x16xf32>, vector<32x16xf32>, vector<32x16xf32>, vector<32x16xf32>, vector<32x16xf32>, vector<32x16xf32>, vector<32x16xf32> -> vector<32x128xf32>
    %cst_152 = arith.constant 0.000000e+00 : f32
    %482 = vector.broadcast %cst_152 : f32 to vector<32x128xf32>
    %483 = arith.select %261, %481, %482 : vector<32x128xi1>, vector<32x128xf32>
    %484 = tpu.concatenate %477, %477, %477, %477, %477, %477, %477, %477 in 0 : vector<16x32xf32>, vector<16x32xf32>, vector<16x32xf32>, vector<16x32xf32>, vector<16x32xf32>, vector<16x32xf32>, vector<16x32xf32>, vector<16x32xf32> -> vector<128x32xf32>
    %cst_153 = arith.constant 0.000000e+00 : f32
    %485 = vector.broadcast %cst_153 : f32 to vector<128x32xf32>
    %486 = arith.select %358, %484, %485 : vector<128x32xi1>, vector<128x32xf32>
    %487 = arith.truncf %479 : vector<16x32xf32> to vector<16x32xbf16>
    %488 = arith.truncf %483 : vector<32x128xf32> to vector<32x128xbf16>
    %cst_154 = arith.constant dense<0.000000e+00> : vector<16x128xf32>
    %489 = tpu.matmul %487, %488, %cst_154 {dimension_numbers = #tpu.dot_dimension_numbers<[1], [0], [0], [1], [0, 0, 1, 1], [], []>} : vector<16x32xbf16>, vector<32x128xbf16>, vector<16x128xf32> -> vector<16x128xf32>
    %490 = tpu.concatenate %102, %102, %102, %102, %102, %102, %102, %102 in 1 : vector<16x16xf32>, vector<16x16xf32>, vector<16x16xf32>, vector<16x16xf32>, vector<16x16xf32>, vector<16x16xf32>, vector<16x16xf32>, vector<16x16xf32> -> vector<16x128xf32>
    %491 = arith.addf %489, %490 : vector<16x128xf32>
    %cst_155 = arith.constant dense<0xFF800000> : vector<16xf32>
    %492 = vector.multi_reduction <maximumf>, %491, %cst_155 [1] : vector<16x128xf32> to vector<16xf32>
    %493 = vector.shape_cast %492 : vector<16xf32> to vector<16x1xf32>
    %494 = vector.broadcast %493 : vector<16x1xf32> to vector<16x128xf32>
    %495 = arith.subf %491, %494 : vector<16x128xf32>
    %496 = math.exp %495 : vector<16x128xf32>
    %cst_156 = arith.constant dense<0.000000e+00> : vector<16x128xf32>
    %497 = tpu.matmul %496, %458, %cst_156 {dimension_numbers = #tpu.dot_dimension_numbers<[1], [0], [0], [1], [0, 0, 1, 1], [], []>} : vector<16x128xf32>, vector<128x128xf32>, vector<16x128xf32> -> vector<16x128xf32>
    %498 = tpu.reciprocal %497 {approx = true} : vector<16x128xf32> -> vector<16x128xf32>
    %499 = arith.mulf %496, %498 : vector<16x128xf32>
    %500 = arith.truncf %499 : vector<16x128xf32> to vector<16x128xbf16>
    %501 = arith.truncf %486 : vector<128x32xf32> to vector<128x32xbf16>
    %cst_157 = arith.constant dense<0.000000e+00> : vector<16x32xf32>
    %502 = tpu.matmul %500, %501, %cst_157 {dimension_numbers = #tpu.dot_dimension_numbers<[1], [0], [0], [1], [0, 0, 1, 1], [], []>} : vector<16x128xbf16>, vector<128x32xbf16>, vector<16x32xf32> -> vector<16x32xf32>
    %503 = arith.truncf %502 : vector<16x32xf32> to vector<16x32xbf16>
    %c0_158 = arith.constant 0 : index
    %c0_159 = arith.constant 0 : index
    %504 = vector.load %arg10[%c0_158, %c0_159] : memref<32x32xbf16, #tpu.memory_space<vmem>>, vector<32x32xbf16>
    %cst_160 = arith.constant dense<0.000000e+00> : vector<16x32xf32>
    %505 = tpu.matmul %503, %504, %cst_160 {dimension_numbers = #tpu.dot_dimension_numbers<[1], [0], [0], [1], [0, 0, 1, 1], [], []>} : vector<16x32xbf16>, vector<32x32xbf16>, vector<16x32xf32> -> vector<16x32xf32>
    %c0_161 = arith.constant 0 : index
    %c0_162 = arith.constant 0 : index
    %506 = vector.load %arg11[%c0_161, %c0_162] : memref<1x32xf32, #tpu.memory_space<vmem>>, vector<1x32xf32>
    %507 = vector.broadcast %506 : vector<1x32xf32> to vector<16x32xf32>
    %508 = arith.addf %505, %507 : vector<16x32xf32>
    %509 = arith.addf %461, %508 : vector<16x32xf32>
    %cst_163 = arith.constant dense<0.000000e+00> : vector<16xf32>
    %510 = vector.multi_reduction <add>, %509, %cst_163 [1] : vector<16x32xf32> to vector<16xf32>
    %511 = vector.shape_cast %510 : vector<16xf32> to vector<16x1xf32>
    %cst_164 = arith.constant 3.200000e+01 : f32
    %512 = vector.broadcast %cst_164 : f32 to vector<16x1xf32>
    %513 = arith.divf %511, %512 : vector<16x1xf32>
    %514 = vector.broadcast %513 : vector<16x1xf32> to vector<16x32xf32>
    %515 = arith.subf %509, %514 : vector<16x32xf32>
    %516 = arith.mulf %515, %515 : vector<16x32xf32>
    %cst_165 = arith.constant dense<0.000000e+00> : vector<16xf32>
    %517 = vector.multi_reduction <add>, %516, %cst_165 [1] : vector<16x32xf32> to vector<16xf32>
    %518 = vector.shape_cast %517 : vector<16xf32> to vector<16x1xf32>
    %cst_166 = arith.constant 3.200000e+01 : f32
    %519 = vector.broadcast %cst_166 : f32 to vector<16x1xf32>
    %520 = arith.divf %518, %519 : vector<16x1xf32>
    %cst_167 = arith.constant 9.99999974E-6 : f32
    %521 = vector.broadcast %cst_167 : f32 to vector<16x1xf32>
    %522 = arith.addf %520, %521 : vector<16x1xf32>
    %523 = math.rsqrt %522 : vector<16x1xf32>
    %524 = vector.broadcast %523 : vector<16x1xf32> to vector<16x32xf32>
    %525 = arith.mulf %515, %524 : vector<16x32xf32>
    %c0_168 = arith.constant 0 : index
    %c0_169 = arith.constant 0 : index
    %526 = vector.load %arg16[%c0_168, %c0_169] : memref<1x32xf32, #tpu.memory_space<vmem>>, vector<1x32xf32>
    %527 = vector.broadcast %526 : vector<1x32xf32> to vector<16x32xf32>
    %528 = arith.mulf %525, %527 : vector<16x32xf32>
    %c0_170 = arith.constant 0 : index
    %c0_171 = arith.constant 0 : index
    %529 = vector.load %arg17[%c0_170, %c0_171] : memref<1x32xf32, #tpu.memory_space<vmem>>, vector<1x32xf32>
    %530 = vector.broadcast %529 : vector<1x32xf32> to vector<16x32xf32>
    %531 = arith.addf %528, %530 : vector<16x32xf32>
    %532 = arith.truncf %531 : vector<16x32xf32> to vector<16x32xbf16>
    %c0_172 = arith.constant 0 : index
    %c0_173 = arith.constant 0 : index
    %533 = vector.load %arg12[%c0_172, %c0_173] : memref<32x2048xbf16, #tpu.memory_space<vmem>>, vector<32x2048xbf16>
    %cst_174 = arith.constant dense<0.000000e+00> : vector<16x2048xf32>
    %534 = tpu.matmul %532, %533, %cst_174 {dimension_numbers = #tpu.dot_dimension_numbers<[1], [0], [0], [1], [0, 0, 1, 1], [], []>} : vector<16x32xbf16>, vector<32x2048xbf16>, vector<16x2048xf32> -> vector<16x2048xf32>
    %c0_175 = arith.constant 0 : index
    %c0_176 = arith.constant 0 : index
    %535 = vector.load %arg13[%c0_175, %c0_176] : memref<1x2048xf32, #tpu.memory_space<vmem>>, vector<1x2048xf32>
    %536 = vector.broadcast %535 : vector<1x2048xf32> to vector<16x2048xf32>
    %537 = arith.addf %534, %536 : vector<16x2048xf32>
    %cst_177 = arith.constant 0.000000e+00 : f32
    %538 = vector.broadcast %cst_177 : f32 to vector<16x2048xf32>
    %539 = arith.maximumf %537, %538 : vector<16x2048xf32>
    %540 = arith.truncf %539 : vector<16x2048xf32> to vector<16x2048xbf16>
    %c0_178 = arith.constant 0 : index
    %c0_179 = arith.constant 0 : index
    %541 = vector.load %arg14[%c0_178, %c0_179] : memref<2048x32xbf16, #tpu.memory_space<vmem>>, vector<2048x32xbf16>
    %cst_180 = arith.constant dense<0.000000e+00> : vector<16x32xf32>
    %542 = tpu.matmul %540, %541, %cst_180 {dimension_numbers = #tpu.dot_dimension_numbers<[1], [0], [0], [1], [0, 0, 1, 1], [], []>} : vector<16x2048xbf16>, vector<2048x32xbf16>, vector<16x32xf32> -> vector<16x32xf32>
    %c0_181 = arith.constant 0 : index
    %c0_182 = arith.constant 0 : index
    %543 = vector.load %arg15[%c0_181, %c0_182] : memref<1x32xf32, #tpu.memory_space<vmem>>, vector<1x32xf32>
    %544 = vector.broadcast %543 : vector<1x32xf32> to vector<16x32xf32>
    %545 = arith.addf %542, %544 : vector<16x32xf32>
    %546 = arith.addf %531, %545 : vector<16x32xf32>
    %cst_183 = arith.constant dense<0.000000e+00> : vector<16xf32>
    %547 = vector.multi_reduction <add>, %546, %cst_183 [1] : vector<16x32xf32> to vector<16xf32>
    %548 = vector.shape_cast %547 : vector<16xf32> to vector<16x1xf32>
    %cst_184 = arith.constant 3.200000e+01 : f32
    %549 = vector.broadcast %cst_184 : f32 to vector<16x1xf32>
    %550 = arith.divf %548, %549 : vector<16x1xf32>
    %551 = vector.broadcast %550 : vector<16x1xf32> to vector<16x32xf32>
    %552 = arith.subf %546, %551 : vector<16x32xf32>
    %553 = arith.mulf %552, %552 : vector<16x32xf32>
    %cst_185 = arith.constant dense<0.000000e+00> : vector<16xf32>
    %554 = vector.multi_reduction <add>, %553, %cst_185 [1] : vector<16x32xf32> to vector<16xf32>
    %555 = vector.shape_cast %554 : vector<16xf32> to vector<16x1xf32>
    %cst_186 = arith.constant 3.200000e+01 : f32
    %556 = vector.broadcast %cst_186 : f32 to vector<16x1xf32>
    %557 = arith.divf %555, %556 : vector<16x1xf32>
    %cst_187 = arith.constant 9.99999974E-6 : f32
    %558 = vector.broadcast %cst_187 : f32 to vector<16x1xf32>
    %559 = arith.addf %557, %558 : vector<16x1xf32>
    %560 = math.rsqrt %559 : vector<16x1xf32>
    %561 = vector.broadcast %560 : vector<16x1xf32> to vector<16x32xf32>
    %562 = arith.mulf %552, %561 : vector<16x32xf32>
    %c0_188 = arith.constant 0 : index
    %c0_189 = arith.constant 0 : index
    %563 = vector.load %arg18[%c0_188, %c0_189] : memref<1x32xf32, #tpu.memory_space<vmem>>, vector<1x32xf32>
    %564 = vector.broadcast %563 : vector<1x32xf32> to vector<16x32xf32>
    %565 = arith.mulf %562, %564 : vector<16x32xf32>
    %c0_190 = arith.constant 0 : index
    %c0_191 = arith.constant 0 : index
    %566 = vector.load %arg19[%c0_190, %c0_191] : memref<1x32xf32, #tpu.memory_space<vmem>>, vector<1x32xf32>
    %567 = vector.broadcast %566 : vector<1x32xf32> to vector<16x32xf32>
    %568 = arith.addf %565, %567 : vector<16x32xf32>
    %c0_192 = arith.constant 0 : index
    %c0_193 = arith.constant 0 : index
    %569 = vector.load %arg20[%c0_192, %c0_193] : memref<32x96xbf16, #tpu.memory_space<vmem>>, vector<32x96xbf16>
    %c0_194 = arith.constant 0 : index
    %c0_195 = arith.constant 0 : index
    %570 = vector.load %arg21[%c0_194, %c0_195] : memref<1x96xf32, #tpu.memory_space<vmem>>, vector<1x96xf32>
    %571 = arith.truncf %66 : vector<16x32xf32> to vector<16x32xbf16>
    %572 = vector.extract_strided_slice %569 {offsets = [0, 0], sizes = [32, 32], strides = [1, 1]} : vector<32x96xbf16> to vector<32x32xbf16>
    %cst_196 = arith.constant dense<0.000000e+00> : vector<16x32xf32>
    %573 = tpu.matmul %571, %572, %cst_196 {dimension_numbers = #tpu.dot_dimension_numbers<[1], [0], [0], [1], [0, 0, 1, 1], [], []>} : vector<16x32xbf16>, vector<32x32xbf16>, vector<16x32xf32> -> vector<16x32xf32>
    %574 = vector.extract_strided_slice %570 {offsets = [0, 0], sizes = [1, 32], strides = [1, 1]} : vector<1x96xf32> to vector<1x32xf32>
    %575 = vector.broadcast %574 : vector<1x32xf32> to vector<16x32xf32>
    %576 = arith.addf %573, %575 : vector<16x32xf32>
    %577 = arith.truncf %66 : vector<16x32xf32> to vector<16x32xbf16>
    %578 = vector.extract_strided_slice %569 {offsets = [0, 32], sizes = [32, 64], strides = [1, 1]} : vector<32x96xbf16> to vector<32x64xbf16>
    %cst_197 = arith.constant dense<0.000000e+00> : vector<16x64xf32>
    %579 = tpu.matmul %577, %578, %cst_197 {dimension_numbers = #tpu.dot_dimension_numbers<[1], [0], [0], [1], [0, 0, 1, 1], [], []>} : vector<16x32xbf16>, vector<32x64xbf16>, vector<16x64xf32> -> vector<16x64xf32>
    %580 = vector.extract_strided_slice %570 {offsets = [0, 32], sizes = [1, 64], strides = [1, 1]} : vector<1x96xf32> to vector<1x64xf32>
    %581 = vector.broadcast %580 : vector<1x64xf32> to vector<16x64xf32>
    %582 = arith.addf %579, %581 : vector<16x64xf32>
    %583 = vector.extract_strided_slice %582 {offsets = [0, 0], sizes = [16, 32], strides = [1, 1]} : vector<16x64xf32> to vector<16x32xf32>
    %584 = vector.extract_strided_slice %582 {offsets = [0, 32], sizes = [16, 32], strides = [1, 1]} : vector<16x64xf32> to vector<16x32xf32>
    %cst_198 = arith.constant 5.000000e-01 : f32
    %585 = vector.broadcast %cst_198 : f32 to vector<16x32xf32>
    %586 = arith.mulf %576, %585 : vector<16x32xf32>
    %587 = tpu.transpose %583, [1, 0] : vector<16x32xf32> -> vector<32x16xf32>
    %588 = tpu.concatenate %587, %587, %587, %587, %587, %587, %587, %587 in 1 : vector<32x16xf32>, vector<32x16xf32>, vector<32x16xf32>, vector<32x16xf32>, vector<32x16xf32>, vector<32x16xf32>, vector<32x16xf32>, vector<32x16xf32> -> vector<32x128xf32>
    %cst_199 = arith.constant 0.000000e+00 : f32
    %589 = vector.broadcast %cst_199 : f32 to vector<32x128xf32>
    %590 = arith.select %261, %588, %589 : vector<32x128xi1>, vector<32x128xf32>
    %591 = tpu.concatenate %584, %584, %584, %584, %584, %584, %584, %584 in 0 : vector<16x32xf32>, vector<16x32xf32>, vector<16x32xf32>, vector<16x32xf32>, vector<16x32xf32>, vector<16x32xf32>, vector<16x32xf32>, vector<16x32xf32> -> vector<128x32xf32>
    %cst_200 = arith.constant 0.000000e+00 : f32
    %592 = vector.broadcast %cst_200 : f32 to vector<128x32xf32>
    %593 = arith.select %358, %591, %592 : vector<128x32xi1>, vector<128x32xf32>
    %594 = arith.truncf %586 : vector<16x32xf32> to vector<16x32xbf16>
    %595 = arith.truncf %590 : vector<32x128xf32> to vector<32x128xbf16>
    %cst_201 = arith.constant dense<0.000000e+00> : vector<16x128xf32>
    %596 = tpu.matmul %594, %595, %cst_201 {dimension_numbers = #tpu.dot_dimension_numbers<[1], [0], [0], [1], [0, 0, 1, 1], [], []>} : vector<16x32xbf16>, vector<32x128xbf16>, vector<16x128xf32> -> vector<16x128xf32>
    %597 = tpu.concatenate %136, %136, %136, %136, %136, %136, %136, %136 in 1 : vector<16x16xf32>, vector<16x16xf32>, vector<16x16xf32>, vector<16x16xf32>, vector<16x16xf32>, vector<16x16xf32>, vector<16x16xf32>, vector<16x16xf32> -> vector<16x128xf32>
    %598 = arith.addf %596, %597 : vector<16x128xf32>
    %cst_202 = arith.constant dense<0xFF800000> : vector<16xf32>
    %599 = vector.multi_reduction <maximumf>, %598, %cst_202 [1] : vector<16x128xf32> to vector<16xf32>
    %600 = vector.shape_cast %599 : vector<16xf32> to vector<16x1xf32>
    %601 = vector.broadcast %600 : vector<16x1xf32> to vector<16x128xf32>
    %602 = arith.subf %598, %601 : vector<16x128xf32>
    %603 = math.exp %602 : vector<16x128xf32>
    %cst_203 = arith.constant dense<0.000000e+00> : vector<16x128xf32>
    %604 = tpu.matmul %603, %458, %cst_203 {dimension_numbers = #tpu.dot_dimension_numbers<[1], [0], [0], [1], [0, 0, 1, 1], [], []>} : vector<16x128xf32>, vector<128x128xf32>, vector<16x128xf32> -> vector<16x128xf32>
    %605 = tpu.reciprocal %604 {approx = true} : vector<16x128xf32> -> vector<16x128xf32>
    %606 = arith.mulf %603, %605 : vector<16x128xf32>
    %607 = arith.truncf %606 : vector<16x128xf32> to vector<16x128xbf16>
    %608 = arith.truncf %593 : vector<128x32xf32> to vector<128x32xbf16>
    %cst_204 = arith.constant dense<0.000000e+00> : vector<16x32xf32>
    %609 = tpu.matmul %607, %608, %cst_204 {dimension_numbers = #tpu.dot_dimension_numbers<[1], [0], [0], [1], [0, 0, 1, 1], [], []>} : vector<16x128xbf16>, vector<128x32xbf16>, vector<16x32xf32> -> vector<16x32xf32>
    %610 = arith.truncf %609 : vector<16x32xf32> to vector<16x32xbf16>
    %c0_205 = arith.constant 0 : index
    %c0_206 = arith.constant 0 : index
    %611 = vector.load %arg22[%c0_205, %c0_206] : memref<32x32xbf16, #tpu.memory_space<vmem>>, vector<32x32xbf16>
    %cst_207 = arith.constant dense<0.000000e+00> : vector<16x32xf32>
    %612 = tpu.matmul %610, %611, %cst_207 {dimension_numbers = #tpu.dot_dimension_numbers<[1], [0], [0], [1], [0, 0, 1, 1], [], []>} : vector<16x32xbf16>, vector<32x32xbf16>, vector<16x32xf32> -> vector<16x32xf32>
    %c0_208 = arith.constant 0 : index
    %c0_209 = arith.constant 0 : index
    %613 = vector.load %arg23[%c0_208, %c0_209] : memref<1x32xf32, #tpu.memory_space<vmem>>, vector<1x32xf32>
    %614 = vector.broadcast %613 : vector<1x32xf32> to vector<16x32xf32>
    %615 = arith.addf %612, %614 : vector<16x32xf32>
    %616 = arith.addf %66, %615 : vector<16x32xf32>
    %cst_210 = arith.constant dense<0.000000e+00> : vector<16xf32>
    %617 = vector.multi_reduction <add>, %616, %cst_210 [1] : vector<16x32xf32> to vector<16xf32>
    %618 = vector.shape_cast %617 : vector<16xf32> to vector<16x1xf32>
    %cst_211 = arith.constant 3.200000e+01 : f32
    %619 = vector.broadcast %cst_211 : f32 to vector<16x1xf32>
    %620 = arith.divf %618, %619 : vector<16x1xf32>
    %621 = vector.broadcast %620 : vector<16x1xf32> to vector<16x32xf32>
    %622 = arith.subf %616, %621 : vector<16x32xf32>
    %623 = arith.mulf %622, %622 : vector<16x32xf32>
    %cst_212 = arith.constant dense<0.000000e+00> : vector<16xf32>
    %624 = vector.multi_reduction <add>, %623, %cst_212 [1] : vector<16x32xf32> to vector<16xf32>
    %625 = vector.shape_cast %624 : vector<16xf32> to vector<16x1xf32>
    %cst_213 = arith.constant 3.200000e+01 : f32
    %626 = vector.broadcast %cst_213 : f32 to vector<16x1xf32>
    %627 = arith.divf %625, %626 : vector<16x1xf32>
    %cst_214 = arith.constant 9.99999974E-6 : f32
    %628 = vector.broadcast %cst_214 : f32 to vector<16x1xf32>
    %629 = arith.addf %627, %628 : vector<16x1xf32>
    %630 = math.rsqrt %629 : vector<16x1xf32>
    %631 = vector.broadcast %630 : vector<16x1xf32> to vector<16x32xf32>
    %632 = arith.mulf %622, %631 : vector<16x32xf32>
    %c0_215 = arith.constant 0 : index
    %c0_216 = arith.constant 0 : index
    %633 = vector.load %arg32[%c0_215, %c0_216] : memref<1x32xf32, #tpu.memory_space<vmem>>, vector<1x32xf32>
    %634 = vector.broadcast %633 : vector<1x32xf32> to vector<16x32xf32>
    %635 = arith.mulf %632, %634 : vector<16x32xf32>
    %c0_217 = arith.constant 0 : index
    %c0_218 = arith.constant 0 : index
    %636 = vector.load %arg33[%c0_217, %c0_218] : memref<1x32xf32, #tpu.memory_space<vmem>>, vector<1x32xf32>
    %637 = vector.broadcast %636 : vector<1x32xf32> to vector<16x32xf32>
    %638 = arith.addf %635, %637 : vector<16x32xf32>
    %c0_219 = arith.constant 0 : index
    %c0_220 = arith.constant 0 : index
    %639 = vector.load %arg24[%c0_219, %c0_220] : memref<32x96xbf16, #tpu.memory_space<vmem>>, vector<32x96xbf16>
    %c0_221 = arith.constant 0 : index
    %c0_222 = arith.constant 0 : index
    %640 = vector.load %arg25[%c0_221, %c0_222] : memref<1x96xf32, #tpu.memory_space<vmem>>, vector<1x96xf32>
    %641 = arith.truncf %638 : vector<16x32xf32> to vector<16x32xbf16>
    %642 = vector.extract_strided_slice %639 {offsets = [0, 0], sizes = [32, 32], strides = [1, 1]} : vector<32x96xbf16> to vector<32x32xbf16>
    %cst_223 = arith.constant dense<0.000000e+00> : vector<16x32xf32>
    %643 = tpu.matmul %641, %642, %cst_223 {dimension_numbers = #tpu.dot_dimension_numbers<[1], [0], [0], [1], [0, 0, 1, 1], [], []>} : vector<16x32xbf16>, vector<32x32xbf16>, vector<16x32xf32> -> vector<16x32xf32>
    %644 = vector.extract_strided_slice %640 {offsets = [0, 0], sizes = [1, 32], strides = [1, 1]} : vector<1x96xf32> to vector<1x32xf32>
    %645 = vector.broadcast %644 : vector<1x32xf32> to vector<16x32xf32>
    %646 = arith.addf %643, %645 : vector<16x32xf32>
    %647 = arith.truncf %568 : vector<16x32xf32> to vector<16x32xbf16>
    %648 = vector.extract_strided_slice %639 {offsets = [0, 32], sizes = [32, 64], strides = [1, 1]} : vector<32x96xbf16> to vector<32x64xbf16>
    %cst_224 = arith.constant dense<0.000000e+00> : vector<16x64xf32>
    %649 = tpu.matmul %647, %648, %cst_224 {dimension_numbers = #tpu.dot_dimension_numbers<[1], [0], [0], [1], [0, 0, 1, 1], [], []>} : vector<16x32xbf16>, vector<32x64xbf16>, vector<16x64xf32> -> vector<16x64xf32>
    %650 = vector.extract_strided_slice %640 {offsets = [0, 32], sizes = [1, 64], strides = [1, 1]} : vector<1x96xf32> to vector<1x64xf32>
    %651 = vector.broadcast %650 : vector<1x64xf32> to vector<16x64xf32>
    %652 = arith.addf %649, %651 : vector<16x64xf32>
    %653 = vector.extract_strided_slice %652 {offsets = [0, 0], sizes = [16, 32], strides = [1, 1]} : vector<16x64xf32> to vector<16x32xf32>
    %654 = vector.extract_strided_slice %652 {offsets = [0, 32], sizes = [16, 32], strides = [1, 1]} : vector<16x64xf32> to vector<16x32xf32>
    %cst_225 = arith.constant 5.000000e-01 : f32
    %655 = vector.broadcast %cst_225 : f32 to vector<16x32xf32>
    %656 = arith.mulf %646, %655 : vector<16x32xf32>
    %657 = tpu.transpose %653, [1, 0] : vector<16x32xf32> -> vector<32x16xf32>
    %658 = tpu.concatenate %657, %657, %657, %657, %657, %657, %657, %657 in 1 : vector<32x16xf32>, vector<32x16xf32>, vector<32x16xf32>, vector<32x16xf32>, vector<32x16xf32>, vector<32x16xf32>, vector<32x16xf32>, vector<32x16xf32> -> vector<32x128xf32>
    %cst_226 = arith.constant 0.000000e+00 : f32
    %659 = vector.broadcast %cst_226 : f32 to vector<32x128xf32>
    %660 = arith.select %261, %658, %659 : vector<32x128xi1>, vector<32x128xf32>
    %661 = tpu.concatenate %654, %654, %654, %654, %654, %654, %654, %654 in 0 : vector<16x32xf32>, vector<16x32xf32>, vector<16x32xf32>, vector<16x32xf32>, vector<16x32xf32>, vector<16x32xf32>, vector<16x32xf32>, vector<16x32xf32> -> vector<128x32xf32>
    %cst_227 = arith.constant 0.000000e+00 : f32
    %662 = vector.broadcast %cst_227 : f32 to vector<128x32xf32>
    %663 = arith.select %358, %661, %662 : vector<128x32xi1>, vector<128x32xf32>
    %664 = arith.truncf %656 : vector<16x32xf32> to vector<16x32xbf16>
    %665 = arith.truncf %660 : vector<32x128xf32> to vector<32x128xbf16>
    %cst_228 = arith.constant dense<0.000000e+00> : vector<16x128xf32>
    %666 = tpu.matmul %664, %665, %cst_228 {dimension_numbers = #tpu.dot_dimension_numbers<[1], [0], [0], [1], [0, 0, 1, 1], [], []>} : vector<16x32xbf16>, vector<32x128xbf16>, vector<16x128xf32> -> vector<16x128xf32>
    %667 = tpu.concatenate %164, %164, %164, %164, %164, %164, %164, %164 in 1 : vector<16x16xf32>, vector<16x16xf32>, vector<16x16xf32>, vector<16x16xf32>, vector<16x16xf32>, vector<16x16xf32>, vector<16x16xf32>, vector<16x16xf32> -> vector<16x128xf32>
    %668 = arith.addf %666, %667 : vector<16x128xf32>
    %cst_229 = arith.constant dense<0xFF800000> : vector<16xf32>
    %669 = vector.multi_reduction <maximumf>, %668, %cst_229 [1] : vector<16x128xf32> to vector<16xf32>
    %670 = vector.shape_cast %669 : vector<16xf32> to vector<16x1xf32>
    %671 = vector.broadcast %670 : vector<16x1xf32> to vector<16x128xf32>
    %672 = arith.subf %668, %671 : vector<16x128xf32>
    %673 = math.exp %672 : vector<16x128xf32>
    %cst_230 = arith.constant dense<0.000000e+00> : vector<16x128xf32>
    %674 = tpu.matmul %673, %458, %cst_230 {dimension_numbers = #tpu.dot_dimension_numbers<[1], [0], [0], [1], [0, 0, 1, 1], [], []>} : vector<16x128xf32>, vector<128x128xf32>, vector<16x128xf32> -> vector<16x128xf32>
    %675 = tpu.reciprocal %674 {approx = true} : vector<16x128xf32> -> vector<16x128xf32>
    %676 = arith.mulf %673, %675 : vector<16x128xf32>
    %677 = arith.truncf %676 : vector<16x128xf32> to vector<16x128xbf16>
    %678 = arith.truncf %663 : vector<128x32xf32> to vector<128x32xbf16>
    %cst_231 = arith.constant dense<0.000000e+00> : vector<16x32xf32>
    %679 = tpu.matmul %677, %678, %cst_231 {dimension_numbers = #tpu.dot_dimension_numbers<[1], [0], [0], [1], [0, 0, 1, 1], [], []>} : vector<16x128xbf16>, vector<128x32xbf16>, vector<16x32xf32> -> vector<16x32xf32>
    %680 = arith.truncf %679 : vector<16x32xf32> to vector<16x32xbf16>
    %c0_232 = arith.constant 0 : index
    %c0_233 = arith.constant 0 : index
    %681 = vector.load %arg26[%c0_232, %c0_233] : memref<32x32xbf16, #tpu.memory_space<vmem>>, vector<32x32xbf16>
    %cst_234 = arith.constant dense<0.000000e+00> : vector<16x32xf32>
    %682 = tpu.matmul %680, %681, %cst_234 {dimension_numbers = #tpu.dot_dimension_numbers<[1], [0], [0], [1], [0, 0, 1, 1], [], []>} : vector<16x32xbf16>, vector<32x32xbf16>, vector<16x32xf32> -> vector<16x32xf32>
    %c0_235 = arith.constant 0 : index
    %c0_236 = arith.constant 0 : index
    %683 = vector.load %arg27[%c0_235, %c0_236] : memref<1x32xf32, #tpu.memory_space<vmem>>, vector<1x32xf32>
    %684 = vector.broadcast %683 : vector<1x32xf32> to vector<16x32xf32>
    %685 = arith.addf %682, %684 : vector<16x32xf32>
    %686 = arith.addf %638, %685 : vector<16x32xf32>
    %cst_237 = arith.constant dense<0.000000e+00> : vector<16xf32>
    %687 = vector.multi_reduction <add>, %686, %cst_237 [1] : vector<16x32xf32> to vector<16xf32>
    %688 = vector.shape_cast %687 : vector<16xf32> to vector<16x1xf32>
    %cst_238 = arith.constant 3.200000e+01 : f32
    %689 = vector.broadcast %cst_238 : f32 to vector<16x1xf32>
    %690 = arith.divf %688, %689 : vector<16x1xf32>
    %691 = vector.broadcast %690 : vector<16x1xf32> to vector<16x32xf32>
    %692 = arith.subf %686, %691 : vector<16x32xf32>
    %693 = arith.mulf %692, %692 : vector<16x32xf32>
    %cst_239 = arith.constant dense<0.000000e+00> : vector<16xf32>
    %694 = vector.multi_reduction <add>, %693, %cst_239 [1] : vector<16x32xf32> to vector<16xf32>
    %695 = vector.shape_cast %694 : vector<16xf32> to vector<16x1xf32>
    %cst_240 = arith.constant 3.200000e+01 : f32
    %696 = vector.broadcast %cst_240 : f32 to vector<16x1xf32>
    %697 = arith.divf %695, %696 : vector<16x1xf32>
    %cst_241 = arith.constant 9.99999974E-6 : f32
    %698 = vector.broadcast %cst_241 : f32 to vector<16x1xf32>
    %699 = arith.addf %697, %698 : vector<16x1xf32>
    %700 = math.rsqrt %699 : vector<16x1xf32>
    %701 = vector.broadcast %700 : vector<16x1xf32> to vector<16x32xf32>
    %702 = arith.mulf %692, %701 : vector<16x32xf32>
    %c0_242 = arith.constant 0 : index
    %c0_243 = arith.constant 0 : index
    %703 = vector.load %arg34[%c0_242, %c0_243] : memref<1x32xf32, #tpu.memory_space<vmem>>, vector<1x32xf32>
    %704 = vector.broadcast %703 : vector<1x32xf32> to vector<16x32xf32>
    %705 = arith.mulf %702, %704 : vector<16x32xf32>
    %c0_244 = arith.constant 0 : index
    %c0_245 = arith.constant 0 : index
    %706 = vector.load %arg35[%c0_244, %c0_245] : memref<1x32xf32, #tpu.memory_space<vmem>>, vector<1x32xf32>
    %707 = vector.broadcast %706 : vector<1x32xf32> to vector<16x32xf32>
    %708 = arith.addf %705, %707 : vector<16x32xf32>
    %709 = arith.truncf %708 : vector<16x32xf32> to vector<16x32xbf16>
    %c0_246 = arith.constant 0 : index
    %c0_247 = arith.constant 0 : index
    %710 = vector.load %arg28[%c0_246, %c0_247] : memref<32x2048xbf16, #tpu.memory_space<vmem>>, vector<32x2048xbf16>
    %cst_248 = arith.constant dense<0.000000e+00> : vector<16x2048xf32>
    %711 = tpu.matmul %709, %710, %cst_248 {dimension_numbers = #tpu.dot_dimension_numbers<[1], [0], [0], [1], [0, 0, 1, 1], [], []>} : vector<16x32xbf16>, vector<32x2048xbf16>, vector<16x2048xf32> -> vector<16x2048xf32>
    %c0_249 = arith.constant 0 : index
    %c0_250 = arith.constant 0 : index
    %712 = vector.load %arg29[%c0_249, %c0_250] : memref<1x2048xf32, #tpu.memory_space<vmem>>, vector<1x2048xf32>
    %713 = vector.broadcast %712 : vector<1x2048xf32> to vector<16x2048xf32>
    %714 = arith.addf %711, %713 : vector<16x2048xf32>
    %cst_251 = arith.constant 0.000000e+00 : f32
    %715 = vector.broadcast %cst_251 : f32 to vector<16x2048xf32>
    %716 = arith.maximumf %714, %715 : vector<16x2048xf32>
    %717 = arith.truncf %716 : vector<16x2048xf32> to vector<16x2048xbf16>
    %c0_252 = arith.constant 0 : index
    %c0_253 = arith.constant 0 : index
    %718 = vector.load %arg30[%c0_252, %c0_253] : memref<2048x32xbf16, #tpu.memory_space<vmem>>, vector<2048x32xbf16>
    %cst_254 = arith.constant dense<0.000000e+00> : vector<16x32xf32>
    %719 = tpu.matmul %717, %718, %cst_254 {dimension_numbers = #tpu.dot_dimension_numbers<[1], [0], [0], [1], [0, 0, 1, 1], [], []>} : vector<16x2048xbf16>, vector<2048x32xbf16>, vector<16x32xf32> -> vector<16x32xf32>
    %c0_255 = arith.constant 0 : index
    %c0_256 = arith.constant 0 : index
    %720 = vector.load %arg31[%c0_255, %c0_256] : memref<1x32xf32, #tpu.memory_space<vmem>>, vector<1x32xf32>
    %721 = vector.broadcast %720 : vector<1x32xf32> to vector<16x32xf32>
    %722 = arith.addf %719, %721 : vector<16x32xf32>
    %723 = arith.addf %708, %722 : vector<16x32xf32>
    %cst_257 = arith.constant dense<0.000000e+00> : vector<16xf32>
    %724 = vector.multi_reduction <add>, %723, %cst_257 [1] : vector<16x32xf32> to vector<16xf32>
    %725 = vector.shape_cast %724 : vector<16xf32> to vector<16x1xf32>
    %cst_258 = arith.constant 3.200000e+01 : f32
    %726 = vector.broadcast %cst_258 : f32 to vector<16x1xf32>
    %727 = arith.divf %725, %726 : vector<16x1xf32>
    %728 = vector.broadcast %727 : vector<16x1xf32> to vector<16x32xf32>
    %729 = arith.subf %723, %728 : vector<16x32xf32>
    %730 = arith.mulf %729, %729 : vector<16x32xf32>
    %cst_259 = arith.constant dense<0.000000e+00> : vector<16xf32>
    %731 = vector.multi_reduction <add>, %730, %cst_259 [1] : vector<16x32xf32> to vector<16xf32>
    %732 = vector.shape_cast %731 : vector<16xf32> to vector<16x1xf32>
    %cst_260 = arith.constant 3.200000e+01 : f32
    %733 = vector.broadcast %cst_260 : f32 to vector<16x1xf32>
    %734 = arith.divf %732, %733 : vector<16x1xf32>
    %cst_261 = arith.constant 9.99999974E-6 : f32
    %735 = vector.broadcast %cst_261 : f32 to vector<16x1xf32>
    %736 = arith.addf %734, %735 : vector<16x1xf32>
    %737 = math.rsqrt %736 : vector<16x1xf32>
    %738 = vector.broadcast %737 : vector<16x1xf32> to vector<16x32xf32>
    %739 = arith.mulf %729, %738 : vector<16x32xf32>
    %c0_262 = arith.constant 0 : index
    %c0_263 = arith.constant 0 : index
    %740 = vector.load %arg36[%c0_262, %c0_263] : memref<1x32xf32, #tpu.memory_space<vmem>>, vector<1x32xf32>
    %741 = vector.broadcast %740 : vector<1x32xf32> to vector<16x32xf32>
    %742 = arith.mulf %739, %741 : vector<16x32xf32>
    %c0_264 = arith.constant 0 : index
    %c0_265 = arith.constant 0 : index
    %743 = vector.load %arg37[%c0_264, %c0_265] : memref<1x32xf32, #tpu.memory_space<vmem>>, vector<1x32xf32>
    %744 = vector.broadcast %743 : vector<1x32xf32> to vector<16x32xf32>
    %745 = arith.addf %742, %744 : vector<16x32xf32>
    %746 = tpu.iota {dimensions = array<i32: 0>} : vector<2x16xi32>
    %747 = tpu.iota {dimensions = array<i32: 1>} : vector<2x16xi32>
    %cst_266 = arith.constant 0.000000e+00 : f32
    %748 = vector.broadcast %cst_266 : f32 to vector<2x16xf32>
    %c0_267 = arith.constant 0 : index
    %749 = memref.load %arg2[%c0_267] : memref<2xi32, #tpu.memory_space<smem>>
    %c0_i32_268 = arith.constant 0 : i32
    %750 = vector.broadcast %c0_i32_268 : i32 to vector<2x16xi32>
    %751 = arith.cmpi eq, %746, %750 : vector<2x16xi32>
    %c0_i32_269 = arith.constant 0 : i32
    %752 = vector.broadcast %c0_i32_269 : i32 to vector<2x16xi32>
    %753 = arith.cmpi sge, %747, %752 : vector<2x16xi32>
    %754 = arith.andi %751, %753 : vector<2x16xi1>
    %c0_i32_270 = arith.constant 0 : i32
    %755 = arith.addi %c0_i32_270, %749 : i32
    %756 = vector.broadcast %755 : i32 to vector<2x16xi32>
    %757 = arith.cmpi slt, %747, %756 : vector<2x16xi32>
    %758 = arith.andi %754, %757 : vector<2x16xi1>
    %cst_271 = arith.constant 1.000000e+00 : f32
    %cst_272 = arith.constant 0.000000e+00 : f32
    %759 = vector.broadcast %cst_271 : f32 to vector<2x16xf32>
    %760 = vector.broadcast %cst_272 : f32 to vector<2x16xf32>
    %761 = arith.select %758, %759, %760 : vector<2x16xi1>, vector<2x16xf32>
    %c1_i32 = arith.constant 1 : i32
    %762 = arith.maxsi %749, %c1_i32 : i32
    %763 = arith.sitofp %762 : i32 to f32
    %764 = vector.broadcast %763 : f32 to vector<2x16xf32>
    %765 = arith.divf %761, %764 : vector<2x16xf32>
    %766 = arith.addf %748, %765 : vector<2x16xf32>
    %c1_273 = arith.constant 1 : index
    %767 = memref.load %arg2[%c1_273] : memref<2xi32, #tpu.memory_space<smem>>
    %c1_i32_274 = arith.constant 1 : i32
    %768 = vector.broadcast %c1_i32_274 : i32 to vector<2x16xi32>
    %769 = arith.cmpi eq, %746, %768 : vector<2x16xi32>
    %c8_i32_275 = arith.constant 8 : i32
    %770 = vector.broadcast %c8_i32_275 : i32 to vector<2x16xi32>
    %771 = arith.cmpi sge, %747, %770 : vector<2x16xi32>
    %772 = arith.andi %769, %771 : vector<2x16xi1>
    %c8_i32_276 = arith.constant 8 : i32
    %773 = arith.addi %c8_i32_276, %767 : i32
    %774 = vector.broadcast %773 : i32 to vector<2x16xi32>
    %775 = arith.cmpi slt, %747, %774 : vector<2x16xi32>
    %776 = arith.andi %772, %775 : vector<2x16xi1>
    %cst_277 = arith.constant 1.000000e+00 : f32
    %cst_278 = arith.constant 0.000000e+00 : f32
    %777 = vector.broadcast %cst_277 : f32 to vector<2x16xf32>
    %778 = vector.broadcast %cst_278 : f32 to vector<2x16xf32>
    %779 = arith.select %776, %777, %778 : vector<2x16xi1>, vector<2x16xf32>
    %c1_i32_279 = arith.constant 1 : i32
    %780 = arith.maxsi %767, %c1_i32_279 : i32
    %781 = arith.sitofp %780 : i32 to f32
    %782 = vector.broadcast %781 : f32 to vector<2x16xf32>
    %783 = arith.divf %779, %782 : vector<2x16xf32>
    %784 = arith.addf %766, %783 : vector<2x16xf32>
    %cst_280 = arith.constant dense<0.000000e+00> : vector<2x32xf32>
    %785 = tpu.matmul %784, %745, %cst_280 {dimension_numbers = #tpu.dot_dimension_numbers<[1], [0], [0], [1], [0, 0, 1, 1], [], []>} : vector<2x16xf32>, vector<16x32xf32>, vector<2x32xf32> -> vector<2x32xf32>
    %c0_281 = arith.constant 0 : index
    %c0_282 = arith.constant 0 : index
    %786 = vector.load %arg38[%c0_281, %c0_282] : memref<32x128xf32, #tpu.memory_space<vmem>>, vector<32x128xf32>
    %cst_283 = arith.constant dense<0.000000e+00> : vector<2x128xf32>
    %787 = tpu.matmul %785, %786, %cst_283 {dimension_numbers = #tpu.dot_dimension_numbers<[1], [0], [0], [1], [0, 0, 1, 1], [], []>} : vector<2x32xf32>, vector<32x128xf32>, vector<2x128xf32> -> vector<2x128xf32>
    %c0_284 = arith.constant 0 : index
    %c0_285 = arith.constant 0 : index
    %788 = vector.load %arg39[%c0_284, %c0_285] : memref<1x128xf32, #tpu.memory_space<vmem>>, vector<1x128xf32>
    %789 = vector.broadcast %788 : vector<1x128xf32> to vector<2x128xf32>
    %790 = arith.addf %787, %789 : vector<2x128xf32>
    %791 = vector.extract_strided_slice %790 {offsets = [0, 0], sizes = [2, 16], strides = [1, 1]} : vector<2x128xf32> to vector<2x16xf32>
    %c0_286 = arith.constant 0 : index
    %c0_287 = arith.constant 0 : index
    %792 = vector.load %arg40[%c0_286, %c0_287] : memref<16x128xf32, #tpu.memory_space<vmem>>, vector<16x128xf32>
    %cst_288 = arith.constant dense<0.000000e+00> : vector<2x128xf32>
    %793 = tpu.matmul %791, %792, %cst_288 {dimension_numbers = #tpu.dot_dimension_numbers<[1], [0], [0], [1], [0, 0, 1, 1], [], []>} : vector<2x16xf32>, vector<16x128xf32>, vector<2x128xf32> -> vector<2x128xf32>
    %c0_289 = arith.constant 0 : index
    %c0_290 = arith.constant 0 : index
    %794 = vector.load %arg41[%c0_289, %c0_290] : memref<1x128xf32, #tpu.memory_space<vmem>>, vector<1x128xf32>
    %795 = vector.broadcast %794 : vector<1x128xf32> to vector<2x128xf32>
    %796 = arith.addf %793, %795 : vector<2x128xf32>
    %797 = arith.addf %790, %796 : vector<2x128xf32>
    %c0_291 = arith.constant 0 : index
    %c0_292 = arith.constant 0 : index
    %798 = vector.load %arg42[%c0_291, %c0_292] : memref<2x128xf32, #tpu.memory_space<vmem>>, vector<2x128xf32>
    tpu.vector_store %arg42[%c0_291, %c0_292], %797 {strides = array<i32>} : memref<2x128xf32, #tpu.memory_space<vmem>>, vector<2x128xf32>,
    return
  }
  func.func @transform_0(%arg0: i32, %arg1: memref<2xi32, #tpu.memory_space<smem>>, %arg2: memref<2xi32, #tpu.memory_space<smem>>) -> (i32, i32) {
    %c0_i32 = arith.constant 0 : i32
    %c0_i32_0 = arith.constant 0 : i32
    %c0_i32_1 = arith.constant 0 : i32
    return %c0_i32, %c0_i32_0 : i32, i32
  }
  func.func @transform_1(%arg0: i32, %arg1: memref<2xi32, #tpu.memory_space<smem>>, %arg2: memref<2xi32, #tpu.memory_space<smem>>) -> (i32, i32) {
    %c0_i32 = arith.constant 0 : i32
    %c0_i32_0 = arith.constant 0 : i32
    %c0_i32_1 = arith.constant 0 : i32
    return %c0_i32, %c0_i32_0 : i32, i32
  }
  func.func @transform_2(%arg0: i32, %arg1: memref<2xi32, #tpu.memory_space<smem>>, %arg2: memref<2xi32, #tpu.memory_space<smem>>) -> (i32, i32) {
    %c0_i32 = arith.constant 0 : i32
    %c0_i32_0 = arith.constant 0 : i32
    %c0_i32_1 = arith.constant 0 : i32
    return %c0_i32, %c0_i32_0 : i32, i32
  }
  func.func @transform_3(%arg0: i32, %arg1: memref<2xi32, #tpu.memory_space<smem>>, %arg2: memref<2xi32, #tpu.memory_space<smem>>) -> (i32, i32) {
    %c0_i32 = arith.constant 0 : i32
    %c0_i32_0 = arith.constant 0 : i32
    %c0_i32_1 = arith.constant 0 : i32
    return %c0_i32, %c0_i32_0 : i32, i32
  }
  func.func @transform_4(%arg0: i32, %arg1: memref<2xi32, #tpu.memory_space<smem>>, %arg2: memref<2xi32, #tpu.memory_space<smem>>) -> (i32, i32) {
    %c0_i32 = arith.constant 0 : i32
    %c0_i32_0 = arith.constant 0 : i32
    %c0_i32_1 = arith.constant 0 : i32
    return %c0_i32, %c0_i32_0 : i32, i32
  }
  func.func @transform_5(%arg0: i32, %arg1: memref<2xi32, #tpu.memory_space<smem>>, %arg2: memref<2xi32, #tpu.memory_space<smem>>) -> (i32, i32) {
    %c0_i32 = arith.constant 0 : i32
    %c0_i32_0 = arith.constant 0 : i32
    %c0_i32_1 = arith.constant 0 : i32
    return %c0_i32, %c0_i32_0 : i32, i32
  }
  func.func @transform_6(%arg0: i32, %arg1: memref<2xi32, #tpu.memory_space<smem>>, %arg2: memref<2xi32, #tpu.memory_space<smem>>) -> (i32, i32) {
    %c0_i32 = arith.constant 0 : i32
    %c0_i32_0 = arith.constant 0 : i32
    %c0_i32_1 = arith.constant 0 : i32
    return %c0_i32, %c0_i32_0 : i32, i32
  }
  func.func @transform_7(%arg0: i32, %arg1: memref<2xi32, #tpu.memory_space<smem>>, %arg2: memref<2xi32, #tpu.memory_space<smem>>) -> (i32, i32) {
    %c0_i32 = arith.constant 0 : i32
    %c0_i32_0 = arith.constant 0 : i32
    %c0_i32_1 = arith.constant 0 : i32
    return %c0_i32, %c0_i32_0 : i32, i32
  }
  func.func @transform_8(%arg0: i32, %arg1: memref<2xi32, #tpu.memory_space<smem>>, %arg2: memref<2xi32, #tpu.memory_space<smem>>) -> (i32, i32) {
    %c0_i32 = arith.constant 0 : i32
    %c0_i32_0 = arith.constant 0 : i32
    %c0_i32_1 = arith.constant 0 : i32
    return %c0_i32, %c0_i32_0 : i32, i32
  }
  func.func @transform_9(%arg0: i32, %arg1: memref<2xi32, #tpu.memory_space<smem>>, %arg2: memref<2xi32, #tpu.memory_space<smem>>) -> (i32, i32) {
    %c0_i32 = arith.constant 0 : i32
    %c0_i32_0 = arith.constant 0 : i32
    %c0_i32_1 = arith.constant 0 : i32
    return %c0_i32, %c0_i32_0 : i32, i32
  }
  func.func @transform_10(%arg0: i32, %arg1: memref<2xi32, #tpu.memory_space<smem>>, %arg2: memref<2xi32, #tpu.memory_space<smem>>) -> (i32, i32) {
    %c0_i32 = arith.constant 0 : i32
    %c0_i32_0 = arith.constant 0 : i32
    %c0_i32_1 = arith.constant 0 : i32
    return %c0_i32, %c0_i32_0 : i32, i32
  }
  func.func @transform_11(%arg0: i32, %arg1: memref<2xi32, #tpu.memory_space<smem>>, %arg2: memref<2xi32, #tpu.memory_space<smem>>) -> (i32, i32) {
    %c0_i32 = arith.constant 0 : i32
    %c0_i32_0 = arith.constant 0 : i32
    %c0_i32_1 = arith.constant 0 : i32
    return %c0_i32, %c0_i32_0 : i32, i32
  }
  func.func @transform_12(%arg0: i32, %arg1: memref<2xi32, #tpu.memory_space<smem>>, %arg2: memref<2xi32, #tpu.memory_space<smem>>) -> (i32, i32) {
    %c0_i32 = arith.constant 0 : i32
    %c0_i32_0 = arith.constant 0 : i32
    %c0_i32_1 = arith.constant 0 : i32
    return %c0_i32, %c0_i32_0 : i32, i32
  }
  func.func @transform_13(%arg0: i32, %arg1: memref<2xi32, #tpu.memory_space<smem>>, %arg2: memref<2xi32, #tpu.memory_space<smem>>) -> (i32, i32) {
    %c0_i32 = arith.constant 0 : i32
    %c0_i32_0 = arith.constant 0 : i32
    %c0_i32_1 = arith.constant 0 : i32
    return %c0_i32, %c0_i32_0 : i32, i32
  }
  func.func @transform_14(%arg0: i32, %arg1: memref<2xi32, #tpu.memory_space<smem>>, %arg2: memref<2xi32, #tpu.memory_space<smem>>) -> (i32, i32) {
    %c0_i32 = arith.constant 0 : i32
    %c0_i32_0 = arith.constant 0 : i32
    %c0_i32_1 = arith.constant 0 : i32
    return %c0_i32, %c0_i32_0 : i32, i32
  }
  func.func @transform_15(%arg0: i32, %arg1: memref<2xi32, #tpu.memory_space<smem>>, %arg2: memref<2xi32, #tpu.memory_space<smem>>) -> (i32, i32) {
    %c0_i32 = arith.constant 0 : i32
    %c0_i32_0 = arith.constant 0 : i32
    %c0_i32_1 = arith.constant 0 : i32
    return %c0_i32, %c0_i32_0 : i32, i32
  }
  func.func @transform_16(%arg0: i32, %arg1: memref<2xi32, #tpu.memory_space<smem>>, %arg2: memref<2xi32, #tpu.memory_space<smem>>) -> (i32, i32) {
    %c0_i32 = arith.constant 0 : i32
    %c0_i32_0 = arith.constant 0 : i32
    %c0_i32_1 = arith.constant 0 : i32
    return %c0_i32, %c0_i32_0 : i32, i32
  }
  func.func @transform_17(%arg0: i32, %arg1: memref<2xi32, #tpu.memory_space<smem>>, %arg2: memref<2xi32, #tpu.memory_space<smem>>) -> (i32, i32) {
    %c0_i32 = arith.constant 0 : i32
    %c0_i32_0 = arith.constant 0 : i32
    %c0_i32_1 = arith.constant 0 : i32
    return %c0_i32, %c0_i32_0 : i32, i32
  }
  func.func @transform_18(%arg0: i32, %arg1: memref<2xi32, #tpu.memory_space<smem>>, %arg2: memref<2xi32, #tpu.memory_space<smem>>) -> (i32, i32) {
    %c0_i32 = arith.constant 0 : i32
    %c0_i32_0 = arith.constant 0 : i32
    %c0_i32_1 = arith.constant 0 : i32
    return %c0_i32, %c0_i32_0 : i32, i32
  }
  func.func @transform_19(%arg0: i32, %arg1: memref<2xi32, #tpu.memory_space<smem>>, %arg2: memref<2xi32, #tpu.memory_space<smem>>) -> (i32, i32) {
    %c0_i32 = arith.constant 0 : i32
    %c0_i32_0 = arith.constant 0 : i32
    %c0_i32_1 = arith.constant 0 : i32
    return %c0_i32, %c0_i32_0 : i32, i32
  }
  func.func @transform_20(%arg0: i32, %arg1: memref<2xi32, #tpu.memory_space<smem>>, %arg2: memref<2xi32, #tpu.memory_space<smem>>) -> (i32, i32) {
    %c0_i32 = arith.constant 0 : i32
    %c0_i32_0 = arith.constant 0 : i32
    %c0_i32_1 = arith.constant 0 : i32
    return %c0_i32, %c0_i32_0 : i32, i32
  }
  func.func @transform_21(%arg0: i32, %arg1: memref<2xi32, #tpu.memory_space<smem>>, %arg2: memref<2xi32, #tpu.memory_space<smem>>) -> (i32, i32) {
    %c0_i32 = arith.constant 0 : i32
    %c0_i32_0 = arith.constant 0 : i32
    %c0_i32_1 = arith.constant 0 : i32
    return %c0_i32, %c0_i32_0 : i32, i32
  }
  func.func @transform_22(%arg0: i32, %arg1: memref<2xi32, #tpu.memory_space<smem>>, %arg2: memref<2xi32, #tpu.memory_space<smem>>) -> (i32, i32) {
    %c0_i32 = arith.constant 0 : i32
    %c0_i32_0 = arith.constant 0 : i32
    %c0_i32_1 = arith.constant 0 : i32
    return %c0_i32, %c0_i32_0 : i32, i32
  }
  func.func @transform_23(%arg0: i32, %arg1: memref<2xi32, #tpu.memory_space<smem>>, %arg2: memref<2xi32, #tpu.memory_space<smem>>) -> (i32, i32) {
    %c0_i32 = arith.constant 0 : i32
    %c0_i32_0 = arith.constant 0 : i32
    %c0_i32_1 = arith.constant 0 : i32
    return %c0_i32, %c0_i32_0 : i32, i32
  }
  func.func @transform_24(%arg0: i32, %arg1: memref<2xi32, #tpu.memory_space<smem>>, %arg2: memref<2xi32, #tpu.memory_space<smem>>) -> (i32, i32) {
    %c0_i32 = arith.constant 0 : i32
    %c0_i32_0 = arith.constant 0 : i32
    %c0_i32_1 = arith.constant 0 : i32
    return %c0_i32, %c0_i32_0 : i32, i32
  }
  func.func @transform_25(%arg0: i32, %arg1: memref<2xi32, #tpu.memory_space<smem>>, %arg2: memref<2xi32, #tpu.memory_space<smem>>) -> (i32, i32) {
    %c0_i32 = arith.constant 0 : i32
    %c0_i32_0 = arith.constant 0 : i32
    %c0_i32_1 = arith.constant 0 : i32
    return %c0_i32, %c0_i32_0 : i32, i32
  }
  func.func @transform_26(%arg0: i32, %arg1: memref<2xi32, #tpu.memory_space<smem>>, %arg2: memref<2xi32, #tpu.memory_space<smem>>) -> (i32, i32) {
    %c0_i32 = arith.constant 0 : i32
    %c0_i32_0 = arith.constant 0 : i32
    %c0_i32_1 = arith.constant 0 : i32
    return %c0_i32, %c0_i32_0 : i32, i32
  }
  func.func @transform_27(%arg0: i32, %arg1: memref<2xi32, #tpu.memory_space<smem>>, %arg2: memref<2xi32, #tpu.memory_space<smem>>) -> (i32, i32) {
    %c0_i32 = arith.constant 0 : i32
    %c0_i32_0 = arith.constant 0 : i32
    %c0_i32_1 = arith.constant 0 : i32
    return %c0_i32, %c0_i32_0 : i32, i32
  }
  func.func @transform_28(%arg0: i32, %arg1: memref<2xi32, #tpu.memory_space<smem>>, %arg2: memref<2xi32, #tpu.memory_space<smem>>) -> (i32, i32) {
    %c0_i32 = arith.constant 0 : i32
    %c0_i32_0 = arith.constant 0 : i32
    %c0_i32_1 = arith.constant 0 : i32
    return %c0_i32, %c0_i32_0 : i32, i32
  }
  func.func @transform_29(%arg0: i32, %arg1: memref<2xi32, #tpu.memory_space<smem>>, %arg2: memref<2xi32, #tpu.memory_space<smem>>) -> (i32, i32) {
    %c0_i32 = arith.constant 0 : i32
    %c0_i32_0 = arith.constant 0 : i32
    %c0_i32_1 = arith.constant 0 : i32
    return %c0_i32, %c0_i32_0 : i32, i32
  }
  func.func @transform_30(%arg0: i32, %arg1: memref<2xi32, #tpu.memory_space<smem>>, %arg2: memref<2xi32, #tpu.memory_space<smem>>) -> (i32, i32) {
    %c0_i32 = arith.constant 0 : i32
    %c0_i32_0 = arith.constant 0 : i32
    %c0_i32_1 = arith.constant 0 : i32
    return %c0_i32, %c0_i32_0 : i32, i32
  }
  func.func @transform_31(%arg0: i32, %arg1: memref<2xi32, #tpu.memory_space<smem>>, %arg2: memref<2xi32, #tpu.memory_space<smem>>) -> (i32, i32) {
    %c0_i32 = arith.constant 0 : i32
    %c0_i32_0 = arith.constant 0 : i32
    %c0_i32_1 = arith.constant 0 : i32
    return %c0_i32, %c0_i32_0 : i32, i32
  }
  func.func @transform_32(%arg0: i32, %arg1: memref<2xi32, #tpu.memory_space<smem>>, %arg2: memref<2xi32, #tpu.memory_space<smem>>) -> (i32, i32) {
    %c0_i32 = arith.constant 0 : i32
    %c0_i32_0 = arith.constant 0 : i32
    %c0_i32_1 = arith.constant 0 : i32
    return %c0_i32, %c0_i32_0 : i32, i32
  }
  func.func @transform_33(%arg0: i32, %arg1: memref<2xi32, #tpu.memory_space<smem>>, %arg2: memref<2xi32, #tpu.memory_space<smem>>) -> (i32, i32) {
    %c0_i32 = arith.constant 0 : i32
    %c0_i32_0 = arith.constant 0 : i32
    %c0_i32_1 = arith.constant 0 : i32
    return %c0_i32, %c0_i32_0 : i32, i32
  }
  func.func @transform_34(%arg0: i32, %arg1: memref<2xi32, #tpu.memory_space<smem>>, %arg2: memref<2xi32, #tpu.memory_space<smem>>) -> (i32, i32) {
    %c0_i32 = arith.constant 0 : i32
    %c0_i32_0 = arith.constant 0 : i32
    %c0_i32_1 = arith.constant 0 : i32
    return %c0_i32, %c0_i32_0 : i32, i32
  }
  func.func @transform_35(%arg0: i32, %arg1: memref<2xi32, #tpu.memory_space<smem>>, %arg2: memref<2xi32, #tpu.memory_space<smem>>) -> (i32, i32) {
    %c0_i32 = arith.constant 0 : i32
    %c0_i32_0 = arith.constant 0 : i32
    %c0_i32_1 = arith.constant 0 : i32
    return %c0_i32, %c0_i32_0 : i32, i32
  }
  func.func @transform_36(%arg0: i32, %arg1: memref<2xi32, #tpu.memory_space<smem>>, %arg2: memref<2xi32, #tpu.memory_space<smem>>) -> (i32, i32) {
    %c0_i32 = arith.constant 0 : i32
    %c0_i32_0 = arith.constant 0 : i32
    %c0_i32_1 = arith.constant 0 : i32
    return %c0_i32, %c0_i32_0 : i32, i32
  }
  func.func @transform_37(%arg0: i32, %arg1: memref<2xi32, #tpu.memory_space<smem>>, %arg2: memref<2xi32, #tpu.memory_space<smem>>) -> (i32, i32) {
    %c0_i32 = arith.constant 0 : i32
    %c0_i32_0 = arith.constant 0 : i32
    %c0_i32_1 = arith.constant 0 : i32
    return %c0_i32, %c0_i32_0 : i32, i32
  }
  func.func @transform_38(%arg0: i32, %arg1: memref<2xi32, #tpu.memory_space<smem>>, %arg2: memref<2xi32, #tpu.memory_space<smem>>) -> (i32, i32) {
    %c0_i32 = arith.constant 0 : i32
    %c0_i32_0 = arith.constant 0 : i32
    %c0_i32_1 = arith.constant 0 : i32
    return %c0_i32, %c0_i32_0 : i32, i32
  }
  func.func @transform_39(%arg0: i32, %arg1: memref<2xi32, #tpu.memory_space<smem>>, %arg2: memref<2xi32, #tpu.memory_space<smem>>) -> (i32, i32) {
    %c0_i32 = arith.constant 0 : i32
    %c0_i32_0 = arith.constant 0 : i32
    %c0_i32_1 = arith.constant 0 : i32
    return %c0_i32, %c0_i32_0 : i32, i32
  }
}

</mosaic_0001>

<llo_original>
// kernel: splitbert_forward.1
$region0: #{splitbert_forward.1}
  #allocation0 [shape = 'u32[]', space=smem, size = 0x4, offset = 0x4, fixed_abs, tag = 'smem constant byte address 0x4 - core index']
  #allocation1 [shape = 'u32[72,128]{1,0:T(1,128)}', space=vmem, size = 0x9000, scoped, tag = 'internal scratch']
  #allocation2 [shape = 's32[1]{0}', space=sflag, size = 0x4, scoped, tag = 'scoped memory for splitbert_forward.1']
  #allocation3 [shape = 'u8[512]{0}', space=smem, size = 0x200, scoped, tag = 'prefetched SMEM operand 0']
  #allocation4 [shape = 'u8[512]{0}', space=smem, size = 0x200, scoped, tag = 'prefetched SMEM operand 1']
  %s0 = inlined_call_operand.smem [shape: u32[42], index: -1, kind: input, shape index: {}]
  %s1 = sld [smem:[%s0]]
  %s2 = scalar_lea.smem %s0, 1
  %s3 = sld [smem:[%s2]]
  %s4 = scalar_lea.smem %s0, 2
  %s5 = sld [smem:[%s4]]
  %s6 = scalar_lea.smem %s0, 3
  %s7 = sld [smem:[%s6]]
  %s8 = scalar_lea.smem %s0, 4
  %s9 = sld [smem:[%s8]]
  %s10 = scalar_lea.smem %s0, 5
  %s11 = sld [smem:[%s10]]
  %s12 = scalar_lea.smem %s0, 6
  %s13 = sld [smem:[%s12]]
  %s14 = scalar_lea.smem %s0, 7
  %s15 = sld [smem:[%s14]]
  %s16 = scalar_lea.smem %s0, 8
  %s17 = sld [smem:[%s16]]
  %s18 = scalar_lea.smem %s0, 9
  %s19 = sld [smem:[%s18]]
  %s20 = scalar_lea.smem %s0, 10
  %s21 = sld [smem:[%s20]]
  %s22 = scalar_lea.smem %s0, 11
  %s23 = sld [smem:[%s22]]
  %s24 = scalar_lea.smem %s0, 12
  %s25 = sld [smem:[%s24]]
  %s26 = scalar_lea.smem %s0, 13
  %s27 = sld [smem:[%s26]]
  %s28 = scalar_lea.smem %s0, 14
  %s29 = sld [smem:[%s28]]
  %s30 = scalar_lea.smem %s0, 15
  %s31 = sld [smem:[%s30]]
  %s32 = scalar_lea.smem %s0, 16
  %s33 = sld [smem:[%s32]]
  %s34 = scalar_lea.smem %s0, 17
  %s35 = sld [smem:[%s34]]
  %s36 = scalar_lea.smem %s0, 18
  %s37 = sld [smem:[%s36]]
  %s38 = scalar_lea.smem %s0, 19
  %s39 = sld [smem:[%s38]]
  %s40 = scalar_lea.smem %s0, 20
  %s41 = sld [smem:[%s40]]
  %s42 = scalar_lea.smem %s0, 21
  %s43 = sld [smem:[%s42]]
  %s44 = scalar_lea.smem %s0, 22
  %s45 = sld [smem:[%s44]]
  %s46 = scalar_lea.smem %s0, 23
  %s47 = sld [smem:[%s46]]
  %s48 = scalar_lea.smem %s0, 24
  %s49 = sld [smem:[%s48]]
  %s50 = scalar_lea.smem %s0, 25
  %s51 = sld [smem:[%s50]]
  %s52 = scalar_lea.smem %s0, 26
  %s53 = sld [smem:[%s52]]
  %s54 = scalar_lea.smem %s0, 27
  %s55 = sld [smem:[%s54]]
  %s56 = scalar_lea.smem %s0, 28
  %s57 = sld [smem:[%s56]]
  %s58 = scalar_lea.smem %s0, 29
  %s59 = sld [smem:[%s58]]
  %s60 = scalar_lea.smem %s0, 30
  %s61 = sld [smem:[%s60]]
  %s62 = scalar_lea.smem %s0, 31
  %s63 = sld [smem:[%s62]]
  %s64 = scalar_lea.smem %s0, 32
  %s65 = sld [smem:[%s64]]
  %s66 = scalar_lea.smem %s0, 33
  %s67 = sld [smem:[%s66]]
  %s68 = scalar_lea.smem %s0, 34
  %s69 = sld [smem:[%s68]]
  %s70 = scalar_lea.smem %s0, 35
  %s71 = sld [smem:[%s70]]
  %s72 = scalar_lea.smem %s0, 36
  %s73 = sld [smem:[%s72]]
  %s74 = scalar_lea.smem %s0, 37
  %s75 = sld [smem:[%s74]]
  %s76 = scalar_lea.smem %s0, 38
  %s77 = sld [smem:[%s76]]
  %s78 = scalar_lea.smem %s0, 39
  %s79 = sld [smem:[%s78]]
  %s80 = scalar_lea.smem %s0, 40
  %s81 = sld [smem:[%s80]]
  %s82 = scalar_lea.smem %s0, 41
  %s83 = sld [smem:[%s82]]
  %s84 = sld [smem:[#allocation0]]
  $region170: #{splitbert_forward.1} parent=0
    _
  %s86 = ssub.s32 1, %s84
  %s87 = scalar_select 0, %s86, %s84
  %s89 = sshll.u32 %s1, 4
  %s90 = int_to_ptr.vmem [resolvable:$true] %s89
  %92 = dma.vmem_to_smem %s90, 16, [#allocation3], [#allocation2]
  %s94 = sshll.u32 %s3, 4
  %s95 = int_to_ptr.vmem [resolvable:$true] %s94
  %97 = dma.vmem_to_smem %s95, 16, [#allocation4], [#allocation2]
  %99 = dma.done [#allocation2], 32
  %100 = sfence
  $region1: #{splitbert_forward.1} parent=0
    #allocation5 [shape = 'u8[512]{0}', space=vmem, size = 0x400, scoped, tag = 'input window, operand 40, single buffered']
    #allocation6 [shape = 's32[1]{0}', space=sflag, size = 0x4, scoped, tag = 'scoped memory for splitbert_forward.1']
    %101 = vsyncpa [#allocation6], 0
    // Predicated region
    $region2: #{splitbert_forward.1} parent=1 // pred_check
      _
    $region3: #{splitbert_forward.1} parent=1 // pred_check_branch
      %103 = sbr.rel (0) target = $region5
    $region4: #{splitbert_forward.1} parent=1 // pred_region
      _
    $region5: #{splitbert_forward.1} parent=1 // pred_fallthru
      _
    // Predicated region
    $region6: #{splitbert_forward.1} parent=1 // pred_check
      _
    $region7: #{splitbert_forward.1} parent=1 // pred_check_branch
      %105 = sbr.rel (0) target = $region9
    $region8: #{splitbert_forward.1} parent=1 // pred_region
      _
    $region9: #{splitbert_forward.1} parent=1 // pred_fallthru
      _
    // Predicated region
    $region10: #{splitbert_forward.1} parent=1 // pred_check
      _
    $region11: #{splitbert_forward.1} parent=1 // pred_check_branch
      %107 = sbr.rel (0) target = $region13
    $region12: #{splitbert_forward.1} parent=1 // pred_region
      _
    $region13: #{splitbert_forward.1} parent=1 // pred_fallthru
      _
    // Predicated region
    $region14: #{splitbert_forward.1} parent=1 // pred_check
      _
    $region15: #{splitbert_forward.1} parent=1 // pred_check_branch
      %109 = sbr.rel (0) target = $region17
    $region16: #{splitbert_forward.1} parent=1 // pred_region
      _
    $region17: #{splitbert_forward.1} parent=1 // pred_fallthru
      _
    // Predicated region
    $region18: #{splitbert_forward.1} parent=1 // pred_check
      _
    $region19: #{splitbert_forward.1} parent=1 // pred_check_branch
      %111 = sbr.rel (0) target = $region21
    $region20: #{splitbert_forward.1} parent=1 // pred_region
      _
    $region21: #{splitbert_forward.1} parent=1 // pred_fallthru
      _
    // Predicated region
    $region22: #{splitbert_forward.1} parent=1 // pred_check
      _
    $region23: #{splitbert_forward.1} parent=1 // pred_check_branch
      %113 = sbr.rel (0) target = $region25
    $region24: #{splitbert_forward.1} parent=1 // pred_region
      _
    $region25: #{splitbert_forward.1} parent=1 // pred_fallthru
      _
    // Predicated region
    $region26: #{splitbert_forward.1} parent=1 // pred_check
      _
    $region27: #{splitbert_forward.1} parent=1 // pred_check_branch
      %115 = sbr.rel (0) target = $region29
    $region28: #{splitbert_forward.1} parent=1 // pred_region
      _
    $region29: #{splitbert_forward.1} parent=1 // pred_fallthru
      _
    // Predicated region
    $region30: #{splitbert_forward.1} parent=1 // pred_check
      _
    $region31: #{splitbert_forward.1} parent=1 // pred_check_branch
      %117 = sbr.rel (0) target = $region33
    $region32: #{splitbert_forward.1} parent=1 // pred_region
      _
    $region33: #{splitbert_forward.1} parent=1 // pred_fallthru
      _
    // Predicated region
    $region34: #{splitbert_forward.1} parent=1 // pred_check
      _
    $region35: #{splitbert_forward.1} parent=1 // pred_check_branch
      %119 = sbr.rel (0) target = $region37
    $region36: #{splitbert_forward.1} parent=1 // pred_region
      _
    $region37: #{splitbert_forward.1} parent=1 // pred_fallthru
      _
    // Predicated region
    $region38: #{splitbert_forward.1} parent=1 // pred_check
      _
    $region39: #{splitbert_forward.1} parent=1 // pred_check_branch
      %121 = sbr.rel (0) target = $region41
    $region40: #{splitbert_forward.1} parent=1 // pred_region
      _
    $region41: #{splitbert_forward.1} parent=1 // pred_fallthru
      _
    // Predicated region
    $region42: #{splitbert_forward.1} parent=1 // pred_check
      _
    $region43: #{splitbert_forward.1} parent=1 // pred_check_branch
      %123 = sbr.rel (0) target = $region45
    $region44: #{splitbert_forward.1} parent=1 // pred_region
      _
    $region45: #{splitbert_forward.1} parent=1 // pred_fallthru
      _
    // Predicated region
    $region46: #{splitbert_forward.1} parent=1 // pred_check
      _
    $region47: #{splitbert_forward.1} parent=1 // pred_check_branch
      %125 = sbr.rel (0) target = $region49
    $region48: #{splitbert_forward.1} parent=1 // pred_region
      _
    $region49: #{splitbert_forward.1} parent=1 // pred_fallthru
      _
    // Predicated region
    $region50: #{splitbert_forward.1} parent=1 // pred_check
      _
    $region51: #{splitbert_forward.1} parent=1 // pred_check_branch
      %127 = sbr.rel (0) target = $region53
    $region52: #{splitbert_forward.1} parent=1 // pred_region
      _
    $region53: #{splitbert_forward.1} parent=1 // pred_fallthru
      _
    // Predicated region
    $region54: #{splitbert_forward.1} parent=1 // pred_check
      _
    $region55: #{splitbert_forward.1} parent=1 // pred_check_branch
      %129 = sbr.rel (0) target = $region57
    $region56: #{splitbert_forward.1} parent=1 // pred_region
      _
    $region57: #{splitbert_forward.1} parent=1 // pred_fallthru
      _
    // Predicated region
    $region58: #{splitbert_forward.1} parent=1 // pred_check
      _
    $region59: #{splitbert_forward.1} parent=1 // pred_check_branch
      %131 = sbr.rel (0) target = $region61
    $region60: #{splitbert_forward.1} parent=1 // pred_region
      _
    $region61: #{splitbert_forward.1} parent=1 // pred_fallthru
      _
    // Predicated region
    $region62: #{splitbert_forward.1} parent=1 // pred_check
      _
    $region63: #{splitbert_forward.1} parent=1 // pred_check_branch
      %133 = sbr.rel (0) target = $region65
    $region64: #{splitbert_forward.1} parent=1 // pred_region
      _
    $region65: #{splitbert_forward.1} parent=1 // pred_fallthru
      _
    // Predicated region
    $region66: #{splitbert_forward.1} parent=1 // pred_check
      _
    $region67: #{splitbert_forward.1} parent=1 // pred_check_branch
      %135 = sbr.rel (0) target = $region69
    $region68: #{splitbert_forward.1} parent=1 // pred_region
      _
    $region69: #{splitbert_forward.1} parent=1 // pred_fallthru
      _
    // Predicated region
    $region70: #{splitbert_forward.1} parent=1 // pred_check
      _
    $region71: #{splitbert_forward.1} parent=1 // pred_check_branch
      %137 = sbr.rel (0) target = $region73
    $region72: #{splitbert_forward.1} parent=1 // pred_region
      _
    $region73: #{splitbert_forward.1} parent=1 // pred_fallthru
      _
    // Predicated region
    $region74: #{splitbert_forward.1} parent=1 // pred_check
      _
    $region75: #{splitbert_forward.1} parent=1 // pred_check_branch
      %139 = sbr.rel (0) target = $region77
    $region76: #{splitbert_forward.1} parent=1 // pred_region
      _
    $region77: #{splitbert_forward.1} parent=1 // pred_fallthru
      _
    // Predicated region
    $region78: #{splitbert_forward.1} parent=1 // pred_check
      _
    $region79: #{splitbert_forward.1} parent=1 // pred_check_branch
      %141 = sbr.rel (0) target = $region81
    $region80: #{splitbert_forward.1} parent=1 // pred_region
      _
    $region81: #{splitbert_forward.1} parent=1 // pred_fallthru
      _
    // Predicated region
    $region82: #{splitbert_forward.1} parent=1 // pred_check
      _
    $region83: #{splitbert_forward.1} parent=1 // pred_check_branch
      %143 = sbr.rel (0) target = $region85
    $region84: #{splitbert_forward.1} parent=1 // pred_region
      _
    $region85: #{splitbert_forward.1} parent=1 // pred_fallthru
      _
    // Predicated region
    $region86: #{splitbert_forward.1} parent=1 // pred_check
      _
    $region87: #{splitbert_forward.1} parent=1 // pred_check_branch
      %145 = sbr.rel (0) target = $region89
    $region88: #{splitbert_forward.1} parent=1 // pred_region
      _
    $region89: #{splitbert_forward.1} parent=1 // pred_fallthru
      _
    // Predicated region
    $region90: #{splitbert_forward.1} parent=1 // pred_check
      _
    $region91: #{splitbert_forward.1} parent=1 // pred_check_branch
      %147 = sbr.rel (0) target = $region93
    $region92: #{splitbert_forward.1} parent=1 // pred_region
      _
    $region93: #{splitbert_forward.1} parent=1 // pred_fallthru
      _
    // Predicated region
    $region94: #{splitbert_forward.1} parent=1 // pred_check
      _
    $region95: #{splitbert_forward.1} parent=1 // pred_check_branch
      %149 = sbr.rel (0) target = $region97
    $region96: #{splitbert_forward.1} parent=1 // pred_region
      _
    $region97: #{splitbert_forward.1} parent=1 // pred_fallthru
      _
    // Predicated region
    $region98: #{splitbert_forward.1} parent=1 // pred_check
      _
    $region99: #{splitbert_forward.1} parent=1 // pred_check_branch
      %151 = sbr.rel (0) target = $region101
    $region100: #{splitbert_forward.1} parent=1 // pred_region
      _
    $region101: #{splitbert_forward.1} parent=1 // pred_fallthru
      _
    // Predicated region
    $region102: #{splitbert_forward.1} parent=1 // pred_check
      _
    $region103: #{splitbert_forward.1} parent=1 // pred_check_branch
      %153 = sbr.rel (0) target = $region105
    $region104: #{splitbert_forward.1} parent=1 // pred_region
      _
    $region105: #{splitbert_forward.1} parent=1 // pred_fallthru
      _
    // Predicated region
    $region106: #{splitbert_forward.1} parent=1 // pred_check
      _
    $region107: #{splitbert_forward.1} parent=1 // pred_check_branch
      %155 = sbr.rel (0) target = $region109
    $region108: #{splitbert_forward.1} parent=1 // pred_region
      _
    $region109: #{splitbert_forward.1} parent=1 // pred_fallthru
      _
    // Predicated region
    $region110: #{splitbert_forward.1} parent=1 // pred_check
      _
    $region111: #{splitbert_forward.1} parent=1 // pred_check_branch
      %157 = sbr.rel (0) target = $region113
    $region112: #{splitbert_forward.1} parent=1 // pred_region
      _
    $region113: #{splitbert_forward.1} parent=1 // pred_fallthru
      _
    // Predicated region
    $region114: #{splitbert_forward.1} parent=1 // pred_check
      _
    $region115: #{splitbert_forward.1} parent=1 // pred_check_branch
      %159 = sbr.rel (0) target = $region117
    $region116: #{splitbert_forward.1} parent=1 // pred_region
      _
    $region117: #{splitbert_forward.1} parent=1 // pred_fallthru
      _
    // Predicated region
    $region118: #{splitbert_forward.1} parent=1 // pred_check
      _
    $region119: #{splitbert_forward.1} parent=1 // pred_check_branch
      %161 = sbr.rel (0) target = $region121
    $region120: #{splitbert_forward.1} parent=1 // pred_region
      _
    $region121: #{splitbert_forward.1} parent=1 // pred_fallthru
      _
    // Predicated region
    $region122: #{splitbert_forward.1} parent=1 // pred_check
      _
    $region123: #{splitbert_forward.1} parent=1 // pred_check_branch
      %163 = sbr.rel (0) target = $region125
    $region124: #{splitbert_forward.1} parent=1 // pred_region
      _
    $region125: #{splitbert_forward.1} parent=1 // pred_fallthru
      _
    // Predicated region
    $region126: #{splitbert_forward.1} parent=1 // pred_check
      _
    $region127: #{splitbert_forward.1} parent=1 // pred_check_branch
      %165 = sbr.rel (0) target = $region129
    $region128: #{splitbert_forward.1} parent=1 // pred_region
      _
    $region129: #{splitbert_forward.1} parent=1 // pred_fallthru
      _
    // Predicated region
    $region130: #{splitbert_forward.1} parent=1 // pred_check
      _
    $region131: #{splitbert_forward.1} parent=1 // pred_check_branch
      %167 = sbr.rel (0) target = $region133
    $region132: #{splitbert_forward.1} parent=1 // pred_region
      _
    $region133: #{splitbert_forward.1} parent=1 // pred_fallthru
      _
    // Predicated region
    $region134: #{splitbert_forward.1} parent=1 // pred_check
      _
    $region135: #{splitbert_forward.1} parent=1 // pred_check_branch
      %169 = sbr.rel (0) target = $region137
    $region136: #{splitbert_forward.1} parent=1 // pred_region
      _
    $region137: #{splitbert_forward.1} parent=1 // pred_fallthru
      _
    // Predicated region
    $region138: #{splitbert_forward.1} parent=1 // pred_check
      _
    $region139: #{splitbert_forward.1} parent=1 // pred_check_branch
      %171 = sbr.rel (0) target = $region141
    $region140: #{splitbert_forward.1} parent=1 // pred_region
      _
    $region141: #{splitbert_forward.1} parent=1 // pred_fallthru
      _
    // Predicated region
    $region142: #{splitbert_forward.1} parent=1 // pred_check
      _
    $region143: #{splitbert_forward.1} parent=1 // pred_check_branch
      %173 = sbr.rel (0) target = $region145
    $region144: #{splitbert_forward.1} parent=1 // pred_region
      _
    $region145: #{splitbert_forward.1} parent=1 // pred_fallthru
      _
    // Predicated region
    $region146: #{splitbert_forward.1} parent=1 // pred_check
      _
    $region147: #{splitbert_forward.1} parent=1 // pred_check_branch
      %175 = sbr.rel (0) target = $region149
    $region148: #{splitbert_forward.1} parent=1 // pred_region
      _
    $region149: #{splitbert_forward.1} parent=1 // pred_fallthru
      _
    // Predicated region
    $region150: #{splitbert_forward.1} parent=1 // pred_check
      _
    $region151: #{splitbert_forward.1} parent=1 // pred_check_branch
      %177 = sbr.rel (0) target = $region153
    $region152: #{splitbert_forward.1} parent=1 // pred_region
      _
    $region153: #{splitbert_forward.1} parent=1 // pred_fallthru
      _
    // Predicated region
    $region154: #{splitbert_forward.1} parent=1 // pred_check
      _
    $region155: #{splitbert_forward.1} parent=1 // pred_check_branch
      %179 = sbr.rel (0) target = $region157
    $region156: #{splitbert_forward.1} parent=1 // pred_region
      %181 = vsyncadd [#allocation6], 0
      %s183 = sshll.u32 %s81, 4
      %s184 = int_to_ptr.hbm [resolvable:$true] %s183
      %s185 = sshll.u32 [#allocation5], 4
      %s186 = int_to_ptr.vmem [resolvable:$true] %s185
      %188 = dma.hbm_to_vmem [thread:$0]  %s184, 16, %s186, [#allocation6]
    $region157: #{splitbert_forward.1} parent=1 // pred_fallthru
      _
    // Predicated region
    $region158: #{splitbert_forward.1} parent=1 // pred_check
      _
    $region159: #{splitbert_forward.1} parent=1 // pred_check_branch
      %190 = sbr.rel (0) target = $region161
    $region160: #{splitbert_forward.1} parent=1 // pred_region
      %192 = dma.done [#allocation6], 16
    $region161: #{splitbert_forward.1} parent=1 // pred_fallthru
      _
    %v194 = vlaneseq
    %v195 = vshrl.u32 %v194, 7
    %v196 = vadd.s32 %v195, 8
    %v197 = vadd.s32 %v195, 16
    %v198 = vadd.s32 %v195, 24
    %v199 = vlaneseq
    %v200 = vand.u32 %v199, 127
    %v201 = vadd.s32 %v200, 128
    %v202 = vadd.s32 %v200, 256
    %v203 = vadd.s32 %v200, 384
    %v204 = vld [vmem:[%s7] sm:$0xff]
    %v205 = vld [vmem:[%s7 + $0x8] sm:$0xff]
    %v206 = vld [vmem:[%s7 + $0x10] sm:$0xff]
    %v207 = vld [vmem:[%s7 + $0x18] sm:$0xff]
    %v208 = vmul.u32 %v195, 16
    %v209 = vmul.u32 %v196, 16
    %v210 = vmul.u32 %v197, 16
    %v211 = vmul.u32 %v198, 16
    %vm212 = vcmp.ge.s32.totalorder %v200, %v208
    %vm213 = vcmp.ge.s32.totalorder %v201, %v208
    %vm214 = vcmp.ge.s32.totalorder %v202, %v208
    %vm215 = vcmp.ge.s32.totalorder %v203, %v208
    %vm216 = vcmp.ge.s32.totalorder %v200, %v209
    %vm217 = vcmp.ge.s32.totalorder %v201, %v209
    %vm218 = vcmp.ge.s32.totalorder %v202, %v209
    %vm219 = vcmp.ge.s32.totalorder %v203, %v209
    %vm220 = vcmp.ge.s32.totalorder %v200, %v210
    %vm221 = vcmp.ge.s32.totalorder %v201, %v210
    %vm222 = vcmp.ge.s32.totalorder %v202, %v210
    %vm223 = vcmp.ge.s32.totalorder %v203, %v210
    %vm224 = vcmp.ge.s32.totalorder %v200, %v211
    %vm225 = vcmp.ge.s32.totalorder %v201, %v211
    %vm226 = vcmp.ge.s32.totalorder %v202, %v211
    %vm227 = vcmp.ge.s32.totalorder %v203, %v211
    %vm228 = vcmp.lt.s32.totalorder %v204, 16
    %v229 = vsel %vm228, %v204, 16
    %vm230 = vcmp.lt.s32.totalorder %v205, 16
    %v231 = vsel %vm230, %v205, 16
    %vm232 = vcmp.lt.s32.totalorder %v206, 16
    %v233 = vsel %vm232, %v206, 16
    %vm234 = vcmp.lt.s32.totalorder %v207, 16
    %v235 = vsel %vm234, %v207, 16
    %236 = vset.pattern.permute.xlu0 0
    %237 = vperm.xlu0 %236, %v229
    %v238 = vpop.permute.xlu0 %237
    %239 = vset.pattern.permute.xlu0 0
    %240 = vperm.xlu0 %239, %v231
    %v241 = vpop.permute.xlu0 %240
    %242 = vset.pattern.permute.xlu0 0
    %243 = vperm.xlu0 %242, %v233
    %v244 = vpop.permute.xlu0 %243
    %245 = vset.pattern.permute.xlu0 0
    %246 = vperm.xlu0 %245, %v235
    %v247 = vpop.permute.xlu0 %246
    %v248 = vadd.s32 %v208, %v238
    %v249 = vadd.s32 %v209, %v241
    %v250 = vadd.s32 %v210, %v244
    %v251 = vadd.s32 %v211, %v247
    %vm252 = vcmp.lt.s32.totalorder %v200, %v248
    %vm253 = vcmp.lt.s32.totalorder %v201, %v248
    %vm254 = vcmp.lt.s32.totalorder %v202, %v248
    %vm255 = vcmp.lt.s32.totalorder %v203, %v248
    %vm256 = vcmp.lt.s32.totalorder %v200, %v249
    %vm257 = vcmp.lt.s32.totalorder %v201, %v249
    %vm258 = vcmp.lt.s32.totalorder %v202, %v249
    %vm259 = vcmp.lt.s32.totalorder %v203, %v249
    %vm260 = vcmp.lt.s32.totalorder %v200, %v250
    %vm261 = vcmp.lt.s32.totalorder %v201, %v250
    %vm262 = vcmp.lt.s32.totalorder %v202, %v250
    %vm263 = vcmp.lt.s32.totalorder %v203, %v250
    %vm264 = vcmp.lt.s32.totalorder %v200, %v251
    %vm265 = vcmp.lt.s32.totalorder %v201, %v251
    %vm266 = vcmp.lt.s32.totalorder %v202, %v251
    %vm267 = vcmp.lt.s32.totalorder %v203, %v251
    %vm268 = vmand %vm212, %vm252
    %vm269 = vmand %vm213, %vm253
    %vm270 = vmand %vm214, %vm254
    %vm271 = vmand %vm215, %vm255
    %vm272 = vmand %vm216, %vm256
    %vm273 = vmand %vm217, %vm257
    %vm274 = vmand %vm218, %vm258
    %vm275 = vmand %vm219, %vm259
    %vm276 = vmand %vm220, %vm260
    %vm277 = vmand %vm221, %vm261
    %vm278 = vmand %vm222, %vm262
    %vm279 = vmand %vm223, %vm263
    %vm280 = vmand %vm224, %vm264
    %vm281 = vmand %vm225, %vm265
    %vm282 = vmand %vm226, %vm266
    %vm283 = vmand %vm227, %vm267
    %v284 = vsel %vm268, 1.0, 0.0
    %v285 = vsel %vm269, 1.0, 0.0
    %v286 = vsel %vm270, 1.0, 0.0
    %v287 = vsel %vm271, 1.0, 0.0
    %v288 = vsel %vm272, 1.0, 0.0
    %v289 = vsel %vm273, 1.0, 0.0
    %v290 = vsel %vm274, 1.0, 0.0
    %v291 = vsel %vm275, 1.0, 0.0
    %v292 = vsel %vm276, 1.0, 0.0
    %v293 = vsel %vm277, 1.0, 0.0
    %v294 = vsel %vm278, 1.0, 0.0
    %v295 = vsel %vm279, 1.0, 0.0
    %v296 = vsel %vm280, 1.0, 0.0
    %v297 = vsel %vm281, 1.0, 0.0
    %v298 = vsel %vm282, 1.0, 0.0
    %v299 = vsel %vm283, 1.0, 0.0
    %v300 = vld [vmem:[%s5] sm:$0xff]
    %v301 = vld [vmem:[%s5 + $0x8] sm:$0xff]
    %v302 = vld [vmem:[%s5 + $0x10] sm:$0xff]
    %v303 = vld [vmem:[%s5 + $0x18] sm:$0xff]
    %v304 = vld [vmem:[%s5 + $0x20] sm:$0xff]
    %v305 = vld [vmem:[%s5 + $0x28] sm:$0xff]
    %v306 = vld [vmem:[%s5 + $0x30] sm:$0xff]
    %v307 = vld [vmem:[%s5 + $0x38] sm:$0xff]
    %v308 = vld [vmem:[%s5 + $0x40] sm:$0xff]
    %v309 = vld [vmem:[%s5 + $0x48] sm:$0xff]
    %v310 = vld [vmem:[%s5 + $0x50] sm:$0xff]
    %v311 = vld [vmem:[%s5 + $0x58] sm:$0xff]
    %v312 = vld [vmem:[%s5 + $0x60] sm:$0xff]
    %v313 = vld [vmem:[%s5 + $0x68] sm:$0xff]
    %v314 = vld [vmem:[%s5 + $0x70] sm:$0xff]
    %v315 = vld [vmem:[%s5 + $0x78] sm:$0xff]
    %v316 = vld [vmem:[%s5 + $0x80] sm:$0xff]
    %v317 = vld [vmem:[%s5 + $0x88] sm:$0xff]
    %v318 = vld [vmem:[%s5 + $0x90] sm:$0xff]
    %v319 = vld [vmem:[%s5 + $0x98] sm:$0xff]
    %v320 = vld [vmem:[%s5 + $0xa0] sm:$0xff]
    %v321 = vld [vmem:[%s5 + $0xa8] sm:$0xff]
    %v322 = vld [vmem:[%s5 + $0xb0] sm:$0xff]
    %v323 = vld [vmem:[%s5 + $0xb8] sm:$0xff]
    %v324 = vld [vmem:[%s5 + $0xc0] sm:$0xff]
    %v325 = vld [vmem:[%s5 + $0xc8] sm:$0xff]
    %v326 = vld [vmem:[%s5 + $0xd0] sm:$0xff]
    %v327 = vld [vmem:[%s5 + $0xd8] sm:$0xff]
    %v328 = vld [vmem:[%s5 + $0xe0] sm:$0xff]
    %v329 = vld [vmem:[%s5 + $0xe8] sm:$0xff]
    %v330 = vld [vmem:[%s5 + $0xf0] sm:$0xff]
    %v331 = vld [vmem:[%s5 + $0xf8] sm:$0xff]
    %v332 = vld [vmem:[%s5 + $0x100] sm:$0xff]
    %v333 = vld [vmem:[%s5 + $0x108] sm:$0xff]
    %v334 = vld [vmem:[%s5 + $0x110] sm:$0xff]
    %v335 = vld [vmem:[%s5 + $0x118] sm:$0xff]
    %v336 = vld [vmem:[%s5 + $0x120] sm:$0xff]
    %v337 = vld [vmem:[%s5 + $0x128] sm:$0xff]
    %v338 = vld [vmem:[%s5 + $0x130] sm:$0xff]
    %v339 = vld [vmem:[%s5 + $0x138] sm:$0xff]
    %v340 = vld [vmem:[%s5 + $0x140] sm:$0xff]
    %v341 = vld [vmem:[%s5 + $0x148] sm:$0xff]
    %v342 = vld [vmem:[%s5 + $0x150] sm:$0xff]
    %v343 = vld [vmem:[%s5 + $0x158] sm:$0xff]
    %v344 = vld [vmem:[%s5 + $0x160] sm:$0xff]
    %v345 = vld [vmem:[%s5 + $0x168] sm:$0xff]
    %v346 = vld [vmem:[%s5 + $0x170] sm:$0xff]
    %v347 = vld [vmem:[%s5 + $0x178] sm:$0xff]
    %v348 = vld [vmem:[%s5 + $0x180] sm:$0xff]
    %v349 = vld [vmem:[%s5 + $0x188] sm:$0xff]
    %v350 = vld [vmem:[%s5 + $0x190] sm:$0xff]
    %v351 = vld [vmem:[%s5 + $0x198] sm:$0xff]
    %v352 = vld [vmem:[%s5 + $0x1a0] sm:$0xff]
    %v353 = vld [vmem:[%s5 + $0x1a8] sm:$0xff]
    %v354 = vld [vmem:[%s5 + $0x1b0] sm:$0xff]
    %v355 = vld [vmem:[%s5 + $0x1b8] sm:$0xff]
    %v356 = vld [vmem:[%s5 + $0x1c0] sm:$0xff]
    %v357 = vld [vmem:[%s5 + $0x1c8] sm:$0xff]
    %v358 = vld [vmem:[%s5 + $0x1d0] sm:$0xff]
    %v359 = vld [vmem:[%s5 + $0x1d8] sm:$0xff]
    %v360 = vld [vmem:[%s5 + $0x1e0] sm:$0xff]
    %v361 = vld [vmem:[%s5 + $0x1e8] sm:$0xff]
    %v362 = vld [vmem:[%s5 + $0x1f0] sm:$0xff]
    %v363 = vld [vmem:[%s5 + $0x1f8] sm:$0xff]
    %364 = vmatpush.msra.mxu0 %v315
    %365 = vmatpush.msra.mxu0 %v314
    %366 = vmatpush.msra.mxu0 %v313
    %367 = vmatpush.msra.mxu0 %v312
    %368 = vmatpush.msra.mxu0 %v311
    %369 = vmatpush.msra.mxu0 %v310
    %370 = vmatpush.msra.mxu0 %v309
    %371 = vmatpush.msra.mxu0 %v308
    %372 = vmatpush.msra.mxu0 %v307
    %373 = vmatpush.msra.mxu0 %v306
    %374 = vmatpush.msra.mxu0 %v305
    %375 = vmatpush.msra.mxu0 %v304
    %376 = vmatpush.msra.mxu0 %v303
    %377 = vmatpush.msra.mxu0 %v302
    %378 = vmatpush.msra.mxu0 %v301
    %379 = vmatpush.msra.mxu0 %v300
    %380 = vmatmul.f32.gmra.mxu0 %v284
    %v381 = vpop.f32.mrf.mxu0
    %v382 = vadd.f32 0.0, %v381
    %383 = vmatmul.f32.gmra.mxu0 %v288
    %v384 = vpop.f32.mrf.mxu0
    %v385 = vadd.f32 0.0, %v384
    %386 = vmatmul.f32.gmra.mxu0 %v292
    %v387 = vpop.f32.mrf.mxu0
    %v388 = vadd.f32 0.0, %v387
    %389 = vmatmul.f32.gmra.mxu0 %v296
    %v390 = vpop.f32.mrf.mxu0
    %v391 = vadd.f32 0.0, %v390
    %392 = vdwg.mxu0
    %393 = vmatpush.msra.mxu0 %v331
    %394 = vmatpush.msra.mxu0 %v330
    %395 = vmatpush.msra.mxu0 %v329
    %396 = vmatpush.msra.mxu0 %v328
    %397 = vmatpush.msra.mxu0 %v327
    %398 = vmatpush.msra.mxu0 %v326
    %399 = vmatpush.msra.mxu0 %v325
    %400 = vmatpush.msra.mxu0 %v324
    %401 = vmatpush.msra.mxu0 %v323
    %402 = vmatpush.msra.mxu0 %v322
    %403 = vmatpush.msra.mxu0 %v321
    %404 = vmatpush.msra.mxu0 %v320
    %405 = vmatpush.msra.mxu0 %v319
    %406 = vmatpush.msra.mxu0 %v318
    %407 = vmatpush.msra.mxu0 %v317
    %408 = vmatpush.msra.mxu0 %v316
    %409 = vmatmul.f32.gmra.mxu0 %v285
    %v410 = vpop.f32.mrf.mxu0
    %v411 = vadd.f32 %v382, %v410
    %412 = vmatmul.f32.gmra.mxu0 %v289
    %v413 = vpop.f32.mrf.mxu0
    %v414 = vadd.f32 %v385, %v413
    %415 = vmatmul.f32.gmra.mxu0 %v293
    %v416 = vpop.f32.mrf.mxu0
    %v417 = vadd.f32 %v388, %v416
    %418 = vmatmul.f32.gmra.mxu0 %v297
    %v419 = vpop.f32.mrf.mxu0
    %v420 = vadd.f32 %v391, %v419
    %421 = vdwg.mxu0
    %422 = vmatpush.msra.mxu0 %v347
    %423 = vmatpush.msra.mxu0 %v346
    %424 = vmatpush.msra.mxu0 %v345
    %425 = vmatpush.msra.mxu0 %v344
    %426 = vmatpush.msra.mxu0 %v343
    %427 = vmatpush.msra.mxu0 %v342
    %428 = vmatpush.msra.mxu0 %v341
    %429 = vmatpush.msra.mxu0 %v340
    %430 = vmatpush.msra.mxu0 %v339
    %431 = vmatpush.msra.mxu0 %v338
    %432 = vmatpush.msra.mxu0 %v337
    %433 = vmatpush.msra.mxu0 %v336
    %434 = vmatpush.msra.mxu0 %v335
    %435 = vmatpush.msra.mxu0 %v334
    %436 = vmatpush.msra.mxu0 %v333
    %437 = vmatpush.msra.mxu0 %v332
    %438 = vmatmul.f32.gmra.mxu0 %v286
    %v439 = vpop.f32.mrf.mxu0
    %v440 = vadd.f32 %v411, %v439
    %441 = vmatmul.f32.gmra.mxu0 %v290
    %v442 = vpop.f32.mrf.mxu0
    %v443 = vadd.f32 %v414, %v442
    %444 = vmatmul.f32.gmra.mxu0 %v294
    %v445 = vpop.f32.mrf.mxu0
    %v446 = vadd.f32 %v417, %v445
    %447 = vmatmul.f32.gmra.mxu0 %v298
    %v448 = vpop.f32.mrf.mxu0
    %v449 = vadd.f32 %v420, %v448
    %450 = vdwg.mxu0
    %451 = vmatpush.msra.mxu0 %v363
    %452 = vmatpush.msra.mxu0 %v362
    %453 = vmatpush.msra.mxu0 %v361
    %454 = vmatpush.msra.mxu0 %v360
    %455 = vmatpush.msra.mxu0 %v359
    %456 = vmatpush.msra.mxu0 %v358
    %457 = vmatpush.msra.mxu0 %v357
    %458 = vmatpush.msra.mxu0 %v356
    %459 = vmatpush.msra.mxu0 %v355
    %460 = vmatpush.msra.mxu0 %v354
    %461 = vmatpush.msra.mxu0 %v353
    %462 = vmatpush.msra.mxu0 %v352
    %463 = vmatpush.msra.mxu0 %v351
    %464 = vmatpush.msra.mxu0 %v350
    %465 = vmatpush.msra.mxu0 %v349
    %466 = vmatpush.msra.mxu0 %v348
    %467 = vmatmul.f32.gmra.mxu0 %v287
    %v468 = vpop.f32.mrf.mxu0
    %v469 = vadd.f32 %v440, %v468
    %470 = vmatmul.f32.gmra.mxu0 %v291
    %v471 = vpop.f32.mrf.mxu0
    %v472 = vadd.f32 %v443, %v471
    %473 = vmatmul.f32.gmra.mxu0 %v295
    %v474 = vpop.f32.mrf.mxu0
    %v475 = vadd.f32 %v446, %v474
    %476 = vmatmul.f32.gmra.mxu0 %v299
    %v477 = vpop.f32.mrf.mxu0
    %v478 = vadd.f32 %v449, %v477
    %479 = vdwg.mxu0
    %v480 = vcvt.s32.f32 %v204
    %v481 = vcvt.s32.f32 %v205
    %v482 = vcvt.s32.f32 %v206
    %v483 = vcvt.s32.f32 %v207
    %v484 = vmax.f32 %v480, 1e-09
    %v485 = vmax.f32 %v481, 1e-09
    %v486 = vmax.f32 %v482, 1e-09
    %v487 = vmax.f32 %v483, 1e-09
    %489 = vset.pattern.permute.xlu0 0
    %490 = vperm.xlu0 %489, %v484
    %v491 = vpop.permute.xlu0 %490
    %494 = vset.pattern.permute.xlu0 0
    %495 = vperm.xlu0 %494, %v485
    %v496 = vpop.permute.xlu0 %495
    %499 = vset.pattern.permute.xlu0 0
    %500 = vperm.xlu0 %499, %v486
    %v501 = vpop.permute.xlu0 %500
    %504 = vset.pattern.permute.xlu0 0
    %505 = vperm.xlu0 %504, %v487
    %v506 = vpop.permute.xlu0 %505
    %v508 = vrcp.pop %v491
    %v509 = vmul.f32 %v491, %v508
    %v510 = vsub.f32 1.0, %v509
    %v511 = vmul.f32 %v508, %v510
    %v512 = vadd.f32 %v508, %v511
    %vm513 = vweird.f32 %v491
    %vm514 = vweird.f32 %v508
    %vm515 = vmor %vm513, %vm514
    %v516 = vsel %vm515, %v508, %v512
    %v517 = vand.u32 2147483647, %v491
    %vm518 = vcmp.eq.f32.partialorder %v517, 8.507059e+37
    %v519 = vand.u32 %v491, 2147483648
    %v520 = vor.u32 1.1754944e-38, %v519
    %v521 = vsel %vm518, %v520, %v516
    %v522 = vmul.f32 %v469, %v521
    %v523 = vrcp.pop %v496
    %v524 = vmul.f32 %v496, %v523
    %v525 = vsub.f32 1.0, %v524
    %v526 = vmul.f32 %v523, %v525
    %v527 = vadd.f32 %v523, %v526
    %vm528 = vweird.f32 %v496
    %vm529 = vweird.f32 %v523
    %vm530 = vmor %vm528, %vm529
    %v531 = vsel %vm530, %v523, %v527
    %v532 = vand.u32 2147483647, %v496
    %vm533 = vcmp.eq.f32.partialorder %v532, 8.507059e+37
    %v534 = vand.u32 %v496, 2147483648
    %v535 = vor.u32 1.1754944e-38, %v534
    %v536 = vsel %vm533, %v535, %v531
    %v537 = vmul.f32 %v472, %v536
    %v538 = vrcp.pop %v501
    %v539 = vmul.f32 %v501, %v538
    %v540 = vsub.f32 1.0, %v539
    %v541 = vmul.f32 %v538, %v540
    %v542 = vadd.f32 %v538, %v541
    %vm543 = vweird.f32 %v501
    %vm544 = vweird.f32 %v538
    %vm545 = vmor %vm543, %vm544
    %v546 = vsel %vm545, %v538, %v542
    %v547 = vand.u32 2147483647, %v501
    %vm548 = vcmp.eq.f32.partialorder %v547, 8.507059e+37
    %v549 = vand.u32 %v501, 2147483648
    %v550 = vor.u32 1.1754944e-38, %v549
    %v551 = vsel %vm548, %v550, %v546
    %v552 = vmul.f32 %v475, %v551
    %v553 = vrcp.pop %v506
    %v554 = vmul.f32 %v506, %v553
    %v555 = vsub.f32 1.0, %v554
    %v556 = vmul.f32 %v553, %v555
    %v557 = vadd.f32 %v553, %v556
    %vm558 = vweird.f32 %v506
    %vm559 = vweird.f32 %v553
    %vm560 = vmor %vm558, %vm559
    %v561 = vsel %vm560, %v553, %v557
    %v562 = vand.u32 2147483647, %v506
    %vm563 = vcmp.eq.f32.partialorder %v562, 8.507059e+37
    %v564 = vand.u32 %v506, 2147483648
    %v565 = vor.u32 1.1754944e-38, %v564
    %v566 = vsel %vm563, %v565, %v561
    %v567 = vmul.f32 %v478, %v566
    %s568 = sld [smem:[#allocation3]]
    %s569 = sld [smem:[#allocation3 + $0x1]]
    %s570 = sld [smem:[#allocation4]]
    %s571 = sld [smem:[#allocation4 + $0x1]]
    %vm572 = vcmp.ge.s32.totalorder %v195, 0
    %vm573 = vcmp.ge.s32.totalorder %v196, 0
    %vm574 = vcmp.ge.s32.totalorder %v197, 0
    %vm575 = vcmp.ge.s32.totalorder %v198, 0
    %v576 = vstv %s568
    %vm577 = vcmp.lt.s32.totalorder %v195, %v576
    %vm578 = vcmp.lt.s32.totalorder %v196, %v576
    %vm579 = vcmp.lt.s32.totalorder %v197, %v576
    %vm580 = vcmp.lt.s32.totalorder %v198, %v576
    %vm581 = vmand %vm572, %vm577
    %vm582 = vmand %vm573, %vm578
    %vm583 = vmand %vm574, %vm579
    %vm584 = vmand %vm575, %vm580
    %vm585 = vcmp.ge.s32.totalorder %v195, 8
    %vm586 = vcmp.ge.s32.totalorder %v196, 8
    %vm587 = vcmp.ge.s32.totalorder %v197, 8
    %vm588 = vcmp.ge.s32.totalorder %v198, 8
    %s589 = sadd.s32 %s569, 8
    %v590 = vstv %s589
    %vm591 = vcmp.lt.s32.totalorder %v195, %v590
    %vm592 = vcmp.lt.s32.totalorder %v196, %v590
    %vm593 = vcmp.lt.s32.totalorder %v197, %v590
    %vm594 = vcmp.lt.s32.totalorder %v198, %v590
    %vm595 = vmand %vm585, %vm591
    %vm596 = vmand %vm586, %vm592
    %vm597 = vmand %vm587, %vm593
    %vm598 = vmand %vm588, %vm594
    %vm599 = vmor %vm581, %vm595
    %vm600 = vmor %vm582, %vm596
    %vm601 = vmor %vm583, %vm597
    %vm602 = vmor %vm584, %vm598
    %vm603 = vcmp.ge.s32.totalorder %v195, 16
    %vm604 = vcmp.ge.s32.totalorder %v196, 16
    %vm605 = vcmp.ge.s32.totalorder %v197, 16
    %vm606 = vcmp.ge.s32.totalorder %v198, 16
    %s607 = sadd.s32 %s570, 16
    %v608 = vstv %s607
    %vm609 = vcmp.lt.s32.totalorder %v195, %v608
    %vm610 = vcmp.lt.s32.totalorder %v196, %v608
    %vm611 = vcmp.lt.s32.totalorder %v197, %v608
    %vm612 = vcmp.lt.s32.totalorder %v198, %v608
    %vm613 = vmand %vm603, %vm609
    %vm614 = vmand %vm604, %vm610
    %vm615 = vmand %vm605, %vm611
    %vm616 = vmand %vm606, %vm612
    %vm617 = vmor %vm599, %vm613
    %vm618 = vmor %vm600, %vm614
    %vm619 = vmor %vm601, %vm615
    %vm620 = vmor %vm602, %vm616
    %vm621 = vcmp.ge.s32.totalorder %v195, 24
    %vm622 = vcmp.ge.s32.totalorder %v196, 24
    %vm623 = vcmp.ge.s32.totalorder %v197, 24
    %vm624 = vcmp.ge.s32.totalorder %v198, 24
    %s625 = sadd.s32 %s571, 24
    %v626 = vstv %s625
    %vm627 = vcmp.lt.s32.totalorder %v195, %v626
    %vm628 = vcmp.lt.s32.totalorder %v196, %v626
    %vm629 = vcmp.lt.s32.totalorder %v197, %v626
    %vm630 = vcmp.lt.s32.totalorder %v198, %v626
    %vm631 = vmand %vm621, %vm627
    %vm632 = vmand %vm622, %vm628
    %vm633 = vmand %vm623, %vm629
    %vm634 = vmand %vm624, %vm630
    %vm635 = vmor %vm617, %vm631
    %vm636 = vmor %vm618, %vm632
    %vm637 = vmor %vm619, %vm633
    %vm638 = vmor %vm620, %vm634
    %v639 = vsel %vm635, 1.0, 0.0
    %v640 = vsel %vm636, 1.0, 0.0
    %v641 = vsel %vm637, 1.0, 0.0
    %v642 = vsel %vm638, 1.0, 0.0
    %v643 = vmul.f32 %v522, %v639
    %v644 = vmul.f32 %v537, %v640
    %v645 = vmul.f32 %v552, %v641
    %v646 = vmul.f32 %v567, %v642
    %v647 = vpack.c.bf16 %v644, %v643
    %v648 = vpack.c.bf16 %v646, %v645
    %v649 = vld [vmem:[%s11] sm:$0xf]
    %v650 = vld [vmem:[%s11 + $0x4] sm:$0xf]
    %v651 = vld [vmem:[%s11 + $0x8] sm:$0xf]
    %v652 = vld [vmem:[%s11 + $0xc] sm:$0xf]
    %v653 = vld [vmem:[%s13] sm:$0x1]
    %v655 = vperm.slane %v653, 0
    %v661 = vunpack.c.l.b16 %v649
    %v662 = vunpack.c.l.b16 %v650
    %v663 = vunpack.c.l.b16 %v651
    %v664 = vunpack.c.l.b16 %v652
    %v665 = vpack.c.b16 %v662, %v661
    %v666 = vpack.c.b16 %v664, %v663
    %vm669 = vcmask 261120
    %v671 = vsel %vm669, %v647, 0
    %v674 = vsel %vm669, %v648, 0
    %676 = vmatpush.bf16.msra.mxu0 0
    %677 = vmatpush.bf16.msra.mxu0 0
    %678 = vmatpush.bf16.msra.mxu0 0
    %679 = vmatpush.bf16.msra.mxu0 0
    %680 = vmatpush.bf16.msra.mxu0 0
    %681 = vmatpush.bf16.msra.mxu0 0
    %682 = vmatpush.bf16.msra.mxu0 %v666
    %683 = vmatpush.bf16.msra.mxu0 %v665
    %684 = vmatmul.bf16.gmra.mxu0 %v671
    %v685 = vpop.f32.mrf.mxu0
    %v686 = vadd.f32 %v655, %v685
    %v687 = vpop.f32.mrf.mxu0
    %v688 = vadd.f32 %v655, %v687
    %689 = vmatmul.bf16.gmra.mxu0 %v674
    %v690 = vpop.f32.mrf.mxu0
    %v691 = vadd.f32 %v655, %v690
    %v692 = vpop.f32.mrf.mxu0
    %v693 = vadd.f32 %v655, %v692
    %694 = vdwg.mxu0
    %vm695 = vcmp.lt.s32.totalorder %v195, 8
    %vm696 = vcmp.lt.s32.totalorder %v196, 8
    %vm697 = vmand %vm572, %vm695
    %vm698 = vmand %vm573, %vm696
    %vm699 = vcmp.ge.s32.totalorder %v200, 0
    %vm700 = vmand %vm697, %vm699
    %vm701 = vmand %vm698, %vm699
    %vm702 = vcmp.le.s32.totalorder %v200, %v195
    %vm703 = vcmp.le.s32.totalorder %v200, %v196
    %vm704 = vmand %vm700, %vm702
    %vm705 = vmand %vm701, %vm703
    %vm706 = vcmp.lt.s32.totalorder %v200, %v576
    %vm707 = vmand %vm704, %vm706
    %vm708 = vmand %vm705, %vm706
    %vm709 = vcmp.lt.s32.totalorder %v195, 16
    %vm710 = vcmp.lt.s32.totalorder %v196, 16
    %vm711 = vmand %vm585, %vm709
    %vm712 = vmand %vm586, %vm710
    %vm713 = vcmp.ge.s32.totalorder %v200, 8
    %vm714 = vmand %vm711, %vm713
    %vm715 = vmand %vm712, %vm713
    %vm716 = vmand %vm714, %vm702
    %vm717 = vmand %vm715, %vm703
    %vm718 = vcmp.lt.s32.totalorder %v200, %v590
    %vm719 = vmand %vm716, %vm718
    %vm720 = vmand %vm717, %vm718
    %vm721 = vmor %vm707, %vm719
    %vm722 = vmor %vm708, %vm720
    %v723 = vsel %vm721, 0.0, -1e+09
    %v724 = vsel %vm722, 0.0, -1e+09
    %v725 = vstv %s570
    %vm726 = vcmp.lt.s32.totalorder %v200, %v725
    %vm727 = vmand %vm704, %vm726
    %vm728 = vmand %vm705, %vm726
    %s729 = sadd.s32 %s571, 8
    %v730 = vstv %s729
    %vm731 = vcmp.lt.s32.totalorder %v200, %v730
    %vm732 = vmand %vm716, %vm731
    %vm733 = vmand %vm717, %vm731
    %vm734 = vmor %vm727, %vm732
    %vm735 = vmor %vm728, %vm733
    %v736 = vsel %vm734, 0.0, -1e+09
    %v737 = vsel %vm735, 0.0, -1e+09
    %vm738 = vcmp.lt.s32.totalorder %v200, 8
    %vm739 = vmand %vm700, %vm738
    %vm740 = vmand %vm701, %vm738
    %vm741 = vcmp.lt.s32.totalorder %v200, 16
    %vm742 = vmand %vm714, %vm741
    %vm743 = vmand %vm715, %vm741
    %vm744 = vmor %vm739, %vm742
    %vm745 = vmor %vm740, %vm743
    %v746 = vsel %vm744, 0.0, -1e+09
    %v747 = vsel %vm745, 0.0, -1e+09
    %vm748 = vcmp.lt.s32.totalorder %v195, 4
    %vm749 = vcmp.lt.s32.totalorder %v196, 4
    %vm750 = vcmp.lt.s32.totalorder %v197, 4
    %vm751 = vcmp.lt.s32.totalorder %v198, 4
    %vm752 = vmand %vm572, %vm748
    %vm753 = vmand %vm573, %vm749
    %vm754 = vmand %vm574, %vm750
    %vm755 = vmand %vm575, %vm751
    %vm756 = vmand %vm752, %vm699
    %vm757 = vmand %vm753, %vm699
    %vm758 = vmand %vm754, %vm699
    %vm759 = vmand %vm755, %vm699
    %vm760 = vmand %vm756, %vm741
    %vm761 = vmand %vm757, %vm741
    %vm762 = vmand %vm758, %vm741
    %vm763 = vmand %vm759, %vm741
    %vm764 = vcmp.ge.s32.totalorder %v195, 4
    %vm765 = vcmp.ge.s32.totalorder %v196, 4
    %vm766 = vcmp.ge.s32.totalorder %v197, 4
    %vm767 = vcmp.ge.s32.totalorder %v198, 4
    %vm768 = vcmp.lt.s32.totalorder %v197, 8
    %vm769 = vcmp.lt.s32.totalorder %v198, 8
    %vm770 = vmand %vm764, %vm695
    %vm771 = vmand %vm765, %vm696
    %vm772 = vmand %vm766, %vm768
    %vm773 = vmand %vm767, %vm769
    %vm774 = vcmp.ge.s32.totalorder %v200, 16
    %vm775 = vmand %vm770, %vm774
    %vm776 = vmand %vm771, %vm774
    %vm777 = vmand %vm772, %vm774
    %vm778 = vmand %vm773, %vm774
    %vm779 = vcmp.lt.s32.totalorder %v200, 32
    %vm780 = vmand %vm775, %vm779
    %vm781 = vmand %vm776, %vm779
    %vm782 = vmand %vm777, %vm779
    %vm783 = vmand %vm778, %vm779
    %vm784 = vmor %vm760, %vm780
    %vm785 = vmor %vm761, %vm781
    %vm786 = vmor %vm762, %vm782
    %vm787 = vmor %vm763, %vm783
    %vm788 = vcmp.lt.s32.totalorder %v195, 12
    %vm789 = vcmp.lt.s32.totalorder %v196, 12
    %vm790 = vcmp.lt.s32.totalorder %v197, 12
    %vm791 = vcmp.lt.s32.totalorder %v198, 12
    %vm792 = vmand %vm585, %vm788
    %vm793 = vmand %vm586, %vm789
    %vm794 = vmand %vm587, %vm790
    %vm795 = vmand %vm588, %vm791
    %vm796 = vcmp.ge.s32.totalorder %v200, 32
    %vm797 = vmand %vm792, %vm796
    %vm798 = vmand %vm793, %vm796
    %vm799 = vmand %vm794, %vm796
    %vm800 = vmand %vm795, %vm796
    %vm801 = vcmp.lt.s32.totalorder %v200, 48
    %vm802 = vmand %vm797, %vm801
    %vm803 = vmand %vm798, %vm801
    %vm804 = vmand %vm799, %vm801
    %vm805 = vmand %vm800, %vm801
    %vm806 = vmor %vm784, %vm802
    %vm807 = vmor %vm785, %vm803
    %vm808 = vmor %vm786, %vm804
    %vm809 = vmor %vm787, %vm805
    %vm810 = vcmp.ge.s32.totalorder %v195, 12
    %vm811 = vcmp.ge.s32.totalorder %v196, 12
    %vm812 = vcmp.ge.s32.totalorder %v197, 12
    %vm813 = vcmp.ge.s32.totalorder %v198, 12
    %vm814 = vcmp.lt.s32.totalorder %v197, 16
    %vm815 = vcmp.lt.s32.totalorder %v198, 16
    %vm816 = vmand %vm810, %vm709
    %vm817 = vmand %vm811, %vm710
    %vm818 = vmand %vm812, %vm814
    %vm819 = vmand %vm813, %vm815
    %vm820 = vcmp.ge.s32.totalorder %v200, 48
    %vm821 = vmand %vm816, %vm820
    %vm822 = vmand %vm817, %vm820
    %vm823 = vmand %vm818, %vm820
    %vm824 = vmand %vm819, %vm820
    %vm825 = vcmp.lt.s32.totalorder %v200, 64
    %vm826 = vmand %vm821, %vm825
    %vm827 = vmand %vm822, %vm825
    %vm828 = vmand %vm823, %vm825
    %vm829 = vmand %vm824, %vm825
    %vm830 = vmor %vm806, %vm826
    %vm831 = vmor %vm807, %vm827
    %vm832 = vmor %vm808, %vm828
    %vm833 = vmor %vm809, %vm829
    %vm834 = vcmp.lt.s32.totalorder %v195, 20
    %vm835 = vcmp.lt.s32.totalorder %v196, 20
    %vm836 = vcmp.lt.s32.totalorder %v197, 20
    %vm837 = vcmp.lt.s32.totalorder %v198, 20
    %vm838 = vmand %vm603, %vm834
    %vm839 = vmand %vm604, %vm835
    %vm840 = vmand %vm605, %vm836
    %vm841 = vmand %vm606, %vm837
    %vm842 = vcmp.ge.s32.totalorder %v200, 64
    %vm843 = vmand %vm838, %vm842
    %vm844 = vmand %vm839, %vm842
    %vm845 = vmand %vm840, %vm842
    %vm846 = vmand %vm841, %vm842
    %vm847 = vcmp.lt.s32.totalorder %v200, 80
    %vm848 = vmand %vm843, %vm847
    %vm849 = vmand %vm844, %vm847
    %vm850 = vmand %vm845, %vm847
    %vm851 = vmand %vm846, %vm847
    %vm852 = vmor %vm830, %vm848
    %vm853 = vmor %vm831, %vm849
    %vm854 = vmor %vm832, %vm850
    %vm855 = vmor %vm833, %vm851
    %vm856 = vcmp.ge.s32.totalorder %v195, 20
    %vm857 = vcmp.ge.s32.totalorder %v196, 20
    %vm858 = vcmp.ge.s32.totalorder %v197, 20
    %vm859 = vcmp.ge.s32.totalorder %v198, 20
    %vm860 = vcmp.lt.s32.totalorder %v195, 24
    %vm861 = vcmp.lt.s32.totalorder %v196, 24
    %vm862 = vcmp.lt.s32.totalorder %v197, 24
    %vm863 = vcmp.lt.s32.totalorder %v198, 24
    %vm864 = vmand %vm856, %vm860
    %vm865 = vmand %vm857, %vm861
    %vm866 = vmand %vm858, %vm862
    %vm867 = vmand %vm859, %vm863
    %vm868 = vcmp.ge.s32.totalorder %v200, 80
    %vm869 = vmand %vm864, %vm868
    %vm870 = vmand %vm865, %vm868
    %vm871 = vmand %vm866, %vm868
    %vm872 = vmand %vm867, %vm868
    %vm873 = vcmp.lt.s32.totalorder %v200, 96
    %vm874 = vmand %vm869, %vm873
    %vm875 = vmand %vm870, %vm873
    %vm876 = vmand %vm871, %vm873
    %vm877 = vmand %vm872, %vm873
    %vm878 = vmor %vm852, %vm874
    %vm879 = vmor %vm853, %vm875
    %vm880 = vmor %vm854, %vm876
    %vm881 = vmor %vm855, %vm877
    %vm882 = vcmp.lt.s32.totalorder %v195, 28
    %vm883 = vcmp.lt.s32.totalorder %v196, 28
    %vm884 = vcmp.lt.s32.totalorder %v197, 28
    %vm885 = vcmp.lt.s32.totalorder %v198, 28
    %vm886 = vmand %vm621, %vm882
    %vm887 = vmand %vm622, %vm883
    %vm888 = vmand %vm623, %vm884
    %vm889 = vmand %vm624, %vm885
    %vm890 = vcmp.ge.s32.totalorder %v200, 96
    %vm891 = vmand %vm886, %vm890
    %vm892 = vmand %vm887, %vm890
    %vm893 = vmand %vm888, %vm890
    %vm894 = vmand %vm889, %vm890
    %vm895 = vcmp.lt.s32.totalorder %v200, 112
    %vm896 = vmand %vm891, %vm895
    %vm897 = vmand %vm892, %vm895
    %vm898 = vmand %vm893, %vm895
    %vm899 = vmand %vm894, %vm895
    %vm900 = vmor %vm878, %vm896
    %vm901 = vmor %vm879, %vm897
    %vm902 = vmor %vm880, %vm898
    %vm903 = vmor %vm881, %vm899
    %vm904 = vcmp.ge.s32.totalorder %v195, 28
    %vm905 = vcmp.ge.s32.totalorder %v196, 28
    %vm906 = vcmp.ge.s32.totalorder %v197, 28
    %vm907 = vcmp.ge.s32.totalorder %v198, 28
    %vm908 = vcmp.lt.s32.totalorder %v195, 32
    %vm909 = vcmp.lt.s32.totalorder %v196, 32
    %vm910 = vcmp.lt.s32.totalorder %v197, 32
    %vm911 = vcmp.lt.s32.totalorder %v198, 32
    %vm912 = vmand %vm904, %vm908
    %vm913 = vmand %vm905, %vm909
    %vm914 = vmand %vm906, %vm910
    %vm915 = vmand %vm907, %vm911
    %vm916 = vcmp.ge.s32.totalorder %v200, 112
    %vm917 = vmand %vm912, %vm916
    %vm918 = vmand %vm913, %vm916
    %vm919 = vmand %vm914, %vm916
    %vm920 = vmand %vm915, %vm916
    %vm921 = vcmp.lt.s32.totalorder %v200, 128
    %vm922 = vmand %vm917, %vm921
    %vm923 = vmand %vm918, %vm921
    %vm924 = vmand %vm919, %vm921
    %vm925 = vmand %vm920, %vm921
    %vm926 = vmor %vm900, %vm922
    %vm927 = vmor %vm901, %vm923
    %vm928 = vmor %vm902, %vm924
    %vm929 = vmor %vm903, %vm925
    %v930 = vadd.s32 %v195, 32
    %v931 = vadd.s32 %v195, 40
    %v932 = vadd.s32 %v195, 48
    %v933 = vadd.s32 %v195, 56
    %v934 = vadd.s32 %v195, 64
    %v935 = vadd.s32 %v195, 72
    %v936 = vadd.s32 %v195, 80
    %v937 = vadd.s32 %v195, 88
    %v938 = vadd.s32 %v195, 96
    %v939 = vadd.s32 %v195, 104
    %v940 = vadd.s32 %v195, 112
    %v941 = vadd.s32 %v195, 120
    %vm942 = vcmp.ge.s32.totalorder %v930, 0
    %vm943 = vcmp.ge.s32.totalorder %v931, 0
    %vm944 = vcmp.ge.s32.totalorder %v932, 0
    %vm945 = vcmp.ge.s32.totalorder %v933, 0
    %vm946 = vcmp.ge.s32.totalorder %v934, 0
    %vm947 = vcmp.ge.s32.totalorder %v935, 0
    %vm948 = vcmp.ge.s32.totalorder %v936, 0
    %vm949 = vcmp.ge.s32.totalorder %v937, 0
    %vm950 = vcmp.ge.s32.totalorder %v938, 0
    %vm951 = vcmp.ge.s32.totalorder %v939, 0
    %vm952 = vcmp.ge.s32.totalorder %v940, 0
    %vm953 = vcmp.ge.s32.totalorder %v941, 0
    %vm954 = vcmp.lt.s32.totalorder %v930, 16
    %vm955 = vcmp.lt.s32.totalorder %v931, 16
    %vm956 = vcmp.lt.s32.totalorder %v932, 16
    %vm957 = vcmp.lt.s32.totalorder %v933, 16
    %vm958 = vcmp.lt.s32.totalorder %v934, 16
    %vm959 = vcmp.lt.s32.totalorder %v935, 16
    %vm960 = vcmp.lt.s32.totalorder %v936, 16
    %vm961 = vcmp.lt.s32.totalorder %v937, 16
    %vm962 = vcmp.lt.s32.totalorder %v938, 16
    %vm963 = vcmp.lt.s32.totalorder %v939, 16
    %vm964 = vcmp.lt.s32.totalorder %v940, 16
    %vm965 = vcmp.lt.s32.totalorder %v941, 16
    %vm966 = vmand %vm572, %vm709
    %vm967 = vmand %vm573, %vm710
    %vm968 = vmand %vm574, %vm814
    %vm969 = vmand %vm575, %vm815
    %vm970 = vmand %vm942, %vm954
    %vm971 = vmand %vm943, %vm955
    %vm972 = vmand %vm944, %vm956
    %vm973 = vmand %vm945, %vm957
    %vm974 = vmand %vm946, %vm958
    %vm975 = vmand %vm947, %vm959
    %vm976 = vmand %vm948, %vm960
    %vm977 = vmand %vm949, %vm961
    %vm978 = vmand %vm950, %vm962
    %vm979 = vmand %vm951, %vm963
    %vm980 = vmand %vm952, %vm964
    %vm981 = vmand %vm953, %vm965
    %vm982 = vmand %vm966, %vm699
    %vm983 = vmand %vm967, %vm699
    %vm984 = vmand %vm968, %vm699
    %vm985 = vmand %vm969, %vm699
    %vm986 = vmand %vm970, %vm699
    %vm987 = vmand %vm971, %vm699
    %vm988 = vmand %vm972, %vm699
    %vm989 = vmand %vm973, %vm699
    %vm990 = vmand %vm974, %vm699
    %vm991 = vmand %vm975, %vm699
    %vm992 = vmand %vm976, %vm699
    %vm993 = vmand %vm977, %vm699
    %vm994 = vmand %vm978, %vm699
    %vm995 = vmand %vm979, %vm699
    %vm996 = vmand %vm980, %vm699
    %vm997 = vmand %vm981, %vm699
    %vm998 = vcmp.lt.s32.totalorder %v200, 4
    %vm999 = vmand %vm982, %vm998
    %vm1000 = vmand %vm983, %vm998
    %vm1001 = vmand %vm984, %vm998
    %vm1002 = vmand %vm985, %vm998
    %vm1003 = vmand %vm986, %vm998
    %vm1004 = vmand %vm987, %vm998
    %vm1005 = vmand %vm988, %vm998
    %vm1006 = vmand %vm989, %vm998
    %vm1007 = vmand %vm990, %vm998
    %vm1008 = vmand %vm991, %vm998
    %vm1009 = vmand %vm992, %vm998
    %vm1010 = vmand %vm993, %vm998
    %vm1011 = vmand %vm994, %vm998
    %vm1012 = vmand %vm995, %vm998
    %vm1013 = vmand %vm996, %vm998
    %vm1014 = vmand %vm997, %vm998
    %vm1015 = vcmp.ge.s32.totalorder %v930, 16
    %vm1016 = vcmp.ge.s32.totalorder %v931, 16
    %vm1017 = vcmp.ge.s32.totalorder %v932, 16
    %vm1018 = vcmp.ge.s32.totalorder %v933, 16
    %vm1019 = vcmp.ge.s32.totalorder %v934, 16
    %vm1020 = vcmp.ge.s32.totalorder %v935, 16
    %vm1021 = vcmp.ge.s32.totalorder %v936, 16
    %vm1022 = vcmp.ge.s32.totalorder %v937, 16
    %vm1023 = vcmp.ge.s32.totalorder %v938, 16
    %vm1024 = vcmp.ge.s32.totalorder %v939, 16
    %vm1025 = vcmp.ge.s32.totalorder %v940, 16
    %vm1026 = vcmp.ge.s32.totalorder %v941, 16
    %vm1027 = vcmp.lt.s32.totalorder %v930, 32
    %vm1028 = vcmp.lt.s32.totalorder %v931, 32
    %vm1029 = vcmp.lt.s32.totalorder %v932, 32
    %vm1030 = vcmp.lt.s32.totalorder %v933, 32
    %vm1031 = vcmp.lt.s32.totalorder %v934, 32
    %vm1032 = vcmp.lt.s32.totalorder %v935, 32
    %vm1033 = vcmp.lt.s32.totalorder %v936, 32
    %vm1034 = vcmp.lt.s32.totalorder %v937, 32
    %vm1035 = vcmp.lt.s32.totalorder %v938, 32
    %vm1036 = vcmp.lt.s32.totalorder %v939, 32
    %vm1037 = vcmp.lt.s32.totalorder %v940, 32
    %vm1038 = vcmp.lt.s32.totalorder %v941, 32
    %vm1039 = vmand %vm603, %vm908
    %vm1040 = vmand %vm604, %vm909
    %vm1041 = vmand %vm605, %vm910
    %vm1042 = vmand %vm606, %vm911
    %vm1043 = vmand %vm1015, %vm1027
    %vm1044 = vmand %vm1016, %vm1028
    %vm1045 = vmand %vm1017, %vm1029
    %vm1046 = vmand %vm1018, %vm1030
    %vm1047 = vmand %vm1019, %vm1031
    %vm1048 = vmand %vm1020, %vm1032
    %vm1049 = vmand %vm1021, %vm1033
    %vm1050 = vmand %vm1022, %vm1034
    %vm1051 = vmand %vm1023, %vm1035
    %vm1052 = vmand %vm1024, %vm1036
    %vm1053 = vmand %vm1025, %vm1037
    %vm1054 = vmand %vm1026, %vm1038
    %vm1055 = vcmp.ge.s32.totalorder %v200, 4
    %vm1056 = vmand %vm1039, %vm1055
    %vm1057 = vmand %vm1040, %vm1055
    %vm1058 = vmand %vm1041, %vm1055
    %vm1059 = vmand %vm1042, %vm1055
    %vm1060 = vmand %vm1043, %vm1055
    %vm1061 = vmand %vm1044, %vm1055
    %vm1062 = vmand %vm1045, %vm1055
    %vm1063 = vmand %vm1046, %vm1055
    %vm1064 = vmand %vm1047, %vm1055
    %vm1065 = vmand %vm1048, %vm1055
    %vm1066 = vmand %vm1049, %vm1055
    %vm1067 = vmand %vm1050, %vm1055
    %vm1068 = vmand %vm1051, %vm1055
    %vm1069 = vmand %vm1052, %vm1055
    %vm1070 = vmand %vm1053, %vm1055
    %vm1071 = vmand %vm1054, %vm1055
    %vm1072 = vmand %vm1056, %vm738
    %vm1073 = vmand %vm1057, %vm738
    %vm1074 = vmand %vm1058, %vm738
    %vm1075 = vmand %vm1059, %vm738
    %vm1076 = vmand %vm1060, %vm738
    %vm1077 = vmand %vm1061, %vm738
    %vm1078 = vmand %vm1062, %vm738
    %vm1079 = vmand %vm1063, %vm738
    %vm1080 = vmand %vm1064, %vm738
    %vm1081 = vmand %vm1065, %vm738
    %vm1082 = vmand %vm1066, %vm738
    %vm1083 = vmand %vm1067, %vm738
    %vm1084 = vmand %vm1068, %vm738
    %vm1085 = vmand %vm1069, %vm738
    %vm1086 = vmand %vm1070, %vm738
    %vm1087 = vmand %vm1071, %vm738
    %vm1088 = vmor %vm999, %vm1072
    %vm1089 = vmor %vm1000, %vm1073
    %vm1090 = vmor %vm1001, %vm1074
    %vm1091 = vmor %vm1002, %vm1075
    %vm1092 = vmor %vm1003, %vm1076
    %vm1093 = vmor %vm1004, %vm1077
    %vm1094 = vmor %vm1005, %vm1078
    %vm1095 = vmor %vm1006, %vm1079
    %vm1096 = vmor %vm1007, %vm1080
    %vm1097 = vmor %vm1008, %vm1081
    %vm1098 = vmor %vm1009, %vm1082
    %vm1099 = vmor %vm1010, %vm1083
    %vm1100 = vmor %vm1011, %vm1084
    %vm1101 = vmor %vm1012, %vm1085
    %vm1102 = vmor %vm1013, %vm1086
    %vm1103 = vmor %vm1014, %vm1087
    %vm1104 = vcmp.ge.s32.totalorder %v195, 32
    %vm1105 = vcmp.ge.s32.totalorder %v196, 32
    %vm1106 = vcmp.ge.s32.totalorder %v197, 32
    %vm1107 = vcmp.ge.s32.totalorder %v198, 32
    %vm1108 = vcmp.ge.s32.totalorder %v930, 32
    %vm1109 = vcmp.ge.s32.totalorder %v931, 32
    %vm1110 = vcmp.ge.s32.totalorder %v932, 32
    %vm1111 = vcmp.ge.s32.totalorder %v933, 32
    %vm1112 = vcmp.ge.s32.totalorder %v934, 32
    %vm1113 = vcmp.ge.s32.totalorder %v935, 32
    %vm1114 = vcmp.ge.s32.totalorder %v936, 32
    %vm1115 = vcmp.ge.s32.totalorder %v937, 32
    %vm1116 = vcmp.ge.s32.totalorder %v938, 32
    %vm1117 = vcmp.ge.s32.totalorder %v939, 32
    %vm1118 = vcmp.ge.s32.totalorder %v940, 32
    %vm1119 = vcmp.ge.s32.totalorder %v941, 32
    %vm1120 = vcmp.lt.s32.totalorder %v195, 48
    %vm1121 = vcmp.lt.s32.totalorder %v196, 48
    %vm1122 = vcmp.lt.s32.totalorder %v197, 48
    %vm1123 = vcmp.lt.s32.totalorder %v198, 48
    %vm1124 = vcmp.lt.s32.totalorder %v930, 48
    %vm1125 = vcmp.lt.s32.totalorder %v931, 48
    %vm1126 = vcmp.lt.s32.totalorder %v932, 48
    %vm1127 = vcmp.lt.s32.totalorder %v933, 48
    %vm1128 = vcmp.lt.s32.totalorder %v934, 48
    %vm1129 = vcmp.lt.s32.totalorder %v935, 48
    %vm1130 = vcmp.lt.s32.totalorder %v936, 48
    %vm1131 = vcmp.lt.s32.totalorder %v937, 48
    %vm1132 = vcmp.lt.s32.totalorder %v938, 48
    %vm1133 = vcmp.lt.s32.totalorder %v939, 48
    %vm1134 = vcmp.lt.s32.totalorder %v940, 48
    %vm1135 = vcmp.lt.s32.totalorder %v941, 48
    %vm1136 = vmand %vm1104, %vm1120
    %vm1137 = vmand %vm1105, %vm1121
    %vm1138 = vmand %vm1106, %vm1122
    %vm1139 = vmand %vm1107, %vm1123
    %vm1140 = vmand %vm1108, %vm1124
    %vm1141 = vmand %vm1109, %vm1125
    %vm1142 = vmand %vm1110, %vm1126
    %vm1143 = vmand %vm1111, %vm1127
    %vm1144 = vmand %vm1112, %vm1128
    %vm1145 = vmand %vm1113, %vm1129
    %vm1146 = vmand %vm1114, %vm1130
    %vm1147 = vmand %vm1115, %vm1131
    %vm1148 = vmand %vm1116, %vm1132
    %vm1149 = vmand %vm1117, %vm1133
    %vm1150 = vmand %vm1118, %vm1134
    %vm1151 = vmand %vm1119, %vm1135
    %vm1152 = vmand %vm1136, %vm713
    %vm1153 = vmand %vm1137, %vm713
    %vm1154 = vmand %vm1138, %vm713
    %vm1155 = vmand %vm1139, %vm713
    %vm1156 = vmand %vm1140, %vm713
    %vm1157 = vmand %vm1141, %vm713
    %vm1158 = vmand %vm1142, %vm713
    %vm1159 = vmand %vm1143, %vm713
    %vm1160 = vmand %vm1144, %vm713
    %vm1161 = vmand %vm1145, %vm713
    %vm1162 = vmand %vm1146, %vm713
    %vm1163 = vmand %vm1147, %vm713
    %vm1164 = vmand %vm1148, %vm713
    %vm1165 = vmand %vm1149, %vm713
    %vm1166 = vmand %vm1150, %vm713
    %vm1167 = vmand %vm1151, %vm713
    %vm1168 = vcmp.lt.s32.totalorder %v200, 12
    %vm1169 = vmand %vm1152, %vm1168
    %vm1170 = vmand %vm1153, %vm1168
    %vm1171 = vmand %vm1154, %vm1168
    %vm1172 = vmand %vm1155, %vm1168
    %vm1173 = vmand %vm1156, %vm1168
    %vm1174 = vmand %vm1157, %vm1168
    %vm1175 = vmand %vm1158, %vm1168
    %vm1176 = vmand %vm1159, %vm1168
    %vm1177 = vmand %vm1160, %vm1168
    %vm1178 = vmand %vm1161, %vm1168
    %vm1179 = vmand %vm1162, %vm1168
    %vm1180 = vmand %vm1163, %vm1168
    %vm1181 = vmand %vm1164, %vm1168
    %vm1182 = vmand %vm1165, %vm1168
    %vm1183 = vmand %vm1166, %vm1168
    %vm1184 = vmand %vm1167, %vm1168
    %vm1185 = vmor %vm1088, %vm1169
    %vm1186 = vmor %vm1089, %vm1170
    %vm1187 = vmor %vm1090, %vm1171
    %vm1188 = vmor %vm1091, %vm1172
    %vm1189 = vmor %vm1092, %vm1173
    %vm1190 = vmor %vm1093, %vm1174
    %vm1191 = vmor %vm1094, %vm1175
    %vm1192 = vmor %vm1095, %vm1176
    %vm1193 = vmor %vm1096, %vm1177
    %vm1194 = vmor %vm1097, %vm1178
    %vm1195 = vmor %vm1098, %vm1179
    %vm1196 = vmor %vm1099, %vm1180
    %vm1197 = vmor %vm1100, %vm1181
    %vm1198 = vmor %vm1101, %vm1182
    %vm1199 = vmor %vm1102, %vm1183
    %vm1200 = vmor %vm1103, %vm1184
    %vm1201 = vcmp.ge.s32.totalorder %v195, 48
    %vm1202 = vcmp.ge.s32.totalorder %v196, 48
    %vm1203 = vcmp.ge.s32.totalorder %v197, 48
    %vm1204 = vcmp.ge.s32.totalorder %v198, 48
    %vm1205 = vcmp.ge.s32.totalorder %v930, 48
    %vm1206 = vcmp.ge.s32.totalorder %v931, 48
    %vm1207 = vcmp.ge.s32.totalorder %v932, 48
    %vm1208 = vcmp.ge.s32.totalorder %v933, 48
    %vm1209 = vcmp.ge.s32.totalorder %v934, 48
    %vm1210 = vcmp.ge.s32.totalorder %v935, 48
    %vm1211 = vcmp.ge.s32.totalorder %v936, 48
    %vm1212 = vcmp.ge.s32.totalorder %v937, 48
    %vm1213 = vcmp.ge.s32.totalorder %v938, 48
    %vm1214 = vcmp.ge.s32.totalorder %v939, 48
    %vm1215 = vcmp.ge.s32.totalorder %v940, 48
    %vm1216 = vcmp.ge.s32.totalorder %v941, 48
    %vm1217 = vcmp.lt.s32.totalorder %v195, 64
    %vm1218 = vcmp.lt.s32.totalorder %v196, 64
    %vm1219 = vcmp.lt.s32.totalorder %v197, 64
    %vm1220 = vcmp.lt.s32.totalorder %v198, 64
    %vm1221 = vcmp.lt.s32.totalorder %v930, 64
    %vm1222 = vcmp.lt.s32.totalorder %v931, 64
    %vm1223 = vcmp.lt.s32.totalorder %v932, 64
    %vm1224 = vcmp.lt.s32.totalorder %v933, 64
    %vm1225 = vcmp.lt.s32.totalorder %v934, 64
    %vm1226 = vcmp.lt.s32.totalorder %v935, 64
    %vm1227 = vcmp.lt.s32.totalorder %v936, 64
    %vm1228 = vcmp.lt.s32.totalorder %v937, 64
    %vm1229 = vcmp.lt.s32.totalorder %v938, 64
    %vm1230 = vcmp.lt.s32.totalorder %v939, 64
    %vm1231 = vcmp.lt.s32.totalorder %v940, 64
    %vm1232 = vcmp.lt.s32.totalorder %v941, 64
    %vm1233 = vmand %vm1201, %vm1217
    %vm1234 = vmand %vm1202, %vm1218
    %vm1235 = vmand %vm1203, %vm1219
    %vm1236 = vmand %vm1204, %vm1220
    %vm1237 = vmand %vm1205, %vm1221
    %vm1238 = vmand %vm1206, %vm1222
    %vm1239 = vmand %vm1207, %vm1223
    %vm1240 = vmand %vm1208, %vm1224
    %vm1241 = vmand %vm1209, %vm1225
    %vm1242 = vmand %vm1210, %vm1226
    %vm1243 = vmand %vm1211, %vm1227
    %vm1244 = vmand %vm1212, %vm1228
    %vm1245 = vmand %vm1213, %vm1229
    %vm1246 = vmand %vm1214, %vm1230
    %vm1247 = vmand %vm1215, %vm1231
    %vm1248 = vmand %vm1216, %vm1232
    %vm1249 = vcmp.ge.s32.totalorder %v200, 12
    %vm1250 = vmand %vm1233, %vm1249
    %vm1251 = vmand %vm1234, %vm1249
    %vm1252 = vmand %vm1235, %vm1249
    %vm1253 = vmand %vm1236, %vm1249
    %vm1254 = vmand %vm1237, %vm1249
    %vm1255 = vmand %vm1238, %vm1249
    %vm1256 = vmand %vm1239, %vm1249
    %vm1257 = vmand %vm1240, %vm1249
    %vm1258 = vmand %vm1241, %vm1249
    %vm1259 = vmand %vm1242, %vm1249
    %vm1260 = vmand %vm1243, %vm1249
    %vm1261 = vmand %vm1244, %vm1249
    %vm1262 = vmand %vm1245, %vm1249
    %vm1263 = vmand %vm1246, %vm1249
    %vm1264 = vmand %vm1247, %vm1249
    %vm1265 = vmand %vm1248, %vm1249
    %vm1266 = vmand %vm1250, %vm741
    %vm1267 = vmand %vm1251, %vm741
    %vm1268 = vmand %vm1252, %vm741
    %vm1269 = vmand %vm1253, %vm741
    %vm1270 = vmand %vm1254, %vm741
    %vm1271 = vmand %vm1255, %vm741
    %vm1272 = vmand %vm1256, %vm741
    %vm1273 = vmand %vm1257, %vm741
    %vm1274 = vmand %vm1258, %vm741
    %vm1275 = vmand %vm1259, %vm741
    %vm1276 = vmand %vm1260, %vm741
    %vm1277 = vmand %vm1261, %vm741
    %vm1278 = vmand %vm1262, %vm741
    %vm1279 = vmand %vm1263, %vm741
    %vm1280 = vmand %vm1264, %vm741
    %vm1281 = vmand %vm1265, %vm741
    %vm1282 = vmor %vm1185, %vm1266
    %vm1283 = vmor %vm1186, %vm1267
    %vm1284 = vmor %vm1187, %vm1268
    %vm1285 = vmor %vm1188, %vm1269
    %vm1286 = vmor %vm1189, %vm1270
    %vm1287 = vmor %vm1190, %vm1271
    %vm1288 = vmor %vm1191, %vm1272
    %vm1289 = vmor %vm1192, %vm1273
    %vm1290 = vmor %vm1193, %vm1274
    %vm1291 = vmor %vm1194, %vm1275
    %vm1292 = vmor %vm1195, %vm1276
    %vm1293 = vmor %vm1196, %vm1277
    %vm1294 = vmor %vm1197, %vm1278
    %vm1295 = vmor %vm1198, %vm1279
    %vm1296 = vmor %vm1199, %vm1280
    %vm1297 = vmor %vm1200, %vm1281
    %vm1298 = vcmp.ge.s32.totalorder %v195, 64
    %vm1299 = vcmp.ge.s32.totalorder %v196, 64
    %vm1300 = vcmp.ge.s32.totalorder %v197, 64
    %vm1301 = vcmp.ge.s32.totalorder %v198, 64
    %vm1302 = vcmp.ge.s32.totalorder %v930, 64
    %vm1303 = vcmp.ge.s32.totalorder %v931, 64
    %vm1304 = vcmp.ge.s32.totalorder %v932, 64
    %vm1305 = vcmp.ge.s32.totalorder %v933, 64
    %vm1306 = vcmp.ge.s32.totalorder %v934, 64
    %vm1307 = vcmp.ge.s32.totalorder %v935, 64
    %vm1308 = vcmp.ge.s32.totalorder %v936, 64
    %vm1309 = vcmp.ge.s32.totalorder %v937, 64
    %vm1310 = vcmp.ge.s32.totalorder %v938, 64
    %vm1311 = vcmp.ge.s32.totalorder %v939, 64
    %vm1312 = vcmp.ge.s32.totalorder %v940, 64
    %vm1313 = vcmp.ge.s32.totalorder %v941, 64
    %vm1314 = vcmp.lt.s32.totalorder %v195, 80
    %vm1315 = vcmp.lt.s32.totalorder %v196, 80
    %vm1316 = vcmp.lt.s32.totalorder %v197, 80
    %vm1317 = vcmp.lt.s32.totalorder %v198, 80
    %vm1318 = vcmp.lt.s32.totalorder %v930, 80
    %vm1319 = vcmp.lt.s32.totalorder %v931, 80
    %vm1320 = vcmp.lt.s32.totalorder %v932, 80
    %vm1321 = vcmp.lt.s32.totalorder %v933, 80
    %vm1322 = vcmp.lt.s32.totalorder %v934, 80
    %vm1323 = vcmp.lt.s32.totalorder %v935, 80
    %vm1324 = vcmp.lt.s32.totalorder %v936, 80
    %vm1325 = vcmp.lt.s32.totalorder %v937, 80
    %vm1326 = vcmp.lt.s32.totalorder %v938, 80
    %vm1327 = vcmp.lt.s32.totalorder %v939, 80
    %vm1328 = vcmp.lt.s32.totalorder %v940, 80
    %vm1329 = vcmp.lt.s32.totalorder %v941, 80
    %vm1330 = vmand %vm1298, %vm1314
    %vm1331 = vmand %vm1299, %vm1315
    %vm1332 = vmand %vm1300, %vm1316
    %vm1333 = vmand %vm1301, %vm1317
    %vm1334 = vmand %vm1302, %vm1318
    %vm1335 = vmand %vm1303, %vm1319
    %vm1336 = vmand %vm1304, %vm1320
    %vm1337 = vmand %vm1305, %vm1321
    %vm1338 = vmand %vm1306, %vm1322
    %vm1339 = vmand %vm1307, %vm1323
    %vm1340 = vmand %vm1308, %vm1324
    %vm1341 = vmand %vm1309, %vm1325
    %vm1342 = vmand %vm1310, %vm1326
    %vm1343 = vmand %vm1311, %vm1327
    %vm1344 = vmand %vm1312, %vm1328
    %vm1345 = vmand %vm1313, %vm1329
    %vm1346 = vmand %vm1330, %vm774
    %vm1347 = vmand %vm1331, %vm774
    %vm1348 = vmand %vm1332, %vm774
    %vm1349 = vmand %vm1333, %vm774
    %vm1350 = vmand %vm1334, %vm774
    %vm1351 = vmand %vm1335, %vm774
    %vm1352 = vmand %vm1336, %vm774
    %vm1353 = vmand %vm1337, %vm774
    %vm1354 = vmand %vm1338, %vm774
    %vm1355 = vmand %vm1339, %vm774
    %vm1356 = vmand %vm1340, %vm774
    %vm1357 = vmand %vm1341, %vm774
    %vm1358 = vmand %vm1342, %vm774
    %vm1359 = vmand %vm1343, %vm774
    %vm1360 = vmand %vm1344, %vm774
    %vm1361 = vmand %vm1345, %vm774
    %vm1362 = vcmp.lt.s32.totalorder %v200, 20
    %vm1363 = vmand %vm1346, %vm1362
    %vm1364 = vmand %vm1347, %vm1362
    %vm1365 = vmand %vm1348, %vm1362
    %vm1366 = vmand %vm1349, %vm1362
    %vm1367 = vmand %vm1350, %vm1362
    %vm1368 = vmand %vm1351, %vm1362
    %vm1369 = vmand %vm1352, %vm1362
    %vm1370 = vmand %vm1353, %vm1362
    %vm1371 = vmand %vm1354, %vm1362
    %vm1372 = vmand %vm1355, %vm1362
    %vm1373 = vmand %vm1356, %vm1362
    %vm1374 = vmand %vm1357, %vm1362
    %vm1375 = vmand %vm1358, %vm1362
    %vm1376 = vmand %vm1359, %vm1362
    %vm1377 = vmand %vm1360, %vm1362
    %vm1378 = vmand %vm1361, %vm1362
    %vm1379 = vmor %vm1282, %vm1363
    %vm1380 = vmor %vm1283, %vm1364
    %vm1381 = vmor %vm1284, %vm1365
    %vm1382 = vmor %vm1285, %vm1366
    %vm1383 = vmor %vm1286, %vm1367
    %vm1384 = vmor %vm1287, %vm1368
    %vm1385 = vmor %vm1288, %vm1369
    %vm1386 = vmor %vm1289, %vm1370
    %vm1387 = vmor %vm1290, %vm1371
    %vm1388 = vmor %vm1291, %vm1372
    %vm1389 = vmor %vm1292, %vm1373
    %vm1390 = vmor %vm1293, %vm1374
    %vm1391 = vmor %vm1294, %vm1375
    %vm1392 = vmor %vm1295, %vm1376
    %vm1393 = vmor %vm1296, %vm1377
    %vm1394 = vmor %vm1297, %vm1378
    %vm1395 = vcmp.ge.s32.totalorder %v195, 80
    %vm1396 = vcmp.ge.s32.totalorder %v196, 80
    %vm1397 = vcmp.ge.s32.totalorder %v197, 80
    %vm1398 = vcmp.ge.s32.totalorder %v198, 80
    %vm1399 = vcmp.ge.s32.totalorder %v930, 80
    %vm1400 = vcmp.ge.s32.totalorder %v931, 80
    %vm1401 = vcmp.ge.s32.totalorder %v932, 80
    %vm1402 = vcmp.ge.s32.totalorder %v933, 80
    %vm1403 = vcmp.ge.s32.totalorder %v934, 80
    %vm1404 = vcmp.ge.s32.totalorder %v935, 80
    %vm1405 = vcmp.ge.s32.totalorder %v936, 80
    %vm1406 = vcmp.ge.s32.totalorder %v937, 80
    %vm1407 = vcmp.ge.s32.totalorder %v938, 80
    %vm1408 = vcmp.ge.s32.totalorder %v939, 80
    %vm1409 = vcmp.ge.s32.totalorder %v940, 80
    %vm1410 = vcmp.ge.s32.totalorder %v941, 80
    %vm1411 = vcmp.lt.s32.totalorder %v195, 96
    %vm1412 = vcmp.lt.s32.totalorder %v196, 96
    %vm1413 = vcmp.lt.s32.totalorder %v197, 96
    %vm1414 = vcmp.lt.s32.totalorder %v198, 96
    %vm1415 = vcmp.lt.s32.totalorder %v930, 96
    %vm1416 = vcmp.lt.s32.totalorder %v931, 96
    %vm1417 = vcmp.lt.s32.totalorder %v932, 96
    %vm1418 = vcmp.lt.s32.totalorder %v933, 96
    %vm1419 = vcmp.lt.s32.totalorder %v934, 96
    %vm1420 = vcmp.lt.s32.totalorder %v935, 96
    %vm1421 = vcmp.lt.s32.totalorder %v936, 96
    %vm1422 = vcmp.lt.s32.totalorder %v937, 96
    %vm1423 = vcmp.lt.s32.totalorder %v938, 96
    %vm1424 = vcmp.lt.s32.totalorder %v939, 96
    %vm1425 = vcmp.lt.s32.totalorder %v940, 96
    %vm1426 = vcmp.lt.s32.totalorder %v941, 96
    %vm1427 = vmand %vm1395, %vm1411
    %vm1428 = vmand %vm1396, %vm1412
    %vm1429 = vmand %vm1397, %vm1413
    %vm1430 = vmand %vm1398, %vm1414
    %vm1431 = vmand %vm1399, %vm1415
    %vm1432 = vmand %vm1400, %vm1416
    %vm1433 = vmand %vm1401, %vm1417
    %vm1434 = vmand %vm1402, %vm1418
    %vm1435 = vmand %vm1403, %vm1419
    %vm1436 = vmand %vm1404, %vm1420
    %vm1437 = vmand %vm1405, %vm1421
    %vm1438 = vmand %vm1406, %vm1422
    %vm1439 = vmand %vm1407, %vm1423
    %vm1440 = vmand %vm1408, %vm1424
    %vm1441 = vmand %vm1409, %vm1425
    %vm1442 = vmand %vm1410, %vm1426
    %vm1443 = vcmp.ge.s32.totalorder %v200, 20
    %vm1444 = vmand %vm1427, %vm1443
    %vm1445 = vmand %vm1428, %vm1443
    %vm1446 = vmand %vm1429, %vm1443
    %vm1447 = vmand %vm1430, %vm1443
    %vm1448 = vmand %vm1431, %vm1443
    %vm1449 = vmand %vm1432, %vm1443
    %vm1450 = vmand %vm1433, %vm1443
    %vm1451 = vmand %vm1434, %vm1443
    %vm1452 = vmand %vm1435, %vm1443
    %vm1453 = vmand %vm1436, %vm1443
    %vm1454 = vmand %vm1437, %vm1443
    %vm1455 = vmand %vm1438, %vm1443
    %vm1456 = vmand %vm1439, %vm1443
    %vm1457 = vmand %vm1440, %vm1443
    %vm1458 = vmand %vm1441, %vm1443
    %vm1459 = vmand %vm1442, %vm1443
    %vm1460 = vcmp.lt.s32.totalorder %v200, 24
    %vm1461 = vmand %vm1444, %vm1460
    %vm1462 = vmand %vm1445, %vm1460
    %vm1463 = vmand %vm1446, %vm1460
    %vm1464 = vmand %vm1447, %vm1460
    %vm1465 = vmand %vm1448, %vm1460
    %vm1466 = vmand %vm1449, %vm1460
    %vm1467 = vmand %vm1450, %vm1460
    %vm1468 = vmand %vm1451, %vm1460
    %vm1469 = vmand %vm1452, %vm1460
    %vm1470 = vmand %vm1453, %vm1460
    %vm1471 = vmand %vm1454, %vm1460
    %vm1472 = vmand %vm1455, %vm1460
    %vm1473 = vmand %vm1456, %vm1460
    %vm1474 = vmand %vm1457, %vm1460
    %vm1475 = vmand %vm1458, %vm1460
    %vm1476 = vmand %vm1459, %vm1460
    %vm1477 = vmor %vm1379, %vm1461
    %vm1478 = vmor %vm1380, %vm1462
    %vm1479 = vmor %vm1381, %vm1463
    %vm1480 = vmor %vm1382, %vm1464
    %vm1481 = vmor %vm1383, %vm1465
    %vm1482 = vmor %vm1384, %vm1466
    %vm1483 = vmor %vm1385, %vm1467
    %vm1484 = vmor %vm1386, %vm1468
    %vm1485 = vmor %vm1387, %vm1469
    %vm1486 = vmor %vm1388, %vm1470
    %vm1487 = vmor %vm1389, %vm1471
    %vm1488 = vmor %vm1390, %vm1472
    %vm1489 = vmor %vm1391, %vm1473
    %vm1490 = vmor %vm1392, %vm1474
    %vm1491 = vmor %vm1393, %vm1475
    %vm1492 = vmor %vm1394, %vm1476
    %vm1493 = vcmp.ge.s32.totalorder %v195, 96
    %vm1494 = vcmp.ge.s32.totalorder %v196, 96
    %vm1495 = vcmp.ge.s32.totalorder %v197, 96
    %vm1496 = vcmp.ge.s32.totalorder %v198, 96
    %vm1497 = vcmp.ge.s32.totalorder %v930, 96
    %vm1498 = vcmp.ge.s32.totalorder %v931, 96
    %vm1499 = vcmp.ge.s32.totalorder %v932, 96
    %vm1500 = vcmp.ge.s32.totalorder %v933, 96
    %vm1501 = vcmp.ge.s32.totalorder %v934, 96
    %vm1502 = vcmp.ge.s32.totalorder %v935, 96
    %vm1503 = vcmp.ge.s32.totalorder %v936, 96
    %vm1504 = vcmp.ge.s32.totalorder %v937, 96
    %vm1505 = vcmp.ge.s32.totalorder %v938, 96
    %vm1506 = vcmp.ge.s32.totalorder %v939, 96
    %vm1507 = vcmp.ge.s32.totalorder %v940, 96
    %vm1508 = vcmp.ge.s32.totalorder %v941, 96
    %vm1509 = vcmp.lt.s32.totalorder %v195, 112
    %vm1510 = vcmp.lt.s32.totalorder %v196, 112
    %vm1511 = vcmp.lt.s32.totalorder %v197, 112
    %vm1512 = vcmp.lt.s32.totalorder %v198, 112
    %vm1513 = vcmp.lt.s32.totalorder %v930, 112
    %vm1514 = vcmp.lt.s32.totalorder %v931, 112
    %vm1515 = vcmp.lt.s32.totalorder %v932, 112
    %vm1516 = vcmp.lt.s32.totalorder %v933, 112
    %vm1517 = vcmp.lt.s32.totalorder %v934, 112
    %vm1518 = vcmp.lt.s32.totalorder %v935, 112
    %vm1519 = vcmp.lt.s32.totalorder %v936, 112
    %vm1520 = vcmp.lt.s32.totalorder %v937, 112
    %vm1521 = vcmp.lt.s32.totalorder %v938, 112
    %vm1522 = vcmp.lt.s32.totalorder %v939, 112
    %vm1523 = vcmp.lt.s32.totalorder %v940, 112
    %vm1524 = vcmp.lt.s32.totalorder %v941, 112
    %vm1525 = vmand %vm1493, %vm1509
    %vm1526 = vmand %vm1494, %vm1510
    %vm1527 = vmand %vm1495, %vm1511
    %vm1528 = vmand %vm1496, %vm1512
    %vm1529 = vmand %vm1497, %vm1513
    %vm1530 = vmand %vm1498, %vm1514
    %vm1531 = vmand %vm1499, %vm1515
    %vm1532 = vmand %vm1500, %vm1516
    %vm1533 = vmand %vm1501, %vm1517
    %vm1534 = vmand %vm1502, %vm1518
    %vm1535 = vmand %vm1503, %vm1519
    %vm1536 = vmand %vm1504, %vm1520
    %vm1537 = vmand %vm1505, %vm1521
    %vm1538 = vmand %vm1506, %vm1522
    %vm1539 = vmand %vm1507, %vm1523
    %vm1540 = vmand %vm1508, %vm1524
    %vm1541 = vcmp.ge.s32.totalorder %v200, 24
    %vm1542 = vmand %vm1525, %vm1541
    %vm1543 = vmand %vm1526, %vm1541
    %vm1544 = vmand %vm1527, %vm1541
    %vm1545 = vmand %vm1528, %vm1541
    %vm1546 = vmand %vm1529, %vm1541
    %vm1547 = vmand %vm1530, %vm1541
    %vm1548 = vmand %vm1531, %vm1541
    %vm1549 = vmand %vm1532, %vm1541
    %vm1550 = vmand %vm1533, %vm1541
    %vm1551 = vmand %vm1534, %vm1541
    %vm1552 = vmand %vm1535, %vm1541
    %vm1553 = vmand %vm1536, %vm1541
    %vm1554 = vmand %vm1537, %vm1541
    %vm1555 = vmand %vm1538, %vm1541
    %vm1556 = vmand %vm1539, %vm1541
    %vm1557 = vmand %vm1540, %vm1541
    %vm1558 = vcmp.lt.s32.totalorder %v200, 28
    %vm1559 = vmand %vm1542, %vm1558
    %vm1560 = vmand %vm1543, %vm1558
    %vm1561 = vmand %vm1544, %vm1558
    %vm1562 = vmand %vm1545, %vm1558
    %vm1563 = vmand %vm1546, %vm1558
    %vm1564 = vmand %vm1547, %vm1558
    %vm1565 = vmand %vm1548, %vm1558
    %vm1566 = vmand %vm1549, %vm1558
    %vm1567 = vmand %vm1550, %vm1558
    %vm1568 = vmand %vm1551, %vm1558
    %vm1569 = vmand %vm1552, %vm1558
    %vm1570 = vmand %vm1553, %vm1558
    %vm1571 = vmand %vm1554, %vm1558
    %vm1572 = vmand %vm1555, %vm1558
    %vm1573 = vmand %vm1556, %vm1558
    %vm1574 = vmand %vm1557, %vm1558
    %vm1575 = vmor %vm1477, %vm1559
    %vm1576 = vmor %vm1478, %vm1560
    %vm1577 = vmor %vm1479, %vm1561
    %vm1578 = vmor %vm1480, %vm1562
    %vm1579 = vmor %vm1481, %vm1563
    %vm1580 = vmor %vm1482, %vm1564
    %vm1581 = vmor %vm1483, %vm1565
    %vm1582 = vmor %vm1484, %vm1566
    %vm1583 = vmor %vm1485, %vm1567
    %vm1584 = vmor %vm1486, %vm1568
    %vm1585 = vmor %vm1487, %vm1569
    %vm1586 = vmor %vm1488, %vm1570
    %vm1587 = vmor %vm1489, %vm1571
    %vm1588 = vmor %vm1490, %vm1572
    %vm1589 = vmor %vm1491, %vm1573
    %vm1590 = vmor %vm1492, %vm1574
    %vm1591 = vcmp.ge.s32.totalorder %v195, 112
    %vm1592 = vcmp.ge.s32.totalorder %v196, 112
    %vm1593 = vcmp.ge.s32.totalorder %v197, 112
    %vm1594 = vcmp.ge.s32.totalorder %v198, 112
    %vm1595 = vcmp.ge.s32.totalorder %v930, 112
    %vm1596 = vcmp.ge.s32.totalorder %v931, 112
    %vm1597 = vcmp.ge.s32.totalorder %v932, 112
    %vm1598 = vcmp.ge.s32.totalorder %v933, 112
    %vm1599 = vcmp.ge.s32.totalorder %v934, 112
    %vm1600 = vcmp.ge.s32.totalorder %v935, 112
    %vm1601 = vcmp.ge.s32.totalorder %v936, 112
    %vm1602 = vcmp.ge.s32.totalorder %v937, 112
    %vm1603 = vcmp.ge.s32.totalorder %v938, 112
    %vm1604 = vcmp.ge.s32.totalorder %v939, 112
    %vm1605 = vcmp.ge.s32.totalorder %v940, 112
    %vm1606 = vcmp.ge.s32.totalorder %v941, 112
    %vm1607 = vcmp.lt.s32.totalorder %v195, 128
    %vm1608 = vcmp.lt.s32.totalorder %v196, 128
    %vm1609 = vcmp.lt.s32.totalorder %v197, 128
    %vm1610 = vcmp.lt.s32.totalorder %v198, 128
    %vm1611 = vcmp.lt.s32.totalorder %v930, 128
    %vm1612 = vcmp.lt.s32.totalorder %v931, 128
    %vm1613 = vcmp.lt.s32.totalorder %v932, 128
    %vm1614 = vcmp.lt.s32.totalorder %v933, 128
    %vm1615 = vcmp.lt.s32.totalorder %v934, 128
    %vm1616 = vcmp.lt.s32.totalorder %v935, 128
    %vm1617 = vcmp.lt.s32.totalorder %v936, 128
    %vm1618 = vcmp.lt.s32.totalorder %v937, 128
    %vm1619 = vcmp.lt.s32.totalorder %v938, 128
    %vm1620 = vcmp.lt.s32.totalorder %v939, 128
    %vm1621 = vcmp.lt.s32.totalorder %v940, 128
    %vm1622 = vcmp.lt.s32.totalorder %v941, 128
    %vm1623 = vmand %vm1591, %vm1607
    %vm1624 = vmand %vm1592, %vm1608
    %vm1625 = vmand %vm1593, %vm1609
    %vm1626 = vmand %vm1594, %vm1610
    %vm1627 = vmand %vm1595, %vm1611
    %vm1628 = vmand %vm1596, %vm1612
    %vm1629 = vmand %vm1597, %vm1613
    %vm1630 = vmand %vm1598, %vm1614
    %vm1631 = vmand %vm1599, %vm1615
    %vm1632 = vmand %vm1600, %vm1616
    %vm1633 = vmand %vm1601, %vm1617
    %vm1634 = vmand %vm1602, %vm1618
    %vm1635 = vmand %vm1603, %vm1619
    %vm1636 = vmand %vm1604, %vm1620
    %vm1637 = vmand %vm1605, %vm1621
    %vm1638 = vmand %vm1606, %vm1622
    %vm1639 = vcmp.ge.s32.totalorder %v200, 28
    %vm1640 = vmand %vm1623, %vm1639
    %vm1641 = vmand %vm1624, %vm1639
    %vm1642 = vmand %vm1625, %vm1639
    %vm1643 = vmand %vm1626, %vm1639
    %vm1644 = vmand %vm1627, %vm1639
    %vm1645 = vmand %vm1628, %vm1639
    %vm1646 = vmand %vm1629, %vm1639
    %vm1647 = vmand %vm1630, %vm1639
    %vm1648 = vmand %vm1631, %vm1639
    %vm1649 = vmand %vm1632, %vm1639
    %vm1650 = vmand %vm1633, %vm1639
    %vm1651 = vmand %vm1634, %vm1639
    %vm1652 = vmand %vm1635, %vm1639
    %vm1653 = vmand %vm1636, %vm1639
    %vm1654 = vmand %vm1637, %vm1639
    %vm1655 = vmand %vm1638, %vm1639
    %vm1656 = vmand %vm1640, %vm779
    %vm1657 = vmand %vm1641, %vm779
    %vm1658 = vmand %vm1642, %vm779
    %vm1659 = vmand %vm1643, %vm779
    %vm1660 = vmand %vm1644, %vm779
    %vm1661 = vmand %vm1645, %vm779
    %vm1662 = vmand %vm1646, %vm779
    %vm1663 = vmand %vm1647, %vm779
    %vm1664 = vmand %vm1648, %vm779
    %vm1665 = vmand %vm1649, %vm779
    %vm1666 = vmand %vm1650, %vm779
    %vm1667 = vmand %vm1651, %vm779
    %vm1668 = vmand %vm1652, %vm779
    %vm1669 = vmand %vm1653, %vm779
    %vm1670 = vmand %vm1654, %vm779
    %vm1671 = vmand %vm1655, %vm779
    %vm1672 = vmor %vm1575, %vm1656
    %vm1673 = vmor %vm1576, %vm1657
    %vm1674 = vmor %vm1577, %vm1658
    %vm1675 = vmor %vm1578, %vm1659
    %vm1676 = vmor %vm1579, %vm1660
    %vm1677 = vmor %vm1580, %vm1661
    %vm1678 = vmor %vm1581, %vm1662
    %vm1679 = vmor %vm1582, %vm1663
    %vm1680 = vmor %vm1583, %vm1664
    %vm1681 = vmor %vm1584, %vm1665
    %vm1682 = vmor %vm1585, %vm1666
    %vm1683 = vmor %vm1586, %vm1667
    %vm1684 = vmor %vm1587, %vm1668
    %vm1685 = vmor %vm1588, %vm1669
    %vm1686 = vmor %vm1589, %vm1670
    %vm1687 = vmor %vm1590, %vm1671
    %vm1688 = vmand %vm982, %vm741
    %vm1689 = vmand %vm983, %vm741
    %vm1690 = vmand %vm984, %vm741
    %vm1691 = vmand %vm985, %vm741
    %vm1692 = vmand %vm986, %vm741
    %vm1693 = vmand %vm987, %vm741
    %vm1694 = vmand %vm988, %vm741
    %vm1695 = vmand %vm989, %vm741
    %vm1696 = vmand %vm990, %vm741
    %vm1697 = vmand %vm991, %vm741
    %vm1698 = vmand %vm992, %vm741
    %vm1699 = vmand %vm993, %vm741
    %vm1700 = vmand %vm994, %vm741
    %vm1701 = vmand %vm995, %vm741
    %vm1702 = vmand %vm996, %vm741
    %vm1703 = vmand %vm997, %vm741
    %vm1704 = vmand %vm1039, %vm774
    %vm1705 = vmand %vm1040, %vm774
    %vm1706 = vmand %vm1041, %vm774
    %vm1707 = vmand %vm1042, %vm774
    %vm1708 = vmand %vm1043, %vm774
    %vm1709 = vmand %vm1044, %vm774
    %vm1710 = vmand %vm1045, %vm774
    %vm1711 = vmand %vm1046, %vm774
    %vm1712 = vmand %vm1047, %vm774
    %vm1713 = vmand %vm1048, %vm774
    %vm1714 = vmand %vm1049, %vm774
    %vm1715 = vmand %vm1050, %vm774
    %vm1716 = vmand %vm1051, %vm774
    %vm1717 = vmand %vm1052, %vm774
    %vm1718 = vmand %vm1053, %vm774
    %vm1719 = vmand %vm1054, %vm774
    %vm1720 = vmand %vm1704, %vm779
    %vm1721 = vmand %vm1705, %vm779
    %vm1722 = vmand %vm1706, %vm779
    %vm1723 = vmand %vm1707, %vm779
    %vm1724 = vmand %vm1708, %vm779
    %vm1725 = vmand %vm1709, %vm779
    %vm1726 = vmand %vm1710, %vm779
    %vm1727 = vmand %vm1711, %vm779
    %vm1728 = vmand %vm1712, %vm779
    %vm1729 = vmand %vm1713, %vm779
    %vm1730 = vmand %vm1714, %vm779
    %vm1731 = vmand %vm1715, %vm779
    %vm1732 = vmand %vm1716, %vm779
    %vm1733 = vmand %vm1717, %vm779
    %vm1734 = vmand %vm1718, %vm779
    %vm1735 = vmand %vm1719, %vm779
    %vm1736 = vmor %vm1688, %vm1720
    %vm1737 = vmor %vm1689, %vm1721
    %vm1738 = vmor %vm1690, %vm1722
    %vm1739 = vmor %vm1691, %vm1723
    %vm1740 = vmor %vm1692, %vm1724
    %vm1741 = vmor %vm1693, %vm1725
    %vm1742 = vmor %vm1694, %vm1726
    %vm1743 = vmor %vm1695, %vm1727
    %vm1744 = vmor %vm1696, %vm1728
    %vm1745 = vmor %vm1697, %vm1729
    %vm1746 = vmor %vm1698, %vm1730
    %vm1747 = vmor %vm1699, %vm1731
    %vm1748 = vmor %vm1700, %vm1732
    %vm1749 = vmor %vm1701, %vm1733
    %vm1750 = vmor %vm1702, %vm1734
    %vm1751 = vmor %vm1703, %vm1735
    %vm1752 = vmand %vm1136, %vm796
    %vm1753 = vmand %vm1137, %vm796
    %vm1754 = vmand %vm1138, %vm796
    %vm1755 = vmand %vm1139, %vm796
    %vm1756 = vmand %vm1140, %vm796
    %vm1757 = vmand %vm1141, %vm796
    %vm1758 = vmand %vm1142, %vm796
    %vm1759 = vmand %vm1143, %vm796
    %vm1760 = vmand %vm1144, %vm796
    %vm1761 = vmand %vm1145, %vm796
    %vm1762 = vmand %vm1146, %vm796
    %vm1763 = vmand %vm1147, %vm796
    %vm1764 = vmand %vm1148, %vm796
    %vm1765 = vmand %vm1149, %vm796
    %vm1766 = vmand %vm1150, %vm796
    %vm1767 = vmand %vm1151, %vm796
    %vm1768 = vmand %vm1752, %vm801
    %vm1769 = vmand %vm1753, %vm801
    %vm1770 = vmand %vm1754, %vm801
    %vm1771 = vmand %vm1755, %vm801
    %vm1772 = vmand %vm1756, %vm801
    %vm1773 = vmand %vm1757, %vm801
    %vm1774 = vmand %vm1758, %vm801
    %vm1775 = vmand %vm1759, %vm801
    %vm1776 = vmand %vm1760, %vm801
    %vm1777 = vmand %vm1761, %vm801
    %vm1778 = vmand %vm1762, %vm801
    %vm1779 = vmand %vm1763, %vm801
    %vm1780 = vmand %vm1764, %vm801
    %vm1781 = vmand %vm1765, %vm801
    %vm1782 = vmand %vm1766, %vm801
    %vm1783 = vmand %vm1767, %vm801
    %vm1784 = vmor %vm1736, %vm1768
    %vm1785 = vmor %vm1737, %vm1769
    %vm1786 = vmor %vm1738, %vm1770
    %vm1787 = vmor %vm1739, %vm1771
    %vm1788 = vmor %vm1740, %vm1772
    %vm1789 = vmor %vm1741, %vm1773
    %vm1790 = vmor %vm1742, %vm1774
    %vm1791 = vmor %vm1743, %vm1775
    %vm1792 = vmor %vm1744, %vm1776
    %vm1793 = vmor %vm1745, %vm1777
    %vm1794 = vmor %vm1746, %vm1778
    %vm1795 = vmor %vm1747, %vm1779
    %vm1796 = vmor %vm1748, %vm1780
    %vm1797 = vmor %vm1749, %vm1781
    %vm1798 = vmor %vm1750, %vm1782
    %vm1799 = vmor %vm1751, %vm1783
    %vm1800 = vmand %vm1233, %vm820
    %vm1801 = vmand %vm1234, %vm820
    %vm1802 = vmand %vm1235, %vm820
    %vm1803 = vmand %vm1236, %vm820
    %vm1804 = vmand %vm1237, %vm820
    %vm1805 = vmand %vm1238, %vm820
    %vm1806 = vmand %vm1239, %vm820
    %vm1807 = vmand %vm1240, %vm820
    %vm1808 = vmand %vm1241, %vm820
    %vm1809 = vmand %vm1242, %vm820
    %vm1810 = vmand %vm1243, %vm820
    %vm1811 = vmand %vm1244, %vm820
    %vm1812 = vmand %vm1245, %vm820
    %vm1813 = vmand %vm1246, %vm820
    %vm1814 = vmand %vm1247, %vm820
    %vm1815 = vmand %vm1248, %vm820
    %vm1816 = vmand %vm1800, %vm825
    %vm1817 = vmand %vm1801, %vm825
    %vm1818 = vmand %vm1802, %vm825
    %vm1819 = vmand %vm1803, %vm825
    %vm1820 = vmand %vm1804, %vm825
    %vm1821 = vmand %vm1805, %vm825
    %vm1822 = vmand %vm1806, %vm825
    %vm1823 = vmand %vm1807, %vm825
    %vm1824 = vmand %vm1808, %vm825
    %vm1825 = vmand %vm1809, %vm825
    %vm1826 = vmand %vm1810, %vm825
    %vm1827 = vmand %vm1811, %vm825
    %vm1828 = vmand %vm1812, %vm825
    %vm1829 = vmand %vm1813, %vm825
    %vm1830 = vmand %vm1814, %vm825
    %vm1831 = vmand %vm1815, %vm825
    %vm1832 = vmor %vm1784, %vm1816
    %vm1833 = vmor %vm1785, %vm1817
    %vm1834 = vmor %vm1786, %vm1818
    %vm1835 = vmor %vm1787, %vm1819
    %vm1836 = vmor %vm1788, %vm1820
    %vm1837 = vmor %vm1789, %vm1821
    %vm1838 = vmor %vm1790, %vm1822
    %vm1839 = vmor %vm1791, %vm1823
    %vm1840 = vmor %vm1792, %vm1824
    %vm1841 = vmor %vm1793, %vm1825
    %vm1842 = vmor %vm1794, %vm1826
    %vm1843 = vmor %vm1795, %vm1827
    %vm1844 = vmor %vm1796, %vm1828
    %vm1845 = vmor %vm1797, %vm1829
    %vm1846 = vmor %vm1798, %vm1830
    %vm1847 = vmor %vm1799, %vm1831
    %vm1848 = vmand %vm1330, %vm842
    %vm1849 = vmand %vm1331, %vm842
    %vm1850 = vmand %vm1332, %vm842
    %vm1851 = vmand %vm1333, %vm842
    %vm1852 = vmand %vm1334, %vm842
    %vm1853 = vmand %vm1335, %vm842
    %vm1854 = vmand %vm1336, %vm842
    %vm1855 = vmand %vm1337, %vm842
    %vm1856 = vmand %vm1338, %vm842
    %vm1857 = vmand %vm1339, %vm842
    %vm1858 = vmand %vm1340, %vm842
    %vm1859 = vmand %vm1341, %vm842
    %vm1860 = vmand %vm1342, %vm842
    %vm1861 = vmand %vm1343, %vm842
    %vm1862 = vmand %vm1344, %vm842
    %vm1863 = vmand %vm1345, %vm842
    %vm1864 = vmand %vm1848, %vm847
    %vm1865 = vmand %vm1849, %vm847
    %vm1866 = vmand %vm1850, %vm847
    %vm1867 = vmand %vm1851, %vm847
    %vm1868 = vmand %vm1852, %vm847
    %vm1869 = vmand %vm1853, %vm847
    %vm1870 = vmand %vm1854, %vm847
    %vm1871 = vmand %vm1855, %vm847
    %vm1872 = vmand %vm1856, %vm847
    %vm1873 = vmand %vm1857, %vm847
    %vm1874 = vmand %vm1858, %vm847
    %vm1875 = vmand %vm1859, %vm847
    %vm1876 = vmand %vm1860, %vm847
    %vm1877 = vmand %vm1861, %vm847
    %vm1878 = vmand %vm1862, %vm847
    %vm1879 = vmand %vm1863, %vm847
    %vm1880 = vmor %vm1832, %vm1864
    %vm1881 = vmor %vm1833, %vm1865
    %vm1882 = vmor %vm1834, %vm1866
    %vm1883 = vmor %vm1835, %vm1867
    %vm1884 = vmor %vm1836, %vm1868
    %vm1885 = vmor %vm1837, %vm1869
    %vm1886 = vmor %vm1838, %vm1870
    %vm1887 = vmor %vm1839, %vm1871
    %vm1888 = vmor %vm1840, %vm1872
    %vm1889 = vmor %vm1841, %vm1873
    %vm1890 = vmor %vm1842, %vm1874
    %vm1891 = vmor %vm1843, %vm1875
    %vm1892 = vmor %vm1844, %vm1876
    %vm1893 = vmor %vm1845, %vm1877
    %vm1894 = vmor %vm1846, %vm1878
    %vm1895 = vmor %vm1847, %vm1879
    %vm1896 = vmand %vm1427, %vm868
    %vm1897 = vmand %vm1428, %vm868
    %vm1898 = vmand %vm1429, %vm868
    %vm1899 = vmand %vm1430, %vm868
    %vm1900 = vmand %vm1431, %vm868
    %vm1901 = vmand %vm1432, %vm868
    %vm1902 = vmand %vm1433, %vm868
    %vm1903 = vmand %vm1434, %vm868
    %vm1904 = vmand %vm1435, %vm868
    %vm1905 = vmand %vm1436, %vm868
    %vm1906 = vmand %vm1437, %vm868
    %vm1907 = vmand %vm1438, %vm868
    %vm1908 = vmand %vm1439, %vm868
    %vm1909 = vmand %vm1440, %vm868
    %vm1910 = vmand %vm1441, %vm868
    %vm1911 = vmand %vm1442, %vm868
    %vm1912 = vmand %vm1896, %vm873
    %vm1913 = vmand %vm1897, %vm873
    %vm1914 = vmand %vm1898, %vm873
    %vm1915 = vmand %vm1899, %vm873
    %vm1916 = vmand %vm1900, %vm873
    %vm1917 = vmand %vm1901, %vm873
    %vm1918 = vmand %vm1902, %vm873
    %vm1919 = vmand %vm1903, %vm873
    %vm1920 = vmand %vm1904, %vm873
    %vm1921 = vmand %vm1905, %vm873
    %vm1922 = vmand %vm1906, %vm873
    %vm1923 = vmand %vm1907, %vm873
    %vm1924 = vmand %vm1908, %vm873
    %vm1925 = vmand %vm1909, %vm873
    %vm1926 = vmand %vm1910, %vm873
    %vm1927 = vmand %vm1911, %vm873
    %vm1928 = vmor %vm1880, %vm1912
    %vm1929 = vmor %vm1881, %vm1913
    %vm1930 = vmor %vm1882, %vm1914
    %vm1931 = vmor %vm1883, %vm1915
    %vm1932 = vmor %vm1884, %vm1916
    %vm1933 = vmor %vm1885, %vm1917
    %vm1934 = vmor %vm1886, %vm1918
    %vm1935 = vmor %vm1887, %vm1919
    %vm1936 = vmor %vm1888, %vm1920
    %vm1937 = vmor %vm1889, %vm1921
    %vm1938 = vmor %vm1890, %vm1922
    %vm1939 = vmor %vm1891, %vm1923
    %vm1940 = vmor %vm1892, %vm1924
    %vm1941 = vmor %vm1893, %vm1925
    %vm1942 = vmor %vm1894, %vm1926
    %vm1943 = vmor %vm1895, %vm1927
    %vm1944 = vmand %vm1525, %vm890
    %vm1945 = vmand %vm1526, %vm890
    %vm1946 = vmand %vm1527, %vm890
    %vm1947 = vmand %vm1528, %vm890
    %vm1948 = vmand %vm1529, %vm890
    %vm1949 = vmand %vm1530, %vm890
    %vm1950 = vmand %vm1531, %vm890
    %vm1951 = vmand %vm1532, %vm890
    %vm1952 = vmand %vm1533, %vm890
    %vm1953 = vmand %vm1534, %vm890
    %vm1954 = vmand %vm1535, %vm890
    %vm1955 = vmand %vm1536, %vm890
    %vm1956 = vmand %vm1537, %vm890
    %vm1957 = vmand %vm1538, %vm890
    %vm1958 = vmand %vm1539, %vm890
    %vm1959 = vmand %vm1540, %vm890
    %vm1960 = vmand %vm1944, %vm895
    %vm1961 = vmand %vm1945, %vm895
    %vm1962 = vmand %vm1946, %vm895
    %vm1963 = vmand %vm1947, %vm895
    %vm1964 = vmand %vm1948, %vm895
    %vm1965 = vmand %vm1949, %vm895
    %vm1966 = vmand %vm1950, %vm895
    %vm1967 = vmand %vm1951, %vm895
    %vm1968 = vmand %vm1952, %vm895
    %vm1969 = vmand %vm1953, %vm895
    %vm1970 = vmand %vm1954, %vm895
    %vm1971 = vmand %vm1955, %vm895
    %vm1972 = vmand %vm1956, %vm895
    %vm1973 = vmand %vm1957, %vm895
    %vm1974 = vmand %vm1958, %vm895
    %vm1975 = vmand %vm1959, %vm895
    %vm1976 = vmor %vm1928, %vm1960
    %vm1977 = vmor %vm1929, %vm1961
    %vm1978 = vmor %vm1930, %vm1962
    %vm1979 = vmor %vm1931, %vm1963
    %vm1980 = vmor %vm1932, %vm1964
    %vm1981 = vmor %vm1933, %vm1965
    %vm1982 = vmor %vm1934, %vm1966
    %vm1983 = vmor %vm1935, %vm1967
    %vm1984 = vmor %vm1936, %vm1968
    %vm1985 = vmor %vm1937, %vm1969
    %vm1986 = vmor %vm1938, %vm1970
    %vm1987 = vmor %vm1939, %vm1971
    %vm1988 = vmor %vm1940, %vm1972
    %vm1989 = vmor %vm1941, %vm1973
    %vm1990 = vmor %vm1942, %vm1974
    %vm1991 = vmor %vm1943, %vm1975
    %vm1992 = vmand %vm1623, %vm916
    %vm1993 = vmand %vm1624, %vm916
    %vm1994 = vmand %vm1625, %vm916
    %vm1995 = vmand %vm1626, %vm916
    %vm1996 = vmand %vm1627, %vm916
    %vm1997 = vmand %vm1628, %vm916
    %vm1998 = vmand %vm1629, %vm916
    %vm1999 = vmand %vm1630, %vm916
    %vm2000 = vmand %vm1631, %vm916
    %vm2001 = vmand %vm1632, %vm916
    %vm2002 = vmand %vm1633, %vm916
    %vm2003 = vmand %vm1634, %vm916
    %vm2004 = vmand %vm1635, %vm916
    %vm2005 = vmand %vm1636, %vm916
    %vm2006 = vmand %vm1637, %vm916
    %vm2007 = vmand %vm1638, %vm916
    %vm2008 = vmand %vm1992, %vm921
    %vm2009 = vmand %vm1993, %vm921
    %vm2010 = vmand %vm1994, %vm921
    %vm2011 = vmand %vm1995, %vm921
    %vm2012 = vmand %vm1996, %vm921
    %vm2013 = vmand %vm1997, %vm921
    %vm2014 = vmand %vm1998, %vm921
    %vm2015 = vmand %vm1999, %vm921
    %vm2016 = vmand %vm2000, %vm921
    %vm2017 = vmand %vm2001, %vm921
    %vm2018 = vmand %vm2002, %vm921
    %vm2019 = vmand %vm2003, %vm921
    %vm2020 = vmand %vm2004, %vm921
    %vm2021 = vmand %vm2005, %vm921
    %vm2022 = vmand %vm2006, %vm921
    %vm2023 = vmand %vm2007, %vm921
    %vm2024 = vmor %vm1976, %vm2008
    %vm2025 = vmor %vm1977, %vm2009
    %vm2026 = vmor %vm1978, %vm2010
    %vm2027 = vmor %vm1979, %vm2011
    %vm2028 = vmor %vm1980, %vm2012
    %vm2029 = vmor %vm1981, %vm2013
    %vm2030 = vmor %vm1982, %vm2014
    %vm2031 = vmor %vm1983, %vm2015
    %vm2032 = vmor %vm1984, %vm2016
    %vm2033 = vmor %vm1985, %vm2017
    %vm2034 = vmor %vm1986, %vm2018
    %vm2035 = vmor %vm1987, %vm2019
    %vm2036 = vmor %vm1988, %vm2020
    %vm2037 = vmor %vm1989, %vm2021
    %vm2038 = vmor %vm1990, %vm2022
    %vm2039 = vmor %vm1991, %vm2023
    %v2040 = vsel %vm2024, 1.0, 0.0
    %v2041 = vsel %vm2025, 1.0, 0.0
    %v2042 = vsel %vm2026, 1.0, 0.0
    %v2043 = vsel %vm2027, 1.0, 0.0
    %v2044 = vsel %vm2028, 1.0, 0.0
    %v2045 = vsel %vm2029, 1.0, 0.0
    %v2046 = vsel %vm2030, 1.0, 0.0
    %v2047 = vsel %vm2031, 1.0, 0.0
    %v2048 = vsel %vm2032, 1.0, 0.0
    %v2049 = vsel %vm2033, 1.0, 0.0
    %v2050 = vsel %vm2034, 1.0, 0.0
    %v2051 = vsel %vm2035, 1.0, 0.0
    %v2052 = vsel %vm2036, 1.0, 0.0
    %v2053 = vsel %vm2037, 1.0, 0.0
    %v2054 = vsel %vm2038, 1.0, 0.0
    %v2055 = vsel %vm2039, 1.0, 0.0
    %v2056 = vld [vmem:[%s9] sm:$0xff]
    %v2057 = vadd.f32 %v686, %v2056
    %v2058 = vadd.f32 %v688, %v2056
    %v2059 = vld [vmem:[%s15] sm:$0xf]
    %v2060 = vld [vmem:[%s15 + $0x4] sm:$0xf]
    %v2061 = vld [vmem:[%s15 + $0x8] sm:$0xf]
    %v2062 = vld [vmem:[%s15 + $0xc] sm:$0xf]
    %v2063 = vld [vmem:[%s17] sm:$0x1]
    %v2064 = vpack.c.bf16 %v2058, %v2057
    %v2066 = vperm.slane %v2063, 0
    %v2072 = vunpack.c.l.b16 %v2059
    %v2073 = vunpack.c.l.b16 %v2060
    %v2074 = vunpack.c.l.b16 %v2061
    %v2075 = vunpack.c.l.b16 %v2062
    %v2076 = vpack.c.b16 %v2073, %v2072
    %v2077 = vpack.c.b16 %v2075, %v2074
    %v2081 = vsel %vm669, %v2064, 0
    %2083 = vmatpush.bf16.msra.mxu0 0
    %2084 = vmatpush.bf16.msra.mxu0 0
    %2085 = vmatpush.bf16.msra.mxu0 0
    %2086 = vmatpush.bf16.msra.mxu0 0
    %2087 = vmatpush.bf16.msra.mxu0 0
    %2088 = vmatpush.bf16.msra.mxu0 0
    %2089 = vmatpush.bf16.msra.mxu0 %v2077
    %2090 = vmatpush.bf16.msra.mxu0 %v2076
    %2091 = vmatmul.bf16.gmra.mxu0 %v2081
    %v2092 = vpop.f32.mrf.mxu0
    %v2093 = vadd.f32 %v2066, %v2092
    %v2094 = vpop.f32.mrf.mxu0
    %v2095 = vadd.f32 %v2066, %v2094
    %2096 = vdwg.mxu0
    %2097 = vrot.lane.b32.xlu0 %v2076, 96
    %v2098 = vpop.permute.xlu0 %2097
    %2099 = vrot.lane.b32.xlu0 %v2077, 96
    %v2100 = vpop.permute.xlu0 %2099
    %2103 = vrot.lane.b32.xlu0 %v2066, 96
    %v2104 = vpop.permute.xlu0 %2103
    %2106 = vmatpush.bf16.msra.mxu0 0
    %2107 = vmatpush.bf16.msra.mxu0 0
    %2108 = vmatpush.bf16.msra.mxu0 0
    %2109 = vmatpush.bf16.msra.mxu0 0
    %2110 = vmatpush.bf16.msra.mxu0 0
    %2111 = vmatpush.bf16.msra.mxu0 0
    %2112 = vmatpush.bf16.msra.mxu0 %v2100
    %2113 = vmatpush.bf16.msra.mxu0 %v2098
    %2114 = vmatmul.bf16.gmra.mxu0 %v2081
    %v2115 = vpop.f32.mrf.mxu0
    %v2116 = vadd.f32 %v2104, %v2115
    %v2117 = vpop.f32.mrf.mxu0
    %v2118 = vadd.f32 %v2104, %v2117
    %2119 = vdwg.mxu0
    %v2120 = vmul.f32 %v2093, 0.5
    %v2121 = vmul.f32 %v2095, 0.5
    %2122 = vxpose.xlu0.b32.start [1/16] %v2116, 128
    %2123 = vxpose.xlu0.b32.cont [2/16] %v2118, 128
    %2124 = vxpose.xlu0.b32.cont [3/16] 0.0, 128
    %2125 = vxpose.xlu0.b32.cont [4/16] 0.0, 128
    %2126 = vxpose.xlu0.b32.cont [5/16] 0.0, 128
    %2127 = vxpose.xlu0.b32.cont [6/16] 0.0, 128
    %2128 = vxpose.xlu0.b32.cont [7/16] 0.0, 128
    %2129 = vxpose.xlu0.b32.cont [8/16] 0.0, 128
    %2130 = vxpose.xlu0.b32.cont [9/16] 0.0, 128
    %2131 = vxpose.xlu0.b32.cont [10/16] 0.0, 128
    %2132 = vxpose.xlu0.b32.cont [11/16] 0.0, 128
    %2133 = vxpose.xlu0.b32.cont [12/16] 0.0, 128
    %2134 = vxpose.xlu0.b32.cont [13/16] 0.0, 128
    %2135 = vxpose.xlu0.b32.cont [14/16] 0.0, 128
    %2136 = vxpose.xlu0.b32.cont [15/16] 0.0, 128
    %2137 = vxpose.xlu0.b32.end [16/16] 0.0, 128
    %v2138 = vpop.trf.xlu0
    %v2139 = vpop.trf.xlu0
    %v2140 = vpop.trf.xlu0
    %v2141 = vpop.trf.xlu0
    %v2142 = vpop.trf.xlu0
    %v2143 = vpop.trf.xlu0
    %v2144 = vpop.trf.xlu0
    %v2145 = vpop.trf.xlu0
    %v2146 = vpop.trf.xlu0
    %v2147 = vpop.trf.xlu0
    %v2148 = vpop.trf.xlu0
    %v2149 = vpop.trf.xlu0
    %v2150 = vpop.trf.xlu0
    %v2151 = vpop.trf.xlu0
    %v2152 = vpop.trf.xlu0
    %v2153 = vpop.trf.xlu0
    %2158 = vrot.lane.b32.xlu0 %v2138, 16
    %v2159 = vpop.permute.xlu0 %2158
    %2160 = vrot.lane.b32.xlu0 %v2139, 16
    %v2161 = vpop.permute.xlu0 %2160
    %2162 = vrot.lane.b32.xlu0 %v2140, 16
    %v2163 = vpop.permute.xlu0 %2162
    %2164 = vrot.lane.b32.xlu0 %v2141, 16
    %v2165 = vpop.permute.xlu0 %2164
    %2170 = vrot.lane.b32.xlu0 %v2138, 32
    %v2171 = vpop.permute.xlu0 %2170
    %2172 = vrot.lane.b32.xlu0 %v2139, 32
    %v2173 = vpop.permute.xlu0 %2172
    %2174 = vrot.lane.b32.xlu0 %v2140, 32
    %v2175 = vpop.permute.xlu0 %2174
    %2176 = vrot.lane.b32.xlu0 %v2141, 32
    %v2177 = vpop.permute.xlu0 %2176
    %2182 = vrot.lane.b32.xlu0 %v2138, 48
    %v2183 = vpop.permute.xlu0 %2182
    %2184 = vrot.lane.b32.xlu0 %v2139, 48
    %v2185 = vpop.permute.xlu0 %2184
    %2186 = vrot.lane.b32.xlu0 %v2140, 48
    %v2187 = vpop.permute.xlu0 %2186
    %2188 = vrot.lane.b32.xlu0 %v2141, 48
    %v2189 = vpop.permute.xlu0 %2188
    %2194 = vrot.lane.b32.xlu0 %v2138, 64
    %v2195 = vpop.permute.xlu0 %2194
    %2196 = vrot.lane.b32.xlu0 %v2139, 64
    %v2197 = vpop.permute.xlu0 %2196
    %2198 = vrot.lane.b32.xlu0 %v2140, 64
    %v2199 = vpop.permute.xlu0 %2198
    %2200 = vrot.lane.b32.xlu0 %v2141, 64
    %v2201 = vpop.permute.xlu0 %2200
    %2206 = vrot.lane.b32.xlu0 %v2138, 80
    %v2207 = vpop.permute.xlu0 %2206
    %2208 = vrot.lane.b32.xlu0 %v2139, 80
    %v2209 = vpop.permute.xlu0 %2208
    %2210 = vrot.lane.b32.xlu0 %v2140, 80
    %v2211 = vpop.permute.xlu0 %2210
    %2212 = vrot.lane.b32.xlu0 %v2141, 80
    %v2213 = vpop.permute.xlu0 %2212
    %2218 = vrot.lane.b32.xlu0 %v2138, 96
    %v2219 = vpop.permute.xlu0 %2218
    %2220 = vrot.lane.b32.xlu0 %v2139, 96
    %v2221 = vpop.permute.xlu0 %2220
    %2222 = vrot.lane.b32.xlu0 %v2140, 96
    %v2223 = vpop.permute.xlu0 %2222
    %2224 = vrot.lane.b32.xlu0 %v2141, 96
    %v2225 = vpop.permute.xlu0 %2224
    %2230 = vrot.lane.b32.xlu0 %v2138, 112
    %v2231 = vpop.permute.xlu0 %2230
    %2232 = vrot.lane.b32.xlu0 %v2139, 112
    %v2233 = vpop.permute.xlu0 %2232
    %2234 = vrot.lane.b32.xlu0 %v2140, 112
    %v2235 = vpop.permute.xlu0 %2234
    %2236 = vrot.lane.b32.xlu0 %v2141, 112
    %v2237 = vpop.permute.xlu0 %2236
    %vm2242 = vcmask 130048
    %v2243 = vsel %vm2242, %v2138, %v2159
    %v2244 = vsel %vm2242, %v2139, %v2161
    %v2245 = vsel %vm2242, %v2140, %v2163
    %v2246 = vsel %vm2242, %v2141, %v2165
    %v2247 = vsel %vm669, %v2243, %v2171
    %v2248 = vsel %vm669, %v2244, %v2173
    %v2249 = vsel %vm669, %v2245, %v2175
    %v2250 = vsel %vm669, %v2246, %v2177
    %vm2251 = vcmask 392192
    %v2252 = vsel %vm2251, %v2247, %v2183
    %v2253 = vsel %vm2251, %v2248, %v2185
    %v2254 = vsel %vm2251, %v2249, %v2187
    %v2255 = vsel %vm2251, %v2250, %v2189
    %vm2256 = vcmask 523264
    %v2257 = vsel %vm2256, %v2252, %v2195
    %v2258 = vsel %vm2256, %v2253, %v2197
    %v2259 = vsel %vm2256, %v2254, %v2199
    %v2260 = vsel %vm2256, %v2255, %v2201
    %vm2261 = vcmask 654336
    %v2262 = vsel %vm2261, %v2257, %v2207
    %v2263 = vsel %vm2261, %v2258, %v2209
    %v2264 = vsel %vm2261, %v2259, %v2211
    %v2265 = vsel %vm2261, %v2260, %v2213
    %vm2266 = vcmask 785408
    %v2267 = vsel %vm2266, %v2262, %v2219
    %v2268 = vsel %vm2266, %v2263, %v2221
    %v2269 = vsel %vm2266, %v2264, %v2223
    %v2270 = vsel %vm2266, %v2265, %v2225
    %vm2271 = vcmask 916480
    %v2272 = vsel %vm2271, %v2267, %v2231
    %v2273 = vsel %vm2271, %v2268, %v2233
    %v2274 = vsel %vm2271, %v2269, %v2235
    %v2275 = vsel %vm2271, %v2270, %v2237
    %v2276 = vsel %vm926, %v2272, 0.0
    %v2277 = vsel %vm927, %v2273, 0.0
    %v2278 = vsel %vm928, %v2274, 0.0
    %v2279 = vsel %vm929, %v2275, 0.0
    %2282 = vrot.lane.b32.xlu0 %v2116, 96
    %v2283 = vpop.permute.xlu0 %2282
    %2284 = vrot.lane.b32.xlu0 %v2118, 96
    %v2285 = vpop.permute.xlu0 %2284
    %v2288 = vsel %vm1672, %v2283, 0.0
    %v2289 = vsel %vm1673, %v2285, 0.0
    %v2290 = vsel %vm1674, %v2283, 0.0
    %v2291 = vsel %vm1675, %v2285, 0.0
    %v2292 = vsel %vm1676, %v2283, 0.0
    %v2293 = vsel %vm1677, %v2285, 0.0
    %v2294 = vsel %vm1678, %v2283, 0.0
    %v2295 = vsel %vm1679, %v2285, 0.0
    %v2296 = vsel %vm1680, %v2283, 0.0
    %v2297 = vsel %vm1681, %v2285, 0.0
    %v2298 = vsel %vm1682, %v2283, 0.0
    %v2299 = vsel %vm1683, %v2285, 0.0
    %v2300 = vsel %vm1684, %v2283, 0.0
    %v2301 = vsel %vm1685, %v2285, 0.0
    %v2302 = vsel %vm1686, %v2283, 0.0
    %v2303 = vsel %vm1687, %v2285, 0.0
    %v2304 = vpack.c.bf16 %v2121, %v2120
    %v2305 = vpack.c.bf16 %v2277, %v2276
    %v2306 = vpack.c.bf16 %v2279, %v2278
    %2309 = vrot.lane.b32.xlu0 %v723, 16
    %v2310 = vpop.permute.xlu0 %2309
    %2311 = vrot.lane.b32.xlu0 %v724, 16
    %v2312 = vpop.permute.xlu0 %2311
    %2315 = vrot.lane.b32.xlu0 %v723, 32
    %v2316 = vpop.permute.xlu0 %2315
    %2317 = vrot.lane.b32.xlu0 %v724, 32
    %v2318 = vpop.permute.xlu0 %2317
    %2321 = vrot.lane.b32.xlu0 %v723, 48
    %v2322 = vpop.permute.xlu0 %2321
    %2323 = vrot.lane.b32.xlu0 %v724, 48
    %v2324 = vpop.permute.xlu0 %2323
    %2327 = vrot.lane.b32.xlu0 %v723, 64
    %v2328 = vpop.permute.xlu0 %2327
    %2329 = vrot.lane.b32.xlu0 %v724, 64
    %v2330 = vpop.permute.xlu0 %2329
    %2333 = vrot.lane.b32.xlu0 %v723, 80
    %v2334 = vpop.permute.xlu0 %2333
    %2335 = vrot.lane.b32.xlu0 %v724, 80
    %v2336 = vpop.permute.xlu0 %2335
    %2339 = vrot.lane.b32.xlu0 %v723, 96
    %v2340 = vpop.permute.xlu0 %2339
    %2341 = vrot.lane.b32.xlu0 %v724, 96
    %v2342 = vpop.permute.xlu0 %2341
    %2345 = vrot.lane.b32.xlu0 %v723, 112
    %v2346 = vpop.permute.xlu0 %2345
    %2347 = vrot.lane.b32.xlu0 %v724, 112
    %v2348 = vpop.permute.xlu0 %2347
    %v2351 = vsel %vm2242, %v723, %v2310
    %v2352 = vsel %vm2242, %v724, %v2312
    %v2353 = vsel %vm669, %v2351, %v2316
    %v2354 = vsel %vm669, %v2352, %v2318
    %v2355 = vsel %vm2251, %v2353, %v2322
    %v2356 = vsel %vm2251, %v2354, %v2324
    %v2357 = vsel %vm2256, %v2355, %v2328
    %v2358 = vsel %vm2256, %v2356, %v2330
    %v2359 = vsel %vm2261, %v2357, %v2334
    %v2360 = vsel %vm2261, %v2358, %v2336
    %v2361 = vsel %vm2266, %v2359, %v2340
    %v2362 = vsel %vm2266, %v2360, %v2342
    %v2363 = vsel %vm2271, %v2361, %v2346
    %v2364 = vsel %vm2271, %v2362, %v2348
    %v2366 = vsel %vm669, %v2304, 0
    %2368 = vmatpush.bf16.msra.mxu0 0
    %2369 = vmatpush.bf16.msra.mxu0 0
    %2370 = vmatpush.bf16.msra.mxu0 0
    %2371 = vmatpush.bf16.msra.mxu0 0
    %2372 = vmatpush.bf16.msra.mxu0 0
    %2373 = vmatpush.bf16.msra.mxu0 0
    %2374 = vmatpush.bf16.msra.mxu0 %v2306
    %2375 = vmatpush.bf16.msra.mxu0 %v2305
    %2376 = vmatmul.bf16.gmra.mxu0 %v2366
    %v2377 = vpop.f32.mrf.mxu0
    %v2378 = vadd.f32 %v2363, %v2377
    %v2379 = vpop.f32.mrf.mxu0
    %v2380 = vadd.f32 %v2364, %v2379
    %2381 = vdwg.mxu0
    %2382 = vmax.xlane.f32.xlu0 %v2378
    %v2383 = vpop.xlane.xlu0 %2382
    %2384 = vmax.xlane.f32.xlu0 %v2380
    %v2385 = vpop.xlane.xlu0 %2384
    %v2386 = vsub.f32 %v2378, %v2383
    %v2387 = vsub.f32 %v2380, %v2385
    %v2388 = vmul.f32 %v2386, 1.442695
    %v2389 = vpow.pop %v2388
    %v2390 = vmul.f32 %v2387, 1.442695
    %v2391 = vpow.pop %v2390
    %2392 = vmatpush.msra.mxu0 %v2055
    %2393 = vmatpush.msra.mxu0 %v2054
    %2394 = vmatpush.msra.mxu0 %v2053
    %2395 = vmatpush.msra.mxu0 %v2052
    %2396 = vmatpush.msra.mxu0 %v2051
    %2397 = vmatpush.msra.mxu0 %v2050
    %2398 = vmatpush.msra.mxu0 %v2049
    %2399 = vmatpush.msra.mxu0 %v2048
    %2400 = vmatpush.msra.mxu0 %v2047
    %2401 = vmatpush.msra.mxu0 %v2046
    %2402 = vmatpush.msra.mxu0 %v2045
    %2403 = vmatpush.msra.mxu0 %v2044
    %2404 = vmatpush.msra.mxu0 %v2043
    %2405 = vmatpush.msra.mxu0 %v2042
    %2406 = vmatpush.msra.mxu0 %v2041
    %2407 = vmatpush.msra.mxu0 %v2040
    %2408 = vmatmul.f32.gmra.mxu0 %v2389
    %v2409 = vpop.f32.mrf.mxu0
    %v2410 = vadd.f32 0.0, %v2409
    %2411 = vmatmul.f32.gmra.mxu0 %v2391
    %v2412 = vpop.f32.mrf.mxu0
    %v2413 = vadd.f32 0.0, %v2412
    %2414 = vdwg.mxu0
    %v2415 = vrcp.pop %v2410
    %v2416 = vrcp.pop %v2413
    %v2417 = vmul.f32 %v2389, %v2415
    %v2418 = vmul.f32 %v2391, %v2416
    %v2419 = vpack.c.bf16 %v2418, %v2417
    %v2420 = vpack.c.bf16 %v2289, %v2288
    %v2421 = vpack.c.bf16 %v2291, %v2290
    %v2422 = vpack.c.bf16 %v2293, %v2292
    %v2423 = vpack.c.bf16 %v2295, %v2294
    %v2424 = vpack.c.bf16 %v2297, %v2296
    %v2425 = vpack.c.bf16 %v2299, %v2298
    %v2426 = vpack.c.bf16 %v2301, %v2300
    %v2427 = vpack.c.bf16 %v2303, %v2302
    %2428 = vmatpush.bf16.msra.mxu0 %v2427
    %2429 = vmatpush.bf16.msra.mxu0 %v2426
    %2430 = vmatpush.bf16.msra.mxu0 %v2425
    %2431 = vmatpush.bf16.msra.mxu0 %v2424
    %2432 = vmatpush.bf16.msra.mxu0 %v2423
    %2433 = vmatpush.bf16.msra.mxu0 %v2422
    %2434 = vmatpush.bf16.msra.mxu0 %v2421
    %2435 = vmatpush.bf16.msra.mxu0 %v2420
    %2436 = vmatmul.bf16.gmra.mxu0 %v2419
    %v2437 = vpop.f32.mrf.mxu0
    %v2438 = vadd.f32 0.0, %v2437
    %v2439 = vpop.f32.mrf.mxu0
    %v2440 = vadd.f32 0.0, %v2439
    %2441 = vdwg.mxu0
    %v2442 = vpack.c.bf16 %v2440, %v2438
    %v2443 = vld [vmem:[%s19] sm:$0xf]
    %v2444 = vld [vmem:[%s19 + $0x4] sm:$0xf]
    %v2445 = vld [vmem:[%s19 + $0x8] sm:$0xf]
    %v2446 = vld [vmem:[%s19 + $0xc] sm:$0xf]
    %v2447 = vld [vmem:[%s21] sm:$0x1]
    %v2449 = vperm.slane %v2447, 0
    %v2455 = vunpack.c.l.b16 %v2443
    %v2456 = vunpack.c.l.b16 %v2444
    %v2457 = vunpack.c.l.b16 %v2445
    %v2458 = vunpack.c.l.b16 %v2446
    %v2459 = vpack.c.b16 %v2456, %v2455
    %v2460 = vpack.c.b16 %v2458, %v2457
    %v2464 = vsel %vm669, %v2442, 0
    %2466 = vmatpush.bf16.msra.mxu0 0
    %2467 = vmatpush.bf16.msra.mxu0 0
    %2468 = vmatpush.bf16.msra.mxu0 0
    %2469 = vmatpush.bf16.msra.mxu0 0
    %2470 = vmatpush.bf16.msra.mxu0 0
    %2471 = vmatpush.bf16.msra.mxu0 0
    %2472 = vmatpush.bf16.msra.mxu0 %v2460
    %2473 = vmatpush.bf16.msra.mxu0 %v2459
    %2474 = vmatmul.bf16.gmra.mxu0 %v2464
    %v2475 = vpop.f32.mrf.mxu0
    %v2476 = vadd.f32 %v2449, %v2475
    %v2477 = vpop.f32.mrf.mxu0
    %v2478 = vadd.f32 %v2449, %v2477
    %2479 = vdwg.mxu0
    %v2480 = vadd.f32 %v2057, %v2476
    %v2481 = vadd.f32 %v2058, %v2478
    %v2482 = vsel %vm669, %v2480, 0.0
    %2483 = vadd.xlane.f32.xlu0 %v2482
    %v2484 = vpop.xlane.xlu0 %2483
    %v2485 = vsel %vm669, %v2481, 0.0
    %2486 = vadd.xlane.f32.xlu0 %v2485
    %v2487 = vpop.xlane.xlu0 %2486
    %v2488 = vrcp.pop 32.0
    %v2489 = vmul.f32 32.0, %v2488
    %v2490 = vsub.f32 1.0, %v2489
    %v2491 = vmul.f32 %v2488, %v2490
    %v2492 = vadd.f32 %v2488, %v2491
    %vm2493 = vweird.f32 %v2488
    %v2494 = vsel %vm2493, %v2488, %v2492
    %v2495 = vmul.f32 %v2484, %v2494
    %v2496 = vmul.f32 %v2487, %v2494
    %v2497 = vsub.f32 %v2480, %v2495
    %v2498 = vsub.f32 %v2481, %v2496
    %v2499 = vmul.f32 %v2497, %v2497
    %v2500 = vmul.f32 %v2498, %v2498
    %v2501 = vsel %vm669, %v2499, 0.0
    %2502 = vadd.xlane.f32.xlu0 %v2501
    %v2503 = vpop.xlane.xlu0 %2502
    %v2504 = vsel %vm669, %v2500, 0.0
    %2505 = vadd.xlane.f32.xlu0 %v2504
    %v2506 = vpop.xlane.xlu0 %2505
    %v2507 = vmul.f32 %v2503, %v2494
    %v2508 = vmul.f32 %v2506, %v2494
    %v2509 = vadd.f32 %v2507, 1e-05
    %v2510 = vadd.f32 %v2508, 1e-05
    %v2511 = vrsqrt.pop %v2509
    %v2512 = vmul.f32 %v2511, %v2509
    %v2513 = vmul.f32 %v2512, %v2511
    %v2514 = vmul.f32 0.5, %v2513
    %v2515 = vsub.f32 1.5, %v2514
    %v2516 = vmul.f32 %v2511, %v2515
    %vm2517 = vweird.f32 %v2509
    %vm2518 = vweird.f32 %v2511
    %vm2519 = vmor %vm2517, %vm2518
    %v2520 = vsel %vm2519, %v2511, %v2516
    %v2521 = vrsqrt.pop %v2510
    %v2522 = vmul.f32 %v2521, %v2510
    %v2523 = vmul.f32 %v2522, %v2521
    %v2524 = vmul.f32 0.5, %v2523
    %v2525 = vsub.f32 1.5, %v2524
    %v2526 = vmul.f32 %v2521, %v2525
    %vm2527 = vweird.f32 %v2510
    %vm2528 = vweird.f32 %v2521
    %vm2529 = vmor %vm2527, %vm2528
    %v2530 = vsel %vm2529, %v2521, %v2526
    %v2531 = vmul.f32 %v2497, %v2520
    %v2532 = vmul.f32 %v2498, %v2530
    %v2533 = vld [vmem:[%s31] sm:$0x1]
    %v2535 = vperm.slane %v2533, 0
    %v2537 = vmul.f32 %v2531, %v2535
    %v2538 = vmul.f32 %v2532, %v2535
    %v2539 = vld [vmem:[%s33] sm:$0x1]
    %v2541 = vperm.slane %v2539, 0
    %v2543 = vadd.f32 %v2537, %v2541
    %v2544 = vadd.f32 %v2538, %v2541
    %v2545 = vpack.c.bf16 %v2544, %v2543
    %v2546 = vld [vmem:[%s23] sm:$0xff]
    %v2547 = vld [vmem:[%s23 + $0x8] sm:$0xff]
    %v2548 = vld [vmem:[%s23 + $0x10] sm:$0xff]
    %v2549 = vld [vmem:[%s23 + $0x18] sm:$0xff]
    %v2550 = vld [vmem:[%s23 + $0x20] sm:$0xff]
    %v2551 = vld [vmem:[%s23 + $0x28] sm:$0xff]
    %v2552 = vld [vmem:[%s23 + $0x30] sm:$0xff]
    %v2553 = vld [vmem:[%s23 + $0x38] sm:$0xff]
    %v2554 = vld [vmem:[%s23 + $0x40] sm:$0xff]
    %v2555 = vld [vmem:[%s23 + $0x48] sm:$0xff]
    %v2556 = vld [vmem:[%s23 + $0x50] sm:$0xff]
    %v2557 = vld [vmem:[%s23 + $0x58] sm:$0xff]
    %v2558 = vld [vmem:[%s23 + $0x60] sm:$0xff]
    %v2559 = vld [vmem:[%s23 + $0x68] sm:$0xff]
    %v2560 = vld [vmem:[%s23 + $0x70] sm:$0xff]
    %v2561 = vld [vmem:[%s23 + $0x78] sm:$0xff]
    %v2562 = vld [vmem:[%s23 + $0x80] sm:$0xff]
    %v2563 = vld [vmem:[%s23 + $0x88] sm:$0xff]
    %v2564 = vld [vmem:[%s23 + $0x90] sm:$0xff]
    %v2565 = vld [vmem:[%s23 + $0x98] sm:$0xff]
    %v2566 = vld [vmem:[%s23 + $0xa0] sm:$0xff]
    %v2567 = vld [vmem:[%s23 + $0xa8] sm:$0xff]
    %v2568 = vld [vmem:[%s23 + $0xb0] sm:$0xff]
    %v2569 = vld [vmem:[%s23 + $0xb8] sm:$0xff]
    %v2570 = vld [vmem:[%s23 + $0xc0] sm:$0xff]
    %v2571 = vld [vmem:[%s23 + $0xc8] sm:$0xff]
    %v2572 = vld [vmem:[%s23 + $0xd0] sm:$0xff]
    %v2573 = vld [vmem:[%s23 + $0xd8] sm:$0xff]
    %v2574 = vld [vmem:[%s23 + $0xe0] sm:$0xff]
    %v2575 = vld [vmem:[%s23 + $0xe8] sm:$0xff]
    %v2576 = vld [vmem:[%s23 + $0xf0] sm:$0xff]
    %v2577 = vld [vmem:[%s23 + $0xf8] sm:$0xff]
    %v2578 = vld [vmem:[%s25] sm:$0xff]
    %v2579 = vld [vmem:[%s25 + $0x8] sm:$0xff]
    %v2582 = vperm.slane %v2578, 0
    %v2583 = vperm.slane %v2578, 1
    %v2584 = vperm.slane %v2578, 2
    %v2585 = vperm.slane %v2578, 3
    %v2586 = vperm.slane %v2578, 4
    %v2587 = vperm.slane %v2578, 5
    %v2588 = vperm.slane %v2578, 6
    %v2589 = vperm.slane %v2578, 7
    %v2590 = vperm.slane %v2579, 0
    %v2591 = vperm.slane %v2579, 1
    %v2592 = vperm.slane %v2579, 2
    %v2593 = vperm.slane %v2579, 3
    %v2594 = vperm.slane %v2579, 4
    %v2595 = vperm.slane %v2579, 5
    %v2596 = vperm.slane %v2579, 6
    %v2597 = vperm.slane %v2579, 7
    %v2646 = vunpack.c.l.b16 %v2546
    %v2647 = vunpack.c.h.b16 %v2546
    %v2648 = vunpack.c.l.b16 %v2547
    %v2649 = vunpack.c.h.b16 %v2547
    %v2650 = vunpack.c.l.b16 %v2548
    %v2651 = vunpack.c.h.b16 %v2548
    %v2652 = vunpack.c.l.b16 %v2549
    %v2653 = vunpack.c.h.b16 %v2549
    %v2654 = vunpack.c.l.b16 %v2550
    %v2655 = vunpack.c.h.b16 %v2550
    %v2656 = vunpack.c.l.b16 %v2551
    %v2657 = vunpack.c.h.b16 %v2551
    %v2658 = vunpack.c.l.b16 %v2552
    %v2659 = vunpack.c.h.b16 %v2552
    %v2660 = vunpack.c.l.b16 %v2553
    %v2661 = vunpack.c.h.b16 %v2553
    %v2662 = vunpack.c.l.b16 %v2554
    %v2663 = vunpack.c.h.b16 %v2554
    %v2664 = vunpack.c.l.b16 %v2555
    %v2665 = vunpack.c.h.b16 %v2555
    %v2666 = vunpack.c.l.b16 %v2556
    %v2667 = vunpack.c.h.b16 %v2556
    %v2668 = vunpack.c.l.b16 %v2557
    %v2669 = vunpack.c.h.b16 %v2557
    %v2670 = vunpack.c.l.b16 %v2558
    %v2671 = vunpack.c.h.b16 %v2558
    %v2672 = vunpack.c.l.b16 %v2559
    %v2673 = vunpack.c.h.b16 %v2559
    %v2674 = vunpack.c.l.b16 %v2560
    %v2675 = vunpack.c.h.b16 %v2560
    %v2676 = vunpack.c.l.b16 %v2561
    %v2677 = vunpack.c.h.b16 %v2561
    %v2678 = vunpack.c.l.b16 %v2562
    %v2679 = vunpack.c.h.b16 %v2562
    %v2680 = vunpack.c.l.b16 %v2563
    %v2681 = vunpack.c.h.b16 %v2563
    %v2682 = vunpack.c.l.b16 %v2564
    %v2683 = vunpack.c.h.b16 %v2564
    %v2684 = vunpack.c.l.b16 %v2565
    %v2685 = vunpack.c.h.b16 %v2565
    %v2686 = vunpack.c.l.b16 %v2566
    %v2687 = vunpack.c.h.b16 %v2566
    %v2688 = vunpack.c.l.b16 %v2567
    %v2689 = vunpack.c.h.b16 %v2567
    %v2690 = vunpack.c.l.b16 %v2568
    %v2691 = vunpack.c.h.b16 %v2568
    %v2692 = vunpack.c.l.b16 %v2569
    %v2693 = vunpack.c.h.b16 %v2569
    %v2694 = vunpack.c.l.b16 %v2570
    %v2695 = vunpack.c.h.b16 %v2570
    %v2696 = vunpack.c.l.b16 %v2571
    %v2697 = vunpack.c.h.b16 %v2571
    %v2698 = vunpack.c.l.b16 %v2572
    %v2699 = vunpack.c.h.b16 %v2572
    %v2700 = vunpack.c.l.b16 %v2573
    %v2701 = vunpack.c.h.b16 %v2573
    %v2702 = vunpack.c.l.b16 %v2574
    %v2703 = vunpack.c.h.b16 %v2574
    %v2704 = vunpack.c.l.b16 %v2575
    %v2705 = vunpack.c.h.b16 %v2575
    %v2706 = vunpack.c.l.b16 %v2576
    %v2707 = vunpack.c.h.b16 %v2576
    %v2708 = vunpack.c.l.b16 %v2577
    %v2709 = vunpack.c.h.b16 %v2577
    %v2710 = vpack.c.b16 %v2662, %v2646
    %v2711 = vpack.c.b16 %v2663, %v2647
    %v2712 = vpack.c.b16 %v2664, %v2648
    %v2713 = vpack.c.b16 %v2665, %v2649
    %v2714 = vpack.c.b16 %v2666, %v2650
    %v2715 = vpack.c.b16 %v2667, %v2651
    %v2716 = vpack.c.b16 %v2668, %v2652
    %v2717 = vpack.c.b16 %v2669, %v2653
    %v2718 = vpack.c.b16 %v2670, %v2654
    %v2719 = vpack.c.b16 %v2671, %v2655
    %v2720 = vpack.c.b16 %v2672, %v2656
    %v2721 = vpack.c.b16 %v2673, %v2657
    %v2722 = vpack.c.b16 %v2674, %v2658
    %v2723 = vpack.c.b16 %v2675, %v2659
    %v2724 = vpack.c.b16 %v2676, %v2660
    %v2725 = vpack.c.b16 %v2677, %v2661
    %v2726 = vpack.c.b16 %v2694, %v2678
    %v2727 = vpack.c.b16 %v2695, %v2679
    %v2728 = vpack.c.b16 %v2696, %v2680
    %v2729 = vpack.c.b16 %v2697, %v2681
    %v2730 = vpack.c.b16 %v2698, %v2682
    %v2731 = vpack.c.b16 %v2699, %v2683
    %v2732 = vpack.c.b16 %v2700, %v2684
    %v2733 = vpack.c.b16 %v2701, %v2685
    %v2734 = vpack.c.b16 %v2702, %v2686
    %v2735 = vpack.c.b16 %v2703, %v2687
    %v2736 = vpack.c.b16 %v2704, %v2688
    %v2737 = vpack.c.b16 %v2705, %v2689
    %v2738 = vpack.c.b16 %v2706, %v2690
    %v2739 = vpack.c.b16 %v2707, %v2691
    %v2740 = vpack.c.b16 %v2708, %v2692
    %v2741 = vpack.c.b16 %v2709, %v2693
    %v2775 = vsel %vm669, %v2545, 0
    %2777 = vmatpush.bf16.msra.mxu0 0
    %2778 = vmatpush.bf16.msra.mxu0 0
    %2779 = vmatpush.bf16.msra.mxu0 0
    %2780 = vmatpush.bf16.msra.mxu0 0
    %2781 = vmatpush.bf16.msra.mxu0 0
    %2782 = vmatpush.bf16.msra.mxu0 0
    %2783 = vmatpush.bf16.msra.mxu0 %v2726
    %2784 = vmatpush.bf16.msra.mxu0 %v2710
    %2785 = vmatmul.bf16.gmra.mxu0 %v2775
    %v2786 = vpop.f32.mrf.mxu0
    %v2787 = vadd.f32 %v2582, %v2786
    %v2788 = vpop.f32.mrf.mxu0
    %v2789 = vadd.f32 %v2582, %v2788
    %2790 = vdwg.mxu0
    %2791 = vmatpush.bf16.msra.mxu0 0
    %2792 = vmatpush.bf16.msra.mxu0 0
    %2793 = vmatpush.bf16.msra.mxu0 0
    %2794 = vmatpush.bf16.msra.mxu0 0
    %2795 = vmatpush.bf16.msra.mxu0 0
    %2796 = vmatpush.bf16.msra.mxu0 0
    %2797 = vmatpush.bf16.msra.mxu0 %v2727
    %2798 = vmatpush.bf16.msra.mxu0 %v2711
    %2799 = vmatmul.bf16.gmra.mxu0 %v2775
    %v2800 = vpop.f32.mrf.mxu0
    %v2801 = vadd.f32 %v2583, %v2800
    %v2802 = vpop.f32.mrf.mxu0
    %v2803 = vadd.f32 %v2583, %v2802
    %2804 = vdwg.mxu0
    %2805 = vmatpush.bf16.msra.mxu0 0
    %2806 = vmatpush.bf16.msra.mxu0 0
    %2807 = vmatpush.bf16.msra.mxu0 0
    %2808 = vmatpush.bf16.msra.mxu0 0
    %2809 = vmatpush.bf16.msra.mxu0 0
    %2810 = vmatpush.bf16.msra.mxu0 0
    %2811 = vmatpush.bf16.msra.mxu0 %v2728
    %2812 = vmatpush.bf16.msra.mxu0 %v2712
    %2813 = vmatmul.bf16.gmra.mxu0 %v2775
    %v2814 = vpop.f32.mrf.mxu0
    %v2815 = vadd.f32 %v2584, %v2814
    %v2816 = vpop.f32.mrf.mxu0
    %v2817 = vadd.f32 %v2584, %v2816
    %2818 = vdwg.mxu0
    %2819 = vmatpush.bf16.msra.mxu0 0
    %2820 = vmatpush.bf16.msra.mxu0 0
    %2821 = vmatpush.bf16.msra.mxu0 0
    %2822 = vmatpush.bf16.msra.mxu0 0
    %2823 = vmatpush.bf16.msra.mxu0 0
    %2824 = vmatpush.bf16.msra.mxu0 0
    %2825 = vmatpush.bf16.msra.mxu0 %v2729
    %2826 = vmatpush.bf16.msra.mxu0 %v2713
    %2827 = vmatmul.bf16.gmra.mxu0 %v2775
    %v2828 = vpop.f32.mrf.mxu0
    %v2829 = vadd.f32 %v2585, %v2828
    %v2830 = vpop.f32.mrf.mxu0
    %v2831 = vadd.f32 %v2585, %v2830
    %2832 = vdwg.mxu0
    %2833 = vmatpush.bf16.msra.mxu0 0
    %2834 = vmatpush.bf16.msra.mxu0 0
    %2835 = vmatpush.bf16.msra.mxu0 0
    %2836 = vmatpush.bf16.msra.mxu0 0
    %2837 = vmatpush.bf16.msra.mxu0 0
    %2838 = vmatpush.bf16.msra.mxu0 0
    %2839 = vmatpush.bf16.msra.mxu0 %v2730
    %2840 = vmatpush.bf16.msra.mxu0 %v2714
    %2841 = vmatmul.bf16.gmra.mxu0 %v2775
    %v2842 = vpop.f32.mrf.mxu0
    %v2843 = vadd.f32 %v2586, %v2842
    %v2844 = vpop.f32.mrf.mxu0
    %v2845 = vadd.f32 %v2586, %v2844
    %2846 = vdwg.mxu0
    %2847 = vmatpush.bf16.msra.mxu0 0
    %2848 = vmatpush.bf16.msra.mxu0 0
    %2849 = vmatpush.bf16.msra.mxu0 0
    %2850 = vmatpush.bf16.msra.mxu0 0
    %2851 = vmatpush.bf16.msra.mxu0 0
    %2852 = vmatpush.bf16.msra.mxu0 0
    %2853 = vmatpush.bf16.msra.mxu0 %v2731
    %2854 = vmatpush.bf16.msra.mxu0 %v2715
    %2855 = vmatmul.bf16.gmra.mxu0 %v2775
    %v2856 = vpop.f32.mrf.mxu0
    %v2857 = vadd.f32 %v2587, %v2856
    %v2858 = vpop.f32.mrf.mxu0
    %v2859 = vadd.f32 %v2587, %v2858
    %2860 = vdwg.mxu0
    %2861 = vmatpush.bf16.msra.mxu0 0
    %2862 = vmatpush.bf16.msra.mxu0 0
    %2863 = vmatpush.bf16.msra.mxu0 0
    %2864 = vmatpush.bf16.msra.mxu0 0
    %2865 = vmatpush.bf16.msra.mxu0 0
    %2866 = vmatpush.bf16.msra.mxu0 0
    %2867 = vmatpush.bf16.msra.mxu0 %v2732
    %2868 = vmatpush.bf16.msra.mxu0 %v2716
    %2869 = vmatmul.bf16.gmra.mxu0 %v2775
    %v2870 = vpop.f32.mrf.mxu0
    %v2871 = vadd.f32 %v2588, %v2870
    %v2872 = vpop.f32.mrf.mxu0
    %v2873 = vadd.f32 %v2588, %v2872
    %2874 = vdwg.mxu0
    %2875 = vmatpush.bf16.msra.mxu0 0
    %2876 = vmatpush.bf16.msra.mxu0 0
    %2877 = vmatpush.bf16.msra.mxu0 0
    %2878 = vmatpush.bf16.msra.mxu0 0
    %2879 = vmatpush.bf16.msra.mxu0 0
    %2880 = vmatpush.bf16.msra.mxu0 0
    %2881 = vmatpush.bf16.msra.mxu0 %v2733
    %2882 = vmatpush.bf16.msra.mxu0 %v2717
    %2883 = vmatmul.bf16.gmra.mxu0 %v2775
    %v2884 = vpop.f32.mrf.mxu0
    %v2885 = vadd.f32 %v2589, %v2884
    %v2886 = vpop.f32.mrf.mxu0
    %v2887 = vadd.f32 %v2589, %v2886
    %2888 = vdwg.mxu0
    %2889 = vmatpush.bf16.msra.mxu0 0
    %2890 = vmatpush.bf16.msra.mxu0 0
    %2891 = vmatpush.bf16.msra.mxu0 0
    %2892 = vmatpush.bf16.msra.mxu0 0
    %2893 = vmatpush.bf16.msra.mxu0 0
    %2894 = vmatpush.bf16.msra.mxu0 0
    %2895 = vmatpush.bf16.msra.mxu0 %v2734
    %2896 = vmatpush.bf16.msra.mxu0 %v2718
    %2897 = vmatmul.bf16.gmra.mxu0 %v2775
    %v2898 = vpop.f32.mrf.mxu0
    %v2899 = vadd.f32 %v2590, %v2898
    %v2900 = vpop.f32.mrf.mxu0
    %v2901 = vadd.f32 %v2590, %v2900
    %2902 = vdwg.mxu0
    %2903 = vmatpush.bf16.msra.mxu0 0
    %2904 = vmatpush.bf16.msra.mxu0 0
    %2905 = vmatpush.bf16.msra.mxu0 0
    %2906 = vmatpush.bf16.msra.mxu0 0
    %2907 = vmatpush.bf16.msra.mxu0 0
    %2908 = vmatpush.bf16.msra.mxu0 0
    %2909 = vmatpush.bf16.msra.mxu0 %v2735
    %2910 = vmatpush.bf16.msra.mxu0 %v2719
    %2911 = vmatmul.bf16.gmra.mxu0 %v2775
    %v2912 = vpop.f32.mrf.mxu0
    %v2913 = vadd.f32 %v2591, %v2912
    %v2914 = vpop.f32.mrf.mxu0
    %v2915 = vadd.f32 %v2591, %v2914
    %2916 = vdwg.mxu0
    %2917 = vmatpush.bf16.msra.mxu0 0
    %2918 = vmatpush.bf16.msra.mxu0 0
    %2919 = vmatpush.bf16.msra.mxu0 0
    %2920 = vmatpush.bf16.msra.mxu0 0
    %2921 = vmatpush.bf16.msra.mxu0 0
    %2922 = vmatpush.bf16.msra.mxu0 0
    %2923 = vmatpush.bf16.msra.mxu0 %v2736
    %2924 = vmatpush.bf16.msra.mxu0 %v2720
    %2925 = vmatmul.bf16.gmra.mxu0 %v2775
    %v2926 = vpop.f32.mrf.mxu0
    %v2927 = vadd.f32 %v2592, %v2926
    %v2928 = vpop.f32.mrf.mxu0
    %v2929 = vadd.f32 %v2592, %v2928
    %2930 = vdwg.mxu0
    %2931 = vmatpush.bf16.msra.mxu0 0
    %2932 = vmatpush.bf16.msra.mxu0 0
    %2933 = vmatpush.bf16.msra.mxu0 0
    %2934 = vmatpush.bf16.msra.mxu0 0
    %2935 = vmatpush.bf16.msra.mxu0 0
    %2936 = vmatpush.bf16.msra.mxu0 0
    %2937 = vmatpush.bf16.msra.mxu0 %v2737
    %2938 = vmatpush.bf16.msra.mxu0 %v2721
    %2939 = vmatmul.bf16.gmra.mxu0 %v2775
    %v2940 = vpop.f32.mrf.mxu0
    %v2941 = vadd.f32 %v2593, %v2940
    %v2942 = vpop.f32.mrf.mxu0
    %v2943 = vadd.f32 %v2593, %v2942
    %2944 = vdwg.mxu0
    %2945 = vmatpush.bf16.msra.mxu0 0
    %2946 = vmatpush.bf16.msra.mxu0 0
    %2947 = vmatpush.bf16.msra.mxu0 0
    %2948 = vmatpush.bf16.msra.mxu0 0
    %2949 = vmatpush.bf16.msra.mxu0 0
    %2950 = vmatpush.bf16.msra.mxu0 0
    %2951 = vmatpush.bf16.msra.mxu0 %v2738
    %2952 = vmatpush.bf16.msra.mxu0 %v2722
    %2953 = vmatmul.bf16.gmra.mxu0 %v2775
    %v2954 = vpop.f32.mrf.mxu0
    %v2955 = vadd.f32 %v2594, %v2954
    %v2956 = vpop.f32.mrf.mxu0
    %v2957 = vadd.f32 %v2594, %v2956
    %2958 = vdwg.mxu0
    %2959 = vmatpush.bf16.msra.mxu0 0
    %2960 = vmatpush.bf16.msra.mxu0 0
    %2961 = vmatpush.bf16.msra.mxu0 0
    %2962 = vmatpush.bf16.msra.mxu0 0
    %2963 = vmatpush.bf16.msra.mxu0 0
    %2964 = vmatpush.bf16.msra.mxu0 0
    %2965 = vmatpush.bf16.msra.mxu0 %v2739
    %2966 = vmatpush.bf16.msra.mxu0 %v2723
    %2967 = vmatmul.bf16.gmra.mxu0 %v2775
    %v2968 = vpop.f32.mrf.mxu0
    %v2969 = vadd.f32 %v2595, %v2968
    %v2970 = vpop.f32.mrf.mxu0
    %v2971 = vadd.f32 %v2595, %v2970
    %2972 = vdwg.mxu0
    %2973 = vmatpush.bf16.msra.mxu0 0
    %2974 = vmatpush.bf16.msra.mxu0 0
    %2975 = vmatpush.bf16.msra.mxu0 0
    %2976 = vmatpush.bf16.msra.mxu0 0
    %2977 = vmatpush.bf16.msra.mxu0 0
    %2978 = vmatpush.bf16.msra.mxu0 0
    %2979 = vmatpush.bf16.msra.mxu0 %v2740
    %2980 = vmatpush.bf16.msra.mxu0 %v2724
    %2981 = vmatmul.bf16.gmra.mxu0 %v2775
    %v2982 = vpop.f32.mrf.mxu0
    %v2983 = vadd.f32 %v2596, %v2982
    %v2984 = vpop.f32.mrf.mxu0
    %v2985 = vadd.f32 %v2596, %v2984
    %2986 = vdwg.mxu0
    %2987 = vmatpush.bf16.msra.mxu0 0
    %2988 = vmatpush.bf16.msra.mxu0 0
    %2989 = vmatpush.bf16.msra.mxu0 0
    %2990 = vmatpush.bf16.msra.mxu0 0
    %2991 = vmatpush.bf16.msra.mxu0 0
    %2992 = vmatpush.bf16.msra.mxu0 0
    %2993 = vmatpush.bf16.msra.mxu0 %v2741
    %2994 = vmatpush.bf16.msra.mxu0 %v2725
    %2995 = vmatmul.bf16.gmra.mxu0 %v2775
    %v2996 = vpop.f32.mrf.mxu0
    %v2997 = vadd.f32 %v2597, %v2996
    %v2998 = vpop.f32.mrf.mxu0
    %v2999 = vadd.f32 %v2597, %v2998
    %3000 = vdwg.mxu0
    %v3001 = vmax.f32 %v2787, 0.0
    %v3002 = vmax.f32 %v2801, 0.0
    %v3003 = vmax.f32 %v2815, 0.0
    %v3004 = vmax.f32 %v2829, 0.0
    %v3005 = vmax.f32 %v2843, 0.0
    %v3006 = vmax.f32 %v2857, 0.0
    %v3007 = vmax.f32 %v2871, 0.0
    %v3008 = vmax.f32 %v2885, 0.0
    %v3009 = vmax.f32 %v2899, 0.0
    %v3010 = vmax.f32 %v2913, 0.0
    %v3011 = vmax.f32 %v2927, 0.0
    %v3012 = vmax.f32 %v2941, 0.0
    %v3013 = vmax.f32 %v2955, 0.0
    %v3014 = vmax.f32 %v2969, 0.0
    %v3015 = vmax.f32 %v2983, 0.0
    %v3016 = vmax.f32 %v2997, 0.0
    %v3017 = vmax.f32 %v2789, 0.0
    %v3018 = vmax.f32 %v2803, 0.0
    %v3019 = vmax.f32 %v2817, 0.0
    %v3020 = vmax.f32 %v2831, 0.0
    %v3021 = vmax.f32 %v2845, 0.0
    %v3022 = vmax.f32 %v2859, 0.0
    %v3023 = vmax.f32 %v2873, 0.0
    %v3024 = vmax.f32 %v2887, 0.0
    %v3025 = vmax.f32 %v2901, 0.0
    %v3026 = vmax.f32 %v2915, 0.0
    %v3027 = vmax.f32 %v2929, 0.0
    %v3028 = vmax.f32 %v2943, 0.0
    %v3029 = vmax.f32 %v2957, 0.0
    %v3030 = vmax.f32 %v2971, 0.0
    %v3031 = vmax.f32 %v2985, 0.0
    %v3032 = vmax.f32 %v2999, 0.0
    %v3033 = vpack.c.bf16 %v3017, %v3001
    %v3034 = vpack.c.bf16 %v3018, %v3002
    %v3035 = vpack.c.bf16 %v3019, %v3003
    %v3036 = vpack.c.bf16 %v3020, %v3004
    %v3037 = vpack.c.bf16 %v3021, %v3005
    %v3038 = vpack.c.bf16 %v3022, %v3006
    %v3039 = vpack.c.bf16 %v3023, %v3007
    %v3040 = vpack.c.bf16 %v3024, %v3008
    %v3041 = vpack.c.bf16 %v3025, %v3009
    %v3042 = vpack.c.bf16 %v3026, %v3010
    %v3043 = vpack.c.bf16 %v3027, %v3011
    %v3044 = vpack.c.bf16 %v3028, %v3012
    %v3045 = vpack.c.bf16 %v3029, %v3013
    %v3046 = vpack.c.bf16 %v3030, %v3014
    %v3047 = vpack.c.bf16 %v3031, %v3015
    %v3048 = vpack.c.bf16 %v3032, %v3016
    %v3049 = vld [vmem:[%s27] sm:$0xf]
    %v3050 = vld [vmem:[%s27 + $0x4] sm:$0xf]
    %v3051 = vld [vmem:[%s27 + $0x8] sm:$0xf]
    %v3052 = vld [vmem:[%s27 + $0xc] sm:$0xf]
    %v3053 = vld [vmem:[%s27 + $0x10] sm:$0xf]
    %v3054 = vld [vmem:[%s27 + $0x14] sm:$0xf]
    %v3055 = vld [vmem:[%s27 + $0x18] sm:$0xf]
    %v3056 = vld [vmem:[%s27 + $0x1c] sm:$0xf]
    %v3057 = vld [vmem:[%s27 + $0x20] sm:$0xf]
    %v3058 = vld [vmem:[%s27 + $0x24] sm:$0xf]
    %v3059 = vld [vmem:[%s27 + $0x28] sm:$0xf]
    %v3060 = vld [vmem:[%s27 + $0x2c] sm:$0xf]
    %v3061 = vld [vmem:[%s27 + $0x30] sm:$0xf]
    %v3062 = vld [vmem:[%s27 + $0x34] sm:$0xf]
    %v3063 = vld [vmem:[%s27 + $0x38] sm:$0xf]
    %v3064 = vld [vmem:[%s27 + $0x3c] sm:$0xf]
    %v3065 = vld [vmem:[%s27 + $0x40] sm:$0xf]
    %v3066 = vld [vmem:[%s27 + $0x44] sm:$0xf]
    %v3067 = vld [vmem:[%s27 + $0x48] sm:$0xf]
    %v3068 = vld [vmem:[%s27 + $0x4c] sm:$0xf]
    %v3069 = vld [vmem:[%s27 + $0x50] sm:$0xf]
    %v3070 = vld [vmem:[%s27 + $0x54] sm:$0xf]
    %v3071 = vld [vmem:[%s27 + $0x58] sm:$0xf]
    %v3072 = vld [vmem:[%s27 + $0x5c] sm:$0xf]
    %v3073 = vld [vmem:[%s27 + $0x60] sm:$0xf]
    %v3074 = vld [vmem:[%s27 + $0x64] sm:$0xf]
    %v3075 = vld [vmem:[%s27 + $0x68] sm:$0xf]
    %v3076 = vld [vmem:[%s27 + $0x6c] sm:$0xf]
    %v3077 = vld [vmem:[%s27 + $0x70] sm:$0xf]
    %v3078 = vld [vmem:[%s27 + $0x74] sm:$0xf]
    %v3079 = vld [vmem:[%s27 + $0x78] sm:$0xf]
    %v3080 = vld [vmem:[%s27 + $0x7c] sm:$0xf]
    %v3081 = vld [vmem:[%s27 + $0x80] sm:$0xf]
    %v3082 = vld [vmem:[%s27 + $0x84] sm:$0xf]
    %v3083 = vld [vmem:[%s27 + $0x88] sm:$0xf]
    %v3084 = vld [vmem:[%s27 + $0x8c] sm:$0xf]
    %v3085 = vld [vmem:[%s27 + $0x90] sm:$0xf]
    %v3086 = vld [vmem:[%s27 + $0x94] sm:$0xf]
    %v3087 = vld [vmem:[%s27 + $0x98] sm:$0xf]
    %v3088 = vld [vmem:[%s27 + $0x9c] sm:$0xf]
    %v3089 = vld [vmem:[%s27 + $0xa0] sm:$0xf]
    %v3090 = vld [vmem:[%s27 + $0xa4] sm:$0xf]
    %v3091 = vld [vmem:[%s27 + $0xa8] sm:$0xf]
    %v3092 = vld [vmem:[%s27 + $0xac] sm:$0xf]
    %v3093 = vld [vmem:[%s27 + $0xb0] sm:$0xf]
    %v3094 = vld [vmem:[%s27 + $0xb4] sm:$0xf]
    %v3095 = vld [vmem:[%s27 + $0xb8] sm:$0xf]
    %v3096 = vld [vmem:[%s27 + $0xbc] sm:$0xf]
    %v3097 = vld [vmem:[%s27 + $0xc0] sm:$0xf]
    %v3098 = vld [vmem:[%s27 + $0xc4] sm:$0xf]
    %v3099 = vld [vmem:[%s27 + $0xc8] sm:$0xf]
    %v3100 = vld [vmem:[%s27 + $0xcc] sm:$0xf]
    %v3101 = vld [vmem:[%s27 + $0xd0] sm:$0xf]
    %v3102 = vld [vmem:[%s27 + $0xd4] sm:$0xf]
    %v3103 = vld [vmem:[%s27 + $0xd8] sm:$0xf]
    %v3104 = vld [vmem:[%s27 + $0xdc] sm:$0xf]
    %v3105 = vld [vmem:[%s27 + $0xe0] sm:$0xf]
    %v3106 = vld [vmem:[%s27 + $0xe4] sm:$0xf]
    %v3107 = vld [vmem:[%s27 + $0xe8] sm:$0xf]
    %v3108 = vld [vmem:[%s27 + $0xec] sm:$0xf]
    %v3109 = vld [vmem:[%s27 + $0xf0] sm:$0xf]
    %v3110 = vld [vmem:[%s27 + $0xf4] sm:$0xf]
    %v3111 = vld [vmem:[%s27 + $0xf8] sm:$0xf]
    %v3112 = vld [vmem:[%s27 + $0xfc] sm:$0xf]
    %v3113 = vld [vmem:[%s27 + $0x100] sm:$0xf]
    %v3114 = vld [vmem:[%s27 + $0x104] sm:$0xf]
    %v3115 = vld [vmem:[%s27 + $0x108] sm:$0xf]
    %v3116 = vld [vmem:[%s27 + $0x10c] sm:$0xf]
    %v3117 = vld [vmem:[%s27 + $0x110] sm:$0xf]
    %v3118 = vld [vmem:[%s27 + $0x114] sm:$0xf]
    %v3119 = vld [vmem:[%s27 + $0x118] sm:$0xf]
    %v3120 = vld [vmem:[%s27 + $0x11c] sm:$0xf]
    %v3121 = vld [vmem:[%s27 + $0x120] sm:$0xf]
    %v3122 = vld [vmem:[%s27 + $0x124] sm:$0xf]
    %v3123 = vld [vmem:[%s27 + $0x128] sm:$0xf]
    %v3124 = vld [vmem:[%s27 + $0x12c] sm:$0xf]
    %v3125 = vld [vmem:[%s27 + $0x130] sm:$0xf]
    %v3126 = vld [vmem:[%s27 + $0x134] sm:$0xf]
    %v3127 = vld [vmem:[%s27 + $0x138] sm:$0xf]
    %v3128 = vld [vmem:[%s27 + $0x13c] sm:$0xf]
    %v3129 = vld [vmem:[%s27 + $0x140] sm:$0xf]
    %v3130 = vld [vmem:[%s27 + $0x144] sm:$0xf]
    %v3131 = vld [vmem:[%s27 + $0x148] sm:$0xf]
    %v3132 = vld [vmem:[%s27 + $0x14c] sm:$0xf]
    %v3133 = vld [vmem:[%s27 + $0x150] sm:$0xf]
    %v3134 = vld [vmem:[%s27 + $0x154] sm:$0xf]
    %v3135 = vld [vmem:[%s27 + $0x158] sm:$0xf]
    %v3136 = vld [vmem:[%s27 + $0x15c] sm:$0xf]
    %v3137 = vld [vmem:[%s27 + $0x160] sm:$0xf]
    %v3138 = vld [vmem:[%s27 + $0x164] sm:$0xf]
    %v3139 = vld [vmem:[%s27 + $0x168] sm:$0xf]
    %v3140 = vld [vmem:[%s27 + $0x16c] sm:$0xf]
    %v3141 = vld [vmem:[%s27 + $0x170] sm:$0xf]
    %v3142 = vld [vmem:[%s27 + $0x174] sm:$0xf]
    %v3143 = vld [vmem:[%s27 + $0x178] sm:$0xf]
    %v3144 = vld [vmem:[%s27 + $0x17c] sm:$0xf]
    %v3145 = vld [vmem:[%s27 + $0x180] sm:$0xf]
    %v3146 = vld [vmem:[%s27 + $0x184] sm:$0xf]
    %v3147 = vld [vmem:[%s27 + $0x188] sm:$0xf]
    %v3148 = vld [vmem:[%s27 + $0x18c] sm:$0xf]
    %v3149 = vld [vmem:[%s27 + $0x190] sm:$0xf]
    %v3150 = vld [vmem:[%s27 + $0x194] sm:$0xf]
    %v3151 = vld [vmem:[%s27 + $0x198] sm:$0xf]
    %v3152 = vld [vmem:[%s27 + $0x19c] sm:$0xf]
    %v3153 = vld [vmem:[%s27 + $0x1a0] sm:$0xf]
    %v3154 = vld [vmem:[%s27 + $0x1a4] sm:$0xf]
    %v3155 = vld [vmem:[%s27 + $0x1a8] sm:$0xf]
    %v3156 = vld [vmem:[%s27 + $0x1ac] sm:$0xf]
    %v3157 = vld [vmem:[%s27 + $0x1b0] sm:$0xf]
    %v3158 = vld [vmem:[%s27 + $0x1b4] sm:$0xf]
    %v3159 = vld [vmem:[%s27 + $0x1b8] sm:$0xf]
    %v3160 = vld [vmem:[%s27 + $0x1bc] sm:$0xf]
    %v3161 = vld [vmem:[%s27 + $0x1c0] sm:$0xf]
    %v3162 = vld [vmem:[%s27 + $0x1c4] sm:$0xf]
    %v3163 = vld [vmem:[%s27 + $0x1c8] sm:$0xf]
    %v3164 = vld [vmem:[%s27 + $0x1cc] sm:$0xf]
    %v3165 = vld [vmem:[%s27 + $0x1d0] sm:$0xf]
    %v3166 = vld [vmem:[%s27 + $0x1d4] sm:$0xf]
    %v3167 = vld [vmem:[%s27 + $0x1d8] sm:$0xf]
    %v3168 = vld [vmem:[%s27 + $0x1dc] sm:$0xf]
    %v3169 = vld [vmem:[%s27 + $0x1e0] sm:$0xf]
    %v3170 = vld [vmem:[%s27 + $0x1e4] sm:$0xf]
    %v3171 = vld [vmem:[%s27 + $0x1e8] sm:$0xf]
    %v3172 = vld [vmem:[%s27 + $0x1ec] sm:$0xf]
    %v3173 = vld [vmem:[%s27 + $0x1f0] sm:$0xf]
    %v3174 = vld [vmem:[%s27 + $0x1f4] sm:$0xf]
    %v3175 = vld [vmem:[%s27 + $0x1f8] sm:$0xf]
    %v3176 = vld [vmem:[%s27 + $0x1fc] sm:$0xf]
    %v3177 = vld [vmem:[%s27 + $0x200] sm:$0xf]
    %v3178 = vld [vmem:[%s27 + $0x204] sm:$0xf]
    %v3179 = vld [vmem:[%s27 + $0x208] sm:$0xf]
    %v3180 = vld [vmem:[%s27 + $0x20c] sm:$0xf]
    %v3181 = vld [vmem:[%s27 + $0x210] sm:$0xf]
    %v3182 = vld [vmem:[%s27 + $0x214] sm:$0xf]
    %v3183 = vld [vmem:[%s27 + $0x218] sm:$0xf]
    %v3184 = vld [vmem:[%s27 + $0x21c] sm:$0xf]
    %v3185 = vld [vmem:[%s27 + $0x220] sm:$0xf]
    %v3186 = vld [vmem:[%s27 + $0x224] sm:$0xf]
    %v3187 = vld [vmem:[%s27 + $0x228] sm:$0xf]
    %v3188 = vld [vmem:[%s27 + $0x22c] sm:$0xf]
    %v3189 = vld [vmem:[%s27 + $0x230] sm:$0xf]
    %v3190 = vld [vmem:[%s27 + $0x234] sm:$0xf]
    %v3191 = vld [vmem:[%s27 + $0x238] sm:$0xf]
    %v3192 = vld [vmem:[%s27 + $0x23c] sm:$0xf]
    %v3193 = vld [vmem:[%s27 + $0x240] sm:$0xf]
    %v3194 = vld [vmem:[%s27 + $0x244] sm:$0xf]
    %v3195 = vld [vmem:[%s27 + $0x248] sm:$0xf]
    %v3196 = vld [vmem:[%s27 + $0x24c] sm:$0xf]
    %v3197 = vld [vmem:[%s27 + $0x250] sm:$0xf]
    %v3198 = vld [vmem:[%s27 + $0x254] sm:$0xf]
    %v3199 = vld [vmem:[%s27 + $0x258] sm:$0xf]
    %v3200 = vld [vmem:[%s27 + $0x25c] sm:$0xf]
    %v3201 = vld [vmem:[%s27 + $0x260] sm:$0xf]
    %v3202 = vld [vmem:[%s27 + $0x264] sm:$0xf]
    %v3203 = vld [vmem:[%s27 + $0x268] sm:$0xf]
    %v3204 = vld [vmem:[%s27 + $0x26c] sm:$0xf]
    %v3205 = vld [vmem:[%s27 + $0x270] sm:$0xf]
    %v3206 = vld [vmem:[%s27 + $0x274] sm:$0xf]
    %v3207 = vld [vmem:[%s27 + $0x278] sm:$0xf]
    %v3208 = vld [vmem:[%s27 + $0x27c] sm:$0xf]
    %v3209 = vld [vmem:[%s27 + $0x280] sm:$0xf]
    %v3210 = vld [vmem:[%s27 + $0x284] sm:$0xf]
    %v3211 = vld [vmem:[%s27 + $0x288] sm:$0xf]
    %v3212 = vld [vmem:[%s27 + $0x28c] sm:$0xf]
    %v3213 = vld [vmem:[%s27 + $0x290] sm:$0xf]
    %v3214 = vld [vmem:[%s27 + $0x294] sm:$0xf]
    %v3215 = vld [vmem:[%s27 + $0x298] sm:$0xf]
    %v3216 = vld [vmem:[%s27 + $0x29c] sm:$0xf]
    %v3217 = vld [vmem:[%s27 + $0x2a0] sm:$0xf]
    %v3218 = vld [vmem:[%s27 + $0x2a4] sm:$0xf]
    %v3219 = vld [vmem:[%s27 + $0x2a8] sm:$0xf]
    %v3220 = vld [vmem:[%s27 + $0x2ac] sm:$0xf]
    %v3221 = vld [vmem:[%s27 + $0x2b0] sm:$0xf]
    %v3222 = vld [vmem:[%s27 + $0x2b4] sm:$0xf]
    %v3223 = vld [vmem:[%s27 + $0x2b8] sm:$0xf]
    %v3224 = vld [vmem:[%s27 + $0x2bc] sm:$0xf]
    %v3225 = vld [vmem:[%s27 + $0x2c0] sm:$0xf]
    %v3226 = vld [vmem:[%s27 + $0x2c4] sm:$0xf]
    %v3227 = vld [vmem:[%s27 + $0x2c8] sm:$0xf]
    %v3228 = vld [vmem:[%s27 + $0x2cc] sm:$0xf]
    %v3229 = vld [vmem:[%s27 + $0x2d0] sm:$0xf]
    %v3230 = vld [vmem:[%s27 + $0x2d4] sm:$0xf]
    %v3231 = vld [vmem:[%s27 + $0x2d8] sm:$0xf]
    %v3232 = vld [vmem:[%s27 + $0x2dc] sm:$0xf]
    %v3233 = vld [vmem:[%s27 + $0x2e0] sm:$0xf]
    %v3234 = vld [vmem:[%s27 + $0x2e4] sm:$0xf]
    %v3235 = vld [vmem:[%s27 + $0x2e8] sm:$0xf]
    %v3236 = vld [vmem:[%s27 + $0x2ec] sm:$0xf]
    %v3237 = vld [vmem:[%s27 + $0x2f0] sm:$0xf]
    %v3238 = vld [vmem:[%s27 + $0x2f4] sm:$0xf]
    %v3239 = vld [vmem:[%s27 + $0x2f8] sm:$0xf]
    %v3240 = vld [vmem:[%s27 + $0x2fc] sm:$0xf]
    %v3241 = vld [vmem:[%s27 + $0x300] sm:$0xf]
    %v3242 = vld [vmem:[%s27 + $0x304] sm:$0xf]
    %v3243 = vld [vmem:[%s27 + $0x308] sm:$0xf]
    %v3244 = vld [vmem:[%s27 + $0x30c] sm:$0xf]
    %v3245 = vld [vmem:[%s27 + $0x310] sm:$0xf]
    %v3246 = vld [vmem:[%s27 + $0x314] sm:$0xf]
    %v3247 = vld [vmem:[%s27 + $0x318] sm:$0xf]
    %v3248 = vld [vmem:[%s27 + $0x31c] sm:$0xf]
    %v3249 = vld [vmem:[%s27 + $0x320] sm:$0xf]
    %v3250 = vld [vmem:[%s27 + $0x324] sm:$0xf]
    %v3251 = vld [vmem:[%s27 + $0x328] sm:$0xf]
    %v3252 = vld [vmem:[%s27 + $0x32c] sm:$0xf]
    %v3253 = vld [vmem:[%s27 + $0x330] sm:$0xf]
    %v3254 = vld [vmem:[%s27 + $0x334] sm:$0xf]
    %v3255 = vld [vmem:[%s27 + $0x338] sm:$0xf]
    %v3256 = vld [vmem:[%s27 + $0x33c] sm:$0xf]
    %v3257 = vld [vmem:[%s27 + $0x340] sm:$0xf]
    %v3258 = vld [vmem:[%s27 + $0x344] sm:$0xf]
    %v3259 = vld [vmem:[%s27 + $0x348] sm:$0xf]
    %v3260 = vld [vmem:[%s27 + $0x34c] sm:$0xf]
    %v3261 = vld [vmem:[%s27 + $0x350] sm:$0xf]
    %v3262 = vld [vmem:[%s27 + $0x354] sm:$0xf]
    %v3263 = vld [vmem:[%s27 + $0x358] sm:$0xf]
    %v3264 = vld [vmem:[%s27 + $0x35c] sm:$0xf]
    %v3265 = vld [vmem:[%s27 + $0x360] sm:$0xf]
    %v3266 = vld [vmem:[%s27 + $0x364] sm:$0xf]
    %v3267 = vld [vmem:[%s27 + $0x368] sm:$0xf]
    %v3268 = vld [vmem:[%s27 + $0x36c] sm:$0xf]
    %v3269 = vld [vmem:[%s27 + $0x370] sm:$0xf]
    %v3270 = vld [vmem:[%s27 + $0x374] sm:$0xf]
    %v3271 = vld [vmem:[%s27 + $0x378] sm:$0xf]
    %v3272 = vld [vmem:[%s27 + $0x37c] sm:$0xf]
    %v3273 = vld [vmem:[%s27 + $0x380] sm:$0xf]
    %v3274 = vld [vmem:[%s27 + $0x384] sm:$0xf]
    %v3275 = vld [vmem:[%s27 + $0x388] sm:$0xf]
    %v3276 = vld [vmem:[%s27 + $0x38c] sm:$0xf]
    %v3277 = vld [vmem:[%s27 + $0x390] sm:$0xf]
    %v3278 = vld [vmem:[%s27 + $0x394] sm:$0xf]
    %v3279 = vld [vmem:[%s27 + $0x398] sm:$0xf]
    %v3280 = vld [vmem:[%s27 + $0x39c] sm:$0xf]
    %v3281 = vld [vmem:[%s27 + $0x3a0] sm:$0xf]
    %v3282 = vld [vmem:[%s27 + $0x3a4] sm:$0xf]
    %v3283 = vld [vmem:[%s27 + $0x3a8] sm:$0xf]
    %v3284 = vld [vmem:[%s27 + $0x3ac] sm:$0xf]
    %v3285 = vld [vmem:[%s27 + $0x3b0] sm:$0xf]
    %v3286 = vld [vmem:[%s27 + $0x3b4] sm:$0xf]
    %v3287 = vld [vmem:[%s27 + $0x3b8] sm:$0xf]
    %v3288 = vld [vmem:[%s27 + $0x3bc] sm:$0xf]
    %v3289 = vld [vmem:[%s27 + $0x3c0] sm:$0xf]
    %v3290 = vld [vmem:[%s27 + $0x3c4] sm:$0xf]
    %v3291 = vld [vmem:[%s27 + $0x3c8] sm:$0xf]
    %v3292 = vld [vmem:[%s27 + $0x3cc] sm:$0xf]
    %v3293 = vld [vmem:[%s27 + $0x3d0] sm:$0xf]
    %v3294 = vld [vmem:[%s27 + $0x3d4] sm:$0xf]
    %v3295 = vld [vmem:[%s27 + $0x3d8] sm:$0xf]
    %v3296 = vld [vmem:[%s27 + $0x3dc] sm:$0xf]
    %v3297 = vld [vmem:[%s27 + $0x3e0] sm:$0xf]
    %v3298 = vld [vmem:[%s27 + $0x3e4] sm:$0xf]
    %v3299 = vld [vmem:[%s27 + $0x3e8] sm:$0xf]
    %v3300 = vld [vmem:[%s27 + $0x3ec] sm:$0xf]
    %v3301 = vld [vmem:[%s27 + $0x3f0] sm:$0xf]
    %v3302 = vld [vmem:[%s27 + $0x3f4] sm:$0xf]
    %v3303 = vld [vmem:[%s27 + $0x3f8] sm:$0xf]
    %v3304 = vld [vmem:[%s27 + $0x3fc] sm:$0xf]
    %v3305 = vld [vmem:[%s29] sm:$0x1]
    %v3307 = vperm.slane %v3305, 0
    %v3565 = vunpack.c.l.b16 %v3049
    %v3566 = vunpack.c.l.b16 %v3050
    %v3567 = vunpack.c.l.b16 %v3051
    %v3568 = vunpack.c.l.b16 %v3052
    %v3569 = vunpack.c.l.b16 %v3053
    %v3570 = vunpack.c.l.b16 %v3054
    %v3571 = vunpack.c.l.b16 %v3055
    %v3572 = vunpack.c.l.b16 %v3056
    %v3573 = vunpack.c.l.b16 %v3057
    %v3574 = vunpack.c.l.b16 %v3058
    %v3575 = vunpack.c.l.b16 %v3059
    %v3576 = vunpack.c.l.b16 %v3060
    %v3577 = vunpack.c.l.b16 %v3061
    %v3578 = vunpack.c.l.b16 %v3062
    %v3579 = vunpack.c.l.b16 %v3063
    %v3580 = vunpack.c.l.b16 %v3064
    %v3581 = vunpack.c.l.b16 %v3065
    %v3582 = vunpack.c.l.b16 %v3066
    %v3583 = vunpack.c.l.b16 %v3067
    %v3584 = vunpack.c.l.b16 %v3068
    %v3585 = vunpack.c.l.b16 %v3069
    %v3586 = vunpack.c.l.b16 %v3070
    %v3587 = vunpack.c.l.b16 %v3071
    %v3588 = vunpack.c.l.b16 %v3072
    %v3589 = vunpack.c.l.b16 %v3073
    %v3590 = vunpack.c.l.b16 %v3074
    %v3591 = vunpack.c.l.b16 %v3075
    %v3592 = vunpack.c.l.b16 %v3076
    %v3593 = vunpack.c.l.b16 %v3077
    %v3594 = vunpack.c.l.b16 %v3078
    %v3595 = vunpack.c.l.b16 %v3079
    %v3596 = vunpack.c.l.b16 %v3080
    %v3597 = vunpack.c.l.b16 %v3081
    %v3598 = vunpack.c.l.b16 %v3082
    %v3599 = vunpack.c.l.b16 %v3083
    %v3600 = vunpack.c.l.b16 %v3084
    %v3601 = vunpack.c.l.b16 %v3085
    %v3602 = vunpack.c.l.b16 %v3086
    %v3603 = vunpack.c.l.b16 %v3087
    %v3604 = vunpack.c.l.b16 %v3088
    %v3605 = vunpack.c.l.b16 %v3089
    %v3606 = vunpack.c.l.b16 %v3090
    %v3607 = vunpack.c.l.b16 %v3091
    %v3608 = vunpack.c.l.b16 %v3092
    %v3609 = vunpack.c.l.b16 %v3093
    %v3610 = vunpack.c.l.b16 %v3094
    %v3611 = vunpack.c.l.b16 %v3095
    %v3612 = vunpack.c.l.b16 %v3096
    %v3613 = vunpack.c.l.b16 %v3097
    %v3614 = vunpack.c.l.b16 %v3098
    %v3615 = vunpack.c.l.b16 %v3099
    %v3616 = vunpack.c.l.b16 %v3100
    %v3617 = vunpack.c.l.b16 %v3101
    %v3618 = vunpack.c.l.b16 %v3102
    %v3619 = vunpack.c.l.b16 %v3103
    %v3620 = vunpack.c.l.b16 %v3104
    %v3621 = vunpack.c.l.b16 %v3105
    %v3622 = vunpack.c.l.b16 %v3106
    %v3623 = vunpack.c.l.b16 %v3107
    %v3624 = vunpack.c.l.b16 %v3108
    %v3625 = vunpack.c.l.b16 %v3109
    %v3626 = vunpack.c.l.b16 %v3110
    %v3627 = vunpack.c.l.b16 %v3111
    %v3628 = vunpack.c.l.b16 %v3112
    %v3629 = vunpack.c.l.b16 %v3113
    %v3630 = vunpack.c.l.b16 %v3114
    %v3631 = vunpack.c.l.b16 %v3115
    %v3632 = vunpack.c.l.b16 %v3116
    %v3633 = vunpack.c.l.b16 %v3117
    %v3634 = vunpack.c.l.b16 %v3118
    %v3635 = vunpack.c.l.b16 %v3119
    %v3636 = vunpack.c.l.b16 %v3120
    %v3637 = vunpack.c.l.b16 %v3121
    %v3638 = vunpack.c.l.b16 %v3122
    %v3639 = vunpack.c.l.b16 %v3123
    %v3640 = vunpack.c.l.b16 %v3124
    %v3641 = vunpack.c.l.b16 %v3125
    %v3642 = vunpack.c.l.b16 %v3126
    %v3643 = vunpack.c.l.b16 %v3127
    %v3644 = vunpack.c.l.b16 %v3128
    %v3645 = vunpack.c.l.b16 %v3129
    %v3646 = vunpack.c.l.b16 %v3130
    %v3647 = vunpack.c.l.b16 %v3131
    %v3648 = vunpack.c.l.b16 %v3132
    %v3649 = vunpack.c.l.b16 %v3133
    %v3650 = vunpack.c.l.b16 %v3134
    %v3651 = vunpack.c.l.b16 %v3135
    %v3652 = vunpack.c.l.b16 %v3136
    %v3653 = vunpack.c.l.b16 %v3137
    %v3654 = vunpack.c.l.b16 %v3138
    %v3655 = vunpack.c.l.b16 %v3139
    %v3656 = vunpack.c.l.b16 %v3140
    %v3657 = vunpack.c.l.b16 %v3141
    %v3658 = vunpack.c.l.b16 %v3142
    %v3659 = vunpack.c.l.b16 %v3143
    %v3660 = vunpack.c.l.b16 %v3144
    %v3661 = vunpack.c.l.b16 %v3145
    %v3662 = vunpack.c.l.b16 %v3146
    %v3663 = vunpack.c.l.b16 %v3147
    %v3664 = vunpack.c.l.b16 %v3148
    %v3665 = vunpack.c.l.b16 %v3149
    %v3666 = vunpack.c.l.b16 %v3150
    %v3667 = vunpack.c.l.b16 %v3151
    %v3668 = vunpack.c.l.b16 %v3152
    %v3669 = vunpack.c.l.b16 %v3153
    %v3670 = vunpack.c.l.b16 %v3154
    %v3671 = vunpack.c.l.b16 %v3155
    %v3672 = vunpack.c.l.b16 %v3156
    %v3673 = vunpack.c.l.b16 %v3157
    %v3674 = vunpack.c.l.b16 %v3158
    %v3675 = vunpack.c.l.b16 %v3159
    %v3676 = vunpack.c.l.b16 %v3160
    %v3677 = vunpack.c.l.b16 %v3161
    %v3678 = vunpack.c.l.b16 %v3162
    %v3679 = vunpack.c.l.b16 %v3163
    %v3680 = vunpack.c.l.b16 %v3164
    %v3681 = vunpack.c.l.b16 %v3165
    %v3682 = vunpack.c.l.b16 %v3166
    %v3683 = vunpack.c.l.b16 %v3167
    %v3684 = vunpack.c.l.b16 %v3168
    %v3685 = vunpack.c.l.b16 %v3169
    %v3686 = vunpack.c.l.b16 %v3170
    %v3687 = vunpack.c.l.b16 %v3171
    %v3688 = vunpack.c.l.b16 %v3172
    %v3689 = vunpack.c.l.b16 %v3173
    %v3690 = vunpack.c.l.b16 %v3174
    %v3691 = vunpack.c.l.b16 %v3175
    %v3692 = vunpack.c.l.b16 %v3176
    %v3693 = vunpack.c.l.b16 %v3177
    %v3694 = vunpack.c.l.b16 %v3178
    %v3695 = vunpack.c.l.b16 %v3179
    %v3696 = vunpack.c.l.b16 %v3180
    %v3697 = vunpack.c.l.b16 %v3181
    %v3698 = vunpack.c.l.b16 %v3182
    %v3699 = vunpack.c.l.b16 %v3183
    %v3700 = vunpack.c.l.b16 %v3184
    %v3701 = vunpack.c.l.b16 %v3185
    %v3702 = vunpack.c.l.b16 %v3186
    %v3703 = vunpack.c.l.b16 %v3187
    %v3704 = vunpack.c.l.b16 %v3188
    %v3705 = vunpack.c.l.b16 %v3189
    %v3706 = vunpack.c.l.b16 %v3190
    %v3707 = vunpack.c.l.b16 %v3191
    %v3708 = vunpack.c.l.b16 %v3192
    %v3709 = vunpack.c.l.b16 %v3193
    %v3710 = vunpack.c.l.b16 %v3194
    %v3711 = vunpack.c.l.b16 %v3195
    %v3712 = vunpack.c.l.b16 %v3196
    %v3713 = vunpack.c.l.b16 %v3197
    %v3714 = vunpack.c.l.b16 %v3198
    %v3715 = vunpack.c.l.b16 %v3199
    %v3716 = vunpack.c.l.b16 %v3200
    %v3717 = vunpack.c.l.b16 %v3201
    %v3718 = vunpack.c.l.b16 %v3202
    %v3719 = vunpack.c.l.b16 %v3203
    %v3720 = vunpack.c.l.b16 %v3204
    %v3721 = vunpack.c.l.b16 %v3205
    %v3722 = vunpack.c.l.b16 %v3206
    %v3723 = vunpack.c.l.b16 %v3207
    %v3724 = vunpack.c.l.b16 %v3208
    %v3725 = vunpack.c.l.b16 %v3209
    %v3726 = vunpack.c.l.b16 %v3210
    %v3727 = vunpack.c.l.b16 %v3211
    %v3728 = vunpack.c.l.b16 %v3212
    %v3729 = vunpack.c.l.b16 %v3213
    %v3730 = vunpack.c.l.b16 %v3214
    %v3731 = vunpack.c.l.b16 %v3215
    %v3732 = vunpack.c.l.b16 %v3216
    %v3733 = vunpack.c.l.b16 %v3217
    %v3734 = vunpack.c.l.b16 %v3218
    %v3735 = vunpack.c.l.b16 %v3219
    %v3736 = vunpack.c.l.b16 %v3220
    %v3737 = vunpack.c.l.b16 %v3221
    %v3738 = vunpack.c.l.b16 %v3222
    %v3739 = vunpack.c.l.b16 %v3223
    %v3740 = vunpack.c.l.b16 %v3224
    %v3741 = vunpack.c.l.b16 %v3225
    %v3742 = vunpack.c.l.b16 %v3226
    %v3743 = vunpack.c.l.b16 %v3227
    %v3744 = vunpack.c.l.b16 %v3228
    %v3745 = vunpack.c.l.b16 %v3229
    %v3746 = vunpack.c.l.b16 %v3230
    %v3747 = vunpack.c.l.b16 %v3231
    %v3748 = vunpack.c.l.b16 %v3232
    %v3749 = vunpack.c.l.b16 %v3233
    %v3750 = vunpack.c.l.b16 %v3234
    %v3751 = vunpack.c.l.b16 %v3235
    %v3752 = vunpack.c.l.b16 %v3236
    %v3753 = vunpack.c.l.b16 %v3237
    %v3754 = vunpack.c.l.b16 %v3238
    %v3755 = vunpack.c.l.b16 %v3239
    %v3756 = vunpack.c.l.b16 %v3240
    %v3757 = vunpack.c.l.b16 %v3241
    %v3758 = vunpack.c.l.b16 %v3242
    %v3759 = vunpack.c.l.b16 %v3243
    %v3760 = vunpack.c.l.b16 %v3244
    %v3761 = vunpack.c.l.b16 %v3245
    %v3762 = vunpack.c.l.b16 %v3246
    %v3763 = vunpack.c.l.b16 %v3247
    %v3764 = vunpack.c.l.b16 %v3248
    %v3765 = vunpack.c.l.b16 %v3249
    %v3766 = vunpack.c.l.b16 %v3250
    %v3767 = vunpack.c.l.b16 %v3251
    %v3768 = vunpack.c.l.b16 %v3252
    %v3769 = vunpack.c.l.b16 %v3253
    %v3770 = vunpack.c.l.b16 %v3254
    %v3771 = vunpack.c.l.b16 %v3255
    %v3772 = vunpack.c.l.b16 %v3256
    %v3773 = vunpack.c.l.b16 %v3257
    %v3774 = vunpack.c.l.b16 %v3258
    %v3775 = vunpack.c.l.b16 %v3259
    %v3776 = vunpack.c.l.b16 %v3260
    %v3777 = vunpack.c.l.b16 %v3261
    %v3778 = vunpack.c.l.b16 %v3262
    %v3779 = vunpack.c.l.b16 %v3263
    %v3780 = vunpack.c.l.b16 %v3264
    %v3781 = vunpack.c.l.b16 %v3265
    %v3782 = vunpack.c.l.b16 %v3266
    %v3783 = vunpack.c.l.b16 %v3267
    %v3784 = vunpack.c.l.b16 %v3268
    %v3785 = vunpack.c.l.b16 %v3269
    %v3786 = vunpack.c.l.b16 %v3270
    %v3787 = vunpack.c.l.b16 %v3271
    %v3788 = vunpack.c.l.b16 %v3272
    %v3789 = vunpack.c.l.b16 %v3273
    %v3790 = vunpack.c.l.b16 %v3274
    %v3791 = vunpack.c.l.b16 %v3275
    %v3792 = vunpack.c.l.b16 %v3276
    %v3793 = vunpack.c.l.b16 %v3277
    %v3794 = vunpack.c.l.b16 %v3278
    %v3795 = vunpack.c.l.b16 %v3279
    %v3796 = vunpack.c.l.b16 %v3280
    %v3797 = vunpack.c.l.b16 %v3281
    %v3798 = vunpack.c.l.b16 %v3282
    %v3799 = vunpack.c.l.b16 %v3283
    %v3800 = vunpack.c.l.b16 %v3284
    %v3801 = vunpack.c.l.b16 %v3285
    %v3802 = vunpack.c.l.b16 %v3286
    %v3803 = vunpack.c.l.b16 %v3287
    %v3804 = vunpack.c.l.b16 %v3288
    %v3805 = vunpack.c.l.b16 %v3289
    %v3806 = vunpack.c.l.b16 %v3290
    %v3807 = vunpack.c.l.b16 %v3291
    %v3808 = vunpack.c.l.b16 %v3292
    %v3809 = vunpack.c.l.b16 %v3293
    %v3810 = vunpack.c.l.b16 %v3294
    %v3811 = vunpack.c.l.b16 %v3295
    %v3812 = vunpack.c.l.b16 %v3296
    %v3813 = vunpack.c.l.b16 %v3297
    %v3814 = vunpack.c.l.b16 %v3298
    %v3815 = vunpack.c.l.b16 %v3299
    %v3816 = vunpack.c.l.b16 %v3300
    %v3817 = vunpack.c.l.b16 %v3301
    %v3818 = vunpack.c.l.b16 %v3302
    %v3819 = vunpack.c.l.b16 %v3303
    %v3820 = vunpack.c.l.b16 %v3304
    %v3821 = vpack.c.b16 %v3566, %v3565
    %v3822 = vpack.c.b16 %v3568, %v3567
    %v3823 = vpack.c.b16 %v3570, %v3569
    %v3824 = vpack.c.b16 %v3572, %v3571
    %v3825 = vpack.c.b16 %v3574, %v3573
    %v3826 = vpack.c.b16 %v3576, %v3575
    %v3827 = vpack.c.b16 %v3578, %v3577
    %v3828 = vpack.c.b16 %v3580, %v3579
    %v3829 = vpack.c.b16 %v3582, %v3581
    %v3830 = vpack.c.b16 %v3584, %v3583
    %v3831 = vpack.c.b16 %v3586, %v3585
    %v3832 = vpack.c.b16 %v3588, %v3587
    %v3833 = vpack.c.b16 %v3590, %v3589
    %v3834 = vpack.c.b16 %v3592, %v3591
    %v3835 = vpack.c.b16 %v3594, %v3593
    %v3836 = vpack.c.b16 %v3596, %v3595
    %v3837 = vpack.c.b16 %v3598, %v3597
    %v3838 = vpack.c.b16 %v3600, %v3599
    %v3839 = vpack.c.b16 %v3602, %v3601
    %v3840 = vpack.c.b16 %v3604, %v3603
    %v3841 = vpack.c.b16 %v3606, %v3605
    %v3842 = vpack.c.b16 %v3608, %v3607
    %v3843 = vpack.c.b16 %v3610, %v3609
    %v3844 = vpack.c.b16 %v3612, %v3611
    %v3845 = vpack.c.b16 %v3614, %v3613
    %v3846 = vpack.c.b16 %v3616, %v3615
    %v3847 = vpack.c.b16 %v3618, %v3617
    %v3848 = vpack.c.b16 %v3620, %v3619
    %v3849 = vpack.c.b16 %v3622, %v3621
    %v3850 = vpack.c.b16 %v3624, %v3623
    %v3851 = vpack.c.b16 %v3626, %v3625
    %v3852 = vpack.c.b16 %v3628, %v3627
    %v3853 = vpack.c.b16 %v3630, %v3629
    %v3854 = vpack.c.b16 %v3632, %v3631
    %v3855 = vpack.c.b16 %v3634, %v3633
    %v3856 = vpack.c.b16 %v3636, %v3635
    %v3857 = vpack.c.b16 %v3638, %v3637
    %v3858 = vpack.c.b16 %v3640, %v3639
    %v3859 = vpack.c.b16 %v3642, %v3641
    %v3860 = vpack.c.b16 %v3644, %v3643
    %v3861 = vpack.c.b16 %v3646, %v3645
    %v3862 = vpack.c.b16 %v3648, %v3647
    %v3863 = vpack.c.b16 %v3650, %v3649
    %v3864 = vpack.c.b16 %v3652, %v3651
    %v3865 = vpack.c.b16 %v3654, %v3653
    %v3866 = vpack.c.b16 %v3656, %v3655
    %v3867 = vpack.c.b16 %v3658, %v3657
    %v3868 = vpack.c.b16 %v3660, %v3659
    %v3869 = vpack.c.b16 %v3662, %v3661
    %v3870 = vpack.c.b16 %v3664, %v3663
    %v3871 = vpack.c.b16 %v3666, %v3665
    %v3872 = vpack.c.b16 %v3668, %v3667
    %v3873 = vpack.c.b16 %v3670, %v3669
    %v3874 = vpack.c.b16 %v3672, %v3671
    %v3875 = vpack.c.b16 %v3674, %v3673
    %v3876 = vpack.c.b16 %v3676, %v3675
    %v3877 = vpack.c.b16 %v3678, %v3677
    %v3878 = vpack.c.b16 %v3680, %v3679
    %v3879 = vpack.c.b16 %v3682, %v3681
    %v3880 = vpack.c.b16 %v3684, %v3683
    %v3881 = vpack.c.b16 %v3686, %v3685
    %v3882 = vpack.c.b16 %v3688, %v3687
    %v3883 = vpack.c.b16 %v3690, %v3689
    %v3884 = vpack.c.b16 %v3692, %v3691
    %v3885 = vpack.c.b16 %v3694, %v3693
    %v3886 = vpack.c.b16 %v3696, %v3695
    %v3887 = vpack.c.b16 %v3698, %v3697
    %v3888 = vpack.c.b16 %v3700, %v3699
    %v3889 = vpack.c.b16 %v3702, %v3701
    %v3890 = vpack.c.b16 %v3704, %v3703
    %v3891 = vpack.c.b16 %v3706, %v3705
    %v3892 = vpack.c.b16 %v3708, %v3707
    %v3893 = vpack.c.b16 %v3710, %v3709
    %v3894 = vpack.c.b16 %v3712, %v3711
    %v3895 = vpack.c.b16 %v3714, %v3713
    %v3896 = vpack.c.b16 %v3716, %v3715
    %v3897 = vpack.c.b16 %v3718, %v3717
    %v3898 = vpack.c.b16 %v3720, %v3719
    %v3899 = vpack.c.b16 %v3722, %v3721
    %v3900 = vpack.c.b16 %v3724, %v3723
    %v3901 = vpack.c.b16 %v3726, %v3725
    %v3902 = vpack.c.b16 %v3728, %v3727
    %v3903 = vpack.c.b16 %v3730, %v3729
    %v3904 = vpack.c.b16 %v3732, %v3731
    %v3905 = vpack.c.b16 %v3734, %v3733
    %v3906 = vpack.c.b16 %v3736, %v3735
    %v3907 = vpack.c.b16 %v3738, %v3737
    %v3908 = vpack.c.b16 %v3740, %v3739
    %v3909 = vpack.c.b16 %v3742, %v3741
    %v3910 = vpack.c.b16 %v3744, %v3743
    %v3911 = vpack.c.b16 %v3746, %v3745
    %v3912 = vpack.c.b16 %v3748, %v3747
    %v3913 = vpack.c.b16 %v3750, %v3749
    %v3914 = vpack.c.b16 %v3752, %v3751
    %v3915 = vpack.c.b16 %v3754, %v3753
    %v3916 = vpack.c.b16 %v3756, %v3755
    %v3917 = vpack.c.b16 %v3758, %v3757
    %v3918 = vpack.c.b16 %v3760, %v3759
    %v3919 = vpack.c.b16 %v3762, %v3761
    %v3920 = vpack.c.b16 %v3764, %v3763
    %v3921 = vpack.c.b16 %v3766, %v3765
    %v3922 = vpack.c.b16 %v3768, %v3767
    %v3923 = vpack.c.b16 %v3770, %v3769
    %v3924 = vpack.c.b16 %v3772, %v3771
    %v3925 = vpack.c.b16 %v3774, %v3773
    %v3926 = vpack.c.b16 %v3776, %v3775
    %v3927 = vpack.c.b16 %v3778, %v3777
    %v3928 = vpack.c.b16 %v3780, %v3779
    %v3929 = vpack.c.b16 %v3782, %v3781
    %v3930 = vpack.c.b16 %v3784, %v3783
    %v3931 = vpack.c.b16 %v3786, %v3785
    %v3932 = vpack.c.b16 %v3788, %v3787
    %v3933 = vpack.c.b16 %v3790, %v3789
    %v3934 = vpack.c.b16 %v3792, %v3791
    %v3935 = vpack.c.b16 %v3794, %v3793
    %v3936 = vpack.c.b16 %v3796, %v3795
    %v3937 = vpack.c.b16 %v3798, %v3797
    %v3938 = vpack.c.b16 %v3800, %v3799
    %v3939 = vpack.c.b16 %v3802, %v3801
    %v3940 = vpack.c.b16 %v3804, %v3803
    %v3941 = vpack.c.b16 %v3806, %v3805
    %v3942 = vpack.c.b16 %v3808, %v3807
    %v3943 = vpack.c.b16 %v3810, %v3809
    %v3944 = vpack.c.b16 %v3812, %v3811
    %v3945 = vpack.c.b16 %v3814, %v3813
    %v3946 = vpack.c.b16 %v3816, %v3815
    %v3947 = vpack.c.b16 %v3818, %v3817
    %v3948 = vpack.c.b16 %v3820, %v3819
    %4077 = vmatpush.bf16.msra.mxu0 %v3828
    %4078 = vmatpush.bf16.msra.mxu0 %v3827
    %4079 = vmatpush.bf16.msra.mxu0 %v3826
    %4080 = vmatpush.bf16.msra.mxu0 %v3825
    %4081 = vmatpush.bf16.msra.mxu0 %v3824
    %4082 = vmatpush.bf16.msra.mxu0 %v3823
    %4083 = vmatpush.bf16.msra.mxu0 %v3822
    %4084 = vmatpush.bf16.msra.mxu0 %v3821
    %4085 = vmatmul.bf16.gmra.mxu0 %v3033
    %v4086 = vpop.f32.mrf.mxu0
    %v4087 = vadd.f32 %v3307, %v4086
    %v4088 = vpop.f32.mrf.mxu0
    %v4089 = vadd.f32 %v3307, %v4088
    %4090 = vdwg.mxu0
    %4091 = vmatpush.bf16.msra.mxu0 %v3836
    %4092 = vmatpush.bf16.msra.mxu0 %v3835
    %4093 = vmatpush.bf16.msra.mxu0 %v3834
    %4094 = vmatpush.bf16.msra.mxu0 %v3833
    %4095 = vmatpush.bf16.msra.mxu0 %v3832
    %4096 = vmatpush.bf16.msra.mxu0 %v3831
    %4097 = vmatpush.bf16.msra.mxu0 %v3830
    %4098 = vmatpush.bf16.msra.mxu0 %v3829
    %4099 = vmatmul.bf16.gmra.mxu0 %v3034
    %v4100 = vpop.f32.mrf.mxu0
    %v4101 = vadd.f32 %v4087, %v4100
    %v4102 = vpop.f32.mrf.mxu0
    %v4103 = vadd.f32 %v4089, %v4102
    %4104 = vdwg.mxu0
    %4105 = vmatpush.bf16.msra.mxu0 %v3844
    %4106 = vmatpush.bf16.msra.mxu0 %v3843
    %4107 = vmatpush.bf16.msra.mxu0 %v3842
    %4108 = vmatpush.bf16.msra.mxu0 %v3841
    %4109 = vmatpush.bf16.msra.mxu0 %v3840
    %4110 = vmatpush.bf16.msra.mxu0 %v3839
    %4111 = vmatpush.bf16.msra.mxu0 %v3838
    %4112 = vmatpush.bf16.msra.mxu0 %v3837
    %4113 = vmatmul.bf16.gmra.mxu0 %v3035
    %v4114 = vpop.f32.mrf.mxu0
    %v4115 = vadd.f32 %v4101, %v4114
    %v4116 = vpop.f32.mrf.mxu0
    %v4117 = vadd.f32 %v4103, %v4116
    %4118 = vdwg.mxu0
    %4119 = vmatpush.bf16.msra.mxu0 %v3852
    %4120 = vmatpush.bf16.msra.mxu0 %v3851
    %4121 = vmatpush.bf16.msra.mxu0 %v3850
    %4122 = vmatpush.bf16.msra.mxu0 %v3849
    %4123 = vmatpush.bf16.msra.mxu0 %v3848
    %4124 = vmatpush.bf16.msra.mxu0 %v3847
    %4125 = vmatpush.bf16.msra.mxu0 %v3846
    %4126 = vmatpush.bf16.msra.mxu0 %v3845
    %4127 = vmatmul.bf16.gmra.mxu0 %v3036
    %v4128 = vpop.f32.mrf.mxu0
    %v4129 = vadd.f32 %v4115, %v4128
    %v4130 = vpop.f32.mrf.mxu0
    %v4131 = vadd.f32 %v4117, %v4130
    %4132 = vdwg.mxu0
    %4133 = vmatpush.bf16.msra.mxu0 %v3860
    %4134 = vmatpush.bf16.msra.mxu0 %v3859
    %4135 = vmatpush.bf16.msra.mxu0 %v3858
    %4136 = vmatpush.bf16.msra.mxu0 %v3857
    %4137 = vmatpush.bf16.msra.mxu0 %v3856
    %4138 = vmatpush.bf16.msra.mxu0 %v3855
    %4139 = vmatpush.bf16.msra.mxu0 %v3854
    %4140 = vmatpush.bf16.msra.mxu0 %v3853
    %4141 = vmatmul.bf16.gmra.mxu0 %v3037
    %v4142 = vpop.f32.mrf.mxu0
    %v4143 = vadd.f32 %v4129, %v4142
    %v4144 = vpop.f32.mrf.mxu0
    %v4145 = vadd.f32 %v4131, %v4144
    %4146 = vdwg.mxu0
    %4147 = vmatpush.bf16.msra.mxu0 %v3868
    %4148 = vmatpush.bf16.msra.mxu0 %v3867
    %4149 = vmatpush.bf16.msra.mxu0 %v3866
    %4150 = vmatpush.bf16.msra.mxu0 %v3865
    %4151 = vmatpush.bf16.msra.mxu0 %v3864
    %4152 = vmatpush.bf16.msra.mxu0 %v3863
    %4153 = vmatpush.bf16.msra.mxu0 %v3862
    %4154 = vmatpush.bf16.msra.mxu0 %v3861
    %4155 = vmatmul.bf16.gmra.mxu0 %v3038
    %v4156 = vpop.f32.mrf.mxu0
    %v4157 = vadd.f32 %v4143, %v4156
    %v4158 = vpop.f32.mrf.mxu0
    %v4159 = vadd.f32 %v4145, %v4158
    %4160 = vdwg.mxu0
    %4161 = vmatpush.bf16.msra.mxu0 %v3876
    %4162 = vmatpush.bf16.msra.mxu0 %v3875
    %4163 = vmatpush.bf16.msra.mxu0 %v3874
    %4164 = vmatpush.bf16.msra.mxu0 %v3873
    %4165 = vmatpush.bf16.msra.mxu0 %v3872
    %4166 = vmatpush.bf16.msra.mxu0 %v3871
    %4167 = vmatpush.bf16.msra.mxu0 %v3870
    %4168 = vmatpush.bf16.msra.mxu0 %v3869
    %4169 = vmatmul.bf16.gmra.mxu0 %v3039
    %v4170 = vpop.f32.mrf.mxu0
    %v4171 = vadd.f32 %v4157, %v4170
    %v4172 = vpop.f32.mrf.mxu0
    %v4173 = vadd.f32 %v4159, %v4172
    %4174 = vdwg.mxu0
    %4175 = vmatpush.bf16.msra.mxu0 %v3884
    %4176 = vmatpush.bf16.msra.mxu0 %v3883
    %4177 = vmatpush.bf16.msra.mxu0 %v3882
    %4178 = vmatpush.bf16.msra.mxu0 %v3881
    %4179 = vmatpush.bf16.msra.mxu0 %v3880
    %4180 = vmatpush.bf16.msra.mxu0 %v3879
    %4181 = vmatpush.bf16.msra.mxu0 %v3878
    %4182 = vmatpush.bf16.msra.mxu0 %v3877
    %4183 = vmatmul.bf16.gmra.mxu0 %v3040
    %v4184 = vpop.f32.mrf.mxu0
    %v4185 = vadd.f32 %v4171, %v4184
    %v4186 = vpop.f32.mrf.mxu0
    %v4187 = vadd.f32 %v4173, %v4186
    %4188 = vdwg.mxu0
    %4189 = vmatpush.bf16.msra.mxu0 %v3892
    %4190 = vmatpush.bf16.msra.mxu0 %v3891
    %4191 = vmatpush.bf16.msra.mxu0 %v3890
    %4192 = vmatpush.bf16.msra.mxu0 %v3889
    %4193 = vmatpush.bf16.msra.mxu0 %v3888
    %4194 = vmatpush.bf16.msra.mxu0 %v3887
    %4195 = vmatpush.bf16.msra.mxu0 %v3886
    %4196 = vmatpush.bf16.msra.mxu0 %v3885
    %4197 = vmatmul.bf16.gmra.mxu0 %v3041
    %v4198 = vpop.f32.mrf.mxu0
    %v4199 = vadd.f32 %v4185, %v4198
    %v4200 = vpop.f32.mrf.mxu0
    %v4201 = vadd.f32 %v4187, %v4200
    %4202 = vdwg.mxu0
    %4203 = vmatpush.bf16.msra.mxu0 %v3900
    %4204 = vmatpush.bf16.msra.mxu0 %v3899
    %4205 = vmatpush.bf16.msra.mxu0 %v3898
    %4206 = vmatpush.bf16.msra.mxu0 %v3897
    %4207 = vmatpush.bf16.msra.mxu0 %v3896
    %4208 = vmatpush.bf16.msra.mxu0 %v3895
    %4209 = vmatpush.bf16.msra.mxu0 %v3894
    %4210 = vmatpush.bf16.msra.mxu0 %v3893
    %4211 = vmatmul.bf16.gmra.mxu0 %v3042
    %v4212 = vpop.f32.mrf.mxu0
    %v4213 = vadd.f32 %v4199, %v4212
    %v4214 = vpop.f32.mrf.mxu0
    %v4215 = vadd.f32 %v4201, %v4214
    %4216 = vdwg.mxu0
    %4217 = vmatpush.bf16.msra.mxu0 %v3908
    %4218 = vmatpush.bf16.msra.mxu0 %v3907
    %4219 = vmatpush.bf16.msra.mxu0 %v3906
    %4220 = vmatpush.bf16.msra.mxu0 %v3905
    %4221 = vmatpush.bf16.msra.mxu0 %v3904
    %4222 = vmatpush.bf16.msra.mxu0 %v3903
    %4223 = vmatpush.bf16.msra.mxu0 %v3902
    %4224 = vmatpush.bf16.msra.mxu0 %v3901
    %4225 = vmatmul.bf16.gmra.mxu0 %v3043
    %v4226 = vpop.f32.mrf.mxu0
    %v4227 = vadd.f32 %v4213, %v4226
    %v4228 = vpop.f32.mrf.mxu0
    %v4229 = vadd.f32 %v4215, %v4228
    %4230 = vdwg.mxu0
    %4231 = vmatpush.bf16.msra.mxu0 %v3916
    %4232 = vmatpush.bf16.msra.mxu0 %v3915
    %4233 = vmatpush.bf16.msra.mxu0 %v3914
    %4234 = vmatpush.bf16.msra.mxu0 %v3913
    %4235 = vmatpush.bf16.msra.mxu0 %v3912
    %4236 = vmatpush.bf16.msra.mxu0 %v3911
    %4237 = vmatpush.bf16.msra.mxu0 %v3910
    %4238 = vmatpush.bf16.msra.mxu0 %v3909
    %4239 = vmatmul.bf16.gmra.mxu0 %v3044
    %v4240 = vpop.f32.mrf.mxu0
    %v4241 = vadd.f32 %v4227, %v4240
    %v4242 = vpop.f32.mrf.mxu0
    %v4243 = vadd.f32 %v4229, %v4242
    %4244 = vdwg.mxu0
    %4245 = vmatpush.bf16.msra.mxu0 %v3924
    %4246 = vmatpush.bf16.msra.mxu0 %v3923
    %4247 = vmatpush.bf16.msra.mxu0 %v3922
    %4248 = vmatpush.bf16.msra.mxu0 %v3921
    %4249 = vmatpush.bf16.msra.mxu0 %v3920
    %4250 = vmatpush.bf16.msra.mxu0 %v3919
    %4251 = vmatpush.bf16.msra.mxu0 %v3918
    %4252 = vmatpush.bf16.msra.mxu0 %v3917
    %4253 = vmatmul.bf16.gmra.mxu0 %v3045
    %v4254 = vpop.f32.mrf.mxu0
    %v4255 = vadd.f32 %v4241, %v4254
    %v4256 = vpop.f32.mrf.mxu0
    %v4257 = vadd.f32 %v4243, %v4256
    %4258 = vdwg.mxu0
    %4259 = vmatpush.bf16.msra.mxu0 %v3932
    %4260 = vmatpush.bf16.msra.mxu0 %v3931
    %4261 = vmatpush.bf16.msra.mxu0 %v3930
    %4262 = vmatpush.bf16.msra.mxu0 %v3929
    %4263 = vmatpush.bf16.msra.mxu0 %v3928
    %4264 = vmatpush.bf16.msra.mxu0 %v3927
    %4265 = vmatpush.bf16.msra.mxu0 %v3926
    %4266 = vmatpush.bf16.msra.mxu0 %v3925
    %4267 = vmatmul.bf16.gmra.mxu0 %v3046
    %v4268 = vpop.f32.mrf.mxu0
    %v4269 = vadd.f32 %v4255, %v4268
    %v4270 = vpop.f32.mrf.mxu0
    %v4271 = vadd.f32 %v4257, %v4270
    %4272 = vdwg.mxu0
    %4273 = vmatpush.bf16.msra.mxu0 %v3940
    %4274 = vmatpush.bf16.msra.mxu0 %v3939
    %4275 = vmatpush.bf16.msra.mxu0 %v3938
    %4276 = vmatpush.bf16.msra.mxu0 %v3937
    %4277 = vmatpush.bf16.msra.mxu0 %v3936
    %4278 = vmatpush.bf16.msra.mxu0 %v3935
    %4279 = vmatpush.bf16.msra.mxu0 %v3934
    %4280 = vmatpush.bf16.msra.mxu0 %v3933
    %4281 = vmatmul.bf16.gmra.mxu0 %v3047
    %v4282 = vpop.f32.mrf.mxu0
    %v4283 = vadd.f32 %v4269, %v4282
    %v4284 = vpop.f32.mrf.mxu0
    %v4285 = vadd.f32 %v4271, %v4284
    %4286 = vdwg.mxu0
    %4287 = vmatpush.bf16.msra.mxu0 %v3948
    %4288 = vmatpush.bf16.msra.mxu0 %v3947
    %4289 = vmatpush.bf16.msra.mxu0 %v3946
    %4290 = vmatpush.bf16.msra.mxu0 %v3945
    %4291 = vmatpush.bf16.msra.mxu0 %v3944
    %4292 = vmatpush.bf16.msra.mxu0 %v3943
    %4293 = vmatpush.bf16.msra.mxu0 %v3942
    %4294 = vmatpush.bf16.msra.mxu0 %v3941
    %4295 = vmatmul.bf16.gmra.mxu0 %v3048
    %v4296 = vpop.f32.mrf.mxu0
    %v4297 = vadd.f32 %v4283, %v4296
    %v4298 = vpop.f32.mrf.mxu0
    %v4299 = vadd.f32 %v4285, %v4298
    %4300 = vdwg.mxu0
    %v4301 = vadd.f32 %v2543, %v4297
    %v4302 = vadd.f32 %v2544, %v4299
    %v4303 = vsel %vm669, %v4301, 0.0
    %4304 = vadd.xlane.f32.xlu0 %v4303
    %v4305 = vpop.xlane.xlu0 %4304
    %v4306 = vsel %vm669, %v4302, 0.0
    %4307 = vadd.xlane.f32.xlu0 %v4306
    %v4308 = vpop.xlane.xlu0 %4307
    %v4309 = vmul.f32 %v4305, %v2494
    %v4310 = vmul.f32 %v4308, %v2494
    %v4311 = vsub.f32 %v4301, %v4309
    %v4312 = vsub.f32 %v4302, %v4310
    %v4313 = vmul.f32 %v4311, %v4311
    %v4314 = vmul.f32 %v4312, %v4312
    %v4315 = vsel %vm669, %v4313, 0.0
    %4316 = vadd.xlane.f32.xlu0 %v4315
    %v4317 = vpop.xlane.xlu0 %4316
    %v4318 = vsel %vm669, %v4314, 0.0
    %4319 = vadd.xlane.f32.xlu0 %v4318
    %v4320 = vpop.xlane.xlu0 %4319
    %v4321 = vmul.f32 %v4317, %v2494
    %v4322 = vmul.f32 %v4320, %v2494
    %v4323 = vadd.f32 %v4321, 1e-05
    %v4324 = vadd.f32 %v4322, 1e-05
    %v4325 = vrsqrt.pop %v4323
    %v4326 = vmul.f32 %v4325, %v4323
    %v4327 = vmul.f32 %v4326, %v4325
    %v4328 = vmul.f32 0.5, %v4327
    %v4329 = vsub.f32 1.5, %v4328
    %v4330 = vmul.f32 %v4325, %v4329
    %vm4331 = vweird.f32 %v4323
    %vm4332 = vweird.f32 %v4325
    %vm4333 = vmor %vm4331, %vm4332
    %v4334 = vsel %vm4333, %v4325, %v4330
    %v4335 = vrsqrt.pop %v4324
    %v4336 = vmul.f32 %v4335, %v4324
    %v4337 = vmul.f32 %v4336, %v4335
    %v4338 = vmul.f32 0.5, %v4337
    %v4339 = vsub.f32 1.5, %v4338
    %v4340 = vmul.f32 %v4335, %v4339
    %vm4341 = vweird.f32 %v4324
    %vm4342 = vweird.f32 %v4335
    %vm4343 = vmor %vm4341, %vm4342
    %v4344 = vsel %vm4343, %v4335, %v4340
    %v4345 = vmul.f32 %v4311, %v4334
    %v4346 = vmul.f32 %v4312, %v4344
    %v4347 = vld [vmem:[%s35] sm:$0x1]
    %v4349 = vperm.slane %v4347, 0
    %v4351 = vmul.f32 %v4345, %v4349
    %v4352 = vmul.f32 %v4346, %v4349
    %v4353 = vld [vmem:[%s37] sm:$0x1]
    %v4355 = vperm.slane %v4353, 0
    %v4357 = vadd.f32 %v4351, %v4355
    %v4358 = vadd.f32 %v4352, %v4355
    %v4359 = vld [vmem:[%s39] sm:$0xf]
    %v4360 = vld [vmem:[%s39 + $0x4] sm:$0xf]
    %v4361 = vld [vmem:[%s39 + $0x8] sm:$0xf]
    %v4362 = vld [vmem:[%s39 + $0xc] sm:$0xf]
    %v4363 = vld [vmem:[%s41] sm:$0x1]
    %v4364 = vpack.c.bf16 %v693, %v691
    %v4366 = vperm.slane %v4363, 0
    %v4372 = vunpack.c.l.b16 %v4359
    %v4373 = vunpack.c.l.b16 %v4360
    %v4374 = vunpack.c.l.b16 %v4361
    %v4375 = vunpack.c.l.b16 %v4362
    %v4376 = vpack.c.b16 %v4373, %v4372
    %v4377 = vpack.c.b16 %v4375, %v4374
    %v4381 = vsel %vm669, %v4364, 0
    %4383 = vmatpush.bf16.msra.mxu0 0
    %4384 = vmatpush.bf16.msra.mxu0 0
    %4385 = vmatpush.bf16.msra.mxu0 0
    %4386 = vmatpush.bf16.msra.mxu0 0
    %4387 = vmatpush.bf16.msra.mxu0 0
    %4388 = vmatpush.bf16.msra.mxu0 0
    %4389 = vmatpush.bf16.msra.mxu0 %v4377
    %4390 = vmatpush.bf16.msra.mxu0 %v4376
    %4391 = vmatmul.bf16.gmra.mxu0 %v4381
    %v4392 = vpop.f32.mrf.mxu0
    %v4393 = vadd.f32 %v4366, %v4392
    %v4394 = vpop.f32.mrf.mxu0
    %v4395 = vadd.f32 %v4366, %v4394
    %4396 = vdwg.mxu0
    %4397 = vrot.lane.b32.xlu0 %v4376, 96
    %v4398 = vpop.permute.xlu0 %4397
    %4399 = vrot.lane.b32.xlu0 %v4377, 96
    %v4400 = vpop.permute.xlu0 %4399
    %4403 = vrot.lane.b32.xlu0 %v4366, 96
    %v4404 = vpop.permute.xlu0 %4403
    %4406 = vmatpush.bf16.msra.mxu0 0
    %4407 = vmatpush.bf16.msra.mxu0 0
    %4408 = vmatpush.bf16.msra.mxu0 0
    %4409 = vmatpush.bf16.msra.mxu0 0
    %4410 = vmatpush.bf16.msra.mxu0 0
    %4411 = vmatpush.bf16.msra.mxu0 0
    %4412 = vmatpush.bf16.msra.mxu0 %v4400
    %4413 = vmatpush.bf16.msra.mxu0 %v4398
    %4414 = vmatmul.bf16.gmra.mxu0 %v4381
    %v4415 = vpop.f32.mrf.mxu0
    %v4416 = vadd.f32 %v4404, %v4415
    %v4417 = vpop.f32.mrf.mxu0
    %v4418 = vadd.f32 %v4404, %v4417
    %4419 = vdwg.mxu0
    %v4420 = vmul.f32 %v4393, 0.5
    %v4421 = vmul.f32 %v4395, 0.5
    %4422 = vxpose.xlu0.b32.start [1/16] %v4416, 128
    %4423 = vxpose.xlu0.b32.cont [2/16] %v4418, 128
    %4424 = vxpose.xlu0.b32.cont [3/16] 0.0, 128
    %4425 = vxpose.xlu0.b32.cont [4/16] 0.0, 128
    %4426 = vxpose.xlu0.b32.cont [5/16] 0.0, 128
    %4427 = vxpose.xlu0.b32.cont [6/16] 0.0, 128
    %4428 = vxpose.xlu0.b32.cont [7/16] 0.0, 128
    %4429 = vxpose.xlu0.b32.cont [8/16] 0.0, 128
    %4430 = vxpose.xlu0.b32.cont [9/16] 0.0, 128
    %4431 = vxpose.xlu0.b32.cont [10/16] 0.0, 128
    %4432 = vxpose.xlu0.b32.cont [11/16] 0.0, 128
    %4433 = vxpose.xlu0.b32.cont [12/16] 0.0, 128
    %4434 = vxpose.xlu0.b32.cont [13/16] 0.0, 128
    %4435 = vxpose.xlu0.b32.cont [14/16] 0.0, 128
    %4436 = vxpose.xlu0.b32.cont [15/16] 0.0, 128
    %4437 = vxpose.xlu0.b32.end [16/16] 0.0, 128
    %v4438 = vpop.trf.xlu0
    %v4439 = vpop.trf.xlu0
    %v4440 = vpop.trf.xlu0
    %v4441 = vpop.trf.xlu0
    %v4442 = vpop.trf.xlu0
    %v4443 = vpop.trf.xlu0
    %v4444 = vpop.trf.xlu0
    %v4445 = vpop.trf.xlu0
    %v4446 = vpop.trf.xlu0
    %v4447 = vpop.trf.xlu0
    %v4448 = vpop.trf.xlu0
    %v4449 = vpop.trf.xlu0
    %v4450 = vpop.trf.xlu0
    %v4451 = vpop.trf.xlu0
    %v4452 = vpop.trf.xlu0
    %v4453 = vpop.trf.xlu0
    %4458 = vrot.lane.b32.xlu0 %v4438, 16
    %v4459 = vpop.permute.xlu0 %4458
    %4460 = vrot.lane.b32.xlu0 %v4439, 16
    %v4461 = vpop.permute.xlu0 %4460
    %4462 = vrot.lane.b32.xlu0 %v4440, 16
    %v4463 = vpop.permute.xlu0 %4462
    %4464 = vrot.lane.b32.xlu0 %v4441, 16
    %v4465 = vpop.permute.xlu0 %4464
    %4470 = vrot.lane.b32.xlu0 %v4438, 32
    %v4471 = vpop.permute.xlu0 %4470
    %4472 = vrot.lane.b32.xlu0 %v4439, 32
    %v4473 = vpop.permute.xlu0 %4472
    %4474 = vrot.lane.b32.xlu0 %v4440, 32
    %v4475 = vpop.permute.xlu0 %4474
    %4476 = vrot.lane.b32.xlu0 %v4441, 32
    %v4477 = vpop.permute.xlu0 %4476
    %4482 = vrot.lane.b32.xlu0 %v4438, 48
    %v4483 = vpop.permute.xlu0 %4482
    %4484 = vrot.lane.b32.xlu0 %v4439, 48
    %v4485 = vpop.permute.xlu0 %4484
    %4486 = vrot.lane.b32.xlu0 %v4440, 48
    %v4487 = vpop.permute.xlu0 %4486
    %4488 = vrot.lane.b32.xlu0 %v4441, 48
    %v4489 = vpop.permute.xlu0 %4488
    %4494 = vrot.lane.b32.xlu0 %v4438, 64
    %v4495 = vpop.permute.xlu0 %4494
    %4496 = vrot.lane.b32.xlu0 %v4439, 64
    %v4497 = vpop.permute.xlu0 %4496
    %4498 = vrot.lane.b32.xlu0 %v4440, 64
    %v4499 = vpop.permute.xlu0 %4498
    %4500 = vrot.lane.b32.xlu0 %v4441, 64
    %v4501 = vpop.permute.xlu0 %4500
    %4506 = vrot.lane.b32.xlu0 %v4438, 80
    %v4507 = vpop.permute.xlu0 %4506
    %4508 = vrot.lane.b32.xlu0 %v4439, 80
    %v4509 = vpop.permute.xlu0 %4508
    %4510 = vrot.lane.b32.xlu0 %v4440, 80
    %v4511 = vpop.permute.xlu0 %4510
    %4512 = vrot.lane.b32.xlu0 %v4441, 80
    %v4513 = vpop.permute.xlu0 %4512
    %4518 = vrot.lane.b32.xlu0 %v4438, 96
    %v4519 = vpop.permute.xlu0 %4518
    %4520 = vrot.lane.b32.xlu0 %v4439, 96
    %v4521 = vpop.permute.xlu0 %4520
    %4522 = vrot.lane.b32.xlu0 %v4440, 96
    %v4523 = vpop.permute.xlu0 %4522
    %4524 = vrot.lane.b32.xlu0 %v4441, 96
    %v4525 = vpop.permute.xlu0 %4524
    %4530 = vrot.lane.b32.xlu0 %v4438, 112
    %v4531 = vpop.permute.xlu0 %4530
    %4532 = vrot.lane.b32.xlu0 %v4439, 112
    %v4533 = vpop.permute.xlu0 %4532
    %4534 = vrot.lane.b32.xlu0 %v4440, 112
    %v4535 = vpop.permute.xlu0 %4534
    %4536 = vrot.lane.b32.xlu0 %v4441, 112
    %v4537 = vpop.permute.xlu0 %4536
    %v4542 = vsel %vm2242, %v4438, %v4459
    %v4543 = vsel %vm2242, %v4439, %v4461
    %v4544 = vsel %vm2242, %v4440, %v4463
    %v4545 = vsel %vm2242, %v4441, %v4465
    %v4546 = vsel %vm669, %v4542, %v4471
    %v4547 = vsel %vm669, %v4543, %v4473
    %v4548 = vsel %vm669, %v4544, %v4475
    %v4549 = vsel %vm669, %v4545, %v4477
    %v4550 = vsel %vm2251, %v4546, %v4483
    %v4551 = vsel %vm2251, %v4547, %v4485
    %v4552 = vsel %vm2251, %v4548, %v4487
    %v4553 = vsel %vm2251, %v4549, %v4489
    %v4554 = vsel %vm2256, %v4550, %v4495
    %v4555 = vsel %vm2256, %v4551, %v4497
    %v4556 = vsel %vm2256, %v4552, %v4499
    %v4557 = vsel %vm2256, %v4553, %v4501
    %v4558 = vsel %vm2261, %v4554, %v4507
    %v4559 = vsel %vm2261, %v4555, %v4509
    %v4560 = vsel %vm2261, %v4556, %v4511
    %v4561 = vsel %vm2261, %v4557, %v4513
    %v4562 = vsel %vm2266, %v4558, %v4519
    %v4563 = vsel %vm2266, %v4559, %v4521
    %v4564 = vsel %vm2266, %v4560, %v4523
    %v4565 = vsel %vm2266, %v4561, %v4525
    %v4566 = vsel %vm2271, %v4562, %v4531
    %v4567 = vsel %vm2271, %v4563, %v4533
    %v4568 = vsel %vm2271, %v4564, %v4535
    %v4569 = vsel %vm2271, %v4565, %v4537
    %v4570 = vsel %vm926, %v4566, 0.0
    %v4571 = vsel %vm927, %v4567, 0.0
    %v4572 = vsel %vm928, %v4568, 0.0
    %v4573 = vsel %vm929, %v4569, 0.0
    %4576 = vrot.lane.b32.xlu0 %v4416, 96
    %v4577 = vpop.permute.xlu0 %4576
    %4578 = vrot.lane.b32.xlu0 %v4418, 96
    %v4579 = vpop.permute.xlu0 %4578
    %v4582 = vsel %vm1672, %v4577, 0.0
    %v4583 = vsel %vm1673, %v4579, 0.0
    %v4584 = vsel %vm1674, %v4577, 0.0
    %v4585 = vsel %vm1675, %v4579, 0.0
    %v4586 = vsel %vm1676, %v4577, 0.0
    %v4587 = vsel %vm1677, %v4579, 0.0
    %v4588 = vsel %vm1678, %v4577, 0.0
    %v4589 = vsel %vm1679, %v4579, 0.0
    %v4590 = vsel %vm1680, %v4577, 0.0
    %v4591 = vsel %vm1681, %v4579, 0.0
    %v4592 = vsel %vm1682, %v4577, 0.0
    %v4593 = vsel %vm1683, %v4579, 0.0
    %v4594 = vsel %vm1684, %v4577, 0.0
    %v4595 = vsel %vm1685, %v4579, 0.0
    %v4596 = vsel %vm1686, %v4577, 0.0
    %v4597 = vsel %vm1687, %v4579, 0.0
    %v4598 = vpack.c.bf16 %v4421, %v4420
    %v4599 = vpack.c.bf16 %v4571, %v4570
    %v4600 = vpack.c.bf16 %v4573, %v4572
    %4603 = vrot.lane.b32.xlu0 %v736, 16
    %v4604 = vpop.permute.xlu0 %4603
    %4605 = vrot.lane.b32.xlu0 %v737, 16
    %v4606 = vpop.permute.xlu0 %4605
    %4609 = vrot.lane.b32.xlu0 %v736, 32
    %v4610 = vpop.permute.xlu0 %4609
    %4611 = vrot.lane.b32.xlu0 %v737, 32
    %v4612 = vpop.permute.xlu0 %4611
    %4615 = vrot.lane.b32.xlu0 %v736, 48
    %v4616 = vpop.permute.xlu0 %4615
    %4617 = vrot.lane.b32.xlu0 %v737, 48
    %v4618 = vpop.permute.xlu0 %4617
    %4621 = vrot.lane.b32.xlu0 %v736, 64
    %v4622 = vpop.permute.xlu0 %4621
    %4623 = vrot.lane.b32.xlu0 %v737, 64
    %v4624 = vpop.permute.xlu0 %4623
    %4627 = vrot.lane.b32.xlu0 %v736, 80
    %v4628 = vpop.permute.xlu0 %4627
    %4629 = vrot.lane.b32.xlu0 %v737, 80
    %v4630 = vpop.permute.xlu0 %4629
    %4633 = vrot.lane.b32.xlu0 %v736, 96
    %v4634 = vpop.permute.xlu0 %4633
    %4635 = vrot.lane.b32.xlu0 %v737, 96
    %v4636 = vpop.permute.xlu0 %4635
    %4639 = vrot.lane.b32.xlu0 %v736, 112
    %v4640 = vpop.permute.xlu0 %4639
    %4641 = vrot.lane.b32.xlu0 %v737, 112
    %v4642 = vpop.permute.xlu0 %4641
    %v4645 = vsel %vm2242, %v736, %v4604
    %v4646 = vsel %vm2242, %v737, %v4606
    %v4647 = vsel %vm669, %v4645, %v4610
    %v4648 = vsel %vm669, %v4646, %v4612
    %v4649 = vsel %vm2251, %v4647, %v4616
    %v4650 = vsel %vm2251, %v4648, %v4618
    %v4651 = vsel %vm2256, %v4649, %v4622
    %v4652 = vsel %vm2256, %v4650, %v4624
    %v4653 = vsel %vm2261, %v4651, %v4628
    %v4654 = vsel %vm2261, %v4652, %v4630
    %v4655 = vsel %vm2266, %v4653, %v4634
    %v4656 = vsel %vm2266, %v4654, %v4636
    %v4657 = vsel %vm2271, %v4655, %v4640
    %v4658 = vsel %vm2271, %v4656, %v4642
    %v4660 = vsel %vm669, %v4598, 0
    %4662 = vmatpush.bf16.msra.mxu0 0
    %4663 = vmatpush.bf16.msra.mxu0 0
    %4664 = vmatpush.bf16.msra.mxu0 0
    %4665 = vmatpush.bf16.msra.mxu0 0
    %4666 = vmatpush.bf16.msra.mxu0 0
    %4667 = vmatpush.bf16.msra.mxu0 0
    %4668 = vmatpush.bf16.msra.mxu0 %v4600
    %4669 = vmatpush.bf16.msra.mxu0 %v4599
    %4670 = vmatmul.bf16.gmra.mxu0 %v4660
    %v4671 = vpop.f32.mrf.mxu0
    %v4672 = vadd.f32 %v4657, %v4671
    %v4673 = vpop.f32.mrf.mxu0
    %v4674 = vadd.f32 %v4658, %v4673
    %4675 = vdwg.mxu0
    %4676 = vmax.xlane.f32.xlu0 %v4672
    %v4677 = vpop.xlane.xlu0 %4676
    %4678 = vmax.xlane.f32.xlu0 %v4674
    %v4679 = vpop.xlane.xlu0 %4678
    %v4680 = vsub.f32 %v4672, %v4677
    %v4681 = vsub.f32 %v4674, %v4679
    %v4682 = vmul.f32 %v4680, 1.442695
    %v4683 = vpow.pop %v4682
    %v4684 = vmul.f32 %v4681, 1.442695
    %v4685 = vpow.pop %v4684
    %4686 = vmatpush.msra.mxu0 %v2055
    %4687 = vmatpush.msra.mxu0 %v2054
    %4688 = vmatpush.msra.mxu0 %v2053
    %4689 = vmatpush.msra.mxu0 %v2052
    %4690 = vmatpush.msra.mxu0 %v2051
    %4691 = vmatpush.msra.mxu0 %v2050
    %4692 = vmatpush.msra.mxu0 %v2049
    %4693 = vmatpush.msra.mxu0 %v2048
    %4694 = vmatpush.msra.mxu0 %v2047
    %4695 = vmatpush.msra.mxu0 %v2046
    %4696 = vmatpush.msra.mxu0 %v2045
    %4697 = vmatpush.msra.mxu0 %v2044
    %4698 = vmatpush.msra.mxu0 %v2043
    %4699 = vmatpush.msra.mxu0 %v2042
    %4700 = vmatpush.msra.mxu0 %v2041
    %4701 = vmatpush.msra.mxu0 %v2040
    %4702 = vmatmul.f32.gmra.mxu0 %v4683
    %v4703 = vpop.f32.mrf.mxu0
    %v4704 = vadd.f32 0.0, %v4703
    %4705 = vmatmul.f32.gmra.mxu0 %v4685
    %v4706 = vpop.f32.mrf.mxu0
    %v4707 = vadd.f32 0.0, %v4706
    %4708 = vdwg.mxu0
    %v4709 = vrcp.pop %v4704
    %v4710 = vrcp.pop %v4707
    %v4711 = vmul.f32 %v4683, %v4709
    %v4712 = vmul.f32 %v4685, %v4710
    %v4713 = vpack.c.bf16 %v4712, %v4711
    %v4714 = vpack.c.bf16 %v4583, %v4582
    %v4715 = vpack.c.bf16 %v4585, %v4584
    %v4716 = vpack.c.bf16 %v4587, %v4586
    %v4717 = vpack.c.bf16 %v4589, %v4588
    %v4718 = vpack.c.bf16 %v4591, %v4590
    %v4719 = vpack.c.bf16 %v4593, %v4592
    %v4720 = vpack.c.bf16 %v4595, %v4594
    %v4721 = vpack.c.bf16 %v4597, %v4596
    %4722 = vmatpush.bf16.msra.mxu0 %v4721
    %4723 = vmatpush.bf16.msra.mxu0 %v4720
    %4724 = vmatpush.bf16.msra.mxu0 %v4719
    %4725 = vmatpush.bf16.msra.mxu0 %v4718
    %4726 = vmatpush.bf16.msra.mxu0 %v4717
    %4727 = vmatpush.bf16.msra.mxu0 %v4716
    %4728 = vmatpush.bf16.msra.mxu0 %v4715
    %4729 = vmatpush.bf16.msra.mxu0 %v4714
    %4730 = vmatmul.bf16.gmra.mxu0 %v4713
    %v4731 = vpop.f32.mrf.mxu0
    %v4732 = vadd.f32 0.0, %v4731
    %v4733 = vpop.f32.mrf.mxu0
    %v4734 = vadd.f32 0.0, %v4733
    %4735 = vdwg.mxu0
    %v4736 = vpack.c.bf16 %v4734, %v4732
    %v4737 = vld [vmem:[%s43] sm:$0xf]
    %v4738 = vld [vmem:[%s43 + $0x4] sm:$0xf]
    %v4739 = vld [vmem:[%s43 + $0x8] sm:$0xf]
    %v4740 = vld [vmem:[%s43 + $0xc] sm:$0xf]
    %v4741 = vld [vmem:[%s45] sm:$0x1]
    %v4743 = vperm.slane %v4741, 0
    %v4749 = vunpack.c.l.b16 %v4737
    %v4750 = vunpack.c.l.b16 %v4738
    %v4751 = vunpack.c.l.b16 %v4739
    %v4752 = vunpack.c.l.b16 %v4740
    %v4753 = vpack.c.b16 %v4750, %v4749
    %v4754 = vpack.c.b16 %v4752, %v4751
    %v4758 = vsel %vm669, %v4736, 0
    %4760 = vmatpush.bf16.msra.mxu0 0
    %4761 = vmatpush.bf16.msra.mxu0 0
    %4762 = vmatpush.bf16.msra.mxu0 0
    %4763 = vmatpush.bf16.msra.mxu0 0
    %4764 = vmatpush.bf16.msra.mxu0 0
    %4765 = vmatpush.bf16.msra.mxu0 0
    %4766 = vmatpush.bf16.msra.mxu0 %v4754
    %4767 = vmatpush.bf16.msra.mxu0 %v4753
    %4768 = vmatmul.bf16.gmra.mxu0 %v4758
    %v4769 = vpop.f32.mrf.mxu0
    %v4770 = vadd.f32 %v4743, %v4769
    %v4771 = vpop.f32.mrf.mxu0
    %v4772 = vadd.f32 %v4743, %v4771
    %4773 = vdwg.mxu0
    %v4774 = vadd.f32 %v691, %v4770
    %v4775 = vadd.f32 %v693, %v4772
    %v4776 = vsel %vm669, %v4774, 0.0
    %4777 = vadd.xlane.f32.xlu0 %v4776
    %v4778 = vpop.xlane.xlu0 %4777
    %v4779 = vsel %vm669, %v4775, 0.0
    %4780 = vadd.xlane.f32.xlu0 %v4779
    %v4781 = vpop.xlane.xlu0 %4780
    %v4782 = vmul.f32 %v4778, %v2494
    %v4783 = vmul.f32 %v4781, %v2494
    %v4784 = vsub.f32 %v4774, %v4782
    %v4785 = vsub.f32 %v4775, %v4783
    %v4786 = vmul.f32 %v4784, %v4784
    %v4787 = vmul.f32 %v4785, %v4785
    %v4788 = vsel %vm669, %v4786, 0.0
    %4789 = vadd.xlane.f32.xlu0 %v4788
    %v4790 = vpop.xlane.xlu0 %4789
    %v4791 = vsel %vm669, %v4787, 0.0
    %4792 = vadd.xlane.f32.xlu0 %v4791
    %v4793 = vpop.xlane.xlu0 %4792
    %v4794 = vmul.f32 %v4790, %v2494
    %v4795 = vmul.f32 %v4793, %v2494
    %v4796 = vadd.f32 %v4794, 1e-05
    %v4797 = vadd.f32 %v4795, 1e-05
    %v4798 = vrsqrt.pop %v4796
    %v4799 = vmul.f32 %v4798, %v4796
    %v4800 = vmul.f32 %v4799, %v4798
    %v4801 = vmul.f32 0.5, %v4800
    %v4802 = vsub.f32 1.5, %v4801
    %v4803 = vmul.f32 %v4798, %v4802
    %vm4804 = vweird.f32 %v4796
    %vm4805 = vweird.f32 %v4798
    %vm4806 = vmor %vm4804, %vm4805
    %v4807 = vsel %vm4806, %v4798, %v4803
    %v4808 = vrsqrt.pop %v4797
    %v4809 = vmul.f32 %v4808, %v4797
    %v4810 = vmul.f32 %v4809, %v4808
    %v4811 = vmul.f32 0.5, %v4810
    %v4812 = vsub.f32 1.5, %v4811
    %v4813 = vmul.f32 %v4808, %v4812
    %vm4814 = vweird.f32 %v4797
    %vm4815 = vweird.f32 %v4808
    %vm4816 = vmor %vm4814, %vm4815
    %v4817 = vsel %vm4816, %v4808, %v4813
    %v4818 = vmul.f32 %v4784, %v4807
    %v4819 = vmul.f32 %v4785, %v4817
    %v4820 = vld [vmem:[%s63] sm:$0x1]
    %v4822 = vperm.slane %v4820, 0
    %v4824 = vmul.f32 %v4818, %v4822
    %v4825 = vmul.f32 %v4819, %v4822
    %v4826 = vld [vmem:[%s65] sm:$0x1]
    %v4828 = vperm.slane %v4826, 0
    %v4830 = vadd.f32 %v4824, %v4828
    %v4831 = vadd.f32 %v4825, %v4828
    %v4832 = vld [vmem:[%s47] sm:$0xf]
    %v4833 = vld [vmem:[%s47 + $0x4] sm:$0xf]
    %v4834 = vld [vmem:[%s47 + $0x8] sm:$0xf]
    %v4835 = vld [vmem:[%s47 + $0xc] sm:$0xf]
    %v4836 = vld [vmem:[%s49] sm:$0x1]
    %v4837 = vpack.c.bf16 %v4831, %v4830
    %v4839 = vperm.slane %v4836, 0
    %v4845 = vunpack.c.l.b16 %v4832
    %v4846 = vunpack.c.l.b16 %v4833
    %v4847 = vunpack.c.l.b16 %v4834
    %v4848 = vunpack.c.l.b16 %v4835
    %v4849 = vpack.c.b16 %v4846, %v4845
    %v4850 = vpack.c.b16 %v4848, %v4847
    %v4854 = vsel %vm669, %v4837, 0
    %4856 = vmatpush.bf16.msra.mxu0 0
    %4857 = vmatpush.bf16.msra.mxu0 0
    %4858 = vmatpush.bf16.msra.mxu0 0
    %4859 = vmatpush.bf16.msra.mxu0 0
    %4860 = vmatpush.bf16.msra.mxu0 0
    %4861 = vmatpush.bf16.msra.mxu0 0
    %4862 = vmatpush.bf16.msra.mxu0 %v4850
    %4863 = vmatpush.bf16.msra.mxu0 %v4849
    %4864 = vmatmul.bf16.gmra.mxu0 %v4854
    %v4865 = vpop.f32.mrf.mxu0
    %v4866 = vadd.f32 %v4839, %v4865
    %v4867 = vpop.f32.mrf.mxu0
    %v4868 = vadd.f32 %v4839, %v4867
    %4869 = vdwg.mxu0
    %v4870 = vpack.c.bf16 %v4358, %v4357
    %4871 = vrot.lane.b32.xlu0 %v4849, 96
    %v4872 = vpop.permute.xlu0 %4871
    %4873 = vrot.lane.b32.xlu0 %v4850, 96
    %v4874 = vpop.permute.xlu0 %4873
    %4877 = vrot.lane.b32.xlu0 %v4839, 96
    %v4878 = vpop.permute.xlu0 %4877
    %v4881 = vsel %vm669, %v4870, 0
    %4883 = vmatpush.bf16.msra.mxu0 0
    %4884 = vmatpush.bf16.msra.mxu0 0
    %4885 = vmatpush.bf16.msra.mxu0 0
    %4886 = vmatpush.bf16.msra.mxu0 0
    %4887 = vmatpush.bf16.msra.mxu0 0
    %4888 = vmatpush.bf16.msra.mxu0 0
    %4889 = vmatpush.bf16.msra.mxu0 %v4874
    %4890 = vmatpush.bf16.msra.mxu0 %v4872
    %4891 = vmatmul.bf16.gmra.mxu0 %v4881
    %v4892 = vpop.f32.mrf.mxu0
    %v4893 = vadd.f32 %v4878, %v4892
    %v4894 = vpop.f32.mrf.mxu0
    %v4895 = vadd.f32 %v4878, %v4894
    %4896 = vdwg.mxu0
    %v4897 = vmul.f32 %v4866, 0.5
    %v4898 = vmul.f32 %v4868, 0.5
    %4899 = vxpose.xlu0.b32.start [1/16] %v4893, 128
    %4900 = vxpose.xlu0.b32.cont [2/16] %v4895, 128
    %4901 = vxpose.xlu0.b32.cont [3/16] 0.0, 128
    %4902 = vxpose.xlu0.b32.cont [4/16] 0.0, 128
    %4903 = vxpose.xlu0.b32.cont [5/16] 0.0, 128
    %4904 = vxpose.xlu0.b32.cont [6/16] 0.0, 128
    %4905 = vxpose.xlu0.b32.cont [7/16] 0.0, 128
    %4906 = vxpose.xlu0.b32.cont [8/16] 0.0, 128
    %4907 = vxpose.xlu0.b32.cont [9/16] 0.0, 128
    %4908 = vxpose.xlu0.b32.cont [10/16] 0.0, 128
    %4909 = vxpose.xlu0.b32.cont [11/16] 0.0, 128
    %4910 = vxpose.xlu0.b32.cont [12/16] 0.0, 128
    %4911 = vxpose.xlu0.b32.cont [13/16] 0.0, 128
    %4912 = vxpose.xlu0.b32.cont [14/16] 0.0, 128
    %4913 = vxpose.xlu0.b32.cont [15/16] 0.0, 128
    %4914 = vxpose.xlu0.b32.end [16/16] 0.0, 128
    %v4915 = vpop.trf.xlu0
    %v4916 = vpop.trf.xlu0
    %v4917 = vpop.trf.xlu0
    %v4918 = vpop.trf.xlu0
    %v4919 = vpop.trf.xlu0
    %v4920 = vpop.trf.xlu0
    %v4921 = vpop.trf.xlu0
    %v4922 = vpop.trf.xlu0
    %v4923 = vpop.trf.xlu0
    %v4924 = vpop.trf.xlu0
    %v4925 = vpop.trf.xlu0
    %v4926 = vpop.trf.xlu0
    %v4927 = vpop.trf.xlu0
    %v4928 = vpop.trf.xlu0
    %v4929 = vpop.trf.xlu0
    %v4930 = vpop.trf.xlu0
    %4935 = vrot.lane.b32.xlu0 %v4915, 16
    %v4936 = vpop.permute.xlu0 %4935
    %4937 = vrot.lane.b32.xlu0 %v4916, 16
    %v4938 = vpop.permute.xlu0 %4937
    %4939 = vrot.lane.b32.xlu0 %v4917, 16
    %v4940 = vpop.permute.xlu0 %4939
    %4941 = vrot.lane.b32.xlu0 %v4918, 16
    %v4942 = vpop.permute.xlu0 %4941
    %4947 = vrot.lane.b32.xlu0 %v4915, 32
    %v4948 = vpop.permute.xlu0 %4947
    %4949 = vrot.lane.b32.xlu0 %v4916, 32
    %v4950 = vpop.permute.xlu0 %4949
    %4951 = vrot.lane.b32.xlu0 %v4917, 32
    %v4952 = vpop.permute.xlu0 %4951
    %4953 = vrot.lane.b32.xlu0 %v4918, 32
    %v4954 = vpop.permute.xlu0 %4953
    %4959 = vrot.lane.b32.xlu0 %v4915, 48
    %v4960 = vpop.permute.xlu0 %4959
    %4961 = vrot.lane.b32.xlu0 %v4916, 48
    %v4962 = vpop.permute.xlu0 %4961
    %4963 = vrot.lane.b32.xlu0 %v4917, 48
    %v4964 = vpop.permute.xlu0 %4963
    %4965 = vrot.lane.b32.xlu0 %v4918, 48
    %v4966 = vpop.permute.xlu0 %4965
    %4971 = vrot.lane.b32.xlu0 %v4915, 64
    %v4972 = vpop.permute.xlu0 %4971
    %4973 = vrot.lane.b32.xlu0 %v4916, 64
    %v4974 = vpop.permute.xlu0 %4973
    %4975 = vrot.lane.b32.xlu0 %v4917, 64
    %v4976 = vpop.permute.xlu0 %4975
    %4977 = vrot.lane.b32.xlu0 %v4918, 64
    %v4978 = vpop.permute.xlu0 %4977
    %4983 = vrot.lane.b32.xlu0 %v4915, 80
    %v4984 = vpop.permute.xlu0 %4983
    %4985 = vrot.lane.b32.xlu0 %v4916, 80
    %v4986 = vpop.permute.xlu0 %4985
    %4987 = vrot.lane.b32.xlu0 %v4917, 80
    %v4988 = vpop.permute.xlu0 %4987
    %4989 = vrot.lane.b32.xlu0 %v4918, 80
    %v4990 = vpop.permute.xlu0 %4989
    %4995 = vrot.lane.b32.xlu0 %v4915, 96
    %v4996 = vpop.permute.xlu0 %4995
    %4997 = vrot.lane.b32.xlu0 %v4916, 96
    %v4998 = vpop.permute.xlu0 %4997
    %4999 = vrot.lane.b32.xlu0 %v4917, 96
    %v5000 = vpop.permute.xlu0 %4999
    %5001 = vrot.lane.b32.xlu0 %v4918, 96
    %v5002 = vpop.permute.xlu0 %5001
    %5007 = vrot.lane.b32.xlu0 %v4915, 112
    %v5008 = vpop.permute.xlu0 %5007
    %5009 = vrot.lane.b32.xlu0 %v4916, 112
    %v5010 = vpop.permute.xlu0 %5009
    %5011 = vrot.lane.b32.xlu0 %v4917, 112
    %v5012 = vpop.permute.xlu0 %5011
    %5013 = vrot.lane.b32.xlu0 %v4918, 112
    %v5014 = vpop.permute.xlu0 %5013
    %v5019 = vsel %vm2242, %v4915, %v4936
    %v5020 = vsel %vm2242, %v4916, %v4938
    %v5021 = vsel %vm2242, %v4917, %v4940
    %v5022 = vsel %vm2242, %v4918, %v4942
    %v5023 = vsel %vm669, %v5019, %v4948
    %v5024 = vsel %vm669, %v5020, %v4950
    %v5025 = vsel %vm669, %v5021, %v4952
    %v5026 = vsel %vm669, %v5022, %v4954
    %v5027 = vsel %vm2251, %v5023, %v4960
    %v5028 = vsel %vm2251, %v5024, %v4962
    %v5029 = vsel %vm2251, %v5025, %v4964
    %v5030 = vsel %vm2251, %v5026, %v4966
    %v5031 = vsel %vm2256, %v5027, %v4972
    %v5032 = vsel %vm2256, %v5028, %v4974
    %v5033 = vsel %vm2256, %v5029, %v4976
    %v5034 = vsel %vm2256, %v5030, %v4978
    %v5035 = vsel %vm2261, %v5031, %v4984
    %v5036 = vsel %vm2261, %v5032, %v4986
    %v5037 = vsel %vm2261, %v5033, %v4988
    %v5038 = vsel %vm2261, %v5034, %v4990
    %v5039 = vsel %vm2266, %v5035, %v4996
    %v5040 = vsel %vm2266, %v5036, %v4998
    %v5041 = vsel %vm2266, %v5037, %v5000
    %v5042 = vsel %vm2266, %v5038, %v5002
    %v5043 = vsel %vm2271, %v5039, %v5008
    %v5044 = vsel %vm2271, %v5040, %v5010
    %v5045 = vsel %vm2271, %v5041, %v5012
    %v5046 = vsel %vm2271, %v5042, %v5014
    %v5047 = vsel %vm926, %v5043, 0.0
    %v5048 = vsel %vm927, %v5044, 0.0
    %v5049 = vsel %vm928, %v5045, 0.0
    %v5050 = vsel %vm929, %v5046, 0.0
    %5053 = vrot.lane.b32.xlu0 %v4893, 96
    %v5054 = vpop.permute.xlu0 %5053
    %5055 = vrot.lane.b32.xlu0 %v4895, 96
    %v5056 = vpop.permute.xlu0 %5055
    %v5059 = vsel %vm1672, %v5054, 0.0
    %v5060 = vsel %vm1673, %v5056, 0.0
    %v5061 = vsel %vm1674, %v5054, 0.0
    %v5062 = vsel %vm1675, %v5056, 0.0
    %v5063 = vsel %vm1676, %v5054, 0.0
    %v5064 = vsel %vm1677, %v5056, 0.0
    %v5065 = vsel %vm1678, %v5054, 0.0
    %v5066 = vsel %vm1679, %v5056, 0.0
    %v5067 = vsel %vm1680, %v5054, 0.0
    %v5068 = vsel %vm1681, %v5056, 0.0
    %v5069 = vsel %vm1682, %v5054, 0.0
    %v5070 = vsel %vm1683, %v5056, 0.0
    %v5071 = vsel %vm1684, %v5054, 0.0
    %v5072 = vsel %vm1685, %v5056, 0.0
    %v5073 = vsel %vm1686, %v5054, 0.0
    %v5074 = vsel %vm1687, %v5056, 0.0
    %v5075 = vpack.c.bf16 %v4898, %v4897
    %v5076 = vpack.c.bf16 %v5048, %v5047
    %v5077 = vpack.c.bf16 %v5050, %v5049
    %5080 = vrot.lane.b32.xlu0 %v746, 16
    %v5081 = vpop.permute.xlu0 %5080
    %5082 = vrot.lane.b32.xlu0 %v747, 16
    %v5083 = vpop.permute.xlu0 %5082
    %5086 = vrot.lane.b32.xlu0 %v746, 32
    %v5087 = vpop.permute.xlu0 %5086
    %5088 = vrot.lane.b32.xlu0 %v747, 32
    %v5089 = vpop.permute.xlu0 %5088
    %5092 = vrot.lane.b32.xlu0 %v746, 48
    %v5093 = vpop.permute.xlu0 %5092
    %5094 = vrot.lane.b32.xlu0 %v747, 48
    %v5095 = vpop.permute.xlu0 %5094
    %5098 = vrot.lane.b32.xlu0 %v746, 64
    %v5099 = vpop.permute.xlu0 %5098
    %5100 = vrot.lane.b32.xlu0 %v747, 64
    %v5101 = vpop.permute.xlu0 %5100
    %5104 = vrot.lane.b32.xlu0 %v746, 80
    %v5105 = vpop.permute.xlu0 %5104
    %5106 = vrot.lane.b32.xlu0 %v747, 80
    %v5107 = vpop.permute.xlu0 %5106
    %5110 = vrot.lane.b32.xlu0 %v746, 96
    %v5111 = vpop.permute.xlu0 %5110
    %5112 = vrot.lane.b32.xlu0 %v747, 96
    %v5113 = vpop.permute.xlu0 %5112
    %5116 = vrot.lane.b32.xlu0 %v746, 112
    %v5117 = vpop.permute.xlu0 %5116
    %5118 = vrot.lane.b32.xlu0 %v747, 112
    %v5119 = vpop.permute.xlu0 %5118
    %v5122 = vsel %vm2242, %v746, %v5081
    %v5123 = vsel %vm2242, %v747, %v5083
    %v5124 = vsel %vm669, %v5122, %v5087
    %v5125 = vsel %vm669, %v5123, %v5089
    %v5126 = vsel %vm2251, %v5124, %v5093
    %v5127 = vsel %vm2251, %v5125, %v5095
    %v5128 = vsel %vm2256, %v5126, %v5099
    %v5129 = vsel %vm2256, %v5127, %v5101
    %v5130 = vsel %vm2261, %v5128, %v5105
    %v5131 = vsel %vm2261, %v5129, %v5107
    %v5132 = vsel %vm2266, %v5130, %v5111
    %v5133 = vsel %vm2266, %v5131, %v5113
    %v5134 = vsel %vm2271, %v5132, %v5117
    %v5135 = vsel %vm2271, %v5133, %v5119
    %v5137 = vsel %vm669, %v5075, 0
    %5139 = vmatpush.bf16.msra.mxu0 0
    %5140 = vmatpush.bf16.msra.mxu0 0
    %5141 = vmatpush.bf16.msra.mxu0 0
    %5142 = vmatpush.bf16.msra.mxu0 0
    %5143 = vmatpush.bf16.msra.mxu0 0
    %5144 = vmatpush.bf16.msra.mxu0 0
    %5145 = vmatpush.bf16.msra.mxu0 %v5077
    %5146 = vmatpush.bf16.msra.mxu0 %v5076
    %5147 = vmatmul.bf16.gmra.mxu0 %v5137
    %v5148 = vpop.f32.mrf.mxu0
    %v5149 = vadd.f32 %v5134, %v5148
    %v5150 = vpop.f32.mrf.mxu0
    %v5151 = vadd.f32 %v5135, %v5150
    %5152 = vdwg.mxu0
    %5153 = vmax.xlane.f32.xlu0 %v5149
    %v5154 = vpop.xlane.xlu0 %5153
    %5155 = vmax.xlane.f32.xlu0 %v5151
    %v5156 = vpop.xlane.xlu0 %5155
    %v5157 = vsub.f32 %v5149, %v5154
    %v5158 = vsub.f32 %v5151, %v5156
    %v5159 = vmul.f32 %v5157, 1.442695
    %v5160 = vpow.pop %v5159
    %v5161 = vmul.f32 %v5158, 1.442695
    %v5162 = vpow.pop %v5161
    %5163 = vmatpush.msra.mxu0 %v2055
    %5164 = vmatpush.msra.mxu0 %v2054
    %5165 = vmatpush.msra.mxu0 %v2053
    %5166 = vmatpush.msra.mxu0 %v2052
    %5167 = vmatpush.msra.mxu0 %v2051
    %5168 = vmatpush.msra.mxu0 %v2050
    %5169 = vmatpush.msra.mxu0 %v2049
    %5170 = vmatpush.msra.mxu0 %v2048
    %5171 = vmatpush.msra.mxu0 %v2047
    %5172 = vmatpush.msra.mxu0 %v2046
    %5173 = vmatpush.msra.mxu0 %v2045
    %5174 = vmatpush.msra.mxu0 %v2044
    %5175 = vmatpush.msra.mxu0 %v2043
    %5176 = vmatpush.msra.mxu0 %v2042
    %5177 = vmatpush.msra.mxu0 %v2041
    %5178 = vmatpush.msra.mxu0 %v2040
    %5179 = vmatmul.f32.gmra.mxu0 %v5160
    %v5180 = vpop.f32.mrf.mxu0
    %v5181 = vadd.f32 0.0, %v5180
    %5182 = vmatmul.f32.gmra.mxu0 %v5162
    %v5183 = vpop.f32.mrf.mxu0
    %v5184 = vadd.f32 0.0, %v5183
    %5185 = vdwg.mxu0
    %v5186 = vrcp.pop %v5181
    %v5187 = vrcp.pop %v5184
    %v5188 = vmul.f32 %v5160, %v5186
    %v5189 = vmul.f32 %v5162, %v5187
    %v5190 = vpack.c.bf16 %v5189, %v5188
    %v5191 = vpack.c.bf16 %v5060, %v5059
    %v5192 = vpack.c.bf16 %v5062, %v5061
    %v5193 = vpack.c.bf16 %v5064, %v5063
    %v5194 = vpack.c.bf16 %v5066, %v5065
    %v5195 = vpack.c.bf16 %v5068, %v5067
    %v5196 = vpack.c.bf16 %v5070, %v5069
    %v5197 = vpack.c.bf16 %v5072, %v5071
    %v5198 = vpack.c.bf16 %v5074, %v5073
    %5199 = vmatpush.bf16.msra.mxu0 %v5198
    %5200 = vmatpush.bf16.msra.mxu0 %v5197
    %5201 = vmatpush.bf16.msra.mxu0 %v5196
    %5202 = vmatpush.bf16.msra.mxu0 %v5195
    %5203 = vmatpush.bf16.msra.mxu0 %v5194
    %5204 = vmatpush.bf16.msra.mxu0 %v5193
    %5205 = vmatpush.bf16.msra.mxu0 %v5192
    %5206 = vmatpush.bf16.msra.mxu0 %v5191
    %5207 = vmatmul.bf16.gmra.mxu0 %v5190
    %v5208 = vpop.f32.mrf.mxu0
    %v5209 = vadd.f32 0.0, %v5208
    %v5210 = vpop.f32.mrf.mxu0
    %v5211 = vadd.f32 0.0, %v5210
    %5212 = vdwg.mxu0
    %v5213 = vpack.c.bf16 %v5211, %v5209
    %v5214 = vld [vmem:[%s51] sm:$0xf]
    %v5215 = vld [vmem:[%s51 + $0x4] sm:$0xf]
    %v5216 = vld [vmem:[%s51 + $0x8] sm:$0xf]
    %v5217 = vld [vmem:[%s51 + $0xc] sm:$0xf]
    %v5218 = vld [vmem:[%s53] sm:$0x1]
    %v5220 = vperm.slane %v5218, 0
    %v5226 = vunpack.c.l.b16 %v5214
    %v5227 = vunpack.c.l.b16 %v5215
    %v5228 = vunpack.c.l.b16 %v5216
    %v5229 = vunpack.c.l.b16 %v5217
    %v5230 = vpack.c.b16 %v5227, %v5226
    %v5231 = vpack.c.b16 %v5229, %v5228
    %v5235 = vsel %vm669, %v5213, 0
    %5237 = vmatpush.bf16.msra.mxu0 0
    %5238 = vmatpush.bf16.msra.mxu0 0
    %5239 = vmatpush.bf16.msra.mxu0 0
    %5240 = vmatpush.bf16.msra.mxu0 0
    %5241 = vmatpush.bf16.msra.mxu0 0
    %5242 = vmatpush.bf16.msra.mxu0 0
    %5243 = vmatpush.bf16.msra.mxu0 %v5231
    %5244 = vmatpush.bf16.msra.mxu0 %v5230
    %5245 = vmatmul.bf16.gmra.mxu0 %v5235
    %v5246 = vpop.f32.mrf.mxu0
    %v5247 = vadd.f32 %v5220, %v5246
    %v5248 = vpop.f32.mrf.mxu0
    %v5249 = vadd.f32 %v5220, %v5248
    %5250 = vdwg.mxu0
    %v5251 = vadd.f32 %v4830, %v5247
    %v5252 = vadd.f32 %v4831, %v5249
    %v5253 = vsel %vm669, %v5251, 0.0
    %5254 = vadd.xlane.f32.xlu0 %v5253
    %v5255 = vpop.xlane.xlu0 %5254
    %v5256 = vsel %vm669, %v5252, 0.0
    %5257 = vadd.xlane.f32.xlu0 %v5256
    %v5258 = vpop.xlane.xlu0 %5257
    %v5259 = vmul.f32 %v5255, %v2494
    %v5260 = vmul.f32 %v5258, %v2494
    %v5261 = vsub.f32 %v5251, %v5259
    %v5262 = vsub.f32 %v5252, %v5260
    %v5263 = vmul.f32 %v5261, %v5261
    %v5264 = vmul.f32 %v5262, %v5262
    %v5265 = vsel %vm669, %v5263, 0.0
    %5266 = vadd.xlane.f32.xlu0 %v5265
    %v5267 = vpop.xlane.xlu0 %5266
    %v5268 = vsel %vm669, %v5264, 0.0
    %5269 = vadd.xlane.f32.xlu0 %v5268
    %v5270 = vpop.xlane.xlu0 %5269
    %v5271 = vmul.f32 %v5267, %v2494
    %v5272 = vmul.f32 %v5270, %v2494
    %v5273 = vadd.f32 %v5271, 1e-05
    %v5274 = vadd.f32 %v5272, 1e-05
    %v5275 = vrsqrt.pop %v5273
    %v5276 = vmul.f32 %v5275, %v5273
    %v5277 = vmul.f32 %v5276, %v5275
    %v5278 = vmul.f32 0.5, %v5277
    %v5279 = vsub.f32 1.5, %v5278
    %v5280 = vmul.f32 %v5275, %v5279
    %vm5281 = vweird.f32 %v5273
    %vm5282 = vweird.f32 %v5275
    %vm5283 = vmor %vm5281, %vm5282
    %v5284 = vsel %vm5283, %v5275, %v5280
    %v5285 = vrsqrt.pop %v5274
    %v5286 = vmul.f32 %v5285, %v5274
    %v5287 = vmul.f32 %v5286, %v5285
    %v5288 = vmul.f32 0.5, %v5287
    %v5289 = vsub.f32 1.5, %v5288
    %v5290 = vmul.f32 %v5285, %v5289
    %vm5291 = vweird.f32 %v5274
    %vm5292 = vweird.f32 %v5285
    %vm5293 = vmor %vm5291, %vm5292
    %v5294 = vsel %vm5293, %v5285, %v5290
    %v5295 = vmul.f32 %v5261, %v5284
    %v5296 = vmul.f32 %v5262, %v5294
    %v5297 = vld [vmem:[%s67] sm:$0x1]
    %v5299 = vperm.slane %v5297, 0
    %v5301 = vmul.f32 %v5295, %v5299
    %v5302 = vmul.f32 %v5296, %v5299
    %v5303 = vld [vmem:[%s69] sm:$0x1]
    %v5305 = vperm.slane %v5303, 0
    %v5307 = vadd.f32 %v5301, %v5305
    %v5308 = vadd.f32 %v5302, %v5305
    %v5309 = vpack.c.bf16 %v5308, %v5307
    %v5310 = vld [vmem:[%s55] sm:$0xff]
    %v5311 = vld [vmem:[%s55 + $0x8] sm:$0xff]
    %v5312 = vld [vmem:[%s55 + $0x10] sm:$0xff]
    %v5313 = vld [vmem:[%s55 + $0x18] sm:$0xff]
    %v5314 = vld [vmem:[%s55 + $0x20] sm:$0xff]
    %v5315 = vld [vmem:[%s55 + $0x28] sm:$0xff]
    %v5316 = vld [vmem:[%s55 + $0x30] sm:$0xff]
    %v5317 = vld [vmem:[%s55 + $0x38] sm:$0xff]
    %v5318 = vld [vmem:[%s55 + $0x40] sm:$0xff]
    %v5319 = vld [vmem:[%s55 + $0x48] sm:$0xff]
    %v5320 = vld [vmem:[%s55 + $0x50] sm:$0xff]
    %v5321 = vld [vmem:[%s55 + $0x58] sm:$0xff]
    %v5322 = vld [vmem:[%s55 + $0x60] sm:$0xff]
    %v5323 = vld [vmem:[%s55 + $0x68] sm:$0xff]
    %v5324 = vld [vmem:[%s55 + $0x70] sm:$0xff]
    %v5325 = vld [vmem:[%s55 + $0x78] sm:$0xff]
    %v5326 = vld [vmem:[%s55 + $0x80] sm:$0xff]
    %v5327 = vld [vmem:[%s55 + $0x88] sm:$0xff]
    %v5328 = vld [vmem:[%s55 + $0x90] sm:$0xff]
    %v5329 = vld [vmem:[%s55 + $0x98] sm:$0xff]
    %v5330 = vld [vmem:[%s55 + $0xa0] sm:$0xff]
    %v5331 = vld [vmem:[%s55 + $0xa8] sm:$0xff]
    %v5332 = vld [vmem:[%s55 + $0xb0] sm:$0xff]
    %v5333 = vld [vmem:[%s55 + $0xb8] sm:$0xff]
    %v5334 = vld [vmem:[%s55 + $0xc0] sm:$0xff]
    %v5335 = vld [vmem:[%s55 + $0xc8] sm:$0xff]
    %v5336 = vld [vmem:[%s55 + $0xd0] sm:$0xff]
    %v5337 = vld [vmem:[%s55 + $0xd8] sm:$0xff]
    %v5338 = vld [vmem:[%s55 + $0xe0] sm:$0xff]
    %v5339 = vld [vmem:[%s55 + $0xe8] sm:$0xff]
    %v5340 = vld [vmem:[%s55 + $0xf0] sm:$0xff]
    %v5341 = vld [vmem:[%s55 + $0xf8] sm:$0xff]
    %v5342 = vld [vmem:[%s57] sm:$0xff]
    %v5343 = vld [vmem:[%s57 + $0x8] sm:$0xff]
    %v5346 = vperm.slane %v5342, 0
    %v5347 = vperm.slane %v5342, 1
    %v5348 = vperm.slane %v5342, 2
    %v5349 = vperm.slane %v5342, 3
    %v5350 = vperm.slane %v5342, 4
    %v5351 = vperm.slane %v5342, 5
    %v5352 = vperm.slane %v5342, 6
    %v5353 = vperm.slane %v5342, 7
    %v5354 = vperm.slane %v5343, 0
    %v5355 = vperm.slane %v5343, 1
    %v5356 = vperm.slane %v5343, 2
    %v5357 = vperm.slane %v5343, 3
    %v5358 = vperm.slane %v5343, 4
    %v5359 = vperm.slane %v5343, 5
    %v5360 = vperm.slane %v5343, 6
    %v5361 = vperm.slane %v5343, 7
    %v5410 = vunpack.c.l.b16 %v5310
    %v5411 = vunpack.c.h.b16 %v5310
    %v5412 = vunpack.c.l.b16 %v5311
    %v5413 = vunpack.c.h.b16 %v5311
    %v5414 = vunpack.c.l.b16 %v5312
    %v5415 = vunpack.c.h.b16 %v5312
    %v5416 = vunpack.c.l.b16 %v5313
    %v5417 = vunpack.c.h.b16 %v5313
    %v5418 = vunpack.c.l.b16 %v5314
    %v5419 = vunpack.c.h.b16 %v5314
    %v5420 = vunpack.c.l.b16 %v5315
    %v5421 = vunpack.c.h.b16 %v5315
    %v5422 = vunpack.c.l.b16 %v5316
    %v5423 = vunpack.c.h.b16 %v5316
    %v5424 = vunpack.c.l.b16 %v5317
    %v5425 = vunpack.c.h.b16 %v5317
    %v5426 = vunpack.c.l.b16 %v5318
    %v5427 = vunpack.c.h.b16 %v5318
    %v5428 = vunpack.c.l.b16 %v5319
    %v5429 = vunpack.c.h.b16 %v5319
    %v5430 = vunpack.c.l.b16 %v5320
    %v5431 = vunpack.c.h.b16 %v5320
    %v5432 = vunpack.c.l.b16 %v5321
    %v5433 = vunpack.c.h.b16 %v5321
    %v5434 = vunpack.c.l.b16 %v5322
    %v5435 = vunpack.c.h.b16 %v5322
    %v5436 = vunpack.c.l.b16 %v5323
    %v5437 = vunpack.c.h.b16 %v5323
    %v5438 = vunpack.c.l.b16 %v5324
    %v5439 = vunpack.c.h.b16 %v5324
    %v5440 = vunpack.c.l.b16 %v5325
    %v5441 = vunpack.c.h.b16 %v5325
    %v5442 = vunpack.c.l.b16 %v5326
    %v5443 = vunpack.c.h.b16 %v5326
    %v5444 = vunpack.c.l.b16 %v5327
    %v5445 = vunpack.c.h.b16 %v5327
    %v5446 = vunpack.c.l.b16 %v5328
    %v5447 = vunpack.c.h.b16 %v5328
    %v5448 = vunpack.c.l.b16 %v5329
    %v5449 = vunpack.c.h.b16 %v5329
    %v5450 = vunpack.c.l.b16 %v5330
    %v5451 = vunpack.c.h.b16 %v5330
    %v5452 = vunpack.c.l.b16 %v5331
    %v5453 = vunpack.c.h.b16 %v5331
    %v5454 = vunpack.c.l.b16 %v5332
    %v5455 = vunpack.c.h.b16 %v5332
    %v5456 = vunpack.c.l.b16 %v5333
    %v5457 = vunpack.c.h.b16 %v5333
    %v5458 = vunpack.c.l.b16 %v5334
    %v5459 = vunpack.c.h.b16 %v5334
    %v5460 = vunpack.c.l.b16 %v5335
    %v5461 = vunpack.c.h.b16 %v5335
    %v5462 = vunpack.c.l.b16 %v5336
    %v5463 = vunpack.c.h.b16 %v5336
    %v5464 = vunpack.c.l.b16 %v5337
    %v5465 = vunpack.c.h.b16 %v5337
    %v5466 = vunpack.c.l.b16 %v5338
    %v5467 = vunpack.c.h.b16 %v5338
    %v5468 = vunpack.c.l.b16 %v5339
    %v5469 = vunpack.c.h.b16 %v5339
    %v5470 = vunpack.c.l.b16 %v5340
    %v5471 = vunpack.c.h.b16 %v5340
    %v5472 = vunpack.c.l.b16 %v5341
    %v5473 = vunpack.c.h.b16 %v5341
    %v5474 = vpack.c.b16 %v5426, %v5410
    %v5475 = vpack.c.b16 %v5427, %v5411
    %v5476 = vpack.c.b16 %v5428, %v5412
    %v5477 = vpack.c.b16 %v5429, %v5413
    %v5478 = vpack.c.b16 %v5430, %v5414
    %v5479 = vpack.c.b16 %v5431, %v5415
    %v5480 = vpack.c.b16 %v5432, %v5416
    %v5481 = vpack.c.b16 %v5433, %v5417
    %v5482 = vpack.c.b16 %v5434, %v5418
    %v5483 = vpack.c.b16 %v5435, %v5419
    %v5484 = vpack.c.b16 %v5436, %v5420
    %v5485 = vpack.c.b16 %v5437, %v5421
    %v5486 = vpack.c.b16 %v5438, %v5422
    %v5487 = vpack.c.b16 %v5439, %v5423
    %v5488 = vpack.c.b16 %v5440, %v5424
    %v5489 = vpack.c.b16 %v5441, %v5425
    %v5490 = vpack.c.b16 %v5458, %v5442
    %v5491 = vpack.c.b16 %v5459, %v5443
    %v5492 = vpack.c.b16 %v5460, %v5444
    %v5493 = vpack.c.b16 %v5461, %v5445
    %v5494 = vpack.c.b16 %v5462, %v5446
    %v5495 = vpack.c.b16 %v5463, %v5447
    %v5496 = vpack.c.b16 %v5464, %v5448
    %v5497 = vpack.c.b16 %v5465, %v5449
    %v5498 = vpack.c.b16 %v5466, %v5450
    %v5499 = vpack.c.b16 %v5467, %v5451
    %v5500 = vpack.c.b16 %v5468, %v5452
    %v5501 = vpack.c.b16 %v5469, %v5453
    %v5502 = vpack.c.b16 %v5470, %v5454
    %v5503 = vpack.c.b16 %v5471, %v5455
    %v5504 = vpack.c.b16 %v5472, %v5456
    %v5505 = vpack.c.b16 %v5473, %v5457
    %v5539 = vsel %vm669, %v5309, 0
    %5541 = vmatpush.bf16.msra.mxu0 0
    %5542 = vmatpush.bf16.msra.mxu0 0
    %5543 = vmatpush.bf16.msra.mxu0 0
    %5544 = vmatpush.bf16.msra.mxu0 0
    %5545 = vmatpush.bf16.msra.mxu0 0
    %5546 = vmatpush.bf16.msra.mxu0 0
    %5547 = vmatpush.bf16.msra.mxu0 %v5490
    %5548 = vmatpush.bf16.msra.mxu0 %v5474
    %5549 = vmatmul.bf16.gmra.mxu0 %v5539
    %v5550 = vpop.f32.mrf.mxu0
    %v5551 = vadd.f32 %v5346, %v5550
    %v5552 = vpop.f32.mrf.mxu0
    %v5553 = vadd.f32 %v5346, %v5552
    %5554 = vdwg.mxu0
    %5555 = vmatpush.bf16.msra.mxu0 0
    %5556 = vmatpush.bf16.msra.mxu0 0
    %5557 = vmatpush.bf16.msra.mxu0 0
    %5558 = vmatpush.bf16.msra.mxu0 0
    %5559 = vmatpush.bf16.msra.mxu0 0
    %5560 = vmatpush.bf16.msra.mxu0 0
    %5561 = vmatpush.bf16.msra.mxu0 %v5491
    %5562 = vmatpush.bf16.msra.mxu0 %v5475
    %5563 = vmatmul.bf16.gmra.mxu0 %v5539
    %v5564 = vpop.f32.mrf.mxu0
    %v5565 = vadd.f32 %v5347, %v5564
    %v5566 = vpop.f32.mrf.mxu0
    %v5567 = vadd.f32 %v5347, %v5566
    %5568 = vdwg.mxu0
    %5569 = vmatpush.bf16.msra.mxu0 0
    %5570 = vmatpush.bf16.msra.mxu0 0
    %5571 = vmatpush.bf16.msra.mxu0 0
    %5572 = vmatpush.bf16.msra.mxu0 0
    %5573 = vmatpush.bf16.msra.mxu0 0
    %5574 = vmatpush.bf16.msra.mxu0 0
    %5575 = vmatpush.bf16.msra.mxu0 %v5492
    %5576 = vmatpush.bf16.msra.mxu0 %v5476
    %5577 = vmatmul.bf16.gmra.mxu0 %v5539
    %v5578 = vpop.f32.mrf.mxu0
    %v5579 = vadd.f32 %v5348, %v5578
    %v5580 = vpop.f32.mrf.mxu0
    %v5581 = vadd.f32 %v5348, %v5580
    %5582 = vdwg.mxu0
    %5583 = vmatpush.bf16.msra.mxu0 0
    %5584 = vmatpush.bf16.msra.mxu0 0
    %5585 = vmatpush.bf16.msra.mxu0 0
    %5586 = vmatpush.bf16.msra.mxu0 0
    %5587 = vmatpush.bf16.msra.mxu0 0
    %5588 = vmatpush.bf16.msra.mxu0 0
    %5589 = vmatpush.bf16.msra.mxu0 %v5493
    %5590 = vmatpush.bf16.msra.mxu0 %v5477
    %5591 = vmatmul.bf16.gmra.mxu0 %v5539
    %v5592 = vpop.f32.mrf.mxu0
    %v5593 = vadd.f32 %v5349, %v5592
    %v5594 = vpop.f32.mrf.mxu0
    %v5595 = vadd.f32 %v5349, %v5594
    %5596 = vdwg.mxu0
    %5597 = vmatpush.bf16.msra.mxu0 0
    %5598 = vmatpush.bf16.msra.mxu0 0
    %5599 = vmatpush.bf16.msra.mxu0 0
    %5600 = vmatpush.bf16.msra.mxu0 0
    %5601 = vmatpush.bf16.msra.mxu0 0
    %5602 = vmatpush.bf16.msra.mxu0 0
    %5603 = vmatpush.bf16.msra.mxu0 %v5494
    %5604 = vmatpush.bf16.msra.mxu0 %v5478
    %5605 = vmatmul.bf16.gmra.mxu0 %v5539
    %v5606 = vpop.f32.mrf.mxu0
    %v5607 = vadd.f32 %v5350, %v5606
    %v5608 = vpop.f32.mrf.mxu0
    %v5609 = vadd.f32 %v5350, %v5608
    %5610 = vdwg.mxu0
    %5611 = vmatpush.bf16.msra.mxu0 0
    %5612 = vmatpush.bf16.msra.mxu0 0
    %5613 = vmatpush.bf16.msra.mxu0 0
    %5614 = vmatpush.bf16.msra.mxu0 0
    %5615 = vmatpush.bf16.msra.mxu0 0
    %5616 = vmatpush.bf16.msra.mxu0 0
    %5617 = vmatpush.bf16.msra.mxu0 %v5495
    %5618 = vmatpush.bf16.msra.mxu0 %v5479
    %5619 = vmatmul.bf16.gmra.mxu0 %v5539
    %v5620 = vpop.f32.mrf.mxu0
    %v5621 = vadd.f32 %v5351, %v5620
    %v5622 = vpop.f32.mrf.mxu0
    %v5623 = vadd.f32 %v5351, %v5622
    %5624 = vdwg.mxu0
    %5625 = vmatpush.bf16.msra.mxu0 0
    %5626 = vmatpush.bf16.msra.mxu0 0
    %5627 = vmatpush.bf16.msra.mxu0 0
    %5628 = vmatpush.bf16.msra.mxu0 0
    %5629 = vmatpush.bf16.msra.mxu0 0
    %5630 = vmatpush.bf16.msra.mxu0 0
    %5631 = vmatpush.bf16.msra.mxu0 %v5496
    %5632 = vmatpush.bf16.msra.mxu0 %v5480
    %5633 = vmatmul.bf16.gmra.mxu0 %v5539
    %v5634 = vpop.f32.mrf.mxu0
    %v5635 = vadd.f32 %v5352, %v5634
    %v5636 = vpop.f32.mrf.mxu0
    %v5637 = vadd.f32 %v5352, %v5636
    %5638 = vdwg.mxu0
    %5639 = vmatpush.bf16.msra.mxu0 0
    %5640 = vmatpush.bf16.msra.mxu0 0
    %5641 = vmatpush.bf16.msra.mxu0 0
    %5642 = vmatpush.bf16.msra.mxu0 0
    %5643 = vmatpush.bf16.msra.mxu0 0
    %5644 = vmatpush.bf16.msra.mxu0 0
    %5645 = vmatpush.bf16.msra.mxu0 %v5497
    %5646 = vmatpush.bf16.msra.mxu0 %v5481
    %5647 = vmatmul.bf16.gmra.mxu0 %v5539
    %v5648 = vpop.f32.mrf.mxu0
    %v5649 = vadd.f32 %v5353, %v5648
    %v5650 = vpop.f32.mrf.mxu0
    %v5651 = vadd.f32 %v5353, %v5650
    %5652 = vdwg.mxu0
    %5653 = vmatpush.bf16.msra.mxu0 0
    %5654 = vmatpush.bf16.msra.mxu0 0
    %5655 = vmatpush.bf16.msra.mxu0 0
    %5656 = vmatpush.bf16.msra.mxu0 0
    %5657 = vmatpush.bf16.msra.mxu0 0
    %5658 = vmatpush.bf16.msra.mxu0 0
    %5659 = vmatpush.bf16.msra.mxu0 %v5498
    %5660 = vmatpush.bf16.msra.mxu0 %v5482
    %5661 = vmatmul.bf16.gmra.mxu0 %v5539
    %v5662 = vpop.f32.mrf.mxu0
    %v5663 = vadd.f32 %v5354, %v5662
    %v5664 = vpop.f32.mrf.mxu0
    %v5665 = vadd.f32 %v5354, %v5664
    %5666 = vdwg.mxu0
    %5667 = vmatpush.bf16.msra.mxu0 0
    %5668 = vmatpush.bf16.msra.mxu0 0
    %5669 = vmatpush.bf16.msra.mxu0 0
    %5670 = vmatpush.bf16.msra.mxu0 0
    %5671 = vmatpush.bf16.msra.mxu0 0
    %5672 = vmatpush.bf16.msra.mxu0 0
    %5673 = vmatpush.bf16.msra.mxu0 %v5499
    %5674 = vmatpush.bf16.msra.mxu0 %v5483
    %5675 = vmatmul.bf16.gmra.mxu0 %v5539
    %v5676 = vpop.f32.mrf.mxu0
    %v5677 = vadd.f32 %v5355, %v5676
    %v5678 = vpop.f32.mrf.mxu0
    %v5679 = vadd.f32 %v5355, %v5678
    %5680 = vdwg.mxu0
    %5681 = vmatpush.bf16.msra.mxu0 0
    %5682 = vmatpush.bf16.msra.mxu0 0
    %5683 = vmatpush.bf16.msra.mxu0 0
    %5684 = vmatpush.bf16.msra.mxu0 0
    %5685 = vmatpush.bf16.msra.mxu0 0
    %5686 = vmatpush.bf16.msra.mxu0 0
    %5687 = vmatpush.bf16.msra.mxu0 %v5500
    %5688 = vmatpush.bf16.msra.mxu0 %v5484
    %5689 = vmatmul.bf16.gmra.mxu0 %v5539
    %v5690 = vpop.f32.mrf.mxu0
    %v5691 = vadd.f32 %v5356, %v5690
    %v5692 = vpop.f32.mrf.mxu0
    %v5693 = vadd.f32 %v5356, %v5692
    %5694 = vdwg.mxu0
    %5695 = vmatpush.bf16.msra.mxu0 0
    %5696 = vmatpush.bf16.msra.mxu0 0
    %5697 = vmatpush.bf16.msra.mxu0 0
    %5698 = vmatpush.bf16.msra.mxu0 0
    %5699 = vmatpush.bf16.msra.mxu0 0
    %5700 = vmatpush.bf16.msra.mxu0 0
    %5701 = vmatpush.bf16.msra.mxu0 %v5501
    %5702 = vmatpush.bf16.msra.mxu0 %v5485
    %5703 = vmatmul.bf16.gmra.mxu0 %v5539
    %v5704 = vpop.f32.mrf.mxu0
    %v5705 = vadd.f32 %v5357, %v5704
    %v5706 = vpop.f32.mrf.mxu0
    %v5707 = vadd.f32 %v5357, %v5706
    %5708 = vdwg.mxu0
    %5709 = vmatpush.bf16.msra.mxu0 0
    %5710 = vmatpush.bf16.msra.mxu0 0
    %5711 = vmatpush.bf16.msra.mxu0 0
    %5712 = vmatpush.bf16.msra.mxu0 0
    %5713 = vmatpush.bf16.msra.mxu0 0
    %5714 = vmatpush.bf16.msra.mxu0 0
    %5715 = vmatpush.bf16.msra.mxu0 %v5502
    %5716 = vmatpush.bf16.msra.mxu0 %v5486
    %5717 = vmatmul.bf16.gmra.mxu0 %v5539
    %v5718 = vpop.f32.mrf.mxu0
    %v5719 = vadd.f32 %v5358, %v5718
    %v5720 = vpop.f32.mrf.mxu0
    %v5721 = vadd.f32 %v5358, %v5720
    %5722 = vdwg.mxu0
    %5723 = vmatpush.bf16.msra.mxu0 0
    %5724 = vmatpush.bf16.msra.mxu0 0
    %5725 = vmatpush.bf16.msra.mxu0 0
    %5726 = vmatpush.bf16.msra.mxu0 0
    %5727 = vmatpush.bf16.msra.mxu0 0
    %5728 = vmatpush.bf16.msra.mxu0 0
    %5729 = vmatpush.bf16.msra.mxu0 %v5503
    %5730 = vmatpush.bf16.msra.mxu0 %v5487
    %5731 = vmatmul.bf16.gmra.mxu0 %v5539
    %v5732 = vpop.f32.mrf.mxu0
    %v5733 = vadd.f32 %v5359, %v5732
    %v5734 = vpop.f32.mrf.mxu0
    %v5735 = vadd.f32 %v5359, %v5734
    %5736 = vdwg.mxu0
    %5737 = vmatpush.bf16.msra.mxu0 0
    %5738 = vmatpush.bf16.msra.mxu0 0
    %5739 = vmatpush.bf16.msra.mxu0 0
    %5740 = vmatpush.bf16.msra.mxu0 0
    %5741 = vmatpush.bf16.msra.mxu0 0
    %5742 = vmatpush.bf16.msra.mxu0 0
    %5743 = vmatpush.bf16.msra.mxu0 %v5504
    %5744 = vmatpush.bf16.msra.mxu0 %v5488
    %5745 = vmatmul.bf16.gmra.mxu0 %v5539
    %v5746 = vpop.f32.mrf.mxu0
    %v5747 = vadd.f32 %v5360, %v5746
    %v5748 = vpop.f32.mrf.mxu0
    %v5749 = vadd.f32 %v5360, %v5748
    %5750 = vdwg.mxu0
    %5751 = vmatpush.bf16.msra.mxu0 0
    %5752 = vmatpush.bf16.msra.mxu0 0
    %5753 = vmatpush.bf16.msra.mxu0 0
    %5754 = vmatpush.bf16.msra.mxu0 0
    %5755 = vmatpush.bf16.msra.mxu0 0
    %5756 = vmatpush.bf16.msra.mxu0 0
    %5757 = vmatpush.bf16.msra.mxu0 %v5505
    %5758 = vmatpush.bf16.msra.mxu0 %v5489
    %5759 = vmatmul.bf16.gmra.mxu0 %v5539
    %v5760 = vpop.f32.mrf.mxu0
    %v5761 = vadd.f32 %v5361, %v5760
    %v5762 = vpop.f32.mrf.mxu0
    %v5763 = vadd.f32 %v5361, %v5762
    %5764 = vdwg.mxu0
    %v5765 = vmax.f32 %v5551, 0.0
    %v5766 = vmax.f32 %v5565, 0.0
    %v5767 = vmax.f32 %v5579, 0.0
    %v5768 = vmax.f32 %v5593, 0.0
    %v5769 = vmax.f32 %v5607, 0.0
    %v5770 = vmax.f32 %v5621, 0.0
    %v5771 = vmax.f32 %v5635, 0.0
    %v5772 = vmax.f32 %v5649, 0.0
    %v5773 = vmax.f32 %v5663, 0.0
    %v5774 = vmax.f32 %v5677, 0.0
    %v5775 = vmax.f32 %v5691, 0.0
    %v5776 = vmax.f32 %v5705, 0.0
    %v5777 = vmax.f32 %v5719, 0.0
    %v5778 = vmax.f32 %v5733, 0.0
    %v5779 = vmax.f32 %v5747, 0.0
    %v5780 = vmax.f32 %v5761, 0.0
    %v5781 = vmax.f32 %v5553, 0.0
    %v5782 = vmax.f32 %v5567, 0.0
    %v5783 = vmax.f32 %v5581, 0.0
    %v5784 = vmax.f32 %v5595, 0.0
    %v5785 = vmax.f32 %v5609, 0.0
    %v5786 = vmax.f32 %v5623, 0.0
    %v5787 = vmax.f32 %v5637, 0.0
    %v5788 = vmax.f32 %v5651, 0.0
    %v5789 = vmax.f32 %v5665, 0.0
    %v5790 = vmax.f32 %v5679, 0.0
    %v5791 = vmax.f32 %v5693, 0.0
    %v5792 = vmax.f32 %v5707, 0.0
    %v5793 = vmax.f32 %v5721, 0.0
    %v5794 = vmax.f32 %v5735, 0.0
    %v5795 = vmax.f32 %v5749, 0.0
    %v5796 = vmax.f32 %v5763, 0.0
    %v5797 = vpack.c.bf16 %v5781, %v5765
    %v5798 = vpack.c.bf16 %v5782, %v5766
    %v5799 = vpack.c.bf16 %v5783, %v5767
    %v5800 = vpack.c.bf16 %v5784, %v5768
    %v5801 = vpack.c.bf16 %v5785, %v5769
    %v5802 = vpack.c.bf16 %v5786, %v5770
    %v5803 = vpack.c.bf16 %v5787, %v5771
    %v5804 = vpack.c.bf16 %v5788, %v5772
    %v5805 = vpack.c.bf16 %v5789, %v5773
    %v5806 = vpack.c.bf16 %v5790, %v5774
    %v5807 = vpack.c.bf16 %v5791, %v5775
    %v5808 = vpack.c.bf16 %v5792, %v5776
    %v5809 = vpack.c.bf16 %v5793, %v5777
    %v5810 = vpack.c.bf16 %v5794, %v5778
    %v5811 = vpack.c.bf16 %v5795, %v5779
    %v5812 = vpack.c.bf16 %v5796, %v5780
    %v5813 = vld [vmem:[%s59] sm:$0xf]
    %v5814 = vld [vmem:[%s59 + $0x4] sm:$0xf]
    %v5815 = vld [vmem:[%s59 + $0x8] sm:$0xf]
    %v5816 = vld [vmem:[%s59 + $0xc] sm:$0xf]
    %v5817 = vld [vmem:[%s59 + $0x10] sm:$0xf]
    %v5818 = vld [vmem:[%s59 + $0x14] sm:$0xf]
    %v5819 = vld [vmem:[%s59 + $0x18] sm:$0xf]
    %v5820 = vld [vmem:[%s59 + $0x1c] sm:$0xf]
    %v5821 = vld [vmem:[%s59 + $0x20] sm:$0xf]
    %v5822 = vld [vmem:[%s59 + $0x24] sm:$0xf]
    %v5823 = vld [vmem:[%s59 + $0x28] sm:$0xf]
    %v5824 = vld [vmem:[%s59 + $0x2c] sm:$0xf]
    %v5825 = vld [vmem:[%s59 + $0x30] sm:$0xf]
    %v5826 = vld [vmem:[%s59 + $0x34] sm:$0xf]
    %v5827 = vld [vmem:[%s59 + $0x38] sm:$0xf]
    %v5828 = vld [vmem:[%s59 + $0x3c] sm:$0xf]
    %v5829 = vld [vmem:[%s59 + $0x40] sm:$0xf]
    %v5830 = vld [vmem:[%s59 + $0x44] sm:$0xf]
    %v5831 = vld [vmem:[%s59 + $0x48] sm:$0xf]
    %v5832 = vld [vmem:[%s59 + $0x4c] sm:$0xf]
    %v5833 = vld [vmem:[%s59 + $0x50] sm:$0xf]
    %v5834 = vld [vmem:[%s59 + $0x54] sm:$0xf]
    %v5835 = vld [vmem:[%s59 + $0x58] sm:$0xf]
    %v5836 = vld [vmem:[%s59 + $0x5c] sm:$0xf]
    %v5837 = vld [vmem:[%s59 + $0x60] sm:$0xf]
    %v5838 = vld [vmem:[%s59 + $0x64] sm:$0xf]
    %v5839 = vld [vmem:[%s59 + $0x68] sm:$0xf]
    %v5840 = vld [vmem:[%s59 + $0x6c] sm:$0xf]
    %v5841 = vld [vmem:[%s59 + $0x70] sm:$0xf]
    %v5842 = vld [vmem:[%s59 + $0x74] sm:$0xf]
    %v5843 = vld [vmem:[%s59 + $0x78] sm:$0xf]
    %v5844 = vld [vmem:[%s59 + $0x7c] sm:$0xf]
    %v5845 = vld [vmem:[%s59 + $0x80] sm:$0xf]
    %v5846 = vld [vmem:[%s59 + $0x84] sm:$0xf]
    %v5847 = vld [vmem:[%s59 + $0x88] sm:$0xf]
    %v5848 = vld [vmem:[%s59 + $0x8c] sm:$0xf]
    %v5849 = vld [vmem:[%s59 + $0x90] sm:$0xf]
    %v5850 = vld [vmem:[%s59 + $0x94] sm:$0xf]
    %v5851 = vld [vmem:[%s59 + $0x98] sm:$0xf]
    %v5852 = vld [vmem:[%s59 + $0x9c] sm:$0xf]
    %v5853 = vld [vmem:[%s59 + $0xa0] sm:$0xf]
    %v5854 = vld [vmem:[%s59 + $0xa4] sm:$0xf]
    %v5855 = vld [vmem:[%s59 + $0xa8] sm:$0xf]
    %v5856 = vld [vmem:[%s59 + $0xac] sm:$0xf]
    %v5857 = vld [vmem:[%s59 + $0xb0] sm:$0xf]
    %v5858 = vld [vmem:[%s59 + $0xb4] sm:$0xf]
    %v5859 = vld [vmem:[%s59 + $0xb8] sm:$0xf]
    %v5860 = vld [vmem:[%s59 + $0xbc] sm:$0xf]
    %v5861 = vld [vmem:[%s59 + $0xc0] sm:$0xf]
    %v5862 = vld [vmem:[%s59 + $0xc4] sm:$0xf]
    %v5863 = vld [vmem:[%s59 + $0xc8] sm:$0xf]
    %v5864 = vld [vmem:[%s59 + $0xcc] sm:$0xf]
    %v5865 = vld [vmem:[%s59 + $0xd0] sm:$0xf]
    %v5866 = vld [vmem:[%s59 + $0xd4] sm:$0xf]
    %v5867 = vld [vmem:[%s59 + $0xd8] sm:$0xf]
    %v5868 = vld [vmem:[%s59 + $0xdc] sm:$0xf]
    %v5869 = vld [vmem:[%s59 + $0xe0] sm:$0xf]
    %v5870 = vld [vmem:[%s59 + $0xe4] sm:$0xf]
    %v5871 = vld [vmem:[%s59 + $0xe8] sm:$0xf]
    %v5872 = vld [vmem:[%s59 + $0xec] sm:$0xf]
    %v5873 = vld [vmem:[%s59 + $0xf0] sm:$0xf]
    %v5874 = vld [vmem:[%s59 + $0xf4] sm:$0xf]
    %v5875 = vld [vmem:[%s59 + $0xf8] sm:$0xf]
    %v5876 = vld [vmem:[%s59 + $0xfc] sm:$0xf]
    %v5877 = vld [vmem:[%s59 + $0x100] sm:$0xf]
    %v5878 = vld [vmem:[%s59 + $0x104] sm:$0xf]
    %v5879 = vld [vmem:[%s59 + $0x108] sm:$0xf]
    %v5880 = vld [vmem:[%s59 + $0x10c] sm:$0xf]
    %v5881 = vld [vmem:[%s59 + $0x110] sm:$0xf]
    %v5882 = vld [vmem:[%s59 + $0x114] sm:$0xf]
    %v5883 = vld [vmem:[%s59 + $0x118] sm:$0xf]
    %v5884 = vld [vmem:[%s59 + $0x11c] sm:$0xf]
    %v5885 = vld [vmem:[%s59 + $0x120] sm:$0xf]
    %v5886 = vld [vmem:[%s59 + $0x124] sm:$0xf]
    %v5887 = vld [vmem:[%s59 + $0x128] sm:$0xf]
    %v5888 = vld [vmem:[%s59 + $0x12c] sm:$0xf]
    %v5889 = vld [vmem:[%s59 + $0x130] sm:$0xf]
    %v5890 = vld [vmem:[%s59 + $0x134] sm:$0xf]
    %v5891 = vld [vmem:[%s59 + $0x138] sm:$0xf]
    %v5892 = vld [vmem:[%s59 + $0x13c] sm:$0xf]
    %v5893 = vld [vmem:[%s59 + $0x140] sm:$0xf]
    %v5894 = vld [vmem:[%s59 + $0x144] sm:$0xf]
    %v5895 = vld [vmem:[%s59 + $0x148] sm:$0xf]
    %v5896 = vld [vmem:[%s59 + $0x14c] sm:$0xf]
    %v5897 = vld [vmem:[%s59 + $0x150] sm:$0xf]
    %v5898 = vld [vmem:[%s59 + $0x154] sm:$0xf]
    %v5899 = vld [vmem:[%s59 + $0x158] sm:$0xf]
    %v5900 = vld [vmem:[%s59 + $0x15c] sm:$0xf]
    %v5901 = vld [vmem:[%s59 + $0x160] sm:$0xf]
    %v5902 = vld [vmem:[%s59 + $0x164] sm:$0xf]
    %v5903 = vld [vmem:[%s59 + $0x168] sm:$0xf]
    %v5904 = vld [vmem:[%s59 + $0x16c] sm:$0xf]
    %v5905 = vld [vmem:[%s59 + $0x170] sm:$0xf]
    %v5906 = vld [vmem:[%s59 + $0x174] sm:$0xf]
    %v5907 = vld [vmem:[%s59 + $0x178] sm:$0xf]
    %v5908 = vld [vmem:[%s59 + $0x17c] sm:$0xf]
    %v5909 = vld [vmem:[%s59 + $0x180] sm:$0xf]
    %v5910 = vld [vmem:[%s59 + $0x184] sm:$0xf]
    %v5911 = vld [vmem:[%s59 + $0x188] sm:$0xf]
    %v5912 = vld [vmem:[%s59 + $0x18c] sm:$0xf]
    %v5913 = vld [vmem:[%s59 + $0x190] sm:$0xf]
    %v5914 = vld [vmem:[%s59 + $0x194] sm:$0xf]
    %v5915 = vld [vmem:[%s59 + $0x198] sm:$0xf]
    %v5916 = vld [vmem:[%s59 + $0x19c] sm:$0xf]
    %v5917 = vld [vmem:[%s59 + $0x1a0] sm:$0xf]
    %v5918 = vld [vmem:[%s59 + $0x1a4] sm:$0xf]
    %v5919 = vld [vmem:[%s59 + $0x1a8] sm:$0xf]
    %v5920 = vld [vmem:[%s59 + $0x1ac] sm:$0xf]
    %v5921 = vld [vmem:[%s59 + $0x1b0] sm:$0xf]
    %v5922 = vld [vmem:[%s59 + $0x1b4] sm:$0xf]
    %v5923 = vld [vmem:[%s59 + $0x1b8] sm:$0xf]
    %v5924 = vld [vmem:[%s59 + $0x1bc] sm:$0xf]
    %v5925 = vld [vmem:[%s59 + $0x1c0] sm:$0xf]
    %v5926 = vld [vmem:[%s59 + $0x1c4] sm:$0xf]
    %v5927 = vld [vmem:[%s59 + $0x1c8] sm:$0xf]
    %v5928 = vld [vmem:[%s59 + $0x1cc] sm:$0xf]
    %v5929 = vld [vmem:[%s59 + $0x1d0] sm:$0xf]
    %v5930 = vld [vmem:[%s59 + $0x1d4] sm:$0xf]
    %v5931 = vld [vmem:[%s59 + $0x1d8] sm:$0xf]
    %v5932 = vld [vmem:[%s59 + $0x1dc] sm:$0xf]
    %v5933 = vld [vmem:[%s59 + $0x1e0] sm:$0xf]
    %v5934 = vld [vmem:[%s59 + $0x1e4] sm:$0xf]
    %v5935 = vld [vmem:[%s59 + $0x1e8] sm:$0xf]
    %v5936 = vld [vmem:[%s59 + $0x1ec] sm:$0xf]
    %v5937 = vld [vmem:[%s59 + $0x1f0] sm:$0xf]
    %v5938 = vld [vmem:[%s59 + $0x1f4] sm:$0xf]
    %v5939 = vld [vmem:[%s59 + $0x1f8] sm:$0xf]
    %v5940 = vld [vmem:[%s59 + $0x1fc] sm:$0xf]
    %v5941 = vld [vmem:[%s59 + $0x200] sm:$0xf]
    %v5942 = vld [vmem:[%s59 + $0x204] sm:$0xf]
    %v5943 = vld [vmem:[%s59 + $0x208] sm:$0xf]
    %v5944 = vld [vmem:[%s59 + $0x20c] sm:$0xf]
    %v5945 = vld [vmem:[%s59 + $0x210] sm:$0xf]
    %v5946 = vld [vmem:[%s59 + $0x214] sm:$0xf]
    %v5947 = vld [vmem:[%s59 + $0x218] sm:$0xf]
    %v5948 = vld [vmem:[%s59 + $0x21c] sm:$0xf]
    %v5949 = vld [vmem:[%s59 + $0x220] sm:$0xf]
    %v5950 = vld [vmem:[%s59 + $0x224] sm:$0xf]
    %v5951 = vld [vmem:[%s59 + $0x228] sm:$0xf]
    %v5952 = vld [vmem:[%s59 + $0x22c] sm:$0xf]
    %v5953 = vld [vmem:[%s59 + $0x230] sm:$0xf]
    %v5954 = vld [vmem:[%s59 + $0x234] sm:$0xf]
    %v5955 = vld [vmem:[%s59 + $0x238] sm:$0xf]
    %v5956 = vld [vmem:[%s59 + $0x23c] sm:$0xf]
    %v5957 = vld [vmem:[%s59 + $0x240] sm:$0xf]
    %v5958 = vld [vmem:[%s59 + $0x244] sm:$0xf]
    %v5959 = vld [vmem:[%s59 + $0x248] sm:$0xf]
    %v5960 = vld [vmem:[%s59 + $0x24c] sm:$0xf]
    %v5961 = vld [vmem:[%s59 + $0x250] sm:$0xf]
    %v5962 = vld [vmem:[%s59 + $0x254] sm:$0xf]
    %v5963 = vld [vmem:[%s59 + $0x258] sm:$0xf]
    %v5964 = vld [vmem:[%s59 + $0x25c] sm:$0xf]
    %v5965 = vld [vmem:[%s59 + $0x260] sm:$0xf]
    %v5966 = vld [vmem:[%s59 + $0x264] sm:$0xf]
    %v5967 = vld [vmem:[%s59 + $0x268] sm:$0xf]
    %v5968 = vld [vmem:[%s59 + $0x26c] sm:$0xf]
    %v5969 = vld [vmem:[%s59 + $0x270] sm:$0xf]
    %v5970 = vld [vmem:[%s59 + $0x274] sm:$0xf]
    %v5971 = vld [vmem:[%s59 + $0x278] sm:$0xf]
    %v5972 = vld [vmem:[%s59 + $0x27c] sm:$0xf]
    %v5973 = vld [vmem:[%s59 + $0x280] sm:$0xf]
    %v5974 = vld [vmem:[%s59 + $0x284] sm:$0xf]
    %v5975 = vld [vmem:[%s59 + $0x288] sm:$0xf]
    %v5976 = vld [vmem:[%s59 + $0x28c] sm:$0xf]
    %v5977 = vld [vmem:[%s59 + $0x290] sm:$0xf]
    %v5978 = vld [vmem:[%s59 + $0x294] sm:$0xf]
    %v5979 = vld [vmem:[%s59 + $0x298] sm:$0xf]
    %v5980 = vld [vmem:[%s59 + $0x29c] sm:$0xf]
    %v5981 = vld [vmem:[%s59 + $0x2a0] sm:$0xf]
    %v5982 = vld [vmem:[%s59 + $0x2a4] sm:$0xf]
    %v5983 = vld [vmem:[%s59 + $0x2a8] sm:$0xf]
    %v5984 = vld [vmem:[%s59 + $0x2ac] sm:$0xf]
    %v5985 = vld [vmem:[%s59 + $0x2b0] sm:$0xf]
    %v5986 = vld [vmem:[%s59 + $0x2b4] sm:$0xf]
    %v5987 = vld [vmem:[%s59 + $0x2b8] sm:$0xf]
    %v5988 = vld [vmem:[%s59 + $0x2bc] sm:$0xf]
    %v5989 = vld [vmem:[%s59 + $0x2c0] sm:$0xf]
    %v5990 = vld [vmem:[%s59 + $0x2c4] sm:$0xf]
    %v5991 = vld [vmem:[%s59 + $0x2c8] sm:$0xf]
    %v5992 = vld [vmem:[%s59 + $0x2cc] sm:$0xf]
    %v5993 = vld [vmem:[%s59 + $0x2d0] sm:$0xf]
    %v5994 = vld [vmem:[%s59 + $0x2d4] sm:$0xf]
    %v5995 = vld [vmem:[%s59 + $0x2d8] sm:$0xf]
    %v5996 = vld [vmem:[%s59 + $0x2dc] sm:$0xf]
    %v5997 = vld [vmem:[%s59 + $0x2e0] sm:$0xf]
    %v5998 = vld [vmem:[%s59 + $0x2e4] sm:$0xf]
    %v5999 = vld [vmem:[%s59 + $0x2e8] sm:$0xf]
    %v6000 = vld [vmem:[%s59 + $0x2ec] sm:$0xf]
    %v6001 = vld [vmem:[%s59 + $0x2f0] sm:$0xf]
    %v6002 = vld [vmem:[%s59 + $0x2f4] sm:$0xf]
    %v6003 = vld [vmem:[%s59 + $0x2f8] sm:$0xf]
    %v6004 = vld [vmem:[%s59 + $0x2fc] sm:$0xf]
    %v6005 = vld [vmem:[%s59 + $0x300] sm:$0xf]
    %v6006 = vld [vmem:[%s59 + $0x304] sm:$0xf]
    %v6007 = vld [vmem:[%s59 + $0x308] sm:$0xf]
    %v6008 = vld [vmem:[%s59 + $0x30c] sm:$0xf]
    %v6009 = vld [vmem:[%s59 + $0x310] sm:$0xf]
    %v6010 = vld [vmem:[%s59 + $0x314] sm:$0xf]
    %v6011 = vld [vmem:[%s59 + $0x318] sm:$0xf]
    %v6012 = vld [vmem:[%s59 + $0x31c] sm:$0xf]
    %v6013 = vld [vmem:[%s59 + $0x320] sm:$0xf]
    %v6014 = vld [vmem:[%s59 + $0x324] sm:$0xf]
    %v6015 = vld [vmem:[%s59 + $0x328] sm:$0xf]
    %v6016 = vld [vmem:[%s59 + $0x32c] sm:$0xf]
    %v6017 = vld [vmem:[%s59 + $0x330] sm:$0xf]
    %v6018 = vld [vmem:[%s59 + $0x334] sm:$0xf]
    %v6019 = vld [vmem:[%s59 + $0x338] sm:$0xf]
    %v6020 = vld [vmem:[%s59 + $0x33c] sm:$0xf]
    %v6021 = vld [vmem:[%s59 + $0x340] sm:$0xf]
    %v6022 = vld [vmem:[%s59 + $0x344] sm:$0xf]
    %v6023 = vld [vmem:[%s59 + $0x348] sm:$0xf]
    %v6024 = vld [vmem:[%s59 + $0x34c] sm:$0xf]
    %v6025 = vld [vmem:[%s59 + $0x350] sm:$0xf]
    %v6026 = vld [vmem:[%s59 + $0x354] sm:$0xf]
    %v6027 = vld [vmem:[%s59 + $0x358] sm:$0xf]
    %v6028 = vld [vmem:[%s59 + $0x35c] sm:$0xf]
    %v6029 = vld [vmem:[%s59 + $0x360] sm:$0xf]
    %v6030 = vld [vmem:[%s59 + $0x364] sm:$0xf]
    %v6031 = vld [vmem:[%s59 + $0x368] sm:$0xf]
    %v6032 = vld [vmem:[%s59 + $0x36c] sm:$0xf]
    %v6033 = vld [vmem:[%s59 + $0x370] sm:$0xf]
    %v6034 = vld [vmem:[%s59 + $0x374] sm:$0xf]
    %v6035 = vld [vmem:[%s59 + $0x378] sm:$0xf]
    %v6036 = vld [vmem:[%s59 + $0x37c] sm:$0xf]
    %v6037 = vld [vmem:[%s59 + $0x380] sm:$0xf]
    %v6038 = vld [vmem:[%s59 + $0x384] sm:$0xf]
    %v6039 = vld [vmem:[%s59 + $0x388] sm:$0xf]
    %v6040 = vld [vmem:[%s59 + $0x38c] sm:$0xf]
    %v6041 = vld [vmem:[%s59 + $0x390] sm:$0xf]
    %v6042 = vld [vmem:[%s59 + $0x394] sm:$0xf]
    %v6043 = vld [vmem:[%s59 + $0x398] sm:$0xf]
    %v6044 = vld [vmem:[%s59 + $0x39c] sm:$0xf]
    %v6045 = vld [vmem:[%s59 + $0x3a0] sm:$0xf]
    %v6046 = vld [vmem:[%s59 + $0x3a4] sm:$0xf]
    %v6047 = vld [vmem:[%s59 + $0x3a8] sm:$0xf]
    %v6048 = vld [vmem:[%s59 + $0x3ac] sm:$0xf]
    %v6049 = vld [vmem:[%s59 + $0x3b0] sm:$0xf]
    %v6050 = vld [vmem:[%s59 + $0x3b4] sm:$0xf]
    %v6051 = vld [vmem:[%s59 + $0x3b8] sm:$0xf]
    %v6052 = vld [vmem:[%s59 + $0x3bc] sm:$0xf]
    %v6053 = vld [vmem:[%s59 + $0x3c0] sm:$0xf]
    %v6054 = vld [vmem:[%s59 + $0x3c4] sm:$0xf]
    %v6055 = vld [vmem:[%s59 + $0x3c8] sm:$0xf]
    %v6056 = vld [vmem:[%s59 + $0x3cc] sm:$0xf]
    %v6057 = vld [vmem:[%s59 + $0x3d0] sm:$0xf]
    %v6058 = vld [vmem:[%s59 + $0x3d4] sm:$0xf]
    %v6059 = vld [vmem:[%s59 + $0x3d8] sm:$0xf]
    %v6060 = vld [vmem:[%s59 + $0x3dc] sm:$0xf]
    %v6061 = vld [vmem:[%s59 + $0x3e0] sm:$0xf]
    %v6062 = vld [vmem:[%s59 + $0x3e4] sm:$0xf]
    %v6063 = vld [vmem:[%s59 + $0x3e8] sm:$0xf]
    %v6064 = vld [vmem:[%s59 + $0x3ec] sm:$0xf]
    %v6065 = vld [vmem:[%s59 + $0x3f0] sm:$0xf]
    %v6066 = vld [vmem:[%s59 + $0x3f4] sm:$0xf]
    %v6067 = vld [vmem:[%s59 + $0x3f8] sm:$0xf]
    %v6068 = vld [vmem:[%s59 + $0x3fc] sm:$0xf]
    %v6069 = vld [vmem:[%s61] sm:$0x1]
    %v6071 = vperm.slane %v6069, 0
    %v6329 = vunpack.c.l.b16 %v5813
    %v6330 = vunpack.c.l.b16 %v5814
    %v6331 = vunpack.c.l.b16 %v5815
    %v6332 = vunpack.c.l.b16 %v5816
    %v6333 = vunpack.c.l.b16 %v5817
    %v6334 = vunpack.c.l.b16 %v5818
    %v6335 = vunpack.c.l.b16 %v5819
    %v6336 = vunpack.c.l.b16 %v5820
    %v6337 = vunpack.c.l.b16 %v5821
    %v6338 = vunpack.c.l.b16 %v5822
    %v6339 = vunpack.c.l.b16 %v5823
    %v6340 = vunpack.c.l.b16 %v5824
    %v6341 = vunpack.c.l.b16 %v5825
    %v6342 = vunpack.c.l.b16 %v5826
    %v6343 = vunpack.c.l.b16 %v5827
    %v6344 = vunpack.c.l.b16 %v5828
    %v6345 = vunpack.c.l.b16 %v5829
    %v6346 = vunpack.c.l.b16 %v5830
    %v6347 = vunpack.c.l.b16 %v5831
    %v6348 = vunpack.c.l.b16 %v5832
    %v6349 = vunpack.c.l.b16 %v5833
    %v6350 = vunpack.c.l.b16 %v5834
    %v6351 = vunpack.c.l.b16 %v5835
    %v6352 = vunpack.c.l.b16 %v5836
    %v6353 = vunpack.c.l.b16 %v5837
    %v6354 = vunpack.c.l.b16 %v5838
    %v6355 = vunpack.c.l.b16 %v5839
    %v6356 = vunpack.c.l.b16 %v5840
    %v6357 = vunpack.c.l.b16 %v5841
    %v6358 = vunpack.c.l.b16 %v5842
    %v6359 = vunpack.c.l.b16 %v5843
    %v6360 = vunpack.c.l.b16 %v5844
    %v6361 = vunpack.c.l.b16 %v5845
    %v6362 = vunpack.c.l.b16 %v5846
    %v6363 = vunpack.c.l.b16 %v5847
    %v6364 = vunpack.c.l.b16 %v5848
    %v6365 = vunpack.c.l.b16 %v5849
    %v6366 = vunpack.c.l.b16 %v5850
    %v6367 = vunpack.c.l.b16 %v5851
    %v6368 = vunpack.c.l.b16 %v5852
    %v6369 = vunpack.c.l.b16 %v5853
    %v6370 = vunpack.c.l.b16 %v5854
    %v6371 = vunpack.c.l.b16 %v5855
    %v6372 = vunpack.c.l.b16 %v5856
    %v6373 = vunpack.c.l.b16 %v5857
    %v6374 = vunpack.c.l.b16 %v5858
    %v6375 = vunpack.c.l.b16 %v5859
    %v6376 = vunpack.c.l.b16 %v5860
    %v6377 = vunpack.c.l.b16 %v5861
    %v6378 = vunpack.c.l.b16 %v5862
    %v6379 = vunpack.c.l.b16 %v5863
    %v6380 = vunpack.c.l.b16 %v5864
    %v6381 = vunpack.c.l.b16 %v5865
    %v6382 = vunpack.c.l.b16 %v5866
    %v6383 = vunpack.c.l.b16 %v5867
    %v6384 = vunpack.c.l.b16 %v5868
    %v6385 = vunpack.c.l.b16 %v5869
    %v6386 = vunpack.c.l.b16 %v5870
    %v6387 = vunpack.c.l.b16 %v5871
    %v6388 = vunpack.c.l.b16 %v5872
    %v6389 = vunpack.c.l.b16 %v5873
    %v6390 = vunpack.c.l.b16 %v5874
    %v6391 = vunpack.c.l.b16 %v5875
    %v6392 = vunpack.c.l.b16 %v5876
    %v6393 = vunpack.c.l.b16 %v5877
    %v6394 = vunpack.c.l.b16 %v5878
    %v6395 = vunpack.c.l.b16 %v5879
    %v6396 = vunpack.c.l.b16 %v5880
    %v6397 = vunpack.c.l.b16 %v5881
    %v6398 = vunpack.c.l.b16 %v5882
    %v6399 = vunpack.c.l.b16 %v5883
    %v6400 = vunpack.c.l.b16 %v5884
    %v6401 = vunpack.c.l.b16 %v5885
    %v6402 = vunpack.c.l.b16 %v5886
    %v6403 = vunpack.c.l.b16 %v5887
    %v6404 = vunpack.c.l.b16 %v5888
    %v6405 = vunpack.c.l.b16 %v5889
    %v6406 = vunpack.c.l.b16 %v5890
    %v6407 = vunpack.c.l.b16 %v5891
    %v6408 = vunpack.c.l.b16 %v5892
    %v6409 = vunpack.c.l.b16 %v5893
    %v6410 = vunpack.c.l.b16 %v5894
    %v6411 = vunpack.c.l.b16 %v5895
    %v6412 = vunpack.c.l.b16 %v5896
    %v6413 = vunpack.c.l.b16 %v5897
    %v6414 = vunpack.c.l.b16 %v5898
    %v6415 = vunpack.c.l.b16 %v5899
    %v6416 = vunpack.c.l.b16 %v5900
    %v6417 = vunpack.c.l.b16 %v5901
    %v6418 = vunpack.c.l.b16 %v5902
    %v6419 = vunpack.c.l.b16 %v5903
    %v6420 = vunpack.c.l.b16 %v5904
    %v6421 = vunpack.c.l.b16 %v5905
    %v6422 = vunpack.c.l.b16 %v5906
    %v6423 = vunpack.c.l.b16 %v5907
    %v6424 = vunpack.c.l.b16 %v5908
    %v6425 = vunpack.c.l.b16 %v5909
    %v6426 = vunpack.c.l.b16 %v5910
    %v6427 = vunpack.c.l.b16 %v5911
    %v6428 = vunpack.c.l.b16 %v5912
    %v6429 = vunpack.c.l.b16 %v5913
    %v6430 = vunpack.c.l.b16 %v5914
    %v6431 = vunpack.c.l.b16 %v5915
    %v6432 = vunpack.c.l.b16 %v5916
    %v6433 = vunpack.c.l.b16 %v5917
    %v6434 = vunpack.c.l.b16 %v5918
    %v6435 = vunpack.c.l.b16 %v5919
    %v6436 = vunpack.c.l.b16 %v5920
    %v6437 = vunpack.c.l.b16 %v5921
    %v6438 = vunpack.c.l.b16 %v5922
    %v6439 = vunpack.c.l.b16 %v5923
    %v6440 = vunpack.c.l.b16 %v5924
    %v6441 = vunpack.c.l.b16 %v5925
    %v6442 = vunpack.c.l.b16 %v5926
    %v6443 = vunpack.c.l.b16 %v5927
    %v6444 = vunpack.c.l.b16 %v5928
    %v6445 = vunpack.c.l.b16 %v5929
    %v6446 = vunpack.c.l.b16 %v5930
    %v6447 = vunpack.c.l.b16 %v5931
    %v6448 = vunpack.c.l.b16 %v5932
    %v6449 = vunpack.c.l.b16 %v5933
    %v6450 = vunpack.c.l.b16 %v5934
    %v6451 = vunpack.c.l.b16 %v5935
    %v6452 = vunpack.c.l.b16 %v5936
    %v6453 = vunpack.c.l.b16 %v5937
    %v6454 = vunpack.c.l.b16 %v5938
    %v6455 = vunpack.c.l.b16 %v5939
    %v6456 = vunpack.c.l.b16 %v5940
    %v6457 = vunpack.c.l.b16 %v5941
    %v6458 = vunpack.c.l.b16 %v5942
    %v6459 = vunpack.c.l.b16 %v5943
    %v6460 = vunpack.c.l.b16 %v5944
    %v6461 = vunpack.c.l.b16 %v5945
    %v6462 = vunpack.c.l.b16 %v5946
    %v6463 = vunpack.c.l.b16 %v5947
    %v6464 = vunpack.c.l.b16 %v5948
    %v6465 = vunpack.c.l.b16 %v5949
    %v6466 = vunpack.c.l.b16 %v5950
    %v6467 = vunpack.c.l.b16 %v5951
    %v6468 = vunpack.c.l.b16 %v5952
    %v6469 = vunpack.c.l.b16 %v5953
    %v6470 = vunpack.c.l.b16 %v5954
    %v6471 = vunpack.c.l.b16 %v5955
    %v6472 = vunpack.c.l.b16 %v5956
    %v6473 = vunpack.c.l.b16 %v5957
    %v6474 = vunpack.c.l.b16 %v5958
    %v6475 = vunpack.c.l.b16 %v5959
    %v6476 = vunpack.c.l.b16 %v5960
    %v6477 = vunpack.c.l.b16 %v5961
    %v6478 = vunpack.c.l.b16 %v5962
    %v6479 = vunpack.c.l.b16 %v5963
    %v6480 = vunpack.c.l.b16 %v5964
    %v6481 = vunpack.c.l.b16 %v5965
    %v6482 = vunpack.c.l.b16 %v5966
    %v6483 = vunpack.c.l.b16 %v5967
    %v6484 = vunpack.c.l.b16 %v5968
    %v6485 = vunpack.c.l.b16 %v5969
    %v6486 = vunpack.c.l.b16 %v5970
    %v6487 = vunpack.c.l.b16 %v5971
    %v6488 = vunpack.c.l.b16 %v5972
    %v6489 = vunpack.c.l.b16 %v5973
    %v6490 = vunpack.c.l.b16 %v5974
    %v6491 = vunpack.c.l.b16 %v5975
    %v6492 = vunpack.c.l.b16 %v5976
    %v6493 = vunpack.c.l.b16 %v5977
    %v6494 = vunpack.c.l.b16 %v5978
    %v6495 = vunpack.c.l.b16 %v5979
    %v6496 = vunpack.c.l.b16 %v5980
    %v6497 = vunpack.c.l.b16 %v5981
    %v6498 = vunpack.c.l.b16 %v5982
    %v6499 = vunpack.c.l.b16 %v5983
    %v6500 = vunpack.c.l.b16 %v5984
    %v6501 = vunpack.c.l.b16 %v5985
    %v6502 = vunpack.c.l.b16 %v5986
    %v6503 = vunpack.c.l.b16 %v5987
    %v6504 = vunpack.c.l.b16 %v5988
    %v6505 = vunpack.c.l.b16 %v5989
    %v6506 = vunpack.c.l.b16 %v5990
    %v6507 = vunpack.c.l.b16 %v5991
    %v6508 = vunpack.c.l.b16 %v5992
    %v6509 = vunpack.c.l.b16 %v5993
    %v6510 = vunpack.c.l.b16 %v5994
    %v6511 = vunpack.c.l.b16 %v5995
    %v6512 = vunpack.c.l.b16 %v5996
    %v6513 = vunpack.c.l.b16 %v5997
    %v6514 = vunpack.c.l.b16 %v5998
    %v6515 = vunpack.c.l.b16 %v5999
    %v6516 = vunpack.c.l.b16 %v6000
    %v6517 = vunpack.c.l.b16 %v6001
    %v6518 = vunpack.c.l.b16 %v6002
    %v6519 = vunpack.c.l.b16 %v6003
    %v6520 = vunpack.c.l.b16 %v6004
    %v6521 = vunpack.c.l.b16 %v6005
    %v6522 = vunpack.c.l.b16 %v6006
    %v6523 = vunpack.c.l.b16 %v6007
    %v6524 = vunpack.c.l.b16 %v6008
    %v6525 = vunpack.c.l.b16 %v6009
    %v6526 = vunpack.c.l.b16 %v6010
    %v6527 = vunpack.c.l.b16 %v6011
    %v6528 = vunpack.c.l.b16 %v6012
    %v6529 = vunpack.c.l.b16 %v6013
    %v6530 = vunpack.c.l.b16 %v6014
    %v6531 = vunpack.c.l.b16 %v6015
    %v6532 = vunpack.c.l.b16 %v6016
    %v6533 = vunpack.c.l.b16 %v6017
    %v6534 = vunpack.c.l.b16 %v6018
    %v6535 = vunpack.c.l.b16 %v6019
    %v6536 = vunpack.c.l.b16 %v6020
    %v6537 = vunpack.c.l.b16 %v6021
    %v6538 = vunpack.c.l.b16 %v6022
    %v6539 = vunpack.c.l.b16 %v6023
    %v6540 = vunpack.c.l.b16 %v6024
    %v6541 = vunpack.c.l.b16 %v6025
    %v6542 = vunpack.c.l.b16 %v6026
    %v6543 = vunpack.c.l.b16 %v6027
    %v6544 = vunpack.c.l.b16 %v6028
    %v6545 = vunpack.c.l.b16 %v6029
    %v6546 = vunpack.c.l.b16 %v6030
    %v6547 = vunpack.c.l.b16 %v6031
    %v6548 = vunpack.c.l.b16 %v6032
    %v6549 = vunpack.c.l.b16 %v6033
    %v6550 = vunpack.c.l.b16 %v6034
    %v6551 = vunpack.c.l.b16 %v6035
    %v6552 = vunpack.c.l.b16 %v6036
    %v6553 = vunpack.c.l.b16 %v6037
    %v6554 = vunpack.c.l.b16 %v6038
    %v6555 = vunpack.c.l.b16 %v6039
    %v6556 = vunpack.c.l.b16 %v6040
    %v6557 = vunpack.c.l.b16 %v6041
    %v6558 = vunpack.c.l.b16 %v6042
    %v6559 = vunpack.c.l.b16 %v6043
    %v6560 = vunpack.c.l.b16 %v6044
    %v6561 = vunpack.c.l.b16 %v6045
    %v6562 = vunpack.c.l.b16 %v6046
    %v6563 = vunpack.c.l.b16 %v6047
    %v6564 = vunpack.c.l.b16 %v6048
    %v6565 = vunpack.c.l.b16 %v6049
    %v6566 = vunpack.c.l.b16 %v6050
    %v6567 = vunpack.c.l.b16 %v6051
    %v6568 = vunpack.c.l.b16 %v6052
    %v6569 = vunpack.c.l.b16 %v6053
    %v6570 = vunpack.c.l.b16 %v6054
    %v6571 = vunpack.c.l.b16 %v6055
    %v6572 = vunpack.c.l.b16 %v6056
    %v6573 = vunpack.c.l.b16 %v6057
    %v6574 = vunpack.c.l.b16 %v6058
    %v6575 = vunpack.c.l.b16 %v6059
    %v6576 = vunpack.c.l.b16 %v6060
    %v6577 = vunpack.c.l.b16 %v6061
    %v6578 = vunpack.c.l.b16 %v6062
    %v6579 = vunpack.c.l.b16 %v6063
    %v6580 = vunpack.c.l.b16 %v6064
    %v6581 = vunpack.c.l.b16 %v6065
    %v6582 = vunpack.c.l.b16 %v6066
    %v6583 = vunpack.c.l.b16 %v6067
    %v6584 = vunpack.c.l.b16 %v6068
    %v6585 = vpack.c.b16 %v6330, %v6329
    %v6586 = vpack.c.b16 %v6332, %v6331
    %v6587 = vpack.c.b16 %v6334, %v6333
    %v6588 = vpack.c.b16 %v6336, %v6335
    %v6589 = vpack.c.b16 %v6338, %v6337
    %v6590 = vpack.c.b16 %v6340, %v6339
    %v6591 = vpack.c.b16 %v6342, %v6341
    %v6592 = vpack.c.b16 %v6344, %v6343
    %v6593 = vpack.c.b16 %v6346, %v6345
    %v6594 = vpack.c.b16 %v6348, %v6347
    %v6595 = vpack.c.b16 %v6350, %v6349
    %v6596 = vpack.c.b16 %v6352, %v6351
    %v6597 = vpack.c.b16 %v6354, %v6353
    %v6598 = vpack.c.b16 %v6356, %v6355
    %v6599 = vpack.c.b16 %v6358, %v6357
    %v6600 = vpack.c.b16 %v6360, %v6359
    %v6601 = vpack.c.b16 %v6362, %v6361
    %v6602 = vpack.c.b16 %v6364, %v6363
    %v6603 = vpack.c.b16 %v6366, %v6365
    %v6604 = vpack.c.b16 %v6368, %v6367
    %v6605 = vpack.c.b16 %v6370, %v6369
    %v6606 = vpack.c.b16 %v6372, %v6371
    %v6607 = vpack.c.b16 %v6374, %v6373
    %v6608 = vpack.c.b16 %v6376, %v6375
    %v6609 = vpack.c.b16 %v6378, %v6377
    %v6610 = vpack.c.b16 %v6380, %v6379
    %v6611 = vpack.c.b16 %v6382, %v6381
    %v6612 = vpack.c.b16 %v6384, %v6383
    %v6613 = vpack.c.b16 %v6386, %v6385
    %v6614 = vpack.c.b16 %v6388, %v6387
    %v6615 = vpack.c.b16 %v6390, %v6389
    %v6616 = vpack.c.b16 %v6392, %v6391
    %v6617 = vpack.c.b16 %v6394, %v6393
    %v6618 = vpack.c.b16 %v6396, %v6395
    %v6619 = vpack.c.b16 %v6398, %v6397
    %v6620 = vpack.c.b16 %v6400, %v6399
    %v6621 = vpack.c.b16 %v6402, %v6401
    %v6622 = vpack.c.b16 %v6404, %v6403
    %v6623 = vpack.c.b16 %v6406, %v6405
    %v6624 = vpack.c.b16 %v6408, %v6407
    %v6625 = vpack.c.b16 %v6410, %v6409
    %v6626 = vpack.c.b16 %v6412, %v6411
    %v6627 = vpack.c.b16 %v6414, %v6413
    %v6628 = vpack.c.b16 %v6416, %v6415
    %v6629 = vpack.c.b16 %v6418, %v6417
    %v6630 = vpack.c.b16 %v6420, %v6419
    %v6631 = vpack.c.b16 %v6422, %v6421
    %v6632 = vpack.c.b16 %v6424, %v6423
    %v6633 = vpack.c.b16 %v6426, %v6425
    %v6634 = vpack.c.b16 %v6428, %v6427
    %v6635 = vpack.c.b16 %v6430, %v6429
    %v6636 = vpack.c.b16 %v6432, %v6431
    %v6637 = vpack.c.b16 %v6434, %v6433
    %v6638 = vpack.c.b16 %v6436, %v6435
    %v6639 = vpack.c.b16 %v6438, %v6437
    %v6640 = vpack.c.b16 %v6440, %v6439
    %v6641 = vpack.c.b16 %v6442, %v6441
    %v6642 = vpack.c.b16 %v6444, %v6443
    %v6643 = vpack.c.b16 %v6446, %v6445
    %v6644 = vpack.c.b16 %v6448, %v6447
    %v6645 = vpack.c.b16 %v6450, %v6449
    %v6646 = vpack.c.b16 %v6452, %v6451
    %v6647 = vpack.c.b16 %v6454, %v6453
    %v6648 = vpack.c.b16 %v6456, %v6455
    %v6649 = vpack.c.b16 %v6458, %v6457
    %v6650 = vpack.c.b16 %v6460, %v6459
    %v6651 = vpack.c.b16 %v6462, %v6461
    %v6652 = vpack.c.b16 %v6464, %v6463
    %v6653 = vpack.c.b16 %v6466, %v6465
    %v6654 = vpack.c.b16 %v6468, %v6467
    %v6655 = vpack.c.b16 %v6470, %v6469
    %v6656 = vpack.c.b16 %v6472, %v6471
    %v6657 = vpack.c.b16 %v6474, %v6473
    %v6658 = vpack.c.b16 %v6476, %v6475
    %v6659 = vpack.c.b16 %v6478, %v6477
    %v6660 = vpack.c.b16 %v6480, %v6479
    %v6661 = vpack.c.b16 %v6482, %v6481
    %v6662 = vpack.c.b16 %v6484, %v6483
    %v6663 = vpack.c.b16 %v6486, %v6485
    %v6664 = vpack.c.b16 %v6488, %v6487
    %v6665 = vpack.c.b16 %v6490, %v6489
    %v6666 = vpack.c.b16 %v6492, %v6491
    %v6667 = vpack.c.b16 %v6494, %v6493
    %v6668 = vpack.c.b16 %v6496, %v6495
    %v6669 = vpack.c.b16 %v6498, %v6497
    %v6670 = vpack.c.b16 %v6500, %v6499
    %v6671 = vpack.c.b16 %v6502, %v6501
    %v6672 = vpack.c.b16 %v6504, %v6503
    %v6673 = vpack.c.b16 %v6506, %v6505
    %v6674 = vpack.c.b16 %v6508, %v6507
    %v6675 = vpack.c.b16 %v6510, %v6509
    %v6676 = vpack.c.b16 %v6512, %v6511
    %v6677 = vpack.c.b16 %v6514, %v6513
    %v6678 = vpack.c.b16 %v6516, %v6515
    %v6679 = vpack.c.b16 %v6518, %v6517
    %v6680 = vpack.c.b16 %v6520, %v6519
    %v6681 = vpack.c.b16 %v6522, %v6521
    %v6682 = vpack.c.b16 %v6524, %v6523
    %v6683 = vpack.c.b16 %v6526, %v6525
    %v6684 = vpack.c.b16 %v6528, %v6527
    %v6685 = vpack.c.b16 %v6530, %v6529
    %v6686 = vpack.c.b16 %v6532, %v6531
    %v6687 = vpack.c.b16 %v6534, %v6533
    %v6688 = vpack.c.b16 %v6536, %v6535
    %v6689 = vpack.c.b16 %v6538, %v6537
    %v6690 = vpack.c.b16 %v6540, %v6539
    %v6691 = vpack.c.b16 %v6542, %v6541
    %v6692 = vpack.c.b16 %v6544, %v6543
    %v6693 = vpack.c.b16 %v6546, %v6545
    %v6694 = vpack.c.b16 %v6548, %v6547
    %v6695 = vpack.c.b16 %v6550, %v6549
    %v6696 = vpack.c.b16 %v6552, %v6551
    %v6697 = vpack.c.b16 %v6554, %v6553
    %v6698 = vpack.c.b16 %v6556, %v6555
    %v6699 = vpack.c.b16 %v6558, %v6557
    %v6700 = vpack.c.b16 %v6560, %v6559
    %v6701 = vpack.c.b16 %v6562, %v6561
    %v6702 = vpack.c.b16 %v6564, %v6563
    %v6703 = vpack.c.b16 %v6566, %v6565
    %v6704 = vpack.c.b16 %v6568, %v6567
    %v6705 = vpack.c.b16 %v6570, %v6569
    %v6706 = vpack.c.b16 %v6572, %v6571
    %v6707 = vpack.c.b16 %v6574, %v6573
    %v6708 = vpack.c.b16 %v6576, %v6575
    %v6709 = vpack.c.b16 %v6578, %v6577
    %v6710 = vpack.c.b16 %v6580, %v6579
    %v6711 = vpack.c.b16 %v6582, %v6581
    %v6712 = vpack.c.b16 %v6584, %v6583
    %6841 = vmatpush.bf16.msra.mxu0 %v6592
    %6842 = vmatpush.bf16.msra.mxu0 %v6591
    %6843 = vmatpush.bf16.msra.mxu0 %v6590
    %6844 = vmatpush.bf16.msra.mxu0 %v6589
    %6845 = vmatpush.bf16.msra.mxu0 %v6588
    %6846 = vmatpush.bf16.msra.mxu0 %v6587
    %6847 = vmatpush.bf16.msra.mxu0 %v6586
    %6848 = vmatpush.bf16.msra.mxu0 %v6585
    %6849 = vmatmul.bf16.gmra.mxu0 %v5797
    %v6850 = vpop.f32.mrf.mxu0
    %v6851 = vadd.f32 %v6071, %v6850
    %v6852 = vpop.f32.mrf.mxu0
    %v6853 = vadd.f32 %v6071, %v6852
    %6854 = vdwg.mxu0
    %6855 = vmatpush.bf16.msra.mxu0 %v6600
    %6856 = vmatpush.bf16.msra.mxu0 %v6599
    %6857 = vmatpush.bf16.msra.mxu0 %v6598
    %6858 = vmatpush.bf16.msra.mxu0 %v6597
    %6859 = vmatpush.bf16.msra.mxu0 %v6596
    %6860 = vmatpush.bf16.msra.mxu0 %v6595
    %6861 = vmatpush.bf16.msra.mxu0 %v6594
    %6862 = vmatpush.bf16.msra.mxu0 %v6593
    %6863 = vmatmul.bf16.gmra.mxu0 %v5798
    %v6864 = vpop.f32.mrf.mxu0
    %v6865 = vadd.f32 %v6851, %v6864
    %v6866 = vpop.f32.mrf.mxu0
    %v6867 = vadd.f32 %v6853, %v6866
    %6868 = vdwg.mxu0
    %6869 = vmatpush.bf16.msra.mxu0 %v6608
    %6870 = vmatpush.bf16.msra.mxu0 %v6607
    %6871 = vmatpush.bf16.msra.mxu0 %v6606
    %6872 = vmatpush.bf16.msra.mxu0 %v6605
    %6873 = vmatpush.bf16.msra.mxu0 %v6604
    %6874 = vmatpush.bf16.msra.mxu0 %v6603
    %6875 = vmatpush.bf16.msra.mxu0 %v6602
    %6876 = vmatpush.bf16.msra.mxu0 %v6601
    %6877 = vmatmul.bf16.gmra.mxu0 %v5799
    %v6878 = vpop.f32.mrf.mxu0
    %v6879 = vadd.f32 %v6865, %v6878
    %v6880 = vpop.f32.mrf.mxu0
    %v6881 = vadd.f32 %v6867, %v6880
    %6882 = vdwg.mxu0
    %6883 = vmatpush.bf16.msra.mxu0 %v6616
    %6884 = vmatpush.bf16.msra.mxu0 %v6615
    %6885 = vmatpush.bf16.msra.mxu0 %v6614
    %6886 = vmatpush.bf16.msra.mxu0 %v6613
    %6887 = vmatpush.bf16.msra.mxu0 %v6612
    %6888 = vmatpush.bf16.msra.mxu0 %v6611
    %6889 = vmatpush.bf16.msra.mxu0 %v6610
    %6890 = vmatpush.bf16.msra.mxu0 %v6609
    %6891 = vmatmul.bf16.gmra.mxu0 %v5800
    %v6892 = vpop.f32.mrf.mxu0
    %v6893 = vadd.f32 %v6879, %v6892
    %v6894 = vpop.f32.mrf.mxu0
    %v6895 = vadd.f32 %v6881, %v6894
    %6896 = vdwg.mxu0
    %6897 = vmatpush.bf16.msra.mxu0 %v6624
    %6898 = vmatpush.bf16.msra.mxu0 %v6623
    %6899 = vmatpush.bf16.msra.mxu0 %v6622
    %6900 = vmatpush.bf16.msra.mxu0 %v6621
    %6901 = vmatpush.bf16.msra.mxu0 %v6620
    %6902 = vmatpush.bf16.msra.mxu0 %v6619
    %6903 = vmatpush.bf16.msra.mxu0 %v6618
    %6904 = vmatpush.bf16.msra.mxu0 %v6617
    %6905 = vmatmul.bf16.gmra.mxu0 %v5801
    %v6906 = vpop.f32.mrf.mxu0
    %v6907 = vadd.f32 %v6893, %v6906
    %v6908 = vpop.f32.mrf.mxu0
    %v6909 = vadd.f32 %v6895, %v6908
    %6910 = vdwg.mxu0
    %6911 = vmatpush.bf16.msra.mxu0 %v6632
    %6912 = vmatpush.bf16.msra.mxu0 %v6631
    %6913 = vmatpush.bf16.msra.mxu0 %v6630
    %6914 = vmatpush.bf16.msra.mxu0 %v6629
    %6915 = vmatpush.bf16.msra.mxu0 %v6628
    %6916 = vmatpush.bf16.msra.mxu0 %v6627
    %6917 = vmatpush.bf16.msra.mxu0 %v6626
    %6918 = vmatpush.bf16.msra.mxu0 %v6625
    %6919 = vmatmul.bf16.gmra.mxu0 %v5802
    %v6920 = vpop.f32.mrf.mxu0
    %v6921 = vadd.f32 %v6907, %v6920
    %v6922 = vpop.f32.mrf.mxu0
    %v6923 = vadd.f32 %v6909, %v6922
    %6924 = vdwg.mxu0
    %6925 = vmatpush.bf16.msra.mxu0 %v6640
    %6926 = vmatpush.bf16.msra.mxu0 %v6639
    %6927 = vmatpush.bf16.msra.mxu0 %v6638
    %6928 = vmatpush.bf16.msra.mxu0 %v6637
    %6929 = vmatpush.bf16.msra.mxu0 %v6636
    %6930 = vmatpush.bf16.msra.mxu0 %v6635
    %6931 = vmatpush.bf16.msra.mxu0 %v6634
    %6932 = vmatpush.bf16.msra.mxu0 %v6633
    %6933 = vmatmul.bf16.gmra.mxu0 %v5803
    %v6934 = vpop.f32.mrf.mxu0
    %v6935 = vadd.f32 %v6921, %v6934
    %v6936 = vpop.f32.mrf.mxu0
    %v6937 = vadd.f32 %v6923, %v6936
    %6938 = vdwg.mxu0
    %6939 = vmatpush.bf16.msra.mxu0 %v6648
    %6940 = vmatpush.bf16.msra.mxu0 %v6647
    %6941 = vmatpush.bf16.msra.mxu0 %v6646
    %6942 = vmatpush.bf16.msra.mxu0 %v6645
    %6943 = vmatpush.bf16.msra.mxu0 %v6644
    %6944 = vmatpush.bf16.msra.mxu0 %v6643
    %6945 = vmatpush.bf16.msra.mxu0 %v6642
    %6946 = vmatpush.bf16.msra.mxu0 %v6641
    %6947 = vmatmul.bf16.gmra.mxu0 %v5804
    %v6948 = vpop.f32.mrf.mxu0
    %v6949 = vadd.f32 %v6935, %v6948
    %v6950 = vpop.f32.mrf.mxu0
    %v6951 = vadd.f32 %v6937, %v6950
    %6952 = vdwg.mxu0
    %6953 = vmatpush.bf16.msra.mxu0 %v6656
    %6954 = vmatpush.bf16.msra.mxu0 %v6655
    %6955 = vmatpush.bf16.msra.mxu0 %v6654
    %6956 = vmatpush.bf16.msra.mxu0 %v6653
    %6957 = vmatpush.bf16.msra.mxu0 %v6652
    %6958 = vmatpush.bf16.msra.mxu0 %v6651
    %6959 = vmatpush.bf16.msra.mxu0 %v6650
    %6960 = vmatpush.bf16.msra.mxu0 %v6649
    %6961 = vmatmul.bf16.gmra.mxu0 %v5805
    %v6962 = vpop.f32.mrf.mxu0
    %v6963 = vadd.f32 %v6949, %v6962
    %v6964 = vpop.f32.mrf.mxu0
    %v6965 = vadd.f32 %v6951, %v6964
    %6966 = vdwg.mxu0
    %6967 = vmatpush.bf16.msra.mxu0 %v6664
    %6968 = vmatpush.bf16.msra.mxu0 %v6663
    %6969 = vmatpush.bf16.msra.mxu0 %v6662
    %6970 = vmatpush.bf16.msra.mxu0 %v6661
    %6971 = vmatpush.bf16.msra.mxu0 %v6660
    %6972 = vmatpush.bf16.msra.mxu0 %v6659
    %6973 = vmatpush.bf16.msra.mxu0 %v6658
    %6974 = vmatpush.bf16.msra.mxu0 %v6657
    %6975 = vmatmul.bf16.gmra.mxu0 %v5806
    %v6976 = vpop.f32.mrf.mxu0
    %v6977 = vadd.f32 %v6963, %v6976
    %v6978 = vpop.f32.mrf.mxu0
    %v6979 = vadd.f32 %v6965, %v6978
    %6980 = vdwg.mxu0
    %6981 = vmatpush.bf16.msra.mxu0 %v6672
    %6982 = vmatpush.bf16.msra.mxu0 %v6671
    %6983 = vmatpush.bf16.msra.mxu0 %v6670
    %6984 = vmatpush.bf16.msra.mxu0 %v6669
    %6985 = vmatpush.bf16.msra.mxu0 %v6668
    %6986 = vmatpush.bf16.msra.mxu0 %v6667
    %6987 = vmatpush.bf16.msra.mxu0 %v6666
    %6988 = vmatpush.bf16.msra.mxu0 %v6665
    %6989 = vmatmul.bf16.gmra.mxu0 %v5807
    %v6990 = vpop.f32.mrf.mxu0
    %v6991 = vadd.f32 %v6977, %v6990
    %v6992 = vpop.f32.mrf.mxu0
    %v6993 = vadd.f32 %v6979, %v6992
    %6994 = vdwg.mxu0
    %6995 = vmatpush.bf16.msra.mxu0 %v6680
    %6996 = vmatpush.bf16.msra.mxu0 %v6679
    %6997 = vmatpush.bf16.msra.mxu0 %v6678
    %6998 = vmatpush.bf16.msra.mxu0 %v6677
    %6999 = vmatpush.bf16.msra.mxu0 %v6676
    %7000 = vmatpush.bf16.msra.mxu0 %v6675
    %7001 = vmatpush.bf16.msra.mxu0 %v6674
    %7002 = vmatpush.bf16.msra.mxu0 %v6673
    %7003 = vmatmul.bf16.gmra.mxu0 %v5808
    %v7004 = vpop.f32.mrf.mxu0
    %v7005 = vadd.f32 %v6991, %v7004
    %v7006 = vpop.f32.mrf.mxu0
    %v7007 = vadd.f32 %v6993, %v7006
    %7008 = vdwg.mxu0
    %7009 = vmatpush.bf16.msra.mxu0 %v6688
    %7010 = vmatpush.bf16.msra.mxu0 %v6687
    %7011 = vmatpush.bf16.msra.mxu0 %v6686
    %7012 = vmatpush.bf16.msra.mxu0 %v6685
    %7013 = vmatpush.bf16.msra.mxu0 %v6684
    %7014 = vmatpush.bf16.msra.mxu0 %v6683
    %7015 = vmatpush.bf16.msra.mxu0 %v6682
    %7016 = vmatpush.bf16.msra.mxu0 %v6681
    %7017 = vmatmul.bf16.gmra.mxu0 %v5809
    %v7018 = vpop.f32.mrf.mxu0
    %v7019 = vadd.f32 %v7005, %v7018
    %v7020 = vpop.f32.mrf.mxu0
    %v7021 = vadd.f32 %v7007, %v7020
    %7022 = vdwg.mxu0
    %7023 = vmatpush.bf16.msra.mxu0 %v6696
    %7024 = vmatpush.bf16.msra.mxu0 %v6695
    %7025 = vmatpush.bf16.msra.mxu0 %v6694
    %7026 = vmatpush.bf16.msra.mxu0 %v6693
    %7027 = vmatpush.bf16.msra.mxu0 %v6692
    %7028 = vmatpush.bf16.msra.mxu0 %v6691
    %7029 = vmatpush.bf16.msra.mxu0 %v6690
    %7030 = vmatpush.bf16.msra.mxu0 %v6689
    %7031 = vmatmul.bf16.gmra.mxu0 %v5810
    %v7032 = vpop.f32.mrf.mxu0
    %v7033 = vadd.f32 %v7019, %v7032
    %v7034 = vpop.f32.mrf.mxu0
    %v7035 = vadd.f32 %v7021, %v7034
    %7036 = vdwg.mxu0
    %7037 = vmatpush.bf16.msra.mxu0 %v6704
    %7038 = vmatpush.bf16.msra.mxu0 %v6703
    %7039 = vmatpush.bf16.msra.mxu0 %v6702
    %7040 = vmatpush.bf16.msra.mxu0 %v6701
    %7041 = vmatpush.bf16.msra.mxu0 %v6700
    %7042 = vmatpush.bf16.msra.mxu0 %v6699
    %7043 = vmatpush.bf16.msra.mxu0 %v6698
    %7044 = vmatpush.bf16.msra.mxu0 %v6697
    %7045 = vmatmul.bf16.gmra.mxu0 %v5811
    %v7046 = vpop.f32.mrf.mxu0
    %v7047 = vadd.f32 %v7033, %v7046
    %v7048 = vpop.f32.mrf.mxu0
    %v7049 = vadd.f32 %v7035, %v7048
    %7050 = vdwg.mxu0
    %7051 = vmatpush.bf16.msra.mxu0 %v6712
    %7052 = vmatpush.bf16.msra.mxu0 %v6711
    %7053 = vmatpush.bf16.msra.mxu0 %v6710
    %7054 = vmatpush.bf16.msra.mxu0 %v6709
    %7055 = vmatpush.bf16.msra.mxu0 %v6708
    %7056 = vmatpush.bf16.msra.mxu0 %v6707
    %7057 = vmatpush.bf16.msra.mxu0 %v6706
    %7058 = vmatpush.bf16.msra.mxu0 %v6705
    %7059 = vmatmul.bf16.gmra.mxu0 %v5812
    %v7060 = vpop.f32.mrf.mxu0
    %v7061 = vadd.f32 %v7047, %v7060
    %v7062 = vpop.f32.mrf.mxu0
    %v7063 = vadd.f32 %v7049, %v7062
    %7064 = vdwg.mxu0
    %v7065 = vadd.f32 %v5307, %v7061
    %v7066 = vadd.f32 %v5308, %v7063
    %v7067 = vsel %vm669, %v7065, 0.0
    %7068 = vadd.xlane.f32.xlu0 %v7067
    %v7069 = vpop.xlane.xlu0 %7068
    %v7070 = vsel %vm669, %v7066, 0.0
    %7071 = vadd.xlane.f32.xlu0 %v7070
    %v7072 = vpop.xlane.xlu0 %7071
    %v7073 = vmul.f32 %v7069, %v2494
    %v7074 = vmul.f32 %v7072, %v2494
    %v7075 = vsub.f32 %v7065, %v7073
    %v7076 = vsub.f32 %v7066, %v7074
    %v7077 = vmul.f32 %v7075, %v7075
    %v7078 = vmul.f32 %v7076, %v7076
    %v7079 = vsel %vm669, %v7077, 0.0
    %7080 = vadd.xlane.f32.xlu0 %v7079
    %v7081 = vpop.xlane.xlu0 %7080
    %v7082 = vsel %vm669, %v7078, 0.0
    %7083 = vadd.xlane.f32.xlu0 %v7082
    %v7084 = vpop.xlane.xlu0 %7083
    %v7085 = vmul.f32 %v7081, %v2494
    %v7086 = vmul.f32 %v7084, %v2494
    %v7087 = vadd.f32 %v7085, 1e-05
    %v7088 = vadd.f32 %v7086, 1e-05
    %v7089 = vrsqrt.pop %v7087
    %v7090 = vmul.f32 %v7089, %v7087
    %v7091 = vmul.f32 %v7090, %v7089
    %v7092 = vmul.f32 0.5, %v7091
    %v7093 = vsub.f32 1.5, %v7092
    %v7094 = vmul.f32 %v7089, %v7093
    %vm7095 = vweird.f32 %v7087
    %vm7096 = vweird.f32 %v7089
    %vm7097 = vmor %vm7095, %vm7096
    %v7098 = vsel %vm7097, %v7089, %v7094
    %v7099 = vrsqrt.pop %v7088
    %v7100 = vmul.f32 %v7099, %v7088
    %v7101 = vmul.f32 %v7100, %v7099
    %v7102 = vmul.f32 0.5, %v7101
    %v7103 = vsub.f32 1.5, %v7102
    %v7104 = vmul.f32 %v7099, %v7103
    %vm7105 = vweird.f32 %v7088
    %vm7106 = vweird.f32 %v7099
    %vm7107 = vmor %vm7105, %vm7106
    %v7108 = vsel %vm7107, %v7099, %v7104
    %v7109 = vmul.f32 %v7075, %v7098
    %v7110 = vmul.f32 %v7076, %v7108
    %v7111 = vld [vmem:[%s71] sm:$0x1]
    %v7113 = vperm.slane %v7111, 0
    %v7115 = vmul.f32 %v7109, %v7113
    %v7116 = vmul.f32 %v7110, %v7113
    %v7117 = vld [vmem:[%s73] sm:$0x1]
    %v7119 = vperm.slane %v7117, 0
    %v7121 = vadd.f32 %v7115, %v7119
    %v7122 = vadd.f32 %v7116, %v7119
    %vm7123 = vcmp.eq.s32.totalorder %v195, 0
    %vm7124 = vmand %vm7123, %vm699
    %vm7125 = vmand %vm7124, %vm726
    %v7126 = vsel %vm7125, 1.0, 0.0
    %p7127 = scmp.gt.s32.totalorder %s570, 1
    %s7128 = scalar_select %p7127, %s570, 1
    %s7129 = scvt.s32.f32 %s7128
    %v7130 = vstv %s7129
    %v7131 = vrcp.pop %v7130
    %v7132 = vmul.f32 %v7130, %v7131
    %v7133 = vsub.f32 1.0, %v7132
    %v7134 = vmul.f32 %v7131, %v7133
    %v7135 = vadd.f32 %v7131, %v7134
    %vm7136 = vweird.f32 %v7130
    %vm7137 = vweird.f32 %v7131
    %vm7138 = vmor %vm7136, %vm7137
    %v7139 = vsel %vm7138, %v7131, %v7135
    %v7140 = vand.u32 2147483647, %v7130
    %vm7141 = vcmp.eq.f32.partialorder %v7140, 8.507059e+37
    %v7142 = vand.u32 %v7130, 2147483648
    %v7143 = vor.u32 1.1754944e-38, %v7142
    %v7144 = vsel %vm7141, %v7143, %v7139
    %v7145 = vmul.f32 %v7126, %v7144
    %v7146 = vadd.f32 %v7145, 0.0
    %vm7147 = vcmp.eq.s32.totalorder %v195, 1
    %vm7148 = vmand %vm7147, %vm713
    %vm7149 = vmand %vm7148, %vm731
    %v7150 = vsel %vm7149, 1.0, 0.0
    %p7151 = scmp.gt.s32.totalorder %s571, 1
    %s7152 = scalar_select %p7151, %s571, 1
    %s7153 = scvt.s32.f32 %s7152
    %v7154 = vstv %s7153
    %v7155 = vrcp.pop %v7154
    %v7156 = vmul.f32 %v7154, %v7155
    %v7157 = vsub.f32 1.0, %v7156
    %v7158 = vmul.f32 %v7155, %v7157
    %v7159 = vadd.f32 %v7155, %v7158
    %vm7160 = vweird.f32 %v7154
    %vm7161 = vweird.f32 %v7155
    %vm7162 = vmor %vm7160, %vm7161
    %v7163 = vsel %vm7162, %v7155, %v7159
    %v7164 = vand.u32 2147483647, %v7154
    %vm7165 = vcmp.eq.f32.partialorder %v7164, 8.507059e+37
    %v7166 = vand.u32 %v7154, 2147483648
    %v7167 = vor.u32 1.1754944e-38, %v7166
    %v7168 = vsel %vm7165, %v7167, %v7163
    %v7169 = vmul.f32 %v7150, %v7168
    %v7170 = vadd.f32 %v7146, %v7169
    %v7172 = vsel %vm2242, %v7170, 0
    %7174 = vmatpush.msra.mxu0 0.0
    %7175 = vmatpush.msra.mxu0 0.0
    %7176 = vmatpush.msra.mxu0 0.0
    %7177 = vmatpush.msra.mxu0 0.0
    %7178 = vmatpush.msra.mxu0 0.0
    %7179 = vmatpush.msra.mxu0 0.0
    %7180 = vmatpush.msra.mxu0 0.0
    %7181 = vmatpush.msra.mxu0 0.0
    %7182 = vmatpush.msra.mxu0 0.0
    %7183 = vmatpush.msra.mxu0 0.0
    %7184 = vmatpush.msra.mxu0 0.0
    %7185 = vmatpush.msra.mxu0 0.0
    %7186 = vmatpush.msra.mxu0 0.0
    %7187 = vmatpush.msra.mxu0 0.0
    %7188 = vmatpush.msra.mxu0 %v7122
    %7189 = vmatpush.msra.mxu0 %v7121
    %7190 = vmatmul.f32.gmra.mxu0 %v7172
    %v7191 = vpop.f32.mrf.mxu0
    %v7192 = vadd.f32 0.0, %v7191
    %7193 = vdwg.mxu0
    %v7194 = vld [vmem:[%s75] sm:$0xff]
    %v7195 = vld [vmem:[%s75 + $0x8] sm:$0xff]
    %v7196 = vld [vmem:[%s75 + $0x10] sm:$0xff]
    %v7197 = vld [vmem:[%s75 + $0x18] sm:$0xff]
    %v7198 = vld [vmem:[%s77] sm:$0x1]
    %v7200 = vperm.slane %v7198, 0
    %v7203 = vsel %vm669, %v7192, 0
    %7205 = vmatpush.msra.mxu0 0.0
    %7206 = vmatpush.msra.mxu0 0.0
    %7207 = vmatpush.msra.mxu0 0.0
    %7208 = vmatpush.msra.mxu0 0.0
    %7209 = vmatpush.msra.mxu0 0.0
    %7210 = vmatpush.msra.mxu0 0.0
    %7211 = vmatpush.msra.mxu0 0.0
    %7212 = vmatpush.msra.mxu0 0.0
    %7213 = vmatpush.msra.mxu0 0.0
    %7214 = vmatpush.msra.mxu0 0.0
    %7215 = vmatpush.msra.mxu0 0.0
    %7216 = vmatpush.msra.mxu0 0.0
    %7217 = vmatpush.msra.mxu0 %v7197
    %7218 = vmatpush.msra.mxu0 %v7196
    %7219 = vmatpush.msra.mxu0 %v7195
    %7220 = vmatpush.msra.mxu0 %v7194
    %7221 = vmatmul.f32.gmra.mxu0 %v7203
    %v7222 = vpop.f32.mrf.mxu0
    %v7223 = vadd.f32 %v7200, %v7222
    %7224 = vdwg.mxu0
    %v7225 = vld [vmem:[%s79] sm:$0xff]
    %v7226 = vld [vmem:[%s79 + $0x8] sm:$0xff]
    %v7227 = vld [vmem:[#allocation5] sm:$0x1]
    %v7229 = vperm.slane %v7227, 0
    %v7232 = vsel %vm2242, %v7223, 0
    %7234 = vmatpush.msra.mxu0 0.0
    %7235 = vmatpush.msra.mxu0 0.0
    %7236 = vmatpush.msra.mxu0 0.0
    %7237 = vmatpush.msra.mxu0 0.0
    %7238 = vmatpush.msra.mxu0 0.0
    %7239 = vmatpush.msra.mxu0 0.0
    %7240 = vmatpush.msra.mxu0 0.0
    %7241 = vmatpush.msra.mxu0 0.0
    %7242 = vmatpush.msra.mxu0 0.0
    %7243 = vmatpush.msra.mxu0 0.0
    %7244 = vmatpush.msra.mxu0 0.0
    %7245 = vmatpush.msra.mxu0 0.0
    %7246 = vmatpush.msra.mxu0 0.0
    %7247 = vmatpush.msra.mxu0 0.0
    %7248 = vmatpush.msra.mxu0 %v7226
    %7249 = vmatpush.msra.mxu0 %v7225
    %7250 = vmatmul.f32.gmra.mxu0 %v7232
    %v7251 = vpop.f32.mrf.mxu0
    %v7252 = vadd.f32 %v7229, %v7251
    %7253 = vdwg.mxu0
    %v7254 = vadd.f32 %v7223, %v7252
    %7255 = vst [vmem:[%s83] sm:$0x3] %v7254
    // Predicated region
    $region162: #{splitbert_forward.1} parent=1 // pred_check
      _
    $region163: #{splitbert_forward.1} parent=1 // pred_check_branch
      %7257 = sbr.rel (0) target = $region165
    $region164: #{splitbert_forward.1} parent=1 // pred_region
      _
    $region165: #{splitbert_forward.1} parent=1 // pred_fallthru
      _
    // Predicated region
    $region166: #{splitbert_forward.1} parent=1 // pred_check
      _
    $region167: #{splitbert_forward.1} parent=1 // pred_check_branch
      %7259 = sbr.rel (0) target = $region169
    $region168: #{splitbert_forward.1} parent=1 // pred_region
      _
    $region169: #{splitbert_forward.1} parent=1 // pred_fallthru
      _
    %7260 = vsyncpa [#allocation6], 1

</llo_original>
